<compile_context>
chip_gen: v5e
topology: v5e:2x2
jax: 0.10.0
libtpu: 0.0.40
codegen_flags: <defaults>
</compile_context>

<pallas_src>
import functools

import jax
import jax.numpy as jnp
from jax import lax
from jax.experimental import pallas as pl
from jax.experimental.pallas import tpu as pltpu


# ----------------------------------------------------------------------------
# Helpers
# ----------------------------------------------------------------------------
def _round_up(x, m):
    return ((x + m - 1) // m) * m


def _pick_tm(M, cap):
    return M if M <= cap else cap


def _vmem_limit(nbytes):
    # 2x headroom, clamped to [8 MiB, 64 MiB] (64 MiB = v7x physical VMEM).
    return int(min(max(2 * nbytes, 8 * 1024 * 1024), 64 * 1024 * 1024))


# ----------------------------------------------------------------------------
# Pallas kernels
# ----------------------------------------------------------------------------
def _conv_bias_kernel(p_ref, w_ref, b_ref, y_ref, *, use_act, neg_slope):
    """y = patches @ W + b (+ optional LeakyReLU).  Whole-K dot, resident W."""
    y = jnp.dot(p_ref[...], w_ref[...], preferred_element_type=jnp.float32)
    y = y + b_ref[...]
    if use_act:
        y = jnp.where(y >= 0.0, y, neg_slope * y)
    y_ref[...] = y.astype(y_ref.dtype)


def _conv_stats_kernel(p_ref, w_ref, y_ref, st_ref, *, m_total, tm):
    """y = patches @ W (no bias, BN follows) + per-M-tile partial channel
    sum / sum-of-squares (masking rows past the true M on the last tile)."""
    i = pl.program_id(0)
    y = jnp.dot(p_ref[...], w_ref[...], preferred_element_type=jnp.float32)
    y_ref[...] = y.astype(y_ref.dtype)
    row = i * tm + lax.broadcasted_iota(jnp.int32, (tm, 1), 0)
    yv = jnp.where(row < m_total, y, 0.0)
    s1 = jnp.sum(yv, axis=0, keepdims=True)
    s2 = jnp.sum(yv * yv, axis=0, keepdims=True)
    st_ref[...] = jnp.concatenate([s1, s2], axis=0)


def _bn_act_kernel(y_ref, sc_ref, sh_ref, o_ref, *, use_act, neg_slope):
    """Apply y*scale + shift (folded BatchNorm) + optional LeakyReLU."""
    y = y_ref[...].astype(jnp.float32) * sc_ref[...] + sh_ref[...]
    if use_act:
        y = jnp.where(y >= 0.0, y, neg_slope * y)
    o_ref[...] = y.astype(o_ref.dtype)


# ----------------------------------------------------------------------------
# pallas_call wrappers
# ----------------------------------------------------------------------------
def _conv_matmul(patches, w_mat, bias, *, use_act, with_stats, out_dtype):
    """patches: (M, K) bf16, w_mat: (K, Cp) bf16, bias: (1, Cp) f32 or None."""
    M, K = patches.shape
    Cp = w_mat.shape[1]
    TM = _pick_tm(M, 512)
    grid_m = pl.cdiv(M, TM)

    p_spec = pl.BlockSpec((TM, K), lambda i: (i, 0))
    w_spec = pl.BlockSpec((K, Cp), lambda i: (0, 0))   # VMEM-resident weight

    out_bytes = jnp.dtype(out_dtype).itemsize
    vmem = (K * Cp * 2                       # resident weight (bf16)
            + 2 * TM * K * 2                 # double-buffered patches tile
            + 2 * TM * Cp * out_bytes        # double-buffered y tile
            + TM * Cp * 4                    # f32 dot result
            + 8 * Cp * 4)                    # bias / stats rows
    cparams = pltpu.CompilerParams(
        dimension_semantics=("parallel",),
        vmem_limit_bytes=_vmem_limit(vmem))

    if with_stats:
        kernel = functools.partial(_conv_stats_kernel, m_total=M, tm=TM)
        out_shape = (jax.ShapeDtypeStruct((M, Cp), out_dtype),
                     jax.ShapeDtypeStruct((grid_m, 2, Cp), jnp.float32))
        out_specs = (pl.BlockSpec((TM, Cp), lambda i: (i, 0)),
                     pl.BlockSpec((None, 2, Cp), lambda i: (i, 0, 0)))
        return pl.pallas_call(
            kernel,
            out_shape=out_shape,
            grid_spec=pltpu.PrefetchScalarGridSpec(
                num_scalar_prefetch=0, grid=(grid_m,),
                in_specs=[p_spec, w_spec], out_specs=out_specs),
            compiler_params=cparams,
        )(patches, w_mat)

    kernel = functools.partial(_conv_bias_kernel, use_act=use_act,
                               neg_slope=0.2)
    return pl.pallas_call(
        kernel,
        out_shape=jax.ShapeDtypeStruct((M, Cp), out_dtype),
        grid_spec=pltpu.PrefetchScalarGridSpec(
            num_scalar_prefetch=0, grid=(grid_m,),
            in_specs=[p_spec, w_spec,
                      pl.BlockSpec((1, Cp), lambda i: (0, 0))],
            out_specs=pl.BlockSpec((TM, Cp), lambda i: (i, 0))),
        compiler_params=cparams,
    )(patches, w_mat, bias)


def _bn_act(y, scale, shift, *, use_act, out_dtype):
    M, Cp = y.shape
    TM = _pick_tm(M, 1024)
    grid_m = pl.cdiv(M, TM)
    kernel = functools.partial(_bn_act_kernel, use_act=use_act, neg_slope=0.2)
    vmem = 2 * TM * Cp * (y.dtype.itemsize + jnp.dtype(out_dtype).itemsize) \
        + 8 * Cp * 4
    return pl.pallas_call(
        kernel,
        out_shape=jax.ShapeDtypeStruct((M, Cp), out_dtype),
        grid_spec=pltpu.PrefetchScalarGridSpec(
            num_scalar_prefetch=0, grid=(grid_m,),
            in_specs=[pl.BlockSpec((TM, Cp), lambda i: (i, 0)),
                      pl.BlockSpec((1, Cp), lambda i: (0, 0)),
                      pl.BlockSpec((1, Cp), lambda i: (0, 0))],
            out_specs=pl.BlockSpec((TM, Cp), lambda i: (i, 0))),
        compiler_params=pltpu.CompilerParams(
            dimension_semantics=("parallel",),
            vmem_limit_bytes=_vmem_limit(vmem)),
    )(y, scale, shift)


# ----------------------------------------------------------------------------
# Glue: im2col patch extraction (NHWC, already spatially padded)
# ----------------------------------------------------------------------------
def _im2col(x_nhwc, kh, kw, stride):
    N, Hp, Wp, C = x_nhwc.shape
    Hout = (Hp - kh) // stride + 1
    Wout = (Wp - kw) // stride + 1
    cols = []
    for dy in range(kh):
        for dx in range(kw):
            cols.append(x_nhwc[:, dy:dy + stride * Hout:stride,
                               dx:dx + stride * Wout:stride, :])
    p = jnp.stack(cols, axis=3)                     # (N, Hout, Wout, kh*kw, C)
    return p.reshape(N * Hout * Wout, kh * kw * C), Hout, Wout


# ----------------------------------------------------------------------------
# Model configuration / parameters
# ----------------------------------------------------------------------------
def make_layer_configs(input_nc, ndf=64, n_layers=3):
    cfgs = [dict(cin=input_nc, cout=ndf, stride=2, bn=False, act=True)]
    nf_mult = 1
    for n in range(1, n_layers):
        nf_prev, nf_mult = nf_mult, min(2 ** n, 8)
        cfgs.append(dict(cin=ndf * nf_prev, cout=ndf * nf_mult, stride=2,
                         bn=True, act=True))
    nf_prev, nf_mult = nf_mult, min(2 ** n_layers, 8)
    cfgs.append(dict(cin=ndf * nf_prev, cout=ndf * nf_mult, stride=1,
                     bn=True, act=True))
    cfgs.append(dict(cin=ndf * nf_mult, cout=1, stride=1, bn=False, act=False))
    return cfgs


def init_params(key, cfgs):
    params = []
    for cfg in cfgs:
        key, kw_, kb_ = jax.random.split(key, 3)
        w = 0.05 * jax.random.normal(kw_, (cfg["cout"], cfg["cin"], 4, 4),
                                     dtype=jnp.float32)        # OIHW (torch)
        b = 0.01 * jax.random.normal(kb_, (cfg["cout"],), dtype=jnp.float32)
        gamma = jnp.ones((cfg["cout"],), jnp.float32)          # BN defaults
        beta = jnp.zeros((cfg["cout"],), jnp.float32)
        params.append(dict(w=w, b=b, gamma=gamma, beta=beta))
    return params


def prepare_params(params, cfgs):
    """One-time: reshape OIHW -> (K, Cp), pad channels, cast matmul weights to
    bf16, reshape bias/gamma/beta to lane-dense (1, Cp) f32 rows.  Channel
    padding is carried through the stack: layer i's padded input width equals
    layer i-1's padded output width (padded channels are exactly zero)."""
    prepared = []
    prev_cout_p = None
    for idx, (cfg, p) in enumerate(zip(cfgs, params)):
        cin, cout = cfg["cin"], cfg["cout"]
        if idx == 0:
            cin_p = _round_up(cin, 8)      # => K multiple of 128
        else:
            cin_p = prev_cout_p            # carried padding from previous layer
        cout_p = _round_up(cout, 128)      # lane-dense output
        w = jnp.transpose(p["w"], (2, 3, 1, 0))            # (KH, KW, Cin, Cout)
        w = jnp.pad(w, ((0, 0), (0, 0), (0, cin_p - cin), (0, cout_p - cout)))
        w = w.reshape(16 * cin_p, cout_p).astype(jnp.bfloat16)
        b = jnp.pad(p["b"], (0, cout_p - cout)).reshape(1, cout_p)
        g = jnp.pad(p["gamma"], (0, cout_p - cout)).reshape(1, cout_p)
        bt = jnp.pad(p["beta"], (0, cout_p - cout)).reshape(1, cout_p)
        prepared.append(dict(w=w, b=b, gamma=g, beta=bt,
                             cin=cin, cin_p=cin_p, cout=cout, cout_p=cout_p,
                             stride=cfg["stride"], bn=cfg["bn"],
                             act=cfg["act"]))
        prev_cout_p = cout_p
    return prepared


# ----------------------------------------------------------------------------
# Discriminator forward (NCHW in -> NCHW out)
# ----------------------------------------------------------------------------
def discriminator_forward(x_nchw, prepared):
    N = x_nchw.shape[0]
    x = jnp.transpose(x_nchw, (0, 2, 3, 1)).astype(jnp.bfloat16)  # NHWC bf16
    lp0 = prepared[0]
    if lp0["cin_p"] > lp0["cin"]:
        x = jnp.pad(x, ((0, 0), (0, 0), (0, 0),
                        (0, lp0["cin_p"] - lp0["cin"])))
    n_lay = len(prepared)
    for li, lp in enumerate(prepared):
        is_last = li == n_lay - 1
        out_dtype = jnp.float32 if is_last else jnp.bfloat16
        xp = jnp.pad(x, ((0, 0), (1, 1), (1, 1), (0, 0)))      # padding=1
        patches, Hout, Wout = _im2col(xp, 4, 4, lp["stride"])
        M = patches.shape[0]
        if lp["bn"]:
            # Bias skipped: it cancels exactly in the BN mean subtraction.
            y, part = _conv_matmul(patches, lp["w"], None,
                                   use_act=False, with_stats=True,
                                   out_dtype=jnp.bfloat16)
            stats = jnp.sum(part, axis=0)                       # (2, Cp)
            mean = stats[0:1, :] / M
            var = stats[1:2, :] / M - jnp.square(mean)   # biased batch variance
            scale = lp["gamma"] * lax.rsqrt(var + 1e-5)
            shift = lp["beta"] - mean * scale
            y = _bn_act(y, scale, shift, use_act=lp["act"], out_dtype=out_dtype)
        else:
            y = _conv_matmul(patches, lp["w"], lp["b"],
                             use_act=lp["act"], with_stats=False,
                             out_dtype=out_dtype)
        # No inter-layer slice / pad / cast: padded channels stay zero and the
        # next layer's weights are padded to match.
        x = y.reshape(N, Hout, Wout, lp["cout_p"])
    out = x[..., :prepared[-1]["cout"]]                         # drop lane pad
    return jnp.transpose(out, (0, 3, 1, 2))                     # NHWC -> NCHW


# ----------------------------------------------------------------------------
# Pure-JAX reference (lax.conv, bf16 matmul inputs like the kernel, f32 math)
# ----------------------------------------------------------------------------
def reference_forward(x_nchw, params, cfgs):
    y = x_nchw
    for cfg, p in zip(cfgs, params):
        y = lax.conv_general_dilated(
            y.astype(jnp.bfloat16), p["w"].astype(jnp.bfloat16),
            window_strides=(cfg["stride"], cfg["stride"]),
            padding=((1, 1), (1, 1)),
            dimension_numbers=("NCHW", "OIHW", "NCHW"),
            preferred_element_type=jnp.float32)
        y = y + p["b"][None, :, None, None]
        if cfg["bn"]:
            mean = jnp.mean(y, axis=(0, 2, 3), keepdims=True)
            var = jnp.mean(jnp.square(y - mean), axis=(0, 2, 3), keepdims=True)
            y = (y - mean) * lax.rsqrt(var + 1e-5)
            y = y * p["gamma"][None, :, None, None] + p["beta"][None, :, None, None]
        if cfg["act"]:
            y = jnp.where(y >= 0.0, y, 0.2 * y)
    return y


if __name__ == "__main__":
    # Small config: input_nc=3, ndf=8, n_layers=3, input (2, 3, 32, 32).
    input_nc, ndf, n_layers = 3, 8, 3
    cfgs = make_layer_configs(input_nc, ndf=ndf, n_layers=n_layers)

    key = jax.random.PRNGKey(0)
    k_x, k_p = jax.random.split(key)
    x = jax.random.normal(k_x, (2, input_nc, 32, 32), dtype=jnp.float32)
    params = init_params(k_p, cfgs)
    prepared = prepare_params(params, cfgs)

    fwd = jax.jit(lambda inp: discriminator_forward(inp, prepared))
    out = jax.block_until_ready(fwd(x))

    ref = jax.block_until_ready(reference_forward(x, params, cfgs))
    assert out.shape == ref.shape == (2, 1, 2, 2), (out.shape, ref.shape)
    max_err = float(jnp.max(jnp.abs(out - ref)))
    # bf16 intermediate activations -> slightly looser tolerance than pure f32.
    assert jnp.allclose(out, ref, atol=4e-2, rtol=4e-2), max_err

    print("KERNEL_OK")
</pallas_src>

<mosaic_0001>
module attributes {stable_mosaic.version = 11 : i64} {
  func.func @_conv_bias_kernel(%arg0: i32, %arg1: memref<512x128xbf16, #tpu.memory_space<vmem>>, %arg2: memref<128x128xbf16, #tpu.memory_space<vmem>>, %arg3: memref<1x128xf32, #tpu.memory_space<vmem>>, %arg4: memref<512x128xbf16, #tpu.memory_space<vmem>>) attributes {dimension_semantics = [#tpu.dimension_semantics<parallel>], iteration_bounds = array<i64: 1>, scalar_prefetch = 0 : i64, scratch_operands = 0 : i64, tpu.core_type = #tpu.core_type<tc>, window_params = [{transform_indices = @transform_0, window_bounds = array<i64: 512, 128>}, {pipeline_mode = #tpu.pipeline_mode<synchronous>, transform_indices = @transform_1, window_bounds = array<i64: 128, 128>}, {pipeline_mode = #tpu.pipeline_mode<synchronous>, transform_indices = @transform_2, window_bounds = array<i64: 1, 128>}, {transform_indices = @transform_3, window_bounds = array<i64: 512, 128>}]} {
    %c0 = arith.constant 0 : index
    %c0_0 = arith.constant 0 : index
    %0 = vector.load %arg1[%c0, %c0_0] : memref<512x128xbf16, #tpu.memory_space<vmem>>, vector<512x128xbf16>
    %c0_1 = arith.constant 0 : index
    %c0_2 = arith.constant 0 : index
    %1 = vector.load %arg2[%c0_1, %c0_2] : memref<128x128xbf16, #tpu.memory_space<vmem>>, vector<128x128xbf16>
    %cst = arith.constant dense<0.000000e+00> : vector<512x128xf32>
    %2 = tpu.matmul %0, %1, %cst {dimension_numbers = #tpu.dot_dimension_numbers<[1], [0], [0], [1], [0, 0, 1, 1], [], []>} : vector<512x128xbf16>, vector<128x128xbf16>, vector<512x128xf32> -> vector<512x128xf32>
    %c0_3 = arith.constant 0 : index
    %c0_4 = arith.constant 0 : index
    %3 = vector.load %arg3[%c0_3, %c0_4] : memref<1x128xf32, #tpu.memory_space<vmem>>, vector<1x128xf32>
    %4 = vector.broadcast %3 : vector<1x128xf32> to vector<512x128xf32>
    %5 = arith.addf %2, %4 : vector<512x128xf32>
    %cst_5 = arith.constant 0.000000e+00 : f32
    %6 = vector.broadcast %cst_5 : f32 to vector<512x128xf32>
    %7 = arith.cmpf oge, %5, %6 : vector<512x128xf32>
    %cst_6 = arith.constant 2.000000e-01 : f32
    %8 = vector.broadcast %cst_6 : f32 to vector<512x128xf32>
    %9 = arith.mulf %8, %5 : vector<512x128xf32>
    %10 = arith.select %7, %5, %9 : vector<512x128xi1>, vector<512x128xf32>
    %11 = arith.truncf %10 : vector<512x128xf32> to vector<512x128xbf16>
    %c0_7 = arith.constant 0 : index
    %c0_8 = arith.constant 0 : index
    %12 = vector.load %arg4[%c0_7, %c0_8] : memref<512x128xbf16, #tpu.memory_space<vmem>>, vector<512x128xbf16>
    tpu.vector_store %arg4[%c0_7, %c0_8], %11 {strides = array<i32>} : memref<512x128xbf16, #tpu.memory_space<vmem>>, vector<512x128xbf16>,
    return
  }
  func.func @transform_0(%arg0: i32) -> (i32, i32) {
    %c0_i32 = arith.constant 0 : i32
    %c0_i32_0 = arith.constant 0 : i32
    return %arg0, %c0_i32 : i32, i32
  }
  func.func @transform_1(%arg0: i32) -> (i32, i32) {
    %c0_i32 = arith.constant 0 : i32
    %c0_i32_0 = arith.constant 0 : i32
    %c0_i32_1 = arith.constant 0 : i32
    return %c0_i32, %c0_i32_0 : i32, i32
  }
  func.func @transform_2(%arg0: i32) -> (i32, i32) {
    %c0_i32 = arith.constant 0 : i32
    %c0_i32_0 = arith.constant 0 : i32
    %c0_i32_1 = arith.constant 0 : i32
    return %c0_i32, %c0_i32_0 : i32, i32
  }
  func.func @transform_3(%arg0: i32) -> (i32, i32) {
    %c0_i32 = arith.constant 0 : i32
    %c0_i32_0 = arith.constant 0 : i32
    return %arg0, %c0_i32 : i32, i32
  }
}

module attributes {stable_mosaic.version = 11 : i64} {
  func.func @_bn_act_kernel(%arg0: i32, %arg1: memref<128x128xbf16, #tpu.memory_space<vmem>>, %arg2: memref<1x128xf32, #tpu.memory_space<vmem>>, %arg3: memref<1x128xf32, #tpu.memory_space<vmem>>, %arg4: memref<128x128xbf16, #tpu.memory_space<vmem>>) attributes {dimension_semantics = [#tpu.dimension_semantics<parallel>], iteration_bounds = array<i64: 1>, scalar_prefetch = 0 : i64, scratch_operands = 0 : i64, tpu.core_type = #tpu.core_type<tc>, window_params = [{transform_indices = @transform_0, window_bounds = array<i64: 128, 128>}, {pipeline_mode = #tpu.pipeline_mode<synchronous>, transform_indices = @transform_1, window_bounds = array<i64: 1, 128>}, {pipeline_mode = #tpu.pipeline_mode<synchronous>, transform_indices = @transform_2, window_bounds = array<i64: 1, 128>}, {transform_indices = @transform_3, window_bounds = array<i64: 128, 128>}]} {
    %c0 = arith.constant 0 : index
    %c0_0 = arith.constant 0 : index
    %0 = vector.load %arg1[%c0, %c0_0] : memref<128x128xbf16, #tpu.memory_space<vmem>>, vector<128x128xbf16>
    %1 = arith.extf %0 : vector<128x128xbf16> to vector<128x128xf32>
    %c0_1 = arith.constant 0 : index
    %c0_2 = arith.constant 0 : index
    %2 = vector.load %arg2[%c0_1, %c0_2] : memref<1x128xf32, #tpu.memory_space<vmem>>, vector<1x128xf32>
    %3 = vector.broadcast %2 : vector<1x128xf32> to vector<128x128xf32>
    %4 = arith.mulf %1, %3 : vector<128x128xf32>
    %c0_3 = arith.constant 0 : index
    %c0_4 = arith.constant 0 : index
    %5 = vector.load %arg3[%c0_3, %c0_4] : memref<1x128xf32, #tpu.memory_space<vmem>>, vector<1x128xf32>
    %6 = vector.broadcast %5 : vector<1x128xf32> to vector<128x128xf32>
    %7 = arith.addf %4, %6 : vector<128x128xf32>
    %cst = arith.constant 0.000000e+00 : f32
    %8 = vector.broadcast %cst : f32 to vector<128x128xf32>
    %9 = arith.cmpf oge, %7, %8 : vector<128x128xf32>
    %cst_5 = arith.constant 2.000000e-01 : f32
    %10 = vector.broadcast %cst_5 : f32 to vector<128x128xf32>
    %11 = arith.mulf %10, %7 : vector<128x128xf32>
    %12 = arith.select %9, %7, %11 : vector<128x128xi1>, vector<128x128xf32>
    %13 = arith.truncf %12 : vector<128x128xf32> to vector<128x128xbf16>
    %c0_6 = arith.constant 0 : index
    %c0_7 = arith.constant 0 : index
    %14 = vector.load %arg4[%c0_6, %c0_7] : memref<128x128xbf16, #tpu.memory_space<vmem>>, vector<128x128xbf16>
    tpu.vector_store %arg4[%c0_6, %c0_7], %13 {strides = array<i32>} : memref<128x128xbf16, #tpu.memory_space<vmem>>, vector<128x128xbf16>,
    return
  }
  func.func @transform_0(%arg0: i32) -> (i32, i32) {
    %c0_i32 = arith.constant 0 : i32
    %c0_i32_0 = arith.constant 0 : i32
    return %arg0, %c0_i32 : i32, i32
  }
  func.func @transform_1(%arg0: i32) -> (i32, i32) {
    %c0_i32 = arith.constant 0 : i32
    %c0_i32_0 = arith.constant 0 : i32
    %c0_i32_1 = arith.constant 0 : i32
    return %c0_i32, %c0_i32_0 : i32, i32
  }
  func.func @transform_2(%arg0: i32) -> (i32, i32) {
    %c0_i32 = arith.constant 0 : i32
    %c0_i32_0 = arith.constant 0 : i32
    %c0_i32_1 = arith.constant 0 : i32
    return %c0_i32, %c0_i32_0 : i32, i32
  }
  func.func @transform_3(%arg0: i32) -> (i32, i32) {
    %c0_i32 = arith.constant 0 : i32
    %c0_i32_0 = arith.constant 0 : i32
    return %arg0, %c0_i32 : i32, i32
  }
}

module attributes {stable_mosaic.version = 11 : i64} {
  func.func @_conv_stats_kernel(%arg0: i32, %arg1: memref<128x2048xbf16, #tpu.memory_space<vmem>>, %arg2: memref<2048x128xbf16, #tpu.memory_space<vmem>>, %arg3: memref<128x128xbf16, #tpu.memory_space<vmem>>, %arg4: memref<1x2x128xf32, #tpu.memory_space<vmem>>) attributes {dimension_semantics = [#tpu.dimension_semantics<parallel>], iteration_bounds = array<i64: 1>, scalar_prefetch = 0 : i64, scratch_operands = 0 : i64, tpu.core_type = #tpu.core_type<tc>, window_params = [{transform_indices = @transform_0, window_bounds = array<i64: 128, 2048>}, {pipeline_mode = #tpu.pipeline_mode<synchronous>, transform_indices = @transform_1, window_bounds = array<i64: 2048, 128>}, {transform_indices = @transform_2, window_bounds = array<i64: 128, 128>}, {transform_indices = @transform_3, window_bounds = array<i64: 1, 2, 128>}]} {
    %c0 = arith.constant 0 : index
    %c0_0 = arith.constant 0 : index
    %0 = vector.load %arg1[%c0, %c0_0] : memref<128x2048xbf16, #tpu.memory_space<vmem>>, vector<128x2048xbf16>
    %c0_1 = arith.constant 0 : index
    %c0_2 = arith.constant 0 : index
    %1 = vector.load %arg2[%c0_1, %c0_2] : memref<2048x128xbf16, #tpu.memory_space<vmem>>, vector<2048x128xbf16>
    %cst = arith.constant dense<0.000000e+00> : vector<128x128xf32>
    %2 = tpu.matmul %0, %1, %cst {dimension_numbers = #tpu.dot_dimension_numbers<[1], [0], [0], [1], [0, 0, 1, 1], [], []>} : vector<128x2048xbf16>, vector<2048x128xbf16>, vector<128x128xf32> -> vector<128x128xf32>
    %3 = arith.truncf %2 : vector<128x128xf32> to vector<128x128xbf16>
    %c0_3 = arith.constant 0 : index
    %c0_4 = arith.constant 0 : index
    %4 = vector.load %arg3[%c0_3, %c0_4] : memref<128x128xbf16, #tpu.memory_space<vmem>>, vector<128x128xbf16>
    tpu.vector_store %arg3[%c0_3, %c0_4], %3 {strides = array<i32>} : memref<128x128xbf16, #tpu.memory_space<vmem>>, vector<128x128xbf16>,
    %c128_i32 = arith.constant 128 : i32
    %5 = arith.muli %arg0, %c128_i32 : i32
    %6 = tpu.iota {dimensions = array<i32: 0>} : vector<128x1xi32>
    %7 = vector.broadcast %5 : i32 to vector<128x1xi32>
    %8 = arith.addi %7, %6 : vector<128x1xi32>
    %c128_i32_5 = arith.constant 128 : i32
    %9 = vector.broadcast %c128_i32_5 : i32 to vector<128x1xi32>
    %10 = arith.cmpi slt, %8, %9 : vector<128x1xi32>
    %cst_6 = arith.constant 0.000000e+00 : f32
    %11 = vector.shape_cast %10 : vector<128x1xi1> to vector<128x1xi1>
    %12 = vector.broadcast %11 : vector<128x1xi1> to vector<128x128xi1>
    %13 = vector.broadcast %cst_6 : f32 to vector<128x128xf32>
    %14 = arith.select %12, %2, %13 : vector<128x128xi1>, vector<128x128xf32>
    %cst_7 = arith.constant dense<0.000000e+00> : vector<128xf32>
    %15 = vector.multi_reduction <add>, %14, %cst_7 [0] : vector<128x128xf32> to vector<128xf32>
    %16 = vector.shape_cast %15 : vector<128xf32> to vector<1x128xf32>
    %17 = arith.mulf %14, %14 : vector<128x128xf32>
    %cst_8 = arith.constant dense<0.000000e+00> : vector<128xf32>
    %18 = vector.multi_reduction <add>, %17, %cst_8 [0] : vector<128x128xf32> to vector<128xf32>
    %19 = vector.shape_cast %18 : vector<128xf32> to vector<1x128xf32>
    %20 = tpu.concatenate %16, %19 in 0 : vector<1x128xf32>, vector<1x128xf32> -> vector<2x128xf32>
    %c0_9 = arith.constant 0 : index
    %c0_10 = arith.constant 0 : index
    %c0_11 = arith.constant 0 : index
    %21 = vector.load %arg4[%c0_9, %c0_10, %c0_11] : memref<1x2x128xf32, #tpu.memory_space<vmem>>, vector<1x2x128xf32>
    %22 = vector.shape_cast %21 : vector<1x2x128xf32> to vector<2x128xf32>
    %23 = vector.shape_cast %20 : vector<2x128xf32> to vector<1x2x128xf32>
    tpu.vector_store %arg4[%c0_9, %c0_10, %c0_11], %23 {strides = array<i32>} : memref<1x2x128xf32, #tpu.memory_space<vmem>>, vector<1x2x128xf32>,
    return
  }
  func.func @transform_0(%arg0: i32) -> (i32, i32) {
    %c0_i32 = arith.constant 0 : i32
    %c0_i32_0 = arith.constant 0 : i32
    return %arg0, %c0_i32 : i32, i32
  }
  func.func @transform_1(%arg0: i32) -> (i32, i32) {
    %c0_i32 = arith.constant 0 : i32
    %c0_i32_0 = arith.constant 0 : i32
    %c0_i32_1 = arith.constant 0 : i32
    return %c0_i32, %c0_i32_0 : i32, i32
  }
  func.func @transform_2(%arg0: i32) -> (i32, i32) {
    %c0_i32 = arith.constant 0 : i32
    %c0_i32_0 = arith.constant 0 : i32
    return %arg0, %c0_i32 : i32, i32
  }
  func.func @transform_3(%arg0: i32) -> (i32, i32, i32) {
    %c0_i32 = arith.constant 0 : i32
    %c0_i32_0 = arith.constant 0 : i32
    %c0_i32_1 = arith.constant 0 : i32
    return %arg0, %c0_i32, %c0_i32_0 : i32, i32, i32
  }
}

module attributes {stable_mosaic.version = 11 : i64} {
  func.func @_conv_stats_kernel(%arg0: i32, %arg1: memref<32x2048xbf16, #tpu.memory_space<vmem>>, %arg2: memref<2048x128xbf16, #tpu.memory_space<vmem>>, %arg3: memref<32x128xbf16, #tpu.memory_space<vmem>>, %arg4: memref<1x2x128xf32, #tpu.memory_space<vmem>>) attributes {dimension_semantics = [#tpu.dimension_semantics<parallel>], iteration_bounds = array<i64: 1>, scalar_prefetch = 0 : i64, scratch_operands = 0 : i64, tpu.core_type = #tpu.core_type<tc>, window_params = [{transform_indices = @transform_0, window_bounds = array<i64: 32, 2048>}, {pipeline_mode = #tpu.pipeline_mode<synchronous>, transform_indices = @transform_1, window_bounds = array<i64: 2048, 128>}, {transform_indices = @transform_2, window_bounds = array<i64: 32, 128>}, {transform_indices = @transform_3, window_bounds = array<i64: 1, 2, 128>}]} {
    %c0 = arith.constant 0 : index
    %c0_0 = arith.constant 0 : index
    %0 = vector.load %arg1[%c0, %c0_0] : memref<32x2048xbf16, #tpu.memory_space<vmem>>, vector<32x2048xbf16>
    %c0_1 = arith.constant 0 : index
    %c0_2 = arith.constant 0 : index
    %1 = vector.load %arg2[%c0_1, %c0_2] : memref<2048x128xbf16, #tpu.memory_space<vmem>>, vector<2048x128xbf16>
    %cst = arith.constant dense<0.000000e+00> : vector<32x128xf32>
    %2 = tpu.matmul %0, %1, %cst {dimension_numbers = #tpu.dot_dimension_numbers<[1], [0], [0], [1], [0, 0, 1, 1], [], []>} : vector<32x2048xbf16>, vector<2048x128xbf16>, vector<32x128xf32> -> vector<32x128xf32>
    %3 = arith.truncf %2 : vector<32x128xf32> to vector<32x128xbf16>
    %c0_3 = arith.constant 0 : index
    %c0_4 = arith.constant 0 : index
    %4 = vector.load %arg3[%c0_3, %c0_4] : memref<32x128xbf16, #tpu.memory_space<vmem>>, vector<32x128xbf16>
    tpu.vector_store %arg3[%c0_3, %c0_4], %3 {strides = array<i32>} : memref<32x128xbf16, #tpu.memory_space<vmem>>, vector<32x128xbf16>,
    %c32_i32 = arith.constant 32 : i32
    %5 = arith.muli %arg0, %c32_i32 : i32
    %6 = tpu.iota {dimensions = array<i32: 0>} : vector<32x1xi32>
    %7 = vector.broadcast %5 : i32 to vector<32x1xi32>
    %8 = arith.addi %7, %6 : vector<32x1xi32>
    %c32_i32_5 = arith.constant 32 : i32
    %9 = vector.broadcast %c32_i32_5 : i32 to vector<32x1xi32>
    %10 = arith.cmpi slt, %8, %9 : vector<32x1xi32>
    %cst_6 = arith.constant 0.000000e+00 : f32
    %11 = vector.shape_cast %10 : vector<32x1xi1> to vector<32x1xi1>
    %12 = vector.broadcast %11 : vector<32x1xi1> to vector<32x128xi1>
    %13 = vector.broadcast %cst_6 : f32 to vector<32x128xf32>
    %14 = arith.select %12, %2, %13 : vector<32x128xi1>, vector<32x128xf32>
    %cst_7 = arith.constant dense<0.000000e+00> : vector<128xf32>
    %15 = vector.multi_reduction <add>, %14, %cst_7 [0] : vector<32x128xf32> to vector<128xf32>
    %16 = vector.shape_cast %15 : vector<128xf32> to vector<1x128xf32>
    %17 = arith.mulf %14, %14 : vector<32x128xf32>
    %cst_8 = arith.constant dense<0.000000e+00> : vector<128xf32>
    %18 = vector.multi_reduction <add>, %17, %cst_8 [0] : vector<32x128xf32> to vector<128xf32>
    %19 = vector.shape_cast %18 : vector<128xf32> to vector<1x128xf32>
    %20 = tpu.concatenate %16, %19 in 0 : vector<1x128xf32>, vector<1x128xf32> -> vector<2x128xf32>
    %c0_9 = arith.constant 0 : index
    %c0_10 = arith.constant 0 : index
    %c0_11 = arith.constant 0 : index
    %21 = vector.load %arg4[%c0_9, %c0_10, %c0_11] : memref<1x2x128xf32, #tpu.memory_space<vmem>>, vector<1x2x128xf32>
    %22 = vector.shape_cast %21 : vector<1x2x128xf32> to vector<2x128xf32>
    %23 = vector.shape_cast %20 : vector<2x128xf32> to vector<1x2x128xf32>
    tpu.vector_store %arg4[%c0_9, %c0_10, %c0_11], %23 {strides = array<i32>} : memref<1x2x128xf32, #tpu.memory_space<vmem>>, vector<1x2x128xf32>,
    return
  }
  func.func @transform_0(%arg0: i32) -> (i32, i32) {
    %c0_i32 = arith.constant 0 : i32
    %c0_i32_0 = arith.constant 0 : i32
    return %arg0, %c0_i32 : i32, i32
  }
  func.func @transform_1(%arg0: i32) -> (i32, i32) {
    %c0_i32 = arith.constant 0 : i32
    %c0_i32_0 = arith.constant 0 : i32
    %c0_i32_1 = arith.constant 0 : i32
    return %c0_i32, %c0_i32_0 : i32, i32
  }
  func.func @transform_2(%arg0: i32) -> (i32, i32) {
    %c0_i32 = arith.constant 0 : i32
    %c0_i32_0 = arith.constant 0 : i32
    return %arg0, %c0_i32 : i32, i32
  }
  func.func @transform_3(%arg0: i32) -> (i32, i32, i32) {
    %c0_i32 = arith.constant 0 : i32
    %c0_i32_0 = arith.constant 0 : i32
    %c0_i32_1 = arith.constant 0 : i32
    return %arg0, %c0_i32, %c0_i32_0 : i32, i32, i32
  }
}

module attributes {stable_mosaic.version = 11 : i64} {
  func.func @_bn_act_kernel(%arg0: i32, %arg1: memref<32x128xbf16, #tpu.memory_space<vmem>>, %arg2: memref<1x128xf32, #tpu.memory_space<vmem>>, %arg3: memref<1x128xf32, #tpu.memory_space<vmem>>, %arg4: memref<32x128xbf16, #tpu.memory_space<vmem>>) attributes {dimension_semantics = [#tpu.dimension_semantics<parallel>], iteration_bounds = array<i64: 1>, scalar_prefetch = 0 : i64, scratch_operands = 0 : i64, tpu.core_type = #tpu.core_type<tc>, window_params = [{transform_indices = @transform_0, window_bounds = array<i64: 32, 128>}, {pipeline_mode = #tpu.pipeline_mode<synchronous>, transform_indices = @transform_1, window_bounds = array<i64: 1, 128>}, {pipeline_mode = #tpu.pipeline_mode<synchronous>, transform_indices = @transform_2, window_bounds = array<i64: 1, 128>}, {transform_indices = @transform_3, window_bounds = array<i64: 32, 128>}]} {
    %c0 = arith.constant 0 : index
    %c0_0 = arith.constant 0 : index
    %0 = vector.load %arg1[%c0, %c0_0] : memref<32x128xbf16, #tpu.memory_space<vmem>>, vector<32x128xbf16>
    %1 = arith.extf %0 : vector<32x128xbf16> to vector<32x128xf32>
    %c0_1 = arith.constant 0 : index
    %c0_2 = arith.constant 0 : index
    %2 = vector.load %arg2[%c0_1, %c0_2] : memref<1x128xf32, #tpu.memory_space<vmem>>, vector<1x128xf32>
    %3 = vector.broadcast %2 : vector<1x128xf32> to vector<32x128xf32>
    %4 = arith.mulf %1, %3 : vector<32x128xf32>
    %c0_3 = arith.constant 0 : index
    %c0_4 = arith.constant 0 : index
    %5 = vector.load %arg3[%c0_3, %c0_4] : memref<1x128xf32, #tpu.memory_space<vmem>>, vector<1x128xf32>
    %6 = vector.broadcast %5 : vector<1x128xf32> to vector<32x128xf32>
    %7 = arith.addf %4, %6 : vector<32x128xf32>
    %cst = arith.constant 0.000000e+00 : f32
    %8 = vector.broadcast %cst : f32 to vector<32x128xf32>
    %9 = arith.cmpf oge, %7, %8 : vector<32x128xf32>
    %cst_5 = arith.constant 2.000000e-01 : f32
    %10 = vector.broadcast %cst_5 : f32 to vector<32x128xf32>
    %11 = arith.mulf %10, %7 : vector<32x128xf32>
    %12 = arith.select %9, %7, %11 : vector<32x128xi1>, vector<32x128xf32>
    %13 = arith.truncf %12 : vector<32x128xf32> to vector<32x128xbf16>
    %c0_6 = arith.constant 0 : index
    %c0_7 = arith.constant 0 : index
    %14 = vector.load %arg4[%c0_6, %c0_7] : memref<32x128xbf16, #tpu.memory_space<vmem>>, vector<32x128xbf16>
    tpu.vector_store %arg4[%c0_6, %c0_7], %13 {strides = array<i32>} : memref<32x128xbf16, #tpu.memory_space<vmem>>, vector<32x128xbf16>,
    return
  }
  func.func @transform_0(%arg0: i32) -> (i32, i32) {
    %c0_i32 = arith.constant 0 : i32
    %c0_i32_0 = arith.constant 0 : i32
    return %arg0, %c0_i32 : i32, i32
  }
  func.func @transform_1(%arg0: i32) -> (i32, i32) {
    %c0_i32 = arith.constant 0 : i32
    %c0_i32_0 = arith.constant 0 : i32
    %c0_i32_1 = arith.constant 0 : i32
    return %c0_i32, %c0_i32_0 : i32, i32
  }
  func.func @transform_2(%arg0: i32) -> (i32, i32) {
    %c0_i32 = arith.constant 0 : i32
    %c0_i32_0 = arith.constant 0 : i32
    %c0_i32_1 = arith.constant 0 : i32
    return %c0_i32, %c0_i32_0 : i32, i32
  }
  func.func @transform_3(%arg0: i32) -> (i32, i32) {
    %c0_i32 = arith.constant 0 : i32
    %c0_i32_0 = arith.constant 0 : i32
    return %arg0, %c0_i32 : i32, i32
  }
}

module attributes {stable_mosaic.version = 11 : i64} {
  func.func @_conv_stats_kernel(%arg0: i32, %arg1: memref<18x2048xbf16, #tpu.memory_space<vmem>>, %arg2: memref<2048x128xbf16, #tpu.memory_space<vmem>>, %arg3: memref<18x128xbf16, #tpu.memory_space<vmem>>, %arg4: memref<1x2x128xf32, #tpu.memory_space<vmem>>) attributes {dimension_semantics = [#tpu.dimension_semantics<parallel>], iteration_bounds = array<i64: 1>, scalar_prefetch = 0 : i64, scratch_operands = 0 : i64, tpu.core_type = #tpu.core_type<tc>, window_params = [{transform_indices = @transform_0, window_bounds = array<i64: 18, 2048>}, {pipeline_mode = #tpu.pipeline_mode<synchronous>, transform_indices = @transform_1, window_bounds = array<i64: 2048, 128>}, {transform_indices = @transform_2, window_bounds = array<i64: 18, 128>}, {transform_indices = @transform_3, window_bounds = array<i64: 1, 2, 128>}]} {
    %c0 = arith.constant 0 : index
    %c0_0 = arith.constant 0 : index
    %0 = vector.load %arg1[%c0, %c0_0] : memref<18x2048xbf16, #tpu.memory_space<vmem>>, vector<18x2048xbf16>
    %c0_1 = arith.constant 0 : index
    %c0_2 = arith.constant 0 : index
    %1 = vector.load %arg2[%c0_1, %c0_2] : memref<2048x128xbf16, #tpu.memory_space<vmem>>, vector<2048x128xbf16>
    %cst = arith.constant dense<0.000000e+00> : vector<18x128xf32>
    %2 = tpu.matmul %0, %1, %cst {dimension_numbers = #tpu.dot_dimension_numbers<[1], [0], [0], [1], [0, 0, 1, 1], [], []>} : vector<18x2048xbf16>, vector<2048x128xbf16>, vector<18x128xf32> -> vector<18x128xf32>
    %3 = arith.truncf %2 : vector<18x128xf32> to vector<18x128xbf16>
    %c0_3 = arith.constant 0 : index
    %c0_4 = arith.constant 0 : index
    %4 = vector.load %arg3[%c0_3, %c0_4] : memref<18x128xbf16, #tpu.memory_space<vmem>>, vector<18x128xbf16>
    tpu.vector_store %arg3[%c0_3, %c0_4], %3 {strides = array<i32>} : memref<18x128xbf16, #tpu.memory_space<vmem>>, vector<18x128xbf16>,
    %c18_i32 = arith.constant 18 : i32
    %5 = arith.muli %arg0, %c18_i32 : i32
    %6 = tpu.iota {dimensions = array<i32: 0>} : vector<18x1xi32>
    %7 = vector.broadcast %5 : i32 to vector<18x1xi32>
    %8 = arith.addi %7, %6 : vector<18x1xi32>
    %c18_i32_5 = arith.constant 18 : i32
    %9 = vector.broadcast %c18_i32_5 : i32 to vector<18x1xi32>
    %10 = arith.cmpi slt, %8, %9 : vector<18x1xi32>
    %cst_6 = arith.constant 0.000000e+00 : f32
    %11 = vector.shape_cast %10 : vector<18x1xi1> to vector<18x1xi1>
    %12 = vector.broadcast %11 : vector<18x1xi1> to vector<18x128xi1>
    %13 = vector.broadcast %cst_6 : f32 to vector<18x128xf32>
    %14 = arith.select %12, %2, %13 : vector<18x128xi1>, vector<18x128xf32>
    %cst_7 = arith.constant dense<0.000000e+00> : vector<128xf32>
    %15 = vector.multi_reduction <add>, %14, %cst_7 [0] : vector<18x128xf32> to vector<128xf32>
    %16 = vector.shape_cast %15 : vector<128xf32> to vector<1x128xf32>
    %17 = arith.mulf %14, %14 : vector<18x128xf32>
    %cst_8 = arith.constant dense<0.000000e+00> : vector<128xf32>
    %18 = vector.multi_reduction <add>, %17, %cst_8 [0] : vector<18x128xf32> to vector<128xf32>
    %19 = vector.shape_cast %18 : vector<128xf32> to vector<1x128xf32>
    %20 = tpu.concatenate %16, %19 in 0 : vector<1x128xf32>, vector<1x128xf32> -> vector<2x128xf32>
    %c0_9 = arith.constant 0 : index
    %c0_10 = arith.constant 0 : index
    %c0_11 = arith.constant 0 : index
    %21 = vector.load %arg4[%c0_9, %c0_10, %c0_11] : memref<1x2x128xf32, #tpu.memory_space<vmem>>, vector<1x2x128xf32>
    %22 = vector.shape_cast %21 : vector<1x2x128xf32> to vector<2x128xf32>
    %23 = vector.shape_cast %20 : vector<2x128xf32> to vector<1x2x128xf32>
    tpu.vector_store %arg4[%c0_9, %c0_10, %c0_11], %23 {strides = array<i32>} : memref<1x2x128xf32, #tpu.memory_space<vmem>>, vector<1x2x128xf32>,
    return
  }
  func.func @transform_0(%arg0: i32) -> (i32, i32) {
    %c0_i32 = arith.constant 0 : i32
    %c0_i32_0 = arith.constant 0 : i32
    return %arg0, %c0_i32 : i32, i32
  }
  func.func @transform_1(%arg0: i32) -> (i32, i32) {
    %c0_i32 = arith.constant 0 : i32
    %c0_i32_0 = arith.constant 0 : i32
    %c0_i32_1 = arith.constant 0 : i32
    return %c0_i32, %c0_i32_0 : i32, i32
  }
  func.func @transform_2(%arg0: i32) -> (i32, i32) {
    %c0_i32 = arith.constant 0 : i32
    %c0_i32_0 = arith.constant 0 : i32
    return %arg0, %c0_i32 : i32, i32
  }
  func.func @transform_3(%arg0: i32) -> (i32, i32, i32) {
    %c0_i32 = arith.constant 0 : i32
    %c0_i32_0 = arith.constant 0 : i32
    %c0_i32_1 = arith.constant 0 : i32
    return %arg0, %c0_i32, %c0_i32_0 : i32, i32, i32
  }
}

module attributes {stable_mosaic.version = 11 : i64} {
  func.func @_bn_act_kernel(%arg0: i32, %arg1: memref<18x128xbf16, #tpu.memory_space<vmem>>, %arg2: memref<1x128xf32, #tpu.memory_space<vmem>>, %arg3: memref<1x128xf32, #tpu.memory_space<vmem>>, %arg4: memref<18x128xbf16, #tpu.memory_space<vmem>>) attributes {dimension_semantics = [#tpu.dimension_semantics<parallel>], iteration_bounds = array<i64: 1>, scalar_prefetch = 0 : i64, scratch_operands = 0 : i64, tpu.core_type = #tpu.core_type<tc>, window_params = [{transform_indices = @transform_0, window_bounds = array<i64: 18, 128>}, {pipeline_mode = #tpu.pipeline_mode<synchronous>, transform_indices = @transform_1, window_bounds = array<i64: 1, 128>}, {pipeline_mode = #tpu.pipeline_mode<synchronous>, transform_indices = @transform_2, window_bounds = array<i64: 1, 128>}, {transform_indices = @transform_3, window_bounds = array<i64: 18, 128>}]} {
    %c0 = arith.constant 0 : index
    %c0_0 = arith.constant 0 : index
    %0 = vector.load %arg1[%c0, %c0_0] : memref<18x128xbf16, #tpu.memory_space<vmem>>, vector<18x128xbf16>
    %1 = arith.extf %0 : vector<18x128xbf16> to vector<18x128xf32>
    %c0_1 = arith.constant 0 : index
    %c0_2 = arith.constant 0 : index
    %2 = vector.load %arg2[%c0_1, %c0_2] : memref<1x128xf32, #tpu.memory_space<vmem>>, vector<1x128xf32>
    %3 = vector.broadcast %2 : vector<1x128xf32> to vector<18x128xf32>
    %4 = arith.mulf %1, %3 : vector<18x128xf32>
    %c0_3 = arith.constant 0 : index
    %c0_4 = arith.constant 0 : index
    %5 = vector.load %arg3[%c0_3, %c0_4] : memref<1x128xf32, #tpu.memory_space<vmem>>, vector<1x128xf32>
    %6 = vector.broadcast %5 : vector<1x128xf32> to vector<18x128xf32>
    %7 = arith.addf %4, %6 : vector<18x128xf32>
    %cst = arith.constant 0.000000e+00 : f32
    %8 = vector.broadcast %cst : f32 to vector<18x128xf32>
    %9 = arith.cmpf oge, %7, %8 : vector<18x128xf32>
    %cst_5 = arith.constant 2.000000e-01 : f32
    %10 = vector.broadcast %cst_5 : f32 to vector<18x128xf32>
    %11 = arith.mulf %10, %7 : vector<18x128xf32>
    %12 = arith.select %9, %7, %11 : vector<18x128xi1>, vector<18x128xf32>
    %13 = arith.truncf %12 : vector<18x128xf32> to vector<18x128xbf16>
    %c0_6 = arith.constant 0 : index
    %c0_7 = arith.constant 0 : index
    %14 = vector.load %arg4[%c0_6, %c0_7] : memref<18x128xbf16, #tpu.memory_space<vmem>>, vector<18x128xbf16>
    tpu.vector_store %arg4[%c0_6, %c0_7], %13 {strides = array<i32>} : memref<18x128xbf16, #tpu.memory_space<vmem>>, vector<18x128xbf16>,
    return
  }
  func.func @transform_0(%arg0: i32) -> (i32, i32) {
    %c0_i32 = arith.constant 0 : i32
    %c0_i32_0 = arith.constant 0 : i32
    return %arg0, %c0_i32 : i32, i32
  }
  func.func @transform_1(%arg0: i32) -> (i32, i32) {
    %c0_i32 = arith.constant 0 : i32
    %c0_i32_0 = arith.constant 0 : i32
    %c0_i32_1 = arith.constant 0 : i32
    return %c0_i32, %c0_i32_0 : i32, i32
  }
  func.func @transform_2(%arg0: i32) -> (i32, i32) {
    %c0_i32 = arith.constant 0 : i32
    %c0_i32_0 = arith.constant 0 : i32
    %c0_i32_1 = arith.constant 0 : i32
    return %c0_i32, %c0_i32_0 : i32, i32
  }
  func.func @transform_3(%arg0: i32) -> (i32, i32) {
    %c0_i32 = arith.constant 0 : i32
    %c0_i32_0 = arith.constant 0 : i32
    return %arg0, %c0_i32 : i32, i32
  }
}

module attributes {stable_mosaic.version = 11 : i64} {
  func.func @_conv_bias_kernel(%arg0: i32, %arg1: memref<8x2048xbf16, #tpu.memory_space<vmem>>, %arg2: memref<2048x128xbf16, #tpu.memory_space<vmem>>, %arg3: memref<1x128xf32, #tpu.memory_space<vmem>>, %arg4: memref<8x128xf32, #tpu.memory_space<vmem>>) attributes {dimension_semantics = [#tpu.dimension_semantics<parallel>], iteration_bounds = array<i64: 1>, scalar_prefetch = 0 : i64, scratch_operands = 0 : i64, tpu.core_type = #tpu.core_type<tc>, window_params = [{transform_indices = @transform_0, window_bounds = array<i64: 8, 2048>}, {pipeline_mode = #tpu.pipeline_mode<synchronous>, transform_indices = @transform_1, window_bounds = array<i64: 2048, 128>}, {pipeline_mode = #tpu.pipeline_mode<synchronous>, transform_indices = @transform_2, window_bounds = array<i64: 1, 128>}, {transform_indices = @transform_3, window_bounds = array<i64: 8, 128>}]} {
    %c0 = arith.constant 0 : index
    %c0_0 = arith.constant 0 : index
    %0 = vector.load %arg1[%c0, %c0_0] : memref<8x2048xbf16, #tpu.memory_space<vmem>>, vector<8x2048xbf16>
    %c0_1 = arith.constant 0 : index
    %c0_2 = arith.constant 0 : index
    %1 = vector.load %arg2[%c0_1, %c0_2] : memref<2048x128xbf16, #tpu.memory_space<vmem>>, vector<2048x128xbf16>
    %cst = arith.constant dense<0.000000e+00> : vector<8x128xf32>
    %2 = tpu.matmul %0, %1, %cst {dimension_numbers = #tpu.dot_dimension_numbers<[1], [0], [0], [1], [0, 0, 1, 1], [], []>} : vector<8x2048xbf16>, vector<2048x128xbf16>, vector<8x128xf32> -> vector<8x128xf32>
    %c0_3 = arith.constant 0 : index
    %c0_4 = arith.constant 0 : index
    %3 = vector.load %arg3[%c0_3, %c0_4] : memref<1x128xf32, #tpu.memory_space<vmem>>, vector<1x128xf32>
    %4 = vector.broadcast %3 : vector<1x128xf32> to vector<8x128xf32>
    %5 = arith.addf %2, %4 : vector<8x128xf32>
    %c0_5 = arith.constant 0 : index
    %c0_6 = arith.constant 0 : index
    %6 = vector.load %arg4[%c0_5, %c0_6] : memref<8x128xf32, #tpu.memory_space<vmem>>, vector<8x128xf32>
    tpu.vector_store %arg4[%c0_5, %c0_6], %5 {strides = array<i32>} : memref<8x128xf32, #tpu.memory_space<vmem>>, vector<8x128xf32>,
    return
  }
  func.func @transform_0(%arg0: i32) -> (i32, i32) {
    %c0_i32 = arith.constant 0 : i32
    %c0_i32_0 = arith.constant 0 : i32
    return %arg0, %c0_i32 : i32, i32
  }
  func.func @transform_1(%arg0: i32) -> (i32, i32) {
    %c0_i32 = arith.constant 0 : i32
    %c0_i32_0 = arith.constant 0 : i32
    %c0_i32_1 = arith.constant 0 : i32
    return %c0_i32, %c0_i32_0 : i32, i32
  }
  func.func @transform_2(%arg0: i32) -> (i32, i32) {
    %c0_i32 = arith.constant 0 : i32
    %c0_i32_0 = arith.constant 0 : i32
    %c0_i32_1 = arith.constant 0 : i32
    return %c0_i32, %c0_i32_0 : i32, i32
  }
  func.func @transform_3(%arg0: i32) -> (i32, i32) {
    %c0_i32 = arith.constant 0 : i32
    %c0_i32_0 = arith.constant 0 : i32
    return %arg0, %c0_i32 : i32, i32
  }
}

</mosaic_0001>

<llo_original>
// kernel: _lambda_.8
$region0: #{_lambda_.8}
  #allocation0 [shape = 'u32[]', space=smem, size = 0x4, offset = 0x4, fixed_abs, tag = 'smem constant byte address 0x4 - core index']
  #allocation1 [shape = 'u32[72,128]{1,0:T(1,128)}', space=vmem, size = 0x9000, scoped, tag = 'internal scratch']
  %s0 = inlined_call_operand.vmem [shape: bf16[512,128], index: 0, kind: input, shape index: {}]
  %s1 = inlined_call_operand.vmem [shape: bf16[128,128], index: 1, kind: input, shape index: {}]
  %s2 = inlined_call_operand.vmem [shape: f32[1,128], index: 2, kind: input, shape index: {}]
  %s3 = inlined_call_operand.vmem [shape: bf16[512,128], index: 3, kind: output, shape index: {}]
  %s4 = sld [smem:[#allocation0]]
  $region22: #{_lambda_.8} parent=0
    _
  %s6 = ssub.s32 1, %s4
  %s7 = scalar_select 0, %s6, %s4
  // Predicated region
  $region2: #{_lambda_.8} parent=0 // pred_check
    _
  $region3: #{_lambda_.8} parent=0 // pred_check_branch
    %9 = sbr.rel (0) target = $region5
  $region4: #{_lambda_.8} parent=0 // pred_region
    _
  $region5: #{_lambda_.8} parent=0 // pred_fallthru
    _
  // Predicated region
  $region6: #{_lambda_.8} parent=0 // pred_check
    _
  $region7: #{_lambda_.8} parent=0 // pred_check_branch
    %11 = sbr.rel (0) target = $region9
  $region8: #{_lambda_.8} parent=0 // pred_region
    _
  $region9: #{_lambda_.8} parent=0 // pred_fallthru
    _
  // Predicated region
  $region10: #{_lambda_.8} parent=0 // pred_check
    _
  $region11: #{_lambda_.8} parent=0 // pred_check_branch
    %13 = sbr.rel (0) target = $region13
  $region12: #{_lambda_.8} parent=0 // pred_region
    _
  $region13: #{_lambda_.8} parent=0 // pred_fallthru
    _
  %v14 = vld [vmem:[%s0] sm:$0xf]
  %v15 = vld [vmem:[%s0 + $0x4] sm:$0xf]
  %v16 = vld [vmem:[%s0 + $0x8] sm:$0xf]
  %v17 = vld [vmem:[%s0 + $0xc] sm:$0xf]
  %v18 = vld [vmem:[%s0 + $0x10] sm:$0xf]
  %v19 = vld [vmem:[%s0 + $0x14] sm:$0xf]
  %v20 = vld [vmem:[%s0 + $0x18] sm:$0xf]
  %v21 = vld [vmem:[%s0 + $0x1c] sm:$0xf]
  %v22 = vld [vmem:[%s0 + $0x20] sm:$0xf]
  %v23 = vld [vmem:[%s0 + $0x24] sm:$0xf]
  %v24 = vld [vmem:[%s0 + $0x28] sm:$0xf]
  %v25 = vld [vmem:[%s0 + $0x2c] sm:$0xf]
  %v26 = vld [vmem:[%s0 + $0x30] sm:$0xf]
  %v27 = vld [vmem:[%s0 + $0x34] sm:$0xf]
  %v28 = vld [vmem:[%s0 + $0x38] sm:$0xf]
  %v29 = vld [vmem:[%s0 + $0x3c] sm:$0xf]
  %v30 = vld [vmem:[%s0 + $0x40] sm:$0xf]
  %v31 = vld [vmem:[%s0 + $0x44] sm:$0xf]
  %v32 = vld [vmem:[%s0 + $0x48] sm:$0xf]
  %v33 = vld [vmem:[%s0 + $0x4c] sm:$0xf]
  %v34 = vld [vmem:[%s0 + $0x50] sm:$0xf]
  %v35 = vld [vmem:[%s0 + $0x54] sm:$0xf]
  %v36 = vld [vmem:[%s0 + $0x58] sm:$0xf]
  %v37 = vld [vmem:[%s0 + $0x5c] sm:$0xf]
  %v38 = vld [vmem:[%s0 + $0x60] sm:$0xf]
  %v39 = vld [vmem:[%s0 + $0x64] sm:$0xf]
  %v40 = vld [vmem:[%s0 + $0x68] sm:$0xf]
  %v41 = vld [vmem:[%s0 + $0x6c] sm:$0xf]
  %v42 = vld [vmem:[%s0 + $0x70] sm:$0xf]
  %v43 = vld [vmem:[%s0 + $0x74] sm:$0xf]
  %v44 = vld [vmem:[%s0 + $0x78] sm:$0xf]
  %v45 = vld [vmem:[%s0 + $0x7c] sm:$0xf]
  %v46 = vld [vmem:[%s0 + $0x80] sm:$0xf]
  %v47 = vld [vmem:[%s0 + $0x84] sm:$0xf]
  %v48 = vld [vmem:[%s0 + $0x88] sm:$0xf]
  %v49 = vld [vmem:[%s0 + $0x8c] sm:$0xf]
  %v50 = vld [vmem:[%s0 + $0x90] sm:$0xf]
  %v51 = vld [vmem:[%s0 + $0x94] sm:$0xf]
  %v52 = vld [vmem:[%s0 + $0x98] sm:$0xf]
  %v53 = vld [vmem:[%s0 + $0x9c] sm:$0xf]
  %v54 = vld [vmem:[%s0 + $0xa0] sm:$0xf]
  %v55 = vld [vmem:[%s0 + $0xa4] sm:$0xf]
  %v56 = vld [vmem:[%s0 + $0xa8] sm:$0xf]
  %v57 = vld [vmem:[%s0 + $0xac] sm:$0xf]
  %v58 = vld [vmem:[%s0 + $0xb0] sm:$0xf]
  %v59 = vld [vmem:[%s0 + $0xb4] sm:$0xf]
  %v60 = vld [vmem:[%s0 + $0xb8] sm:$0xf]
  %v61 = vld [vmem:[%s0 + $0xbc] sm:$0xf]
  %v62 = vld [vmem:[%s0 + $0xc0] sm:$0xf]
  %v63 = vld [vmem:[%s0 + $0xc4] sm:$0xf]
  %v64 = vld [vmem:[%s0 + $0xc8] sm:$0xf]
  %v65 = vld [vmem:[%s0 + $0xcc] sm:$0xf]
  %v66 = vld [vmem:[%s0 + $0xd0] sm:$0xf]
  %v67 = vld [vmem:[%s0 + $0xd4] sm:$0xf]
  %v68 = vld [vmem:[%s0 + $0xd8] sm:$0xf]
  %v69 = vld [vmem:[%s0 + $0xdc] sm:$0xf]
  %v70 = vld [vmem:[%s0 + $0xe0] sm:$0xf]
  %v71 = vld [vmem:[%s0 + $0xe4] sm:$0xf]
  %v72 = vld [vmem:[%s0 + $0xe8] sm:$0xf]
  %v73 = vld [vmem:[%s0 + $0xec] sm:$0xf]
  %v74 = vld [vmem:[%s0 + $0xf0] sm:$0xf]
  %v75 = vld [vmem:[%s0 + $0xf4] sm:$0xf]
  %v76 = vld [vmem:[%s0 + $0xf8] sm:$0xf]
  %v77 = vld [vmem:[%s0 + $0xfc] sm:$0xf]
  %v78 = vld [vmem:[%s1] sm:$0xf]
  %v79 = vld [vmem:[%s1 + $0x4] sm:$0xf]
  %v80 = vld [vmem:[%s1 + $0x8] sm:$0xf]
  %v81 = vld [vmem:[%s1 + $0xc] sm:$0xf]
  %v82 = vld [vmem:[%s1 + $0x10] sm:$0xf]
  %v83 = vld [vmem:[%s1 + $0x14] sm:$0xf]
  %v84 = vld [vmem:[%s1 + $0x18] sm:$0xf]
  %v85 = vld [vmem:[%s1 + $0x1c] sm:$0xf]
  %v86 = vld [vmem:[%s1 + $0x20] sm:$0xf]
  %v87 = vld [vmem:[%s1 + $0x24] sm:$0xf]
  %v88 = vld [vmem:[%s1 + $0x28] sm:$0xf]
  %v89 = vld [vmem:[%s1 + $0x2c] sm:$0xf]
  %v90 = vld [vmem:[%s1 + $0x30] sm:$0xf]
  %v91 = vld [vmem:[%s1 + $0x34] sm:$0xf]
  %v92 = vld [vmem:[%s1 + $0x38] sm:$0xf]
  %v93 = vld [vmem:[%s1 + $0x3c] sm:$0xf]
  %v94 = vld [vmem:[%s2] sm:$0x1]
  %v96 = vperm.slane %v94, 0
  %v162 = vunpack.c.l.b16 %v14
  %v163 = vunpack.c.l.b16 %v15
  %v164 = vunpack.c.l.b16 %v16
  %v165 = vunpack.c.l.b16 %v17
  %v166 = vunpack.c.l.b16 %v18
  %v167 = vunpack.c.l.b16 %v19
  %v168 = vunpack.c.l.b16 %v20
  %v169 = vunpack.c.l.b16 %v21
  %v170 = vunpack.c.l.b16 %v22
  %v171 = vunpack.c.l.b16 %v23
  %v172 = vunpack.c.l.b16 %v24
  %v173 = vunpack.c.l.b16 %v25
  %v174 = vunpack.c.l.b16 %v26
  %v175 = vunpack.c.l.b16 %v27
  %v176 = vunpack.c.l.b16 %v28
  %v177 = vunpack.c.l.b16 %v29
  %v178 = vunpack.c.l.b16 %v30
  %v179 = vunpack.c.l.b16 %v31
  %v180 = vunpack.c.l.b16 %v32
  %v181 = vunpack.c.l.b16 %v33
  %v182 = vunpack.c.l.b16 %v34
  %v183 = vunpack.c.l.b16 %v35
  %v184 = vunpack.c.l.b16 %v36
  %v185 = vunpack.c.l.b16 %v37
  %v186 = vunpack.c.l.b16 %v38
  %v187 = vunpack.c.l.b16 %v39
  %v188 = vunpack.c.l.b16 %v40
  %v189 = vunpack.c.l.b16 %v41
  %v190 = vunpack.c.l.b16 %v42
  %v191 = vunpack.c.l.b16 %v43
  %v192 = vunpack.c.l.b16 %v44
  %v193 = vunpack.c.l.b16 %v45
  %v194 = vunpack.c.l.b16 %v46
  %v195 = vunpack.c.l.b16 %v47
  %v196 = vunpack.c.l.b16 %v48
  %v197 = vunpack.c.l.b16 %v49
  %v198 = vunpack.c.l.b16 %v50
  %v199 = vunpack.c.l.b16 %v51
  %v200 = vunpack.c.l.b16 %v52
  %v201 = vunpack.c.l.b16 %v53
  %v202 = vunpack.c.l.b16 %v54
  %v203 = vunpack.c.l.b16 %v55
  %v204 = vunpack.c.l.b16 %v56
  %v205 = vunpack.c.l.b16 %v57
  %v206 = vunpack.c.l.b16 %v58
  %v207 = vunpack.c.l.b16 %v59
  %v208 = vunpack.c.l.b16 %v60
  %v209 = vunpack.c.l.b16 %v61
  %v210 = vunpack.c.l.b16 %v62
  %v211 = vunpack.c.l.b16 %v63
  %v212 = vunpack.c.l.b16 %v64
  %v213 = vunpack.c.l.b16 %v65
  %v214 = vunpack.c.l.b16 %v66
  %v215 = vunpack.c.l.b16 %v67
  %v216 = vunpack.c.l.b16 %v68
  %v217 = vunpack.c.l.b16 %v69
  %v218 = vunpack.c.l.b16 %v70
  %v219 = vunpack.c.l.b16 %v71
  %v220 = vunpack.c.l.b16 %v72
  %v221 = vunpack.c.l.b16 %v73
  %v222 = vunpack.c.l.b16 %v74
  %v223 = vunpack.c.l.b16 %v75
  %v224 = vunpack.c.l.b16 %v76
  %v225 = vunpack.c.l.b16 %v77
  %v226 = vpack.c.b16 %v163, %v162
  %v227 = vpack.c.b16 %v165, %v164
  %v228 = vpack.c.b16 %v167, %v166
  %v229 = vpack.c.b16 %v169, %v168
  %v230 = vpack.c.b16 %v171, %v170
  %v231 = vpack.c.b16 %v173, %v172
  %v232 = vpack.c.b16 %v175, %v174
  %v233 = vpack.c.b16 %v177, %v176
  %v234 = vpack.c.b16 %v179, %v178
  %v235 = vpack.c.b16 %v181, %v180
  %v236 = vpack.c.b16 %v183, %v182
  %v237 = vpack.c.b16 %v185, %v184
  %v238 = vpack.c.b16 %v187, %v186
  %v239 = vpack.c.b16 %v189, %v188
  %v240 = vpack.c.b16 %v191, %v190
  %v241 = vpack.c.b16 %v193, %v192
  %v242 = vpack.c.b16 %v195, %v194
  %v243 = vpack.c.b16 %v197, %v196
  %v244 = vpack.c.b16 %v199, %v198
  %v245 = vpack.c.b16 %v201, %v200
  %v246 = vpack.c.b16 %v203, %v202
  %v247 = vpack.c.b16 %v205, %v204
  %v248 = vpack.c.b16 %v207, %v206
  %v249 = vpack.c.b16 %v209, %v208
  %v250 = vpack.c.b16 %v211, %v210
  %v251 = vpack.c.b16 %v213, %v212
  %v252 = vpack.c.b16 %v215, %v214
  %v253 = vpack.c.b16 %v217, %v216
  %v254 = vpack.c.b16 %v219, %v218
  %v255 = vpack.c.b16 %v221, %v220
  %v256 = vpack.c.b16 %v223, %v222
  %v257 = vpack.c.b16 %v225, %v224
  %v306 = vunpack.c.l.b16 %v78
  %v307 = vunpack.c.l.b16 %v79
  %v308 = vunpack.c.l.b16 %v80
  %v309 = vunpack.c.l.b16 %v81
  %v310 = vunpack.c.l.b16 %v82
  %v311 = vunpack.c.l.b16 %v83
  %v312 = vunpack.c.l.b16 %v84
  %v313 = vunpack.c.l.b16 %v85
  %v314 = vunpack.c.l.b16 %v86
  %v315 = vunpack.c.l.b16 %v87
  %v316 = vunpack.c.l.b16 %v88
  %v317 = vunpack.c.l.b16 %v89
  %v318 = vunpack.c.l.b16 %v90
  %v319 = vunpack.c.l.b16 %v91
  %v320 = vunpack.c.l.b16 %v92
  %v321 = vunpack.c.l.b16 %v93
  %v322 = vpack.c.b16 %v307, %v306
  %v323 = vpack.c.b16 %v309, %v308
  %v324 = vpack.c.b16 %v311, %v310
  %v325 = vpack.c.b16 %v313, %v312
  %v326 = vpack.c.b16 %v315, %v314
  %v327 = vpack.c.b16 %v317, %v316
  %v328 = vpack.c.b16 %v319, %v318
  %v329 = vpack.c.b16 %v321, %v320
  %338 = vmatpush.bf16.msra.mxu0 %v329
  %339 = vmatpush.bf16.msra.mxu0 %v328
  %340 = vmatpush.bf16.msra.mxu0 %v327
  %341 = vmatpush.bf16.msra.mxu0 %v326
  %342 = vmatpush.bf16.msra.mxu0 %v325
  %343 = vmatpush.bf16.msra.mxu0 %v324
  %344 = vmatpush.bf16.msra.mxu0 %v323
  %345 = vmatpush.bf16.msra.mxu0 %v322
  %346 = vmatmul.bf16.gmra.mxu0 %v226
  %v347 = vpop.f32.mrf.mxu0
  %v348 = vadd.f32 %v96, %v347
  %v349 = vpop.f32.mrf.mxu0
  %v350 = vadd.f32 %v96, %v349
  %351 = vmatmul.bf16.gmra.mxu0 %v227
  %v352 = vpop.f32.mrf.mxu0
  %v353 = vadd.f32 %v96, %v352
  %v354 = vpop.f32.mrf.mxu0
  %v355 = vadd.f32 %v96, %v354
  %356 = vmatmul.bf16.gmra.mxu0 %v228
  %v357 = vpop.f32.mrf.mxu0
  %v358 = vadd.f32 %v96, %v357
  %v359 = vpop.f32.mrf.mxu0
  %v360 = vadd.f32 %v96, %v359
  %361 = vmatmul.bf16.gmra.mxu0 %v229
  %v362 = vpop.f32.mrf.mxu0
  %v363 = vadd.f32 %v96, %v362
  %v364 = vpop.f32.mrf.mxu0
  %v365 = vadd.f32 %v96, %v364
  %366 = vmatmul.bf16.gmra.mxu0 %v230
  %v367 = vpop.f32.mrf.mxu0
  %v368 = vadd.f32 %v96, %v367
  %v369 = vpop.f32.mrf.mxu0
  %v370 = vadd.f32 %v96, %v369
  %371 = vmatmul.bf16.gmra.mxu0 %v231
  %v372 = vpop.f32.mrf.mxu0
  %v373 = vadd.f32 %v96, %v372
  %v374 = vpop.f32.mrf.mxu0
  %v375 = vadd.f32 %v96, %v374
  %376 = vmatmul.bf16.gmra.mxu0 %v232
  %v377 = vpop.f32.mrf.mxu0
  %v378 = vadd.f32 %v96, %v377
  %v379 = vpop.f32.mrf.mxu0
  %v380 = vadd.f32 %v96, %v379
  %381 = vmatmul.bf16.gmra.mxu0 %v233
  %v382 = vpop.f32.mrf.mxu0
  %v383 = vadd.f32 %v96, %v382
  %v384 = vpop.f32.mrf.mxu0
  %v385 = vadd.f32 %v96, %v384
  %386 = vmatmul.bf16.gmra.mxu0 %v234
  %v387 = vpop.f32.mrf.mxu0
  %v388 = vadd.f32 %v96, %v387
  %v389 = vpop.f32.mrf.mxu0
  %v390 = vadd.f32 %v96, %v389
  %391 = vmatmul.bf16.gmra.mxu0 %v235
  %v392 = vpop.f32.mrf.mxu0
  %v393 = vadd.f32 %v96, %v392
  %v394 = vpop.f32.mrf.mxu0
  %v395 = vadd.f32 %v96, %v394
  %396 = vmatmul.bf16.gmra.mxu0 %v236
  %v397 = vpop.f32.mrf.mxu0
  %v398 = vadd.f32 %v96, %v397
  %v399 = vpop.f32.mrf.mxu0
  %v400 = vadd.f32 %v96, %v399
  %401 = vmatmul.bf16.gmra.mxu0 %v237
  %v402 = vpop.f32.mrf.mxu0
  %v403 = vadd.f32 %v96, %v402
  %v404 = vpop.f32.mrf.mxu0
  %v405 = vadd.f32 %v96, %v404
  %406 = vmatmul.bf16.gmra.mxu0 %v238
  %v407 = vpop.f32.mrf.mxu0
  %v408 = vadd.f32 %v96, %v407
  %v409 = vpop.f32.mrf.mxu0
  %v410 = vadd.f32 %v96, %v409
  %411 = vmatmul.bf16.gmra.mxu0 %v239
  %v412 = vpop.f32.mrf.mxu0
  %v413 = vadd.f32 %v96, %v412
  %v414 = vpop.f32.mrf.mxu0
  %v415 = vadd.f32 %v96, %v414
  %416 = vmatmul.bf16.gmra.mxu0 %v240
  %v417 = vpop.f32.mrf.mxu0
  %v418 = vadd.f32 %v96, %v417
  %v419 = vpop.f32.mrf.mxu0
  %v420 = vadd.f32 %v96, %v419
  %421 = vmatmul.bf16.gmra.mxu0 %v241
  %v422 = vpop.f32.mrf.mxu0
  %v423 = vadd.f32 %v96, %v422
  %v424 = vpop.f32.mrf.mxu0
  %v425 = vadd.f32 %v96, %v424
  %426 = vmatmul.bf16.gmra.mxu0 %v242
  %v427 = vpop.f32.mrf.mxu0
  %v428 = vadd.f32 %v96, %v427
  %v429 = vpop.f32.mrf.mxu0
  %v430 = vadd.f32 %v96, %v429
  %431 = vmatmul.bf16.gmra.mxu0 %v243
  %v432 = vpop.f32.mrf.mxu0
  %v433 = vadd.f32 %v96, %v432
  %v434 = vpop.f32.mrf.mxu0
  %v435 = vadd.f32 %v96, %v434
  %436 = vmatmul.bf16.gmra.mxu0 %v244
  %v437 = vpop.f32.mrf.mxu0
  %v438 = vadd.f32 %v96, %v437
  %v439 = vpop.f32.mrf.mxu0
  %v440 = vadd.f32 %v96, %v439
  %441 = vmatmul.bf16.gmra.mxu0 %v245
  %v442 = vpop.f32.mrf.mxu0
  %v443 = vadd.f32 %v96, %v442
  %v444 = vpop.f32.mrf.mxu0
  %v445 = vadd.f32 %v96, %v444
  %446 = vmatmul.bf16.gmra.mxu0 %v246
  %v447 = vpop.f32.mrf.mxu0
  %v448 = vadd.f32 %v96, %v447
  %v449 = vpop.f32.mrf.mxu0
  %v450 = vadd.f32 %v96, %v449
  %451 = vmatmul.bf16.gmra.mxu0 %v247
  %v452 = vpop.f32.mrf.mxu0
  %v453 = vadd.f32 %v96, %v452
  %v454 = vpop.f32.mrf.mxu0
  %v455 = vadd.f32 %v96, %v454
  %456 = vmatmul.bf16.gmra.mxu0 %v248
  %v457 = vpop.f32.mrf.mxu0
  %v458 = vadd.f32 %v96, %v457
  %v459 = vpop.f32.mrf.mxu0
  %v460 = vadd.f32 %v96, %v459
  %461 = vmatmul.bf16.gmra.mxu0 %v249
  %v462 = vpop.f32.mrf.mxu0
  %v463 = vadd.f32 %v96, %v462
  %v464 = vpop.f32.mrf.mxu0
  %v465 = vadd.f32 %v96, %v464
  %466 = vmatmul.bf16.gmra.mxu0 %v250
  %v467 = vpop.f32.mrf.mxu0
  %v468 = vadd.f32 %v96, %v467
  %v469 = vpop.f32.mrf.mxu0
  %v470 = vadd.f32 %v96, %v469
  %471 = vmatmul.bf16.gmra.mxu0 %v251
  %v472 = vpop.f32.mrf.mxu0
  %v473 = vadd.f32 %v96, %v472
  %v474 = vpop.f32.mrf.mxu0
  %v475 = vadd.f32 %v96, %v474
  %476 = vmatmul.bf16.gmra.mxu0 %v252
  %v477 = vpop.f32.mrf.mxu0
  %v478 = vadd.f32 %v96, %v477
  %v479 = vpop.f32.mrf.mxu0
  %v480 = vadd.f32 %v96, %v479
  %481 = vmatmul.bf16.gmra.mxu0 %v253
  %v482 = vpop.f32.mrf.mxu0
  %v483 = vadd.f32 %v96, %v482
  %v484 = vpop.f32.mrf.mxu0
  %v485 = vadd.f32 %v96, %v484
  %486 = vmatmul.bf16.gmra.mxu0 %v254
  %v487 = vpop.f32.mrf.mxu0
  %v488 = vadd.f32 %v96, %v487
  %v489 = vpop.f32.mrf.mxu0
  %v490 = vadd.f32 %v96, %v489
  %491 = vmatmul.bf16.gmra.mxu0 %v255
  %v492 = vpop.f32.mrf.mxu0
  %v493 = vadd.f32 %v96, %v492
  %v494 = vpop.f32.mrf.mxu0
  %v495 = vadd.f32 %v96, %v494
  %496 = vmatmul.bf16.gmra.mxu0 %v256
  %v497 = vpop.f32.mrf.mxu0
  %v498 = vadd.f32 %v96, %v497
  %v499 = vpop.f32.mrf.mxu0
  %v500 = vadd.f32 %v96, %v499
  %501 = vmatmul.bf16.gmra.mxu0 %v257
  %v502 = vpop.f32.mrf.mxu0
  %v503 = vadd.f32 %v96, %v502
  %v504 = vpop.f32.mrf.mxu0
  %v505 = vadd.f32 %v96, %v504
  %506 = vdwg.mxu0
  %vm507 = vcmp.ge.f32.partialorder %v348, 0.0
  %vm508 = vcmp.ge.f32.partialorder %v350, 0.0
  %vm509 = vcmp.ge.f32.partialorder %v353, 0.0
  %vm510 = vcmp.ge.f32.partialorder %v355, 0.0
  %vm511 = vcmp.ge.f32.partialorder %v358, 0.0
  %vm512 = vcmp.ge.f32.partialorder %v360, 0.0
  %vm513 = vcmp.ge.f32.partialorder %v363, 0.0
  %vm514 = vcmp.ge.f32.partialorder %v365, 0.0
  %vm515 = vcmp.ge.f32.partialorder %v368, 0.0
  %vm516 = vcmp.ge.f32.partialorder %v370, 0.0
  %vm517 = vcmp.ge.f32.partialorder %v373, 0.0
  %vm518 = vcmp.ge.f32.partialorder %v375, 0.0
  %vm519 = vcmp.ge.f32.partialorder %v378, 0.0
  %vm520 = vcmp.ge.f32.partialorder %v380, 0.0
  %vm521 = vcmp.ge.f32.partialorder %v383, 0.0
  %vm522 = vcmp.ge.f32.partialorder %v385, 0.0
  %vm523 = vcmp.ge.f32.partialorder %v388, 0.0
  %vm524 = vcmp.ge.f32.partialorder %v390, 0.0
  %vm525 = vcmp.ge.f32.partialorder %v393, 0.0
  %vm526 = vcmp.ge.f32.partialorder %v395, 0.0
  %vm527 = vcmp.ge.f32.partialorder %v398, 0.0
  %vm528 = vcmp.ge.f32.partialorder %v400, 0.0
  %vm529 = vcmp.ge.f32.partialorder %v403, 0.0
  %vm530 = vcmp.ge.f32.partialorder %v405, 0.0
  %vm531 = vcmp.ge.f32.partialorder %v408, 0.0
  %vm532 = vcmp.ge.f32.partialorder %v410, 0.0
  %vm533 = vcmp.ge.f32.partialorder %v413, 0.0
  %vm534 = vcmp.ge.f32.partialorder %v415, 0.0
  %vm535 = vcmp.ge.f32.partialorder %v418, 0.0
  %vm536 = vcmp.ge.f32.partialorder %v420, 0.0
  %vm537 = vcmp.ge.f32.partialorder %v423, 0.0
  %vm538 = vcmp.ge.f32.partialorder %v425, 0.0
  %vm539 = vcmp.ge.f32.partialorder %v428, 0.0
  %vm540 = vcmp.ge.f32.partialorder %v430, 0.0
  %vm541 = vcmp.ge.f32.partialorder %v433, 0.0
  %vm542 = vcmp.ge.f32.partialorder %v435, 0.0
  %vm543 = vcmp.ge.f32.partialorder %v438, 0.0
  %vm544 = vcmp.ge.f32.partialorder %v440, 0.0
  %vm545 = vcmp.ge.f32.partialorder %v443, 0.0
  %vm546 = vcmp.ge.f32.partialorder %v445, 0.0
  %vm547 = vcmp.ge.f32.partialorder %v448, 0.0
  %vm548 = vcmp.ge.f32.partialorder %v450, 0.0
  %vm549 = vcmp.ge.f32.partialorder %v453, 0.0
  %vm550 = vcmp.ge.f32.partialorder %v455, 0.0
  %vm551 = vcmp.ge.f32.partialorder %v458, 0.0
  %vm552 = vcmp.ge.f32.partialorder %v460, 0.0
  %vm553 = vcmp.ge.f32.partialorder %v463, 0.0
  %vm554 = vcmp.ge.f32.partialorder %v465, 0.0
  %vm555 = vcmp.ge.f32.partialorder %v468, 0.0
  %vm556 = vcmp.ge.f32.partialorder %v470, 0.0
  %vm557 = vcmp.ge.f32.partialorder %v473, 0.0
  %vm558 = vcmp.ge.f32.partialorder %v475, 0.0
  %vm559 = vcmp.ge.f32.partialorder %v478, 0.0
  %vm560 = vcmp.ge.f32.partialorder %v480, 0.0
  %vm561 = vcmp.ge.f32.partialorder %v483, 0.0
  %vm562 = vcmp.ge.f32.partialorder %v485, 0.0
  %vm563 = vcmp.ge.f32.partialorder %v488, 0.0
  %vm564 = vcmp.ge.f32.partialorder %v490, 0.0
  %vm565 = vcmp.ge.f32.partialorder %v493, 0.0
  %vm566 = vcmp.ge.f32.partialorder %v495, 0.0
  %vm567 = vcmp.ge.f32.partialorder %v498, 0.0
  %vm568 = vcmp.ge.f32.partialorder %v500, 0.0
  %vm569 = vcmp.ge.f32.partialorder %v503, 0.0
  %vm570 = vcmp.ge.f32.partialorder %v505, 0.0
  %v571 = vmul.f32 %v348, 0.2
  %v572 = vmul.f32 %v350, 0.2
  %v573 = vmul.f32 %v353, 0.2
  %v574 = vmul.f32 %v355, 0.2
  %v575 = vmul.f32 %v358, 0.2
  %v576 = vmul.f32 %v360, 0.2
  %v577 = vmul.f32 %v363, 0.2
  %v578 = vmul.f32 %v365, 0.2
  %v579 = vmul.f32 %v368, 0.2
  %v580 = vmul.f32 %v370, 0.2
  %v581 = vmul.f32 %v373, 0.2
  %v582 = vmul.f32 %v375, 0.2
  %v583 = vmul.f32 %v378, 0.2
  %v584 = vmul.f32 %v380, 0.2
  %v585 = vmul.f32 %v383, 0.2
  %v586 = vmul.f32 %v385, 0.2
  %v587 = vmul.f32 %v388, 0.2
  %v588 = vmul.f32 %v390, 0.2
  %v589 = vmul.f32 %v393, 0.2
  %v590 = vmul.f32 %v395, 0.2
  %v591 = vmul.f32 %v398, 0.2
  %v592 = vmul.f32 %v400, 0.2
  %v593 = vmul.f32 %v403, 0.2
  %v594 = vmul.f32 %v405, 0.2
  %v595 = vmul.f32 %v408, 0.2
  %v596 = vmul.f32 %v410, 0.2
  %v597 = vmul.f32 %v413, 0.2
  %v598 = vmul.f32 %v415, 0.2
  %v599 = vmul.f32 %v418, 0.2
  %v600 = vmul.f32 %v420, 0.2
  %v601 = vmul.f32 %v423, 0.2
  %v602 = vmul.f32 %v425, 0.2
  %v603 = vmul.f32 %v428, 0.2
  %v604 = vmul.f32 %v430, 0.2
  %v605 = vmul.f32 %v433, 0.2
  %v606 = vmul.f32 %v435, 0.2
  %v607 = vmul.f32 %v438, 0.2
  %v608 = vmul.f32 %v440, 0.2
  %v609 = vmul.f32 %v443, 0.2
  %v610 = vmul.f32 %v445, 0.2
  %v611 = vmul.f32 %v448, 0.2
  %v612 = vmul.f32 %v450, 0.2
  %v613 = vmul.f32 %v453, 0.2
  %v614 = vmul.f32 %v455, 0.2
  %v615 = vmul.f32 %v458, 0.2
  %v616 = vmul.f32 %v460, 0.2
  %v617 = vmul.f32 %v463, 0.2
  %v618 = vmul.f32 %v465, 0.2
  %v619 = vmul.f32 %v468, 0.2
  %v620 = vmul.f32 %v470, 0.2
  %v621 = vmul.f32 %v473, 0.2
  %v622 = vmul.f32 %v475, 0.2
  %v623 = vmul.f32 %v478, 0.2
  %v624 = vmul.f32 %v480, 0.2
  %v625 = vmul.f32 %v483, 0.2
  %v626 = vmul.f32 %v485, 0.2
  %v627 = vmul.f32 %v488, 0.2
  %v628 = vmul.f32 %v490, 0.2
  %v629 = vmul.f32 %v493, 0.2
  %v630 = vmul.f32 %v495, 0.2
  %v631 = vmul.f32 %v498, 0.2
  %v632 = vmul.f32 %v500, 0.2
  %v633 = vmul.f32 %v503, 0.2
  %v634 = vmul.f32 %v505, 0.2
  %v635 = vsel %vm507, %v348, %v571
  %v636 = vsel %vm508, %v350, %v572
  %v637 = vsel %vm509, %v353, %v573
  %v638 = vsel %vm510, %v355, %v574
  %v639 = vsel %vm511, %v358, %v575
  %v640 = vsel %vm512, %v360, %v576
  %v641 = vsel %vm513, %v363, %v577
  %v642 = vsel %vm514, %v365, %v578
  %v643 = vsel %vm515, %v368, %v579
  %v644 = vsel %vm516, %v370, %v580
  %v645 = vsel %vm517, %v373, %v581
  %v646 = vsel %vm518, %v375, %v582
  %v647 = vsel %vm519, %v378, %v583
  %v648 = vsel %vm520, %v380, %v584
  %v649 = vsel %vm521, %v383, %v585
  %v650 = vsel %vm522, %v385, %v586
  %v651 = vsel %vm523, %v388, %v587
  %v652 = vsel %vm524, %v390, %v588
  %v653 = vsel %vm525, %v393, %v589
  %v654 = vsel %vm526, %v395, %v590
  %v655 = vsel %vm527, %v398, %v591
  %v656 = vsel %vm528, %v400, %v592
  %v657 = vsel %vm529, %v403, %v593
  %v658 = vsel %vm530, %v405, %v594
  %v659 = vsel %vm531, %v408, %v595
  %v660 = vsel %vm532, %v410, %v596
  %v661 = vsel %vm533, %v413, %v597
  %v662 = vsel %vm534, %v415, %v598
  %v663 = vsel %vm535, %v418, %v599
  %v664 = vsel %vm536, %v420, %v600
  %v665 = vsel %vm537, %v423, %v601
  %v666 = vsel %vm538, %v425, %v602
  %v667 = vsel %vm539, %v428, %v603
  %v668 = vsel %vm540, %v430, %v604
  %v669 = vsel %vm541, %v433, %v605
  %v670 = vsel %vm542, %v435, %v606
  %v671 = vsel %vm543, %v438, %v607
  %v672 = vsel %vm544, %v440, %v608
  %v673 = vsel %vm545, %v443, %v609
  %v674 = vsel %vm546, %v445, %v610
  %v675 = vsel %vm547, %v448, %v611
  %v676 = vsel %vm548, %v450, %v612
  %v677 = vsel %vm549, %v453, %v613
  %v678 = vsel %vm550, %v455, %v614
  %v679 = vsel %vm551, %v458, %v615
  %v680 = vsel %vm552, %v460, %v616
  %v681 = vsel %vm553, %v463, %v617
  %v682 = vsel %vm554, %v465, %v618
  %v683 = vsel %vm555, %v468, %v619
  %v684 = vsel %vm556, %v470, %v620
  %v685 = vsel %vm557, %v473, %v621
  %v686 = vsel %vm558, %v475, %v622
  %v687 = vsel %vm559, %v478, %v623
  %v688 = vsel %vm560, %v480, %v624
  %v689 = vsel %vm561, %v483, %v625
  %v690 = vsel %vm562, %v485, %v626
  %v691 = vsel %vm563, %v488, %v627
  %v692 = vsel %vm564, %v490, %v628
  %v693 = vsel %vm565, %v493, %v629
  %v694 = vsel %vm566, %v495, %v630
  %v695 = vsel %vm567, %v498, %v631
  %v696 = vsel %vm568, %v500, %v632
  %v697 = vsel %vm569, %v503, %v633
  %v698 = vsel %vm570, %v505, %v634
  %v699 = vpack.c.bf16 %v635, %v635
  %v700 = vpack.c.bf16 %v636, %v636
  %v701 = vpack.c.bf16 %v637, %v637
  %v702 = vpack.c.bf16 %v638, %v638
  %v703 = vpack.c.bf16 %v639, %v639
  %v704 = vpack.c.bf16 %v640, %v640
  %v705 = vpack.c.bf16 %v641, %v641
  %v706 = vpack.c.bf16 %v642, %v642
  %v707 = vpack.c.bf16 %v643, %v643
  %v708 = vpack.c.bf16 %v644, %v644
  %v709 = vpack.c.bf16 %v645, %v645
  %v710 = vpack.c.bf16 %v646, %v646
  %v711 = vpack.c.bf16 %v647, %v647
  %v712 = vpack.c.bf16 %v648, %v648
  %v713 = vpack.c.bf16 %v649, %v649
  %v714 = vpack.c.bf16 %v650, %v650
  %v715 = vpack.c.bf16 %v651, %v651
  %v716 = vpack.c.bf16 %v652, %v652
  %v717 = vpack.c.bf16 %v653, %v653
  %v718 = vpack.c.bf16 %v654, %v654
  %v719 = vpack.c.bf16 %v655, %v655
  %v720 = vpack.c.bf16 %v656, %v656
  %v721 = vpack.c.bf16 %v657, %v657
  %v722 = vpack.c.bf16 %v658, %v658
  %v723 = vpack.c.bf16 %v659, %v659
  %v724 = vpack.c.bf16 %v660, %v660
  %v725 = vpack.c.bf16 %v661, %v661
  %v726 = vpack.c.bf16 %v662, %v662
  %v727 = vpack.c.bf16 %v663, %v663
  %v728 = vpack.c.bf16 %v664, %v664
  %v729 = vpack.c.bf16 %v665, %v665
  %v730 = vpack.c.bf16 %v666, %v666
  %v731 = vpack.c.bf16 %v667, %v667
  %v732 = vpack.c.bf16 %v668, %v668
  %v733 = vpack.c.bf16 %v669, %v669
  %v734 = vpack.c.bf16 %v670, %v670
  %v735 = vpack.c.bf16 %v671, %v671
  %v736 = vpack.c.bf16 %v672, %v672
  %v737 = vpack.c.bf16 %v673, %v673
  %v738 = vpack.c.bf16 %v674, %v674
  %v739 = vpack.c.bf16 %v675, %v675
  %v740 = vpack.c.bf16 %v676, %v676
  %v741 = vpack.c.bf16 %v677, %v677
  %v742 = vpack.c.bf16 %v678, %v678
  %v743 = vpack.c.bf16 %v679, %v679
  %v744 = vpack.c.bf16 %v680, %v680
  %v745 = vpack.c.bf16 %v681, %v681
  %v746 = vpack.c.bf16 %v682, %v682
  %v747 = vpack.c.bf16 %v683, %v683
  %v748 = vpack.c.bf16 %v684, %v684
  %v749 = vpack.c.bf16 %v685, %v685
  %v750 = vpack.c.bf16 %v686, %v686
  %v751 = vpack.c.bf16 %v687, %v687
  %v752 = vpack.c.bf16 %v688, %v688
  %v753 = vpack.c.bf16 %v689, %v689
  %v754 = vpack.c.bf16 %v690, %v690
  %v755 = vpack.c.bf16 %v691, %v691
  %v756 = vpack.c.bf16 %v692, %v692
  %v757 = vpack.c.bf16 %v693, %v693
  %v758 = vpack.c.bf16 %v694, %v694
  %v759 = vpack.c.bf16 %v695, %v695
  %v760 = vpack.c.bf16 %v696, %v696
  %v761 = vpack.c.bf16 %v697, %v697
  %v762 = vpack.c.bf16 %v698, %v698
  %763 = vst [vmem:[%s3] sm:$0xf] %v699
  %764 = vst [vmem:[%s3 + $0x4] sm:$0xf] %v700
  %765 = vst [vmem:[%s3 + $0x8] sm:$0xf] %v701
  %766 = vst [vmem:[%s3 + $0xc] sm:$0xf] %v702
  %767 = vst [vmem:[%s3 + $0x10] sm:$0xf] %v703
  %768 = vst [vmem:[%s3 + $0x14] sm:$0xf] %v704
  %769 = vst [vmem:[%s3 + $0x18] sm:$0xf] %v705
  %770 = vst [vmem:[%s3 + $0x1c] sm:$0xf] %v706
  %771 = vst [vmem:[%s3 + $0x20] sm:$0xf] %v707
  %772 = vst [vmem:[%s3 + $0x24] sm:$0xf] %v708
  %773 = vst [vmem:[%s3 + $0x28] sm:$0xf] %v709
  %774 = vst [vmem:[%s3 + $0x2c] sm:$0xf] %v710
  %775 = vst [vmem:[%s3 + $0x30] sm:$0xf] %v711
  %776 = vst [vmem:[%s3 + $0x34] sm:$0xf] %v712
  %777 = vst [vmem:[%s3 + $0x38] sm:$0xf] %v713
  %778 = vst [vmem:[%s3 + $0x3c] sm:$0xf] %v714
  %779 = vst [vmem:[%s3 + $0x40] sm:$0xf] %v715
  %780 = vst [vmem:[%s3 + $0x44] sm:$0xf] %v716
  %781 = vst [vmem:[%s3 + $0x48] sm:$0xf] %v717
  %782 = vst [vmem:[%s3 + $0x4c] sm:$0xf] %v718
  %783 = vst [vmem:[%s3 + $0x50] sm:$0xf] %v719
  %784 = vst [vmem:[%s3 + $0x54] sm:$0xf] %v720
  %785 = vst [vmem:[%s3 + $0x58] sm:$0xf] %v721
  %786 = vst [vmem:[%s3 + $0x5c] sm:$0xf] %v722
  %787 = vst [vmem:[%s3 + $0x60] sm:$0xf] %v723
  %788 = vst [vmem:[%s3 + $0x64] sm:$0xf] %v724
  %789 = vst [vmem:[%s3 + $0x68] sm:$0xf] %v725
  %790 = vst [vmem:[%s3 + $0x6c] sm:$0xf] %v726
  %791 = vst [vmem:[%s3 + $0x70] sm:$0xf] %v727
  %792 = vst [vmem:[%s3 + $0x74] sm:$0xf] %v728
  %793 = vst [vmem:[%s3 + $0x78] sm:$0xf] %v729
  %794 = vst [vmem:[%s3 + $0x7c] sm:$0xf] %v730
  %795 = vst [vmem:[%s3 + $0x80] sm:$0xf] %v731
  %796 = vst [vmem:[%s3 + $0x84] sm:$0xf] %v732
  %797 = vst [vmem:[%s3 + $0x88] sm:$0xf] %v733
  %798 = vst [vmem:[%s3 + $0x8c] sm:$0xf] %v734
  %799 = vst [vmem:[%s3 + $0x90] sm:$0xf] %v735
  %800 = vst [vmem:[%s3 + $0x94] sm:$0xf] %v736
  %801 = vst [vmem:[%s3 + $0x98] sm:$0xf] %v737
  %802 = vst [vmem:[%s3 + $0x9c] sm:$0xf] %v738
  %803 = vst [vmem:[%s3 + $0xa0] sm:$0xf] %v739
  %804 = vst [vmem:[%s3 + $0xa4] sm:$0xf] %v740
  %805 = vst [vmem:[%s3 + $0xa8] sm:$0xf] %v741
  %806 = vst [vmem:[%s3 + $0xac] sm:$0xf] %v742
  %807 = vst [vmem:[%s3 + $0xb0] sm:$0xf] %v743
  %808 = vst [vmem:[%s3 + $0xb4] sm:$0xf] %v744
  %809 = vst [vmem:[%s3 + $0xb8] sm:$0xf] %v745
  %810 = vst [vmem:[%s3 + $0xbc] sm:$0xf] %v746
  %811 = vst [vmem:[%s3 + $0xc0] sm:$0xf] %v747
  %812 = vst [vmem:[%s3 + $0xc4] sm:$0xf] %v748
  %813 = vst [vmem:[%s3 + $0xc8] sm:$0xf] %v749
  %814 = vst [vmem:[%s3 + $0xcc] sm:$0xf] %v750
  %815 = vst [vmem:[%s3 + $0xd0] sm:$0xf] %v751
  %816 = vst [vmem:[%s3 + $0xd4] sm:$0xf] %v752
  %817 = vst [vmem:[%s3 + $0xd8] sm:$0xf] %v753
  %818 = vst [vmem:[%s3 + $0xdc] sm:$0xf] %v754
  %819 = vst [vmem:[%s3 + $0xe0] sm:$0xf] %v755
  %820 = vst [vmem:[%s3 + $0xe4] sm:$0xf] %v756
  %821 = vst [vmem:[%s3 + $0xe8] sm:$0xf] %v757
  %822 = vst [vmem:[%s3 + $0xec] sm:$0xf] %v758
  %823 = vst [vmem:[%s3 + $0xf0] sm:$0xf] %v759
  %824 = vst [vmem:[%s3 + $0xf4] sm:$0xf] %v760
  %825 = vst [vmem:[%s3 + $0xf8] sm:$0xf] %v761
  %826 = vst [vmem:[%s3 + $0xfc] sm:$0xf] %v762
  // Predicated region
  $region14: #{_lambda_.8} parent=0 // pred_check
    _
  $region15: #{_lambda_.8} parent=0 // pred_check_branch
    %828 = sbr.rel (0) target = $region17
  $region16: #{_lambda_.8} parent=0 // pred_region
    _
  $region17: #{_lambda_.8} parent=0 // pred_fallthru
    _
  // Predicated region
  $region18: #{_lambda_.8} parent=0 // pred_check
    _
  $region19: #{_lambda_.8} parent=0 // pred_check_branch
    %830 = sbr.rel (0) target = $region21
  $region20: #{_lambda_.8} parent=0 // pred_region
    _
  $region21: #{_lambda_.8} parent=0 // pred_fallthru
    _

// kernel: _lambda_.10
$region0: #{_lambda_.10}
  #allocation0 [shape = 'u32[]', space=smem, size = 0x4, offset = 0x4, fixed_abs, tag = 'smem constant byte address 0x4 - core index']
  #allocation1 [shape = 'u32[72,128]{1,0:T(1,128)}', space=vmem, size = 0x9000, scoped, tag = 'internal scratch']
  %s0 = inlined_call_operand.vmem [shape: bf16[128,128], index: 0, kind: input, shape index: {}]
  %s1 = inlined_call_operand.vmem [shape: f32[1,128], index: 1, kind: input, shape index: {}]
  %s2 = inlined_call_operand.vmem [shape: f32[1,128], index: 2, kind: input, shape index: {}]
  %s3 = inlined_call_operand.vmem [shape: bf16[128,128], index: 3, kind: output, shape index: {}]
  %s4 = sld [smem:[#allocation0]]
  $region22: #{_lambda_.10} parent=0
    _
  %s6 = ssub.s32 1, %s4
  %s7 = scalar_select 0, %s6, %s4
  // Predicated region
  $region2: #{_lambda_.10} parent=0 // pred_check
    _
  $region3: #{_lambda_.10} parent=0 // pred_check_branch
    %9 = sbr.rel (0) target = $region5
  $region4: #{_lambda_.10} parent=0 // pred_region
    _
  $region5: #{_lambda_.10} parent=0 // pred_fallthru
    _
  // Predicated region
  $region6: #{_lambda_.10} parent=0 // pred_check
    _
  $region7: #{_lambda_.10} parent=0 // pred_check_branch
    %11 = sbr.rel (0) target = $region9
  $region8: #{_lambda_.10} parent=0 // pred_region
    _
  $region9: #{_lambda_.10} parent=0 // pred_fallthru
    _
  // Predicated region
  $region10: #{_lambda_.10} parent=0 // pred_check
    _
  $region11: #{_lambda_.10} parent=0 // pred_check_branch
    %13 = sbr.rel (0) target = $region13
  $region12: #{_lambda_.10} parent=0 // pred_region
    _
  $region13: #{_lambda_.10} parent=0 // pred_fallthru
    _
  %v14 = vld [vmem:[%s0] sm:$0xf]
  %v15 = vld [vmem:[%s0 + $0x4] sm:$0xf]
  %v16 = vld [vmem:[%s0 + $0x8] sm:$0xf]
  %v17 = vld [vmem:[%s0 + $0xc] sm:$0xf]
  %v18 = vld [vmem:[%s0 + $0x10] sm:$0xf]
  %v19 = vld [vmem:[%s0 + $0x14] sm:$0xf]
  %v20 = vld [vmem:[%s0 + $0x18] sm:$0xf]
  %v21 = vld [vmem:[%s0 + $0x1c] sm:$0xf]
  %v22 = vld [vmem:[%s0 + $0x20] sm:$0xf]
  %v23 = vld [vmem:[%s0 + $0x24] sm:$0xf]
  %v24 = vld [vmem:[%s0 + $0x28] sm:$0xf]
  %v25 = vld [vmem:[%s0 + $0x2c] sm:$0xf]
  %v26 = vld [vmem:[%s0 + $0x30] sm:$0xf]
  %v27 = vld [vmem:[%s0 + $0x34] sm:$0xf]
  %v28 = vld [vmem:[%s0 + $0x38] sm:$0xf]
  %v29 = vld [vmem:[%s0 + $0x3c] sm:$0xf]
  %v30 = vunpack.c.l.bf16 %v14
  %v31 = vunpack.c.l.bf16 %v15
  %v32 = vunpack.c.l.bf16 %v16
  %v33 = vunpack.c.l.bf16 %v17
  %v34 = vunpack.c.l.bf16 %v18
  %v35 = vunpack.c.l.bf16 %v19
  %v36 = vunpack.c.l.bf16 %v20
  %v37 = vunpack.c.l.bf16 %v21
  %v38 = vunpack.c.l.bf16 %v22
  %v39 = vunpack.c.l.bf16 %v23
  %v40 = vunpack.c.l.bf16 %v24
  %v41 = vunpack.c.l.bf16 %v25
  %v42 = vunpack.c.l.bf16 %v26
  %v43 = vunpack.c.l.bf16 %v27
  %v44 = vunpack.c.l.bf16 %v28
  %v45 = vunpack.c.l.bf16 %v29
  %v46 = vld [vmem:[%s1] sm:$0x1]
  %v48 = vperm.slane %v46, 0
  %v50 = vmul.f32 %v30, %v48
  %v51 = vmul.f32 %v31, %v48
  %v52 = vmul.f32 %v32, %v48
  %v53 = vmul.f32 %v33, %v48
  %v54 = vmul.f32 %v34, %v48
  %v55 = vmul.f32 %v35, %v48
  %v56 = vmul.f32 %v36, %v48
  %v57 = vmul.f32 %v37, %v48
  %v58 = vmul.f32 %v38, %v48
  %v59 = vmul.f32 %v39, %v48
  %v60 = vmul.f32 %v40, %v48
  %v61 = vmul.f32 %v41, %v48
  %v62 = vmul.f32 %v42, %v48
  %v63 = vmul.f32 %v43, %v48
  %v64 = vmul.f32 %v44, %v48
  %v65 = vmul.f32 %v45, %v48
  %v66 = vld [vmem:[%s2] sm:$0x1]
  %v68 = vperm.slane %v66, 0
  %v70 = vadd.f32 %v50, %v68
  %v71 = vadd.f32 %v51, %v68
  %v72 = vadd.f32 %v52, %v68
  %v73 = vadd.f32 %v53, %v68
  %v74 = vadd.f32 %v54, %v68
  %v75 = vadd.f32 %v55, %v68
  %v76 = vadd.f32 %v56, %v68
  %v77 = vadd.f32 %v57, %v68
  %v78 = vadd.f32 %v58, %v68
  %v79 = vadd.f32 %v59, %v68
  %v80 = vadd.f32 %v60, %v68
  %v81 = vadd.f32 %v61, %v68
  %v82 = vadd.f32 %v62, %v68
  %v83 = vadd.f32 %v63, %v68
  %v84 = vadd.f32 %v64, %v68
  %v85 = vadd.f32 %v65, %v68
  %vm86 = vcmp.ge.f32.partialorder %v70, 0.0
  %vm87 = vcmp.ge.f32.partialorder %v71, 0.0
  %vm88 = vcmp.ge.f32.partialorder %v72, 0.0
  %vm89 = vcmp.ge.f32.partialorder %v73, 0.0
  %vm90 = vcmp.ge.f32.partialorder %v74, 0.0
  %vm91 = vcmp.ge.f32.partialorder %v75, 0.0
  %vm92 = vcmp.ge.f32.partialorder %v76, 0.0
  %vm93 = vcmp.ge.f32.partialorder %v77, 0.0
  %vm94 = vcmp.ge.f32.partialorder %v78, 0.0
  %vm95 = vcmp.ge.f32.partialorder %v79, 0.0
  %vm96 = vcmp.ge.f32.partialorder %v80, 0.0
  %vm97 = vcmp.ge.f32.partialorder %v81, 0.0
  %vm98 = vcmp.ge.f32.partialorder %v82, 0.0
  %vm99 = vcmp.ge.f32.partialorder %v83, 0.0
  %vm100 = vcmp.ge.f32.partialorder %v84, 0.0
  %vm101 = vcmp.ge.f32.partialorder %v85, 0.0
  %v102 = vmul.f32 %v70, 0.2
  %v103 = vmul.f32 %v71, 0.2
  %v104 = vmul.f32 %v72, 0.2
  %v105 = vmul.f32 %v73, 0.2
  %v106 = vmul.f32 %v74, 0.2
  %v107 = vmul.f32 %v75, 0.2
  %v108 = vmul.f32 %v76, 0.2
  %v109 = vmul.f32 %v77, 0.2
  %v110 = vmul.f32 %v78, 0.2
  %v111 = vmul.f32 %v79, 0.2
  %v112 = vmul.f32 %v80, 0.2
  %v113 = vmul.f32 %v81, 0.2
  %v114 = vmul.f32 %v82, 0.2
  %v115 = vmul.f32 %v83, 0.2
  %v116 = vmul.f32 %v84, 0.2
  %v117 = vmul.f32 %v85, 0.2
  %v118 = vsel %vm86, %v70, %v102
  %v119 = vsel %vm87, %v71, %v103
  %v120 = vsel %vm88, %v72, %v104
  %v121 = vsel %vm89, %v73, %v105
  %v122 = vsel %vm90, %v74, %v106
  %v123 = vsel %vm91, %v75, %v107
  %v124 = vsel %vm92, %v76, %v108
  %v125 = vsel %vm93, %v77, %v109
  %v126 = vsel %vm94, %v78, %v110
  %v127 = vsel %vm95, %v79, %v111
  %v128 = vsel %vm96, %v80, %v112
  %v129 = vsel %vm97, %v81, %v113
  %v130 = vsel %vm98, %v82, %v114
  %v131 = vsel %vm99, %v83, %v115
  %v132 = vsel %vm100, %v84, %v116
  %v133 = vsel %vm101, %v85, %v117
  %v134 = vpack.c.bf16 %v118, %v118
  %v135 = vpack.c.bf16 %v119, %v119
  %v136 = vpack.c.bf16 %v120, %v120
  %v137 = vpack.c.bf16 %v121, %v121
  %v138 = vpack.c.bf16 %v122, %v122
  %v139 = vpack.c.bf16 %v123, %v123
  %v140 = vpack.c.bf16 %v124, %v124
  %v141 = vpack.c.bf16 %v125, %v125
  %v142 = vpack.c.bf16 %v126, %v126
  %v143 = vpack.c.bf16 %v127, %v127
  %v144 = vpack.c.bf16 %v128, %v128
  %v145 = vpack.c.bf16 %v129, %v129
  %v146 = vpack.c.bf16 %v130, %v130
  %v147 = vpack.c.bf16 %v131, %v131
  %v148 = vpack.c.bf16 %v132, %v132
  %v149 = vpack.c.bf16 %v133, %v133
  %150 = vst [vmem:[%s3] sm:$0xf] %v134
  %151 = vst [vmem:[%s3 + $0x4] sm:$0xf] %v135
  %152 = vst [vmem:[%s3 + $0x8] sm:$0xf] %v136
  %153 = vst [vmem:[%s3 + $0xc] sm:$0xf] %v137
  %154 = vst [vmem:[%s3 + $0x10] sm:$0xf] %v138
  %155 = vst [vmem:[%s3 + $0x14] sm:$0xf] %v139
  %156 = vst [vmem:[%s3 + $0x18] sm:$0xf] %v140
  %157 = vst [vmem:[%s3 + $0x1c] sm:$0xf] %v141
  %158 = vst [vmem:[%s3 + $0x20] sm:$0xf] %v142
  %159 = vst [vmem:[%s3 + $0x24] sm:$0xf] %v143
  %160 = vst [vmem:[%s3 + $0x28] sm:$0xf] %v144
  %161 = vst [vmem:[%s3 + $0x2c] sm:$0xf] %v145
  %162 = vst [vmem:[%s3 + $0x30] sm:$0xf] %v146
  %163 = vst [vmem:[%s3 + $0x34] sm:$0xf] %v147
  %164 = vst [vmem:[%s3 + $0x38] sm:$0xf] %v148
  %165 = vst [vmem:[%s3 + $0x3c] sm:$0xf] %v149
  // Predicated region
  $region14: #{_lambda_.10} parent=0 // pred_check
    _
  $region15: #{_lambda_.10} parent=0 // pred_check_branch
    %167 = sbr.rel (0) target = $region17
  $region16: #{_lambda_.10} parent=0 // pred_region
    _
  $region17: #{_lambda_.10} parent=0 // pred_fallthru
    _
  // Predicated region
  $region18: #{_lambda_.10} parent=0 // pred_check
    _
  $region19: #{_lambda_.10} parent=0 // pred_check_branch
    %169 = sbr.rel (0) target = $region21
  $region20: #{_lambda_.10} parent=0 // pred_region
    _
  $region21: #{_lambda_.10} parent=0 // pred_fallthru
    _

// kernel: _lambda_.9
$region0: #{_lambda_.9}
  #allocation0 [shape = 'u32[]', space=smem, size = 0x4, offset = 0x4, fixed_abs, tag = 'smem constant byte address 0x4 - core index']
  #allocation1 [shape = 'u32[72,128]{1,0:T(1,128)}', space=vmem, size = 0x9000, scoped, tag = 'internal scratch']
  %s0 = inlined_call_operand.vmem [shape: bf16[128,2048], index: 0, kind: input, shape index: {}]
  %s1 = inlined_call_operand.vmem [shape: bf16[2048,128], index: 1, kind: input, shape index: {}]
  %s2 = inlined_call_operand.vmem [shape: bf16[128,128], index: 2, kind: output, shape index: {0}]
  %s3 = inlined_call_operand.vmem [shape: f32[1,2,128], index: 3, kind: output, shape index: {1}]
  %4 = xla_tuple %s2, %s3
  %s5 = sld [smem:[#allocation0]]
  $region26: #{_lambda_.9} parent=0
    _
  %s7 = ssub.s32 1, %s5
  %s8 = scalar_select 0, %s7, %s5
  // Predicated region
  $region2: #{_lambda_.9} parent=0 // pred_check
    _
  $region3: #{_lambda_.9} parent=0 // pred_check_branch
    %10 = sbr.rel (0) target = $region5
  $region4: #{_lambda_.9} parent=0 // pred_region
    _
  $region5: #{_lambda_.9} parent=0 // pred_fallthru
    _
  // Predicated region
  $region6: #{_lambda_.9} parent=0 // pred_check
    _
  $region7: #{_lambda_.9} parent=0 // pred_check_branch
    %12 = sbr.rel (0) target = $region9
  $region8: #{_lambda_.9} parent=0 // pred_region
    _
  $region9: #{_lambda_.9} parent=0 // pred_fallthru
    _
  %v13 = vld [vmem:[%s0] sm:$0xff]
  %v14 = vld [vmem:[%s0 + $0x8] sm:$0xff]
  %v15 = vld [vmem:[%s0 + $0x10] sm:$0xff]
  %v16 = vld [vmem:[%s0 + $0x18] sm:$0xff]
  %v17 = vld [vmem:[%s0 + $0x20] sm:$0xff]
  %v18 = vld [vmem:[%s0 + $0x28] sm:$0xff]
  %v19 = vld [vmem:[%s0 + $0x30] sm:$0xff]
  %v20 = vld [vmem:[%s0 + $0x38] sm:$0xff]
  %v21 = vld [vmem:[%s0 + $0x40] sm:$0xff]
  %v22 = vld [vmem:[%s0 + $0x48] sm:$0xff]
  %v23 = vld [vmem:[%s0 + $0x50] sm:$0xff]
  %v24 = vld [vmem:[%s0 + $0x58] sm:$0xff]
  %v25 = vld [vmem:[%s0 + $0x60] sm:$0xff]
  %v26 = vld [vmem:[%s0 + $0x68] sm:$0xff]
  %v27 = vld [vmem:[%s0 + $0x70] sm:$0xff]
  %v28 = vld [vmem:[%s0 + $0x78] sm:$0xff]
  %v29 = vld [vmem:[%s0 + $0x80] sm:$0xff]
  %v30 = vld [vmem:[%s0 + $0x88] sm:$0xff]
  %v31 = vld [vmem:[%s0 + $0x90] sm:$0xff]
  %v32 = vld [vmem:[%s0 + $0x98] sm:$0xff]
  %v33 = vld [vmem:[%s0 + $0xa0] sm:$0xff]
  %v34 = vld [vmem:[%s0 + $0xa8] sm:$0xff]
  %v35 = vld [vmem:[%s0 + $0xb0] sm:$0xff]
  %v36 = vld [vmem:[%s0 + $0xb8] sm:$0xff]
  %v37 = vld [vmem:[%s0 + $0xc0] sm:$0xff]
  %v38 = vld [vmem:[%s0 + $0xc8] sm:$0xff]
  %v39 = vld [vmem:[%s0 + $0xd0] sm:$0xff]
  %v40 = vld [vmem:[%s0 + $0xd8] sm:$0xff]
  %v41 = vld [vmem:[%s0 + $0xe0] sm:$0xff]
  %v42 = vld [vmem:[%s0 + $0xe8] sm:$0xff]
  %v43 = vld [vmem:[%s0 + $0xf0] sm:$0xff]
  %v44 = vld [vmem:[%s0 + $0xf8] sm:$0xff]
  %v45 = vld [vmem:[%s0 + $0x100] sm:$0xff]
  %v46 = vld [vmem:[%s0 + $0x108] sm:$0xff]
  %v47 = vld [vmem:[%s0 + $0x110] sm:$0xff]
  %v48 = vld [vmem:[%s0 + $0x118] sm:$0xff]
  %v49 = vld [vmem:[%s0 + $0x120] sm:$0xff]
  %v50 = vld [vmem:[%s0 + $0x128] sm:$0xff]
  %v51 = vld [vmem:[%s0 + $0x130] sm:$0xff]
  %v52 = vld [vmem:[%s0 + $0x138] sm:$0xff]
  %v53 = vld [vmem:[%s0 + $0x140] sm:$0xff]
  %v54 = vld [vmem:[%s0 + $0x148] sm:$0xff]
  %v55 = vld [vmem:[%s0 + $0x150] sm:$0xff]
  %v56 = vld [vmem:[%s0 + $0x158] sm:$0xff]
  %v57 = vld [vmem:[%s0 + $0x160] sm:$0xff]
  %v58 = vld [vmem:[%s0 + $0x168] sm:$0xff]
  %v59 = vld [vmem:[%s0 + $0x170] sm:$0xff]
  %v60 = vld [vmem:[%s0 + $0x178] sm:$0xff]
  %v61 = vld [vmem:[%s0 + $0x180] sm:$0xff]
  %v62 = vld [vmem:[%s0 + $0x188] sm:$0xff]
  %v63 = vld [vmem:[%s0 + $0x190] sm:$0xff]
  %v64 = vld [vmem:[%s0 + $0x198] sm:$0xff]
  %v65 = vld [vmem:[%s0 + $0x1a0] sm:$0xff]
  %v66 = vld [vmem:[%s0 + $0x1a8] sm:$0xff]
  %v67 = vld [vmem:[%s0 + $0x1b0] sm:$0xff]
  %v68 = vld [vmem:[%s0 + $0x1b8] sm:$0xff]
  %v69 = vld [vmem:[%s0 + $0x1c0] sm:$0xff]
  %v70 = vld [vmem:[%s0 + $0x1c8] sm:$0xff]
  %v71 = vld [vmem:[%s0 + $0x1d0] sm:$0xff]
  %v72 = vld [vmem:[%s0 + $0x1d8] sm:$0xff]
  %v73 = vld [vmem:[%s0 + $0x1e0] sm:$0xff]
  %v74 = vld [vmem:[%s0 + $0x1e8] sm:$0xff]
  %v75 = vld [vmem:[%s0 + $0x1f0] sm:$0xff]
  %v76 = vld [vmem:[%s0 + $0x1f8] sm:$0xff]
  %v77 = vld [vmem:[%s0 + $0x200] sm:$0xff]
  %v78 = vld [vmem:[%s0 + $0x208] sm:$0xff]
  %v79 = vld [vmem:[%s0 + $0x210] sm:$0xff]
  %v80 = vld [vmem:[%s0 + $0x218] sm:$0xff]
  %v81 = vld [vmem:[%s0 + $0x220] sm:$0xff]
  %v82 = vld [vmem:[%s0 + $0x228] sm:$0xff]
  %v83 = vld [vmem:[%s0 + $0x230] sm:$0xff]
  %v84 = vld [vmem:[%s0 + $0x238] sm:$0xff]
  %v85 = vld [vmem:[%s0 + $0x240] sm:$0xff]
  %v86 = vld [vmem:[%s0 + $0x248] sm:$0xff]
  %v87 = vld [vmem:[%s0 + $0x250] sm:$0xff]
  %v88 = vld [vmem:[%s0 + $0x258] sm:$0xff]
  %v89 = vld [vmem:[%s0 + $0x260] sm:$0xff]
  %v90 = vld [vmem:[%s0 + $0x268] sm:$0xff]
  %v91 = vld [vmem:[%s0 + $0x270] sm:$0xff]
  %v92 = vld [vmem:[%s0 + $0x278] sm:$0xff]
  %v93 = vld [vmem:[%s0 + $0x280] sm:$0xff]
  %v94 = vld [vmem:[%s0 + $0x288] sm:$0xff]
  %v95 = vld [vmem:[%s0 + $0x290] sm:$0xff]
  %v96 = vld [vmem:[%s0 + $0x298] sm:$0xff]
  %v97 = vld [vmem:[%s0 + $0x2a0] sm:$0xff]
  %v98 = vld [vmem:[%s0 + $0x2a8] sm:$0xff]
  %v99 = vld [vmem:[%s0 + $0x2b0] sm:$0xff]
  %v100 = vld [vmem:[%s0 + $0x2b8] sm:$0xff]
  %v101 = vld [vmem:[%s0 + $0x2c0] sm:$0xff]
  %v102 = vld [vmem:[%s0 + $0x2c8] sm:$0xff]
  %v103 = vld [vmem:[%s0 + $0x2d0] sm:$0xff]
  %v104 = vld [vmem:[%s0 + $0x2d8] sm:$0xff]
  %v105 = vld [vmem:[%s0 + $0x2e0] sm:$0xff]
  %v106 = vld [vmem:[%s0 + $0x2e8] sm:$0xff]
  %v107 = vld [vmem:[%s0 + $0x2f0] sm:$0xff]
  %v108 = vld [vmem:[%s0 + $0x2f8] sm:$0xff]
  %v109 = vld [vmem:[%s0 + $0x300] sm:$0xff]
  %v110 = vld [vmem:[%s0 + $0x308] sm:$0xff]
  %v111 = vld [vmem:[%s0 + $0x310] sm:$0xff]
  %v112 = vld [vmem:[%s0 + $0x318] sm:$0xff]
  %v113 = vld [vmem:[%s0 + $0x320] sm:$0xff]
  %v114 = vld [vmem:[%s0 + $0x328] sm:$0xff]
  %v115 = vld [vmem:[%s0 + $0x330] sm:$0xff]
  %v116 = vld [vmem:[%s0 + $0x338] sm:$0xff]
  %v117 = vld [vmem:[%s0 + $0x340] sm:$0xff]
  %v118 = vld [vmem:[%s0 + $0x348] sm:$0xff]
  %v119 = vld [vmem:[%s0 + $0x350] sm:$0xff]
  %v120 = vld [vmem:[%s0 + $0x358] sm:$0xff]
  %v121 = vld [vmem:[%s0 + $0x360] sm:$0xff]
  %v122 = vld [vmem:[%s0 + $0x368] sm:$0xff]
  %v123 = vld [vmem:[%s0 + $0x370] sm:$0xff]
  %v124 = vld [vmem:[%s0 + $0x378] sm:$0xff]
  %v125 = vld [vmem:[%s0 + $0x380] sm:$0xff]
  %v126 = vld [vmem:[%s0 + $0x388] sm:$0xff]
  %v127 = vld [vmem:[%s0 + $0x390] sm:$0xff]
  %v128 = vld [vmem:[%s0 + $0x398] sm:$0xff]
  %v129 = vld [vmem:[%s0 + $0x3a0] sm:$0xff]
  %v130 = vld [vmem:[%s0 + $0x3a8] sm:$0xff]
  %v131 = vld [vmem:[%s0 + $0x3b0] sm:$0xff]
  %v132 = vld [vmem:[%s0 + $0x3b8] sm:$0xff]
  %v133 = vld [vmem:[%s0 + $0x3c0] sm:$0xff]
  %v134 = vld [vmem:[%s0 + $0x3c8] sm:$0xff]
  %v135 = vld [vmem:[%s0 + $0x3d0] sm:$0xff]
  %v136 = vld [vmem:[%s0 + $0x3d8] sm:$0xff]
  %v137 = vld [vmem:[%s0 + $0x3e0] sm:$0xff]
  %v138 = vld [vmem:[%s0 + $0x3e8] sm:$0xff]
  %v139 = vld [vmem:[%s0 + $0x3f0] sm:$0xff]
  %v140 = vld [vmem:[%s0 + $0x3f8] sm:$0xff]
  %v141 = vld [vmem:[%s1] sm:$0xf]
  %v142 = vld [vmem:[%s1 + $0x4] sm:$0xf]
  %v143 = vld [vmem:[%s1 + $0x8] sm:$0xf]
  %v144 = vld [vmem:[%s1 + $0xc] sm:$0xf]
  %v145 = vld [vmem:[%s1 + $0x10] sm:$0xf]
  %v146 = vld [vmem:[%s1 + $0x14] sm:$0xf]
  %v147 = vld [vmem:[%s1 + $0x18] sm:$0xf]
  %v148 = vld [vmem:[%s1 + $0x1c] sm:$0xf]
  %v149 = vld [vmem:[%s1 + $0x20] sm:$0xf]
  %v150 = vld [vmem:[%s1 + $0x24] sm:$0xf]
  %v151 = vld [vmem:[%s1 + $0x28] sm:$0xf]
  %v152 = vld [vmem:[%s1 + $0x2c] sm:$0xf]
  %v153 = vld [vmem:[%s1 + $0x30] sm:$0xf]
  %v154 = vld [vmem:[%s1 + $0x34] sm:$0xf]
  %v155 = vld [vmem:[%s1 + $0x38] sm:$0xf]
  %v156 = vld [vmem:[%s1 + $0x3c] sm:$0xf]
  %v157 = vld [vmem:[%s1 + $0x40] sm:$0xf]
  %v158 = vld [vmem:[%s1 + $0x44] sm:$0xf]
  %v159 = vld [vmem:[%s1 + $0x48] sm:$0xf]
  %v160 = vld [vmem:[%s1 + $0x4c] sm:$0xf]
  %v161 = vld [vmem:[%s1 + $0x50] sm:$0xf]
  %v162 = vld [vmem:[%s1 + $0x54] sm:$0xf]
  %v163 = vld [vmem:[%s1 + $0x58] sm:$0xf]
  %v164 = vld [vmem:[%s1 + $0x5c] sm:$0xf]
  %v165 = vld [vmem:[%s1 + $0x60] sm:$0xf]
  %v166 = vld [vmem:[%s1 + $0x64] sm:$0xf]
  %v167 = vld [vmem:[%s1 + $0x68] sm:$0xf]
  %v168 = vld [vmem:[%s1 + $0x6c] sm:$0xf]
  %v169 = vld [vmem:[%s1 + $0x70] sm:$0xf]
  %v170 = vld [vmem:[%s1 + $0x74] sm:$0xf]
  %v171 = vld [vmem:[%s1 + $0x78] sm:$0xf]
  %v172 = vld [vmem:[%s1 + $0x7c] sm:$0xf]
  %v173 = vld [vmem:[%s1 + $0x80] sm:$0xf]
  %v174 = vld [vmem:[%s1 + $0x84] sm:$0xf]
  %v175 = vld [vmem:[%s1 + $0x88] sm:$0xf]
  %v176 = vld [vmem:[%s1 + $0x8c] sm:$0xf]
  %v177 = vld [vmem:[%s1 + $0x90] sm:$0xf]
  %v178 = vld [vmem:[%s1 + $0x94] sm:$0xf]
  %v179 = vld [vmem:[%s1 + $0x98] sm:$0xf]
  %v180 = vld [vmem:[%s1 + $0x9c] sm:$0xf]
  %v181 = vld [vmem:[%s1 + $0xa0] sm:$0xf]
  %v182 = vld [vmem:[%s1 + $0xa4] sm:$0xf]
  %v183 = vld [vmem:[%s1 + $0xa8] sm:$0xf]
  %v184 = vld [vmem:[%s1 + $0xac] sm:$0xf]
  %v185 = vld [vmem:[%s1 + $0xb0] sm:$0xf]
  %v186 = vld [vmem:[%s1 + $0xb4] sm:$0xf]
  %v187 = vld [vmem:[%s1 + $0xb8] sm:$0xf]
  %v188 = vld [vmem:[%s1 + $0xbc] sm:$0xf]
  %v189 = vld [vmem:[%s1 + $0xc0] sm:$0xf]
  %v190 = vld [vmem:[%s1 + $0xc4] sm:$0xf]
  %v191 = vld [vmem:[%s1 + $0xc8] sm:$0xf]
  %v192 = vld [vmem:[%s1 + $0xcc] sm:$0xf]
  %v193 = vld [vmem:[%s1 + $0xd0] sm:$0xf]
  %v194 = vld [vmem:[%s1 + $0xd4] sm:$0xf]
  %v195 = vld [vmem:[%s1 + $0xd8] sm:$0xf]
  %v196 = vld [vmem:[%s1 + $0xdc] sm:$0xf]
  %v197 = vld [vmem:[%s1 + $0xe0] sm:$0xf]
  %v198 = vld [vmem:[%s1 + $0xe4] sm:$0xf]
  %v199 = vld [vmem:[%s1 + $0xe8] sm:$0xf]
  %v200 = vld [vmem:[%s1 + $0xec] sm:$0xf]
  %v201 = vld [vmem:[%s1 + $0xf0] sm:$0xf]
  %v202 = vld [vmem:[%s1 + $0xf4] sm:$0xf]
  %v203 = vld [vmem:[%s1 + $0xf8] sm:$0xf]
  %v204 = vld [vmem:[%s1 + $0xfc] sm:$0xf]
  %v205 = vld [vmem:[%s1 + $0x100] sm:$0xf]
  %v206 = vld [vmem:[%s1 + $0x104] sm:$0xf]
  %v207 = vld [vmem:[%s1 + $0x108] sm:$0xf]
  %v208 = vld [vmem:[%s1 + $0x10c] sm:$0xf]
  %v209 = vld [vmem:[%s1 + $0x110] sm:$0xf]
  %v210 = vld [vmem:[%s1 + $0x114] sm:$0xf]
  %v211 = vld [vmem:[%s1 + $0x118] sm:$0xf]
  %v212 = vld [vmem:[%s1 + $0x11c] sm:$0xf]
  %v213 = vld [vmem:[%s1 + $0x120] sm:$0xf]
  %v214 = vld [vmem:[%s1 + $0x124] sm:$0xf]
  %v215 = vld [vmem:[%s1 + $0x128] sm:$0xf]
  %v216 = vld [vmem:[%s1 + $0x12c] sm:$0xf]
  %v217 = vld [vmem:[%s1 + $0x130] sm:$0xf]
  %v218 = vld [vmem:[%s1 + $0x134] sm:$0xf]
  %v219 = vld [vmem:[%s1 + $0x138] sm:$0xf]
  %v220 = vld [vmem:[%s1 + $0x13c] sm:$0xf]
  %v221 = vld [vmem:[%s1 + $0x140] sm:$0xf]
  %v222 = vld [vmem:[%s1 + $0x144] sm:$0xf]
  %v223 = vld [vmem:[%s1 + $0x148] sm:$0xf]
  %v224 = vld [vmem:[%s1 + $0x14c] sm:$0xf]
  %v225 = vld [vmem:[%s1 + $0x150] sm:$0xf]
  %v226 = vld [vmem:[%s1 + $0x154] sm:$0xf]
  %v227 = vld [vmem:[%s1 + $0x158] sm:$0xf]
  %v228 = vld [vmem:[%s1 + $0x15c] sm:$0xf]
  %v229 = vld [vmem:[%s1 + $0x160] sm:$0xf]
  %v230 = vld [vmem:[%s1 + $0x164] sm:$0xf]
  %v231 = vld [vmem:[%s1 + $0x168] sm:$0xf]
  %v232 = vld [vmem:[%s1 + $0x16c] sm:$0xf]
  %v233 = vld [vmem:[%s1 + $0x170] sm:$0xf]
  %v234 = vld [vmem:[%s1 + $0x174] sm:$0xf]
  %v235 = vld [vmem:[%s1 + $0x178] sm:$0xf]
  %v236 = vld [vmem:[%s1 + $0x17c] sm:$0xf]
  %v237 = vld [vmem:[%s1 + $0x180] sm:$0xf]
  %v238 = vld [vmem:[%s1 + $0x184] sm:$0xf]
  %v239 = vld [vmem:[%s1 + $0x188] sm:$0xf]
  %v240 = vld [vmem:[%s1 + $0x18c] sm:$0xf]
  %v241 = vld [vmem:[%s1 + $0x190] sm:$0xf]
  %v242 = vld [vmem:[%s1 + $0x194] sm:$0xf]
  %v243 = vld [vmem:[%s1 + $0x198] sm:$0xf]
  %v244 = vld [vmem:[%s1 + $0x19c] sm:$0xf]
  %v245 = vld [vmem:[%s1 + $0x1a0] sm:$0xf]
  %v246 = vld [vmem:[%s1 + $0x1a4] sm:$0xf]
  %v247 = vld [vmem:[%s1 + $0x1a8] sm:$0xf]
  %v248 = vld [vmem:[%s1 + $0x1ac] sm:$0xf]
  %v249 = vld [vmem:[%s1 + $0x1b0] sm:$0xf]
  %v250 = vld [vmem:[%s1 + $0x1b4] sm:$0xf]
  %v251 = vld [vmem:[%s1 + $0x1b8] sm:$0xf]
  %v252 = vld [vmem:[%s1 + $0x1bc] sm:$0xf]
  %v253 = vld [vmem:[%s1 + $0x1c0] sm:$0xf]
  %v254 = vld [vmem:[%s1 + $0x1c4] sm:$0xf]
  %v255 = vld [vmem:[%s1 + $0x1c8] sm:$0xf]
  %v256 = vld [vmem:[%s1 + $0x1cc] sm:$0xf]
  %v257 = vld [vmem:[%s1 + $0x1d0] sm:$0xf]
  %v258 = vld [vmem:[%s1 + $0x1d4] sm:$0xf]
  %v259 = vld [vmem:[%s1 + $0x1d8] sm:$0xf]
  %v260 = vld [vmem:[%s1 + $0x1dc] sm:$0xf]
  %v261 = vld [vmem:[%s1 + $0x1e0] sm:$0xf]
  %v262 = vld [vmem:[%s1 + $0x1e4] sm:$0xf]
  %v263 = vld [vmem:[%s1 + $0x1e8] sm:$0xf]
  %v264 = vld [vmem:[%s1 + $0x1ec] sm:$0xf]
  %v265 = vld [vmem:[%s1 + $0x1f0] sm:$0xf]
  %v266 = vld [vmem:[%s1 + $0x1f4] sm:$0xf]
  %v267 = vld [vmem:[%s1 + $0x1f8] sm:$0xf]
  %v268 = vld [vmem:[%s1 + $0x1fc] sm:$0xf]
  %v269 = vld [vmem:[%s1 + $0x200] sm:$0xf]
  %v270 = vld [vmem:[%s1 + $0x204] sm:$0xf]
  %v271 = vld [vmem:[%s1 + $0x208] sm:$0xf]
  %v272 = vld [vmem:[%s1 + $0x20c] sm:$0xf]
  %v273 = vld [vmem:[%s1 + $0x210] sm:$0xf]
  %v274 = vld [vmem:[%s1 + $0x214] sm:$0xf]
  %v275 = vld [vmem:[%s1 + $0x218] sm:$0xf]
  %v276 = vld [vmem:[%s1 + $0x21c] sm:$0xf]
  %v277 = vld [vmem:[%s1 + $0x220] sm:$0xf]
  %v278 = vld [vmem:[%s1 + $0x224] sm:$0xf]
  %v279 = vld [vmem:[%s1 + $0x228] sm:$0xf]
  %v280 = vld [vmem:[%s1 + $0x22c] sm:$0xf]
  %v281 = vld [vmem:[%s1 + $0x230] sm:$0xf]
  %v282 = vld [vmem:[%s1 + $0x234] sm:$0xf]
  %v283 = vld [vmem:[%s1 + $0x238] sm:$0xf]
  %v284 = vld [vmem:[%s1 + $0x23c] sm:$0xf]
  %v285 = vld [vmem:[%s1 + $0x240] sm:$0xf]
  %v286 = vld [vmem:[%s1 + $0x244] sm:$0xf]
  %v287 = vld [vmem:[%s1 + $0x248] sm:$0xf]
  %v288 = vld [vmem:[%s1 + $0x24c] sm:$0xf]
  %v289 = vld [vmem:[%s1 + $0x250] sm:$0xf]
  %v290 = vld [vmem:[%s1 + $0x254] sm:$0xf]
  %v291 = vld [vmem:[%s1 + $0x258] sm:$0xf]
  %v292 = vld [vmem:[%s1 + $0x25c] sm:$0xf]
  %v293 = vld [vmem:[%s1 + $0x260] sm:$0xf]
  %v294 = vld [vmem:[%s1 + $0x264] sm:$0xf]
  %v295 = vld [vmem:[%s1 + $0x268] sm:$0xf]
  %v296 = vld [vmem:[%s1 + $0x26c] sm:$0xf]
  %v297 = vld [vmem:[%s1 + $0x270] sm:$0xf]
  %v298 = vld [vmem:[%s1 + $0x274] sm:$0xf]
  %v299 = vld [vmem:[%s1 + $0x278] sm:$0xf]
  %v300 = vld [vmem:[%s1 + $0x27c] sm:$0xf]
  %v301 = vld [vmem:[%s1 + $0x280] sm:$0xf]
  %v302 = vld [vmem:[%s1 + $0x284] sm:$0xf]
  %v303 = vld [vmem:[%s1 + $0x288] sm:$0xf]
  %v304 = vld [vmem:[%s1 + $0x28c] sm:$0xf]
  %v305 = vld [vmem:[%s1 + $0x290] sm:$0xf]
  %v306 = vld [vmem:[%s1 + $0x294] sm:$0xf]
  %v307 = vld [vmem:[%s1 + $0x298] sm:$0xf]
  %v308 = vld [vmem:[%s1 + $0x29c] sm:$0xf]
  %v309 = vld [vmem:[%s1 + $0x2a0] sm:$0xf]
  %v310 = vld [vmem:[%s1 + $0x2a4] sm:$0xf]
  %v311 = vld [vmem:[%s1 + $0x2a8] sm:$0xf]
  %v312 = vld [vmem:[%s1 + $0x2ac] sm:$0xf]
  %v313 = vld [vmem:[%s1 + $0x2b0] sm:$0xf]
  %v314 = vld [vmem:[%s1 + $0x2b4] sm:$0xf]
  %v315 = vld [vmem:[%s1 + $0x2b8] sm:$0xf]
  %v316 = vld [vmem:[%s1 + $0x2bc] sm:$0xf]
  %v317 = vld [vmem:[%s1 + $0x2c0] sm:$0xf]
  %v318 = vld [vmem:[%s1 + $0x2c4] sm:$0xf]
  %v319 = vld [vmem:[%s1 + $0x2c8] sm:$0xf]
  %v320 = vld [vmem:[%s1 + $0x2cc] sm:$0xf]
  %v321 = vld [vmem:[%s1 + $0x2d0] sm:$0xf]
  %v322 = vld [vmem:[%s1 + $0x2d4] sm:$0xf]
  %v323 = vld [vmem:[%s1 + $0x2d8] sm:$0xf]
  %v324 = vld [vmem:[%s1 + $0x2dc] sm:$0xf]
  %v325 = vld [vmem:[%s1 + $0x2e0] sm:$0xf]
  %v326 = vld [vmem:[%s1 + $0x2e4] sm:$0xf]
  %v327 = vld [vmem:[%s1 + $0x2e8] sm:$0xf]
  %v328 = vld [vmem:[%s1 + $0x2ec] sm:$0xf]
  %v329 = vld [vmem:[%s1 + $0x2f0] sm:$0xf]
  %v330 = vld [vmem:[%s1 + $0x2f4] sm:$0xf]
  %v331 = vld [vmem:[%s1 + $0x2f8] sm:$0xf]
  %v332 = vld [vmem:[%s1 + $0x2fc] sm:$0xf]
  %v333 = vld [vmem:[%s1 + $0x300] sm:$0xf]
  %v334 = vld [vmem:[%s1 + $0x304] sm:$0xf]
  %v335 = vld [vmem:[%s1 + $0x308] sm:$0xf]
  %v336 = vld [vmem:[%s1 + $0x30c] sm:$0xf]
  %v337 = vld [vmem:[%s1 + $0x310] sm:$0xf]
  %v338 = vld [vmem:[%s1 + $0x314] sm:$0xf]
  %v339 = vld [vmem:[%s1 + $0x318] sm:$0xf]
  %v340 = vld [vmem:[%s1 + $0x31c] sm:$0xf]
  %v341 = vld [vmem:[%s1 + $0x320] sm:$0xf]
  %v342 = vld [vmem:[%s1 + $0x324] sm:$0xf]
  %v343 = vld [vmem:[%s1 + $0x328] sm:$0xf]
  %v344 = vld [vmem:[%s1 + $0x32c] sm:$0xf]
  %v345 = vld [vmem:[%s1 + $0x330] sm:$0xf]
  %v346 = vld [vmem:[%s1 + $0x334] sm:$0xf]
  %v347 = vld [vmem:[%s1 + $0x338] sm:$0xf]
  %v348 = vld [vmem:[%s1 + $0x33c] sm:$0xf]
  %v349 = vld [vmem:[%s1 + $0x340] sm:$0xf]
  %v350 = vld [vmem:[%s1 + $0x344] sm:$0xf]
  %v351 = vld [vmem:[%s1 + $0x348] sm:$0xf]
  %v352 = vld [vmem:[%s1 + $0x34c] sm:$0xf]
  %v353 = vld [vmem:[%s1 + $0x350] sm:$0xf]
  %v354 = vld [vmem:[%s1 + $0x354] sm:$0xf]
  %v355 = vld [vmem:[%s1 + $0x358] sm:$0xf]
  %v356 = vld [vmem:[%s1 + $0x35c] sm:$0xf]
  %v357 = vld [vmem:[%s1 + $0x360] sm:$0xf]
  %v358 = vld [vmem:[%s1 + $0x364] sm:$0xf]
  %v359 = vld [vmem:[%s1 + $0x368] sm:$0xf]
  %v360 = vld [vmem:[%s1 + $0x36c] sm:$0xf]
  %v361 = vld [vmem:[%s1 + $0x370] sm:$0xf]
  %v362 = vld [vmem:[%s1 + $0x374] sm:$0xf]
  %v363 = vld [vmem:[%s1 + $0x378] sm:$0xf]
  %v364 = vld [vmem:[%s1 + $0x37c] sm:$0xf]
  %v365 = vld [vmem:[%s1 + $0x380] sm:$0xf]
  %v366 = vld [vmem:[%s1 + $0x384] sm:$0xf]
  %v367 = vld [vmem:[%s1 + $0x388] sm:$0xf]
  %v368 = vld [vmem:[%s1 + $0x38c] sm:$0xf]
  %v369 = vld [vmem:[%s1 + $0x390] sm:$0xf]
  %v370 = vld [vmem:[%s1 + $0x394] sm:$0xf]
  %v371 = vld [vmem:[%s1 + $0x398] sm:$0xf]
  %v372 = vld [vmem:[%s1 + $0x39c] sm:$0xf]
  %v373 = vld [vmem:[%s1 + $0x3a0] sm:$0xf]
  %v374 = vld [vmem:[%s1 + $0x3a4] sm:$0xf]
  %v375 = vld [vmem:[%s1 + $0x3a8] sm:$0xf]
  %v376 = vld [vmem:[%s1 + $0x3ac] sm:$0xf]
  %v377 = vld [vmem:[%s1 + $0x3b0] sm:$0xf]
  %v378 = vld [vmem:[%s1 + $0x3b4] sm:$0xf]
  %v379 = vld [vmem:[%s1 + $0x3b8] sm:$0xf]
  %v380 = vld [vmem:[%s1 + $0x3bc] sm:$0xf]
  %v381 = vld [vmem:[%s1 + $0x3c0] sm:$0xf]
  %v382 = vld [vmem:[%s1 + $0x3c4] sm:$0xf]
  %v383 = vld [vmem:[%s1 + $0x3c8] sm:$0xf]
  %v384 = vld [vmem:[%s1 + $0x3cc] sm:$0xf]
  %v385 = vld [vmem:[%s1 + $0x3d0] sm:$0xf]
  %v386 = vld [vmem:[%s1 + $0x3d4] sm:$0xf]
  %v387 = vld [vmem:[%s1 + $0x3d8] sm:$0xf]
  %v388 = vld [vmem:[%s1 + $0x3dc] sm:$0xf]
  %v389 = vld [vmem:[%s1 + $0x3e0] sm:$0xf]
  %v390 = vld [vmem:[%s1 + $0x3e4] sm:$0xf]
  %v391 = vld [vmem:[%s1 + $0x3e8] sm:$0xf]
  %v392 = vld [vmem:[%s1 + $0x3ec] sm:$0xf]
  %v393 = vld [vmem:[%s1 + $0x3f0] sm:$0xf]
  %v394 = vld [vmem:[%s1 + $0x3f4] sm:$0xf]
  %v395 = vld [vmem:[%s1 + $0x3f8] sm:$0xf]
  %v396 = vld [vmem:[%s1 + $0x3fc] sm:$0xf]
  %v525 = vunpack.c.l.b16 %v13
  %v526 = vunpack.c.h.b16 %v13
  %v527 = vunpack.c.l.b16 %v14
  %v528 = vunpack.c.h.b16 %v14
  %v529 = vunpack.c.l.b16 %v15
  %v530 = vunpack.c.h.b16 %v15
  %v531 = vunpack.c.l.b16 %v16
  %v532 = vunpack.c.h.b16 %v16
  %v533 = vunpack.c.l.b16 %v17
  %v534 = vunpack.c.h.b16 %v17
  %v535 = vunpack.c.l.b16 %v18
  %v536 = vunpack.c.h.b16 %v18
  %v537 = vunpack.c.l.b16 %v19
  %v538 = vunpack.c.h.b16 %v19
  %v539 = vunpack.c.l.b16 %v20
  %v540 = vunpack.c.h.b16 %v20
  %v541 = vunpack.c.l.b16 %v21
  %v542 = vunpack.c.h.b16 %v21
  %v543 = vunpack.c.l.b16 %v22
  %v544 = vunpack.c.h.b16 %v22
  %v545 = vunpack.c.l.b16 %v23
  %v546 = vunpack.c.h.b16 %v23
  %v547 = vunpack.c.l.b16 %v24
  %v548 = vunpack.c.h.b16 %v24
  %v549 = vunpack.c.l.b16 %v25
  %v550 = vunpack.c.h.b16 %v25
  %v551 = vunpack.c.l.b16 %v26
  %v552 = vunpack.c.h.b16 %v26
  %v553 = vunpack.c.l.b16 %v27
  %v554 = vunpack.c.h.b16 %v27
  %v555 = vunpack.c.l.b16 %v28
  %v556 = vunpack.c.h.b16 %v28
  %v557 = vunpack.c.l.b16 %v29
  %v558 = vunpack.c.h.b16 %v29
  %v559 = vunpack.c.l.b16 %v30
  %v560 = vunpack.c.h.b16 %v30
  %v561 = vunpack.c.l.b16 %v31
  %v562 = vunpack.c.h.b16 %v31
  %v563 = vunpack.c.l.b16 %v32
  %v564 = vunpack.c.h.b16 %v32
  %v565 = vunpack.c.l.b16 %v33
  %v566 = vunpack.c.h.b16 %v33
  %v567 = vunpack.c.l.b16 %v34
  %v568 = vunpack.c.h.b16 %v34
  %v569 = vunpack.c.l.b16 %v35
  %v570 = vunpack.c.h.b16 %v35
  %v571 = vunpack.c.l.b16 %v36
  %v572 = vunpack.c.h.b16 %v36
  %v573 = vunpack.c.l.b16 %v37
  %v574 = vunpack.c.h.b16 %v37
  %v575 = vunpack.c.l.b16 %v38
  %v576 = vunpack.c.h.b16 %v38
  %v577 = vunpack.c.l.b16 %v39
  %v578 = vunpack.c.h.b16 %v39
  %v579 = vunpack.c.l.b16 %v40
  %v580 = vunpack.c.h.b16 %v40
  %v581 = vunpack.c.l.b16 %v41
  %v582 = vunpack.c.h.b16 %v41
  %v583 = vunpack.c.l.b16 %v42
  %v584 = vunpack.c.h.b16 %v42
  %v585 = vunpack.c.l.b16 %v43
  %v586 = vunpack.c.h.b16 %v43
  %v587 = vunpack.c.l.b16 %v44
  %v588 = vunpack.c.h.b16 %v44
  %v589 = vunpack.c.l.b16 %v45
  %v590 = vunpack.c.h.b16 %v45
  %v591 = vunpack.c.l.b16 %v46
  %v592 = vunpack.c.h.b16 %v46
  %v593 = vunpack.c.l.b16 %v47
  %v594 = vunpack.c.h.b16 %v47
  %v595 = vunpack.c.l.b16 %v48
  %v596 = vunpack.c.h.b16 %v48
  %v597 = vunpack.c.l.b16 %v49
  %v598 = vunpack.c.h.b16 %v49
  %v599 = vunpack.c.l.b16 %v50
  %v600 = vunpack.c.h.b16 %v50
  %v601 = vunpack.c.l.b16 %v51
  %v602 = vunpack.c.h.b16 %v51
  %v603 = vunpack.c.l.b16 %v52
  %v604 = vunpack.c.h.b16 %v52
  %v605 = vunpack.c.l.b16 %v53
  %v606 = vunpack.c.h.b16 %v53
  %v607 = vunpack.c.l.b16 %v54
  %v608 = vunpack.c.h.b16 %v54
  %v609 = vunpack.c.l.b16 %v55
  %v610 = vunpack.c.h.b16 %v55
  %v611 = vunpack.c.l.b16 %v56
  %v612 = vunpack.c.h.b16 %v56
  %v613 = vunpack.c.l.b16 %v57
  %v614 = vunpack.c.h.b16 %v57
  %v615 = vunpack.c.l.b16 %v58
  %v616 = vunpack.c.h.b16 %v58
  %v617 = vunpack.c.l.b16 %v59
  %v618 = vunpack.c.h.b16 %v59
  %v619 = vunpack.c.l.b16 %v60
  %v620 = vunpack.c.h.b16 %v60
  %v621 = vunpack.c.l.b16 %v61
  %v622 = vunpack.c.h.b16 %v61
  %v623 = vunpack.c.l.b16 %v62
  %v624 = vunpack.c.h.b16 %v62
  %v625 = vunpack.c.l.b16 %v63
  %v626 = vunpack.c.h.b16 %v63
  %v627 = vunpack.c.l.b16 %v64
  %v628 = vunpack.c.h.b16 %v64
  %v629 = vunpack.c.l.b16 %v65
  %v630 = vunpack.c.h.b16 %v65
  %v631 = vunpack.c.l.b16 %v66
  %v632 = vunpack.c.h.b16 %v66
  %v633 = vunpack.c.l.b16 %v67
  %v634 = vunpack.c.h.b16 %v67
  %v635 = vunpack.c.l.b16 %v68
  %v636 = vunpack.c.h.b16 %v68
  %v637 = vunpack.c.l.b16 %v69
  %v638 = vunpack.c.h.b16 %v69
  %v639 = vunpack.c.l.b16 %v70
  %v640 = vunpack.c.h.b16 %v70
  %v641 = vunpack.c.l.b16 %v71
  %v642 = vunpack.c.h.b16 %v71
  %v643 = vunpack.c.l.b16 %v72
  %v644 = vunpack.c.h.b16 %v72
  %v645 = vunpack.c.l.b16 %v73
  %v646 = vunpack.c.h.b16 %v73
  %v647 = vunpack.c.l.b16 %v74
  %v648 = vunpack.c.h.b16 %v74
  %v649 = vunpack.c.l.b16 %v75
  %v650 = vunpack.c.h.b16 %v75
  %v651 = vunpack.c.l.b16 %v76
  %v652 = vunpack.c.h.b16 %v76
  %v653 = vunpack.c.l.b16 %v77
  %v654 = vunpack.c.h.b16 %v77
  %v655 = vunpack.c.l.b16 %v78
  %v656 = vunpack.c.h.b16 %v78
  %v657 = vunpack.c.l.b16 %v79
  %v658 = vunpack.c.h.b16 %v79
  %v659 = vunpack.c.l.b16 %v80
  %v660 = vunpack.c.h.b16 %v80
  %v661 = vunpack.c.l.b16 %v81
  %v662 = vunpack.c.h.b16 %v81
  %v663 = vunpack.c.l.b16 %v82
  %v664 = vunpack.c.h.b16 %v82
  %v665 = vunpack.c.l.b16 %v83
  %v666 = vunpack.c.h.b16 %v83
  %v667 = vunpack.c.l.b16 %v84
  %v668 = vunpack.c.h.b16 %v84
  %v669 = vunpack.c.l.b16 %v85
  %v670 = vunpack.c.h.b16 %v85
  %v671 = vunpack.c.l.b16 %v86
  %v672 = vunpack.c.h.b16 %v86
  %v673 = vunpack.c.l.b16 %v87
  %v674 = vunpack.c.h.b16 %v87
  %v675 = vunpack.c.l.b16 %v88
  %v676 = vunpack.c.h.b16 %v88
  %v677 = vunpack.c.l.b16 %v89
  %v678 = vunpack.c.h.b16 %v89
  %v679 = vunpack.c.l.b16 %v90
  %v680 = vunpack.c.h.b16 %v90
  %v681 = vunpack.c.l.b16 %v91
  %v682 = vunpack.c.h.b16 %v91
  %v683 = vunpack.c.l.b16 %v92
  %v684 = vunpack.c.h.b16 %v92
  %v685 = vunpack.c.l.b16 %v93
  %v686 = vunpack.c.h.b16 %v93
  %v687 = vunpack.c.l.b16 %v94
  %v688 = vunpack.c.h.b16 %v94
  %v689 = vunpack.c.l.b16 %v95
  %v690 = vunpack.c.h.b16 %v95
  %v691 = vunpack.c.l.b16 %v96
  %v692 = vunpack.c.h.b16 %v96
  %v693 = vunpack.c.l.b16 %v97
  %v694 = vunpack.c.h.b16 %v97
  %v695 = vunpack.c.l.b16 %v98
  %v696 = vunpack.c.h.b16 %v98
  %v697 = vunpack.c.l.b16 %v99
  %v698 = vunpack.c.h.b16 %v99
  %v699 = vunpack.c.l.b16 %v100
  %v700 = vunpack.c.h.b16 %v100
  %v701 = vunpack.c.l.b16 %v101
  %v702 = vunpack.c.h.b16 %v101
  %v703 = vunpack.c.l.b16 %v102
  %v704 = vunpack.c.h.b16 %v102
  %v705 = vunpack.c.l.b16 %v103
  %v706 = vunpack.c.h.b16 %v103
  %v707 = vunpack.c.l.b16 %v104
  %v708 = vunpack.c.h.b16 %v104
  %v709 = vunpack.c.l.b16 %v105
  %v710 = vunpack.c.h.b16 %v105
  %v711 = vunpack.c.l.b16 %v106
  %v712 = vunpack.c.h.b16 %v106
  %v713 = vunpack.c.l.b16 %v107
  %v714 = vunpack.c.h.b16 %v107
  %v715 = vunpack.c.l.b16 %v108
  %v716 = vunpack.c.h.b16 %v108
  %v717 = vunpack.c.l.b16 %v109
  %v718 = vunpack.c.h.b16 %v109
  %v719 = vunpack.c.l.b16 %v110
  %v720 = vunpack.c.h.b16 %v110
  %v721 = vunpack.c.l.b16 %v111
  %v722 = vunpack.c.h.b16 %v111
  %v723 = vunpack.c.l.b16 %v112
  %v724 = vunpack.c.h.b16 %v112
  %v725 = vunpack.c.l.b16 %v113
  %v726 = vunpack.c.h.b16 %v113
  %v727 = vunpack.c.l.b16 %v114
  %v728 = vunpack.c.h.b16 %v114
  %v729 = vunpack.c.l.b16 %v115
  %v730 = vunpack.c.h.b16 %v115
  %v731 = vunpack.c.l.b16 %v116
  %v732 = vunpack.c.h.b16 %v116
  %v733 = vunpack.c.l.b16 %v117
  %v734 = vunpack.c.h.b16 %v117
  %v735 = vunpack.c.l.b16 %v118
  %v736 = vunpack.c.h.b16 %v118
  %v737 = vunpack.c.l.b16 %v119
  %v738 = vunpack.c.h.b16 %v119
  %v739 = vunpack.c.l.b16 %v120
  %v740 = vunpack.c.h.b16 %v120
  %v741 = vunpack.c.l.b16 %v121
  %v742 = vunpack.c.h.b16 %v121
  %v743 = vunpack.c.l.b16 %v122
  %v744 = vunpack.c.h.b16 %v122
  %v745 = vunpack.c.l.b16 %v123
  %v746 = vunpack.c.h.b16 %v123
  %v747 = vunpack.c.l.b16 %v124
  %v748 = vunpack.c.h.b16 %v124
  %v749 = vunpack.c.l.b16 %v125
  %v750 = vunpack.c.h.b16 %v125
  %v751 = vunpack.c.l.b16 %v126
  %v752 = vunpack.c.h.b16 %v126
  %v753 = vunpack.c.l.b16 %v127
  %v754 = vunpack.c.h.b16 %v127
  %v755 = vunpack.c.l.b16 %v128
  %v756 = vunpack.c.h.b16 %v128
  %v757 = vunpack.c.l.b16 %v129
  %v758 = vunpack.c.h.b16 %v129
  %v759 = vunpack.c.l.b16 %v130
  %v760 = vunpack.c.h.b16 %v130
  %v761 = vunpack.c.l.b16 %v131
  %v762 = vunpack.c.h.b16 %v131
  %v763 = vunpack.c.l.b16 %v132
  %v764 = vunpack.c.h.b16 %v132
  %v765 = vunpack.c.l.b16 %v133
  %v766 = vunpack.c.h.b16 %v133
  %v767 = vunpack.c.l.b16 %v134
  %v768 = vunpack.c.h.b16 %v134
  %v769 = vunpack.c.l.b16 %v135
  %v770 = vunpack.c.h.b16 %v135
  %v771 = vunpack.c.l.b16 %v136
  %v772 = vunpack.c.h.b16 %v136
  %v773 = vunpack.c.l.b16 %v137
  %v774 = vunpack.c.h.b16 %v137
  %v775 = vunpack.c.l.b16 %v138
  %v776 = vunpack.c.h.b16 %v138
  %v777 = vunpack.c.l.b16 %v139
  %v778 = vunpack.c.h.b16 %v139
  %v779 = vunpack.c.l.b16 %v140
  %v780 = vunpack.c.h.b16 %v140
  %v781 = vpack.c.b16 %v541, %v525
  %v782 = vpack.c.b16 %v542, %v526
  %v783 = vpack.c.b16 %v543, %v527
  %v784 = vpack.c.b16 %v544, %v528
  %v785 = vpack.c.b16 %v545, %v529
  %v786 = vpack.c.b16 %v546, %v530
  %v787 = vpack.c.b16 %v547, %v531
  %v788 = vpack.c.b16 %v548, %v532
  %v789 = vpack.c.b16 %v549, %v533
  %v790 = vpack.c.b16 %v550, %v534
  %v791 = vpack.c.b16 %v551, %v535
  %v792 = vpack.c.b16 %v552, %v536
  %v793 = vpack.c.b16 %v553, %v537
  %v794 = vpack.c.b16 %v554, %v538
  %v795 = vpack.c.b16 %v555, %v539
  %v796 = vpack.c.b16 %v556, %v540
  %v797 = vpack.c.b16 %v573, %v557
  %v798 = vpack.c.b16 %v574, %v558
  %v799 = vpack.c.b16 %v575, %v559
  %v800 = vpack.c.b16 %v576, %v560
  %v801 = vpack.c.b16 %v577, %v561
  %v802 = vpack.c.b16 %v578, %v562
  %v803 = vpack.c.b16 %v579, %v563
  %v804 = vpack.c.b16 %v580, %v564
  %v805 = vpack.c.b16 %v581, %v565
  %v806 = vpack.c.b16 %v582, %v566
  %v807 = vpack.c.b16 %v583, %v567
  %v808 = vpack.c.b16 %v584, %v568
  %v809 = vpack.c.b16 %v585, %v569
  %v810 = vpack.c.b16 %v586, %v570
  %v811 = vpack.c.b16 %v587, %v571
  %v812 = vpack.c.b16 %v588, %v572
  %v813 = vpack.c.b16 %v605, %v589
  %v814 = vpack.c.b16 %v606, %v590
  %v815 = vpack.c.b16 %v607, %v591
  %v816 = vpack.c.b16 %v608, %v592
  %v817 = vpack.c.b16 %v609, %v593
  %v818 = vpack.c.b16 %v610, %v594
  %v819 = vpack.c.b16 %v611, %v595
  %v820 = vpack.c.b16 %v612, %v596
  %v821 = vpack.c.b16 %v613, %v597
  %v822 = vpack.c.b16 %v614, %v598
  %v823 = vpack.c.b16 %v615, %v599
  %v824 = vpack.c.b16 %v616, %v600
  %v825 = vpack.c.b16 %v617, %v601
  %v826 = vpack.c.b16 %v618, %v602
  %v827 = vpack.c.b16 %v619, %v603
  %v828 = vpack.c.b16 %v620, %v604
  %v829 = vpack.c.b16 %v637, %v621
  %v830 = vpack.c.b16 %v638, %v622
  %v831 = vpack.c.b16 %v639, %v623
  %v832 = vpack.c.b16 %v640, %v624
  %v833 = vpack.c.b16 %v641, %v625
  %v834 = vpack.c.b16 %v642, %v626
  %v835 = vpack.c.b16 %v643, %v627
  %v836 = vpack.c.b16 %v644, %v628
  %v837 = vpack.c.b16 %v645, %v629
  %v838 = vpack.c.b16 %v646, %v630
  %v839 = vpack.c.b16 %v647, %v631
  %v840 = vpack.c.b16 %v648, %v632
  %v841 = vpack.c.b16 %v649, %v633
  %v842 = vpack.c.b16 %v650, %v634
  %v843 = vpack.c.b16 %v651, %v635
  %v844 = vpack.c.b16 %v652, %v636
  %v845 = vpack.c.b16 %v669, %v653
  %v846 = vpack.c.b16 %v670, %v654
  %v847 = vpack.c.b16 %v671, %v655
  %v848 = vpack.c.b16 %v672, %v656
  %v849 = vpack.c.b16 %v673, %v657
  %v850 = vpack.c.b16 %v674, %v658
  %v851 = vpack.c.b16 %v675, %v659
  %v852 = vpack.c.b16 %v676, %v660
  %v853 = vpack.c.b16 %v677, %v661
  %v854 = vpack.c.b16 %v678, %v662
  %v855 = vpack.c.b16 %v679, %v663
  %v856 = vpack.c.b16 %v680, %v664
  %v857 = vpack.c.b16 %v681, %v665
  %v858 = vpack.c.b16 %v682, %v666
  %v859 = vpack.c.b16 %v683, %v667
  %v860 = vpack.c.b16 %v684, %v668
  %v861 = vpack.c.b16 %v701, %v685
  %v862 = vpack.c.b16 %v702, %v686
  %v863 = vpack.c.b16 %v703, %v687
  %v864 = vpack.c.b16 %v704, %v688
  %v865 = vpack.c.b16 %v705, %v689
  %v866 = vpack.c.b16 %v706, %v690
  %v867 = vpack.c.b16 %v707, %v691
  %v868 = vpack.c.b16 %v708, %v692
  %v869 = vpack.c.b16 %v709, %v693
  %v870 = vpack.c.b16 %v710, %v694
  %v871 = vpack.c.b16 %v711, %v695
  %v872 = vpack.c.b16 %v712, %v696
  %v873 = vpack.c.b16 %v713, %v697
  %v874 = vpack.c.b16 %v714, %v698
  %v875 = vpack.c.b16 %v715, %v699
  %v876 = vpack.c.b16 %v716, %v700
  %v877 = vpack.c.b16 %v733, %v717
  %v878 = vpack.c.b16 %v734, %v718
  %v879 = vpack.c.b16 %v735, %v719
  %v880 = vpack.c.b16 %v736, %v720
  %v881 = vpack.c.b16 %v737, %v721
  %v882 = vpack.c.b16 %v738, %v722
  %v883 = vpack.c.b16 %v739, %v723
  %v884 = vpack.c.b16 %v740, %v724
  %v885 = vpack.c.b16 %v741, %v725
  %v886 = vpack.c.b16 %v742, %v726
  %v887 = vpack.c.b16 %v743, %v727
  %v888 = vpack.c.b16 %v744, %v728
  %v889 = vpack.c.b16 %v745, %v729
  %v890 = vpack.c.b16 %v746, %v730
  %v891 = vpack.c.b16 %v747, %v731
  %v892 = vpack.c.b16 %v748, %v732
  %v893 = vpack.c.b16 %v765, %v749
  %v894 = vpack.c.b16 %v766, %v750
  %v895 = vpack.c.b16 %v767, %v751
  %v896 = vpack.c.b16 %v768, %v752
  %v897 = vpack.c.b16 %v769, %v753
  %v898 = vpack.c.b16 %v770, %v754
  %v899 = vpack.c.b16 %v771, %v755
  %v900 = vpack.c.b16 %v772, %v756
  %v901 = vpack.c.b16 %v773, %v757
  %v902 = vpack.c.b16 %v774, %v758
  %v903 = vpack.c.b16 %v775, %v759
  %v904 = vpack.c.b16 %v776, %v760
  %v905 = vpack.c.b16 %v777, %v761
  %v906 = vpack.c.b16 %v778, %v762
  %v907 = vpack.c.b16 %v779, %v763
  %v908 = vpack.c.b16 %v780, %v764
  %v1293 = vunpack.c.l.b16 %v141
  %v1294 = vunpack.c.l.b16 %v142
  %v1295 = vunpack.c.l.b16 %v143
  %v1296 = vunpack.c.l.b16 %v144
  %v1297 = vunpack.c.l.b16 %v145
  %v1298 = vunpack.c.l.b16 %v146
  %v1299 = vunpack.c.l.b16 %v147
  %v1300 = vunpack.c.l.b16 %v148
  %v1301 = vunpack.c.l.b16 %v149
  %v1302 = vunpack.c.l.b16 %v150
  %v1303 = vunpack.c.l.b16 %v151
  %v1304 = vunpack.c.l.b16 %v152
  %v1305 = vunpack.c.l.b16 %v153
  %v1306 = vunpack.c.l.b16 %v154
  %v1307 = vunpack.c.l.b16 %v155
  %v1308 = vunpack.c.l.b16 %v156
  %v1309 = vunpack.c.l.b16 %v157
  %v1310 = vunpack.c.l.b16 %v158
  %v1311 = vunpack.c.l.b16 %v159
  %v1312 = vunpack.c.l.b16 %v160
  %v1313 = vunpack.c.l.b16 %v161
  %v1314 = vunpack.c.l.b16 %v162
  %v1315 = vunpack.c.l.b16 %v163
  %v1316 = vunpack.c.l.b16 %v164
  %v1317 = vunpack.c.l.b16 %v165
  %v1318 = vunpack.c.l.b16 %v166
  %v1319 = vunpack.c.l.b16 %v167
  %v1320 = vunpack.c.l.b16 %v168
  %v1321 = vunpack.c.l.b16 %v169
  %v1322 = vunpack.c.l.b16 %v170
  %v1323 = vunpack.c.l.b16 %v171
  %v1324 = vunpack.c.l.b16 %v172
  %v1325 = vunpack.c.l.b16 %v173
  %v1326 = vunpack.c.l.b16 %v174
  %v1327 = vunpack.c.l.b16 %v175
  %v1328 = vunpack.c.l.b16 %v176
  %v1329 = vunpack.c.l.b16 %v177
  %v1330 = vunpack.c.l.b16 %v178
  %v1331 = vunpack.c.l.b16 %v179
  %v1332 = vunpack.c.l.b16 %v180
  %v1333 = vunpack.c.l.b16 %v181
  %v1334 = vunpack.c.l.b16 %v182
  %v1335 = vunpack.c.l.b16 %v183
  %v1336 = vunpack.c.l.b16 %v184
  %v1337 = vunpack.c.l.b16 %v185
  %v1338 = vunpack.c.l.b16 %v186
  %v1339 = vunpack.c.l.b16 %v187
  %v1340 = vunpack.c.l.b16 %v188
  %v1341 = vunpack.c.l.b16 %v189
  %v1342 = vunpack.c.l.b16 %v190
  %v1343 = vunpack.c.l.b16 %v191
  %v1344 = vunpack.c.l.b16 %v192
  %v1345 = vunpack.c.l.b16 %v193
  %v1346 = vunpack.c.l.b16 %v194
  %v1347 = vunpack.c.l.b16 %v195
  %v1348 = vunpack.c.l.b16 %v196
  %v1349 = vunpack.c.l.b16 %v197
  %v1350 = vunpack.c.l.b16 %v198
  %v1351 = vunpack.c.l.b16 %v199
  %v1352 = vunpack.c.l.b16 %v200
  %v1353 = vunpack.c.l.b16 %v201
  %v1354 = vunpack.c.l.b16 %v202
  %v1355 = vunpack.c.l.b16 %v203
  %v1356 = vunpack.c.l.b16 %v204
  %v1357 = vunpack.c.l.b16 %v205
  %v1358 = vunpack.c.l.b16 %v206
  %v1359 = vunpack.c.l.b16 %v207
  %v1360 = vunpack.c.l.b16 %v208
  %v1361 = vunpack.c.l.b16 %v209
  %v1362 = vunpack.c.l.b16 %v210
  %v1363 = vunpack.c.l.b16 %v211
  %v1364 = vunpack.c.l.b16 %v212
  %v1365 = vunpack.c.l.b16 %v213
  %v1366 = vunpack.c.l.b16 %v214
  %v1367 = vunpack.c.l.b16 %v215
  %v1368 = vunpack.c.l.b16 %v216
  %v1369 = vunpack.c.l.b16 %v217
  %v1370 = vunpack.c.l.b16 %v218
  %v1371 = vunpack.c.l.b16 %v219
  %v1372 = vunpack.c.l.b16 %v220
  %v1373 = vunpack.c.l.b16 %v221
  %v1374 = vunpack.c.l.b16 %v222
  %v1375 = vunpack.c.l.b16 %v223
  %v1376 = vunpack.c.l.b16 %v224
  %v1377 = vunpack.c.l.b16 %v225
  %v1378 = vunpack.c.l.b16 %v226
  %v1379 = vunpack.c.l.b16 %v227
  %v1380 = vunpack.c.l.b16 %v228
  %v1381 = vunpack.c.l.b16 %v229
  %v1382 = vunpack.c.l.b16 %v230
  %v1383 = vunpack.c.l.b16 %v231
  %v1384 = vunpack.c.l.b16 %v232
  %v1385 = vunpack.c.l.b16 %v233
  %v1386 = vunpack.c.l.b16 %v234
  %v1387 = vunpack.c.l.b16 %v235
  %v1388 = vunpack.c.l.b16 %v236
  %v1389 = vunpack.c.l.b16 %v237
  %v1390 = vunpack.c.l.b16 %v238
  %v1391 = vunpack.c.l.b16 %v239
  %v1392 = vunpack.c.l.b16 %v240
  %v1393 = vunpack.c.l.b16 %v241
  %v1394 = vunpack.c.l.b16 %v242
  %v1395 = vunpack.c.l.b16 %v243
  %v1396 = vunpack.c.l.b16 %v244
  %v1397 = vunpack.c.l.b16 %v245
  %v1398 = vunpack.c.l.b16 %v246
  %v1399 = vunpack.c.l.b16 %v247
  %v1400 = vunpack.c.l.b16 %v248
  %v1401 = vunpack.c.l.b16 %v249
  %v1402 = vunpack.c.l.b16 %v250
  %v1403 = vunpack.c.l.b16 %v251
  %v1404 = vunpack.c.l.b16 %v252
  %v1405 = vunpack.c.l.b16 %v253
  %v1406 = vunpack.c.l.b16 %v254
  %v1407 = vunpack.c.l.b16 %v255
  %v1408 = vunpack.c.l.b16 %v256
  %v1409 = vunpack.c.l.b16 %v257
  %v1410 = vunpack.c.l.b16 %v258
  %v1411 = vunpack.c.l.b16 %v259
  %v1412 = vunpack.c.l.b16 %v260
  %v1413 = vunpack.c.l.b16 %v261
  %v1414 = vunpack.c.l.b16 %v262
  %v1415 = vunpack.c.l.b16 %v263
  %v1416 = vunpack.c.l.b16 %v264
  %v1417 = vunpack.c.l.b16 %v265
  %v1418 = vunpack.c.l.b16 %v266
  %v1419 = vunpack.c.l.b16 %v267
  %v1420 = vunpack.c.l.b16 %v268
  %v1421 = vunpack.c.l.b16 %v269
  %v1422 = vunpack.c.l.b16 %v270
  %v1423 = vunpack.c.l.b16 %v271
  %v1424 = vunpack.c.l.b16 %v272
  %v1425 = vunpack.c.l.b16 %v273
  %v1426 = vunpack.c.l.b16 %v274
  %v1427 = vunpack.c.l.b16 %v275
  %v1428 = vunpack.c.l.b16 %v276
  %v1429 = vunpack.c.l.b16 %v277
  %v1430 = vunpack.c.l.b16 %v278
  %v1431 = vunpack.c.l.b16 %v279
  %v1432 = vunpack.c.l.b16 %v280
  %v1433 = vunpack.c.l.b16 %v281
  %v1434 = vunpack.c.l.b16 %v282
  %v1435 = vunpack.c.l.b16 %v283
  %v1436 = vunpack.c.l.b16 %v284
  %v1437 = vunpack.c.l.b16 %v285
  %v1438 = vunpack.c.l.b16 %v286
  %v1439 = vunpack.c.l.b16 %v287
  %v1440 = vunpack.c.l.b16 %v288
  %v1441 = vunpack.c.l.b16 %v289
  %v1442 = vunpack.c.l.b16 %v290
  %v1443 = vunpack.c.l.b16 %v291
  %v1444 = vunpack.c.l.b16 %v292
  %v1445 = vunpack.c.l.b16 %v293
  %v1446 = vunpack.c.l.b16 %v294
  %v1447 = vunpack.c.l.b16 %v295
  %v1448 = vunpack.c.l.b16 %v296
  %v1449 = vunpack.c.l.b16 %v297
  %v1450 = vunpack.c.l.b16 %v298
  %v1451 = vunpack.c.l.b16 %v299
  %v1452 = vunpack.c.l.b16 %v300
  %v1453 = vunpack.c.l.b16 %v301
  %v1454 = vunpack.c.l.b16 %v302
  %v1455 = vunpack.c.l.b16 %v303
  %v1456 = vunpack.c.l.b16 %v304
  %v1457 = vunpack.c.l.b16 %v305
  %v1458 = vunpack.c.l.b16 %v306
  %v1459 = vunpack.c.l.b16 %v307
  %v1460 = vunpack.c.l.b16 %v308
  %v1461 = vunpack.c.l.b16 %v309
  %v1462 = vunpack.c.l.b16 %v310
  %v1463 = vunpack.c.l.b16 %v311
  %v1464 = vunpack.c.l.b16 %v312
  %v1465 = vunpack.c.l.b16 %v313
  %v1466 = vunpack.c.l.b16 %v314
  %v1467 = vunpack.c.l.b16 %v315
  %v1468 = vunpack.c.l.b16 %v316
  %v1469 = vunpack.c.l.b16 %v317
  %v1470 = vunpack.c.l.b16 %v318
  %v1471 = vunpack.c.l.b16 %v319
  %v1472 = vunpack.c.l.b16 %v320
  %v1473 = vunpack.c.l.b16 %v321
  %v1474 = vunpack.c.l.b16 %v322
  %v1475 = vunpack.c.l.b16 %v323
  %v1476 = vunpack.c.l.b16 %v324
  %v1477 = vunpack.c.l.b16 %v325
  %v1478 = vunpack.c.l.b16 %v326
  %v1479 = vunpack.c.l.b16 %v327
  %v1480 = vunpack.c.l.b16 %v328
  %v1481 = vunpack.c.l.b16 %v329
  %v1482 = vunpack.c.l.b16 %v330
  %v1483 = vunpack.c.l.b16 %v331
  %v1484 = vunpack.c.l.b16 %v332
  %v1485 = vunpack.c.l.b16 %v333
  %v1486 = vunpack.c.l.b16 %v334
  %v1487 = vunpack.c.l.b16 %v335
  %v1488 = vunpack.c.l.b16 %v336
  %v1489 = vunpack.c.l.b16 %v337
  %v1490 = vunpack.c.l.b16 %v338
  %v1491 = vunpack.c.l.b16 %v339
  %v1492 = vunpack.c.l.b16 %v340
  %v1493 = vunpack.c.l.b16 %v341
  %v1494 = vunpack.c.l.b16 %v342
  %v1495 = vunpack.c.l.b16 %v343
  %v1496 = vunpack.c.l.b16 %v344
  %v1497 = vunpack.c.l.b16 %v345
  %v1498 = vunpack.c.l.b16 %v346
  %v1499 = vunpack.c.l.b16 %v347
  %v1500 = vunpack.c.l.b16 %v348
  %v1501 = vunpack.c.l.b16 %v349
  %v1502 = vunpack.c.l.b16 %v350
  %v1503 = vunpack.c.l.b16 %v351
  %v1504 = vunpack.c.l.b16 %v352
  %v1505 = vunpack.c.l.b16 %v353
  %v1506 = vunpack.c.l.b16 %v354
  %v1507 = vunpack.c.l.b16 %v355
  %v1508 = vunpack.c.l.b16 %v356
  %v1509 = vunpack.c.l.b16 %v357
  %v1510 = vunpack.c.l.b16 %v358
  %v1511 = vunpack.c.l.b16 %v359
  %v1512 = vunpack.c.l.b16 %v360
  %v1513 = vunpack.c.l.b16 %v361
  %v1514 = vunpack.c.l.b16 %v362
  %v1515 = vunpack.c.l.b16 %v363
  %v1516 = vunpack.c.l.b16 %v364
  %v1517 = vunpack.c.l.b16 %v365
  %v1518 = vunpack.c.l.b16 %v366
  %v1519 = vunpack.c.l.b16 %v367
  %v1520 = vunpack.c.l.b16 %v368
  %v1521 = vunpack.c.l.b16 %v369
  %v1522 = vunpack.c.l.b16 %v370
  %v1523 = vunpack.c.l.b16 %v371
  %v1524 = vunpack.c.l.b16 %v372
  %v1525 = vunpack.c.l.b16 %v373
  %v1526 = vunpack.c.l.b16 %v374
  %v1527 = vunpack.c.l.b16 %v375
  %v1528 = vunpack.c.l.b16 %v376
  %v1529 = vunpack.c.l.b16 %v377
  %v1530 = vunpack.c.l.b16 %v378
  %v1531 = vunpack.c.l.b16 %v379
  %v1532 = vunpack.c.l.b16 %v380
  %v1533 = vunpack.c.l.b16 %v381
  %v1534 = vunpack.c.l.b16 %v382
  %v1535 = vunpack.c.l.b16 %v383
  %v1536 = vunpack.c.l.b16 %v384
  %v1537 = vunpack.c.l.b16 %v385
  %v1538 = vunpack.c.l.b16 %v386
  %v1539 = vunpack.c.l.b16 %v387
  %v1540 = vunpack.c.l.b16 %v388
  %v1541 = vunpack.c.l.b16 %v389
  %v1542 = vunpack.c.l.b16 %v390
  %v1543 = vunpack.c.l.b16 %v391
  %v1544 = vunpack.c.l.b16 %v392
  %v1545 = vunpack.c.l.b16 %v393
  %v1546 = vunpack.c.l.b16 %v394
  %v1547 = vunpack.c.l.b16 %v395
  %v1548 = vunpack.c.l.b16 %v396
  %v1549 = vpack.c.b16 %v1294, %v1293
  %v1550 = vpack.c.b16 %v1296, %v1295
  %v1551 = vpack.c.b16 %v1298, %v1297
  %v1552 = vpack.c.b16 %v1300, %v1299
  %v1553 = vpack.c.b16 %v1302, %v1301
  %v1554 = vpack.c.b16 %v1304, %v1303
  %v1555 = vpack.c.b16 %v1306, %v1305
  %v1556 = vpack.c.b16 %v1308, %v1307
  %v1557 = vpack.c.b16 %v1310, %v1309
  %v1558 = vpack.c.b16 %v1312, %v1311
  %v1559 = vpack.c.b16 %v1314, %v1313
  %v1560 = vpack.c.b16 %v1316, %v1315
  %v1561 = vpack.c.b16 %v1318, %v1317
  %v1562 = vpack.c.b16 %v1320, %v1319
  %v1563 = vpack.c.b16 %v1322, %v1321
  %v1564 = vpack.c.b16 %v1324, %v1323
  %v1565 = vpack.c.b16 %v1326, %v1325
  %v1566 = vpack.c.b16 %v1328, %v1327
  %v1567 = vpack.c.b16 %v1330, %v1329
  %v1568 = vpack.c.b16 %v1332, %v1331
  %v1569 = vpack.c.b16 %v1334, %v1333
  %v1570 = vpack.c.b16 %v1336, %v1335
  %v1571 = vpack.c.b16 %v1338, %v1337
  %v1572 = vpack.c.b16 %v1340, %v1339
  %v1573 = vpack.c.b16 %v1342, %v1341
  %v1574 = vpack.c.b16 %v1344, %v1343
  %v1575 = vpack.c.b16 %v1346, %v1345
  %v1576 = vpack.c.b16 %v1348, %v1347
  %v1577 = vpack.c.b16 %v1350, %v1349
  %v1578 = vpack.c.b16 %v1352, %v1351
  %v1579 = vpack.c.b16 %v1354, %v1353
  %v1580 = vpack.c.b16 %v1356, %v1355
  %v1581 = vpack.c.b16 %v1358, %v1357
  %v1582 = vpack.c.b16 %v1360, %v1359
  %v1583 = vpack.c.b16 %v1362, %v1361
  %v1584 = vpack.c.b16 %v1364, %v1363
  %v1585 = vpack.c.b16 %v1366, %v1365
  %v1586 = vpack.c.b16 %v1368, %v1367
  %v1587 = vpack.c.b16 %v1370, %v1369
  %v1588 = vpack.c.b16 %v1372, %v1371
  %v1589 = vpack.c.b16 %v1374, %v1373
  %v1590 = vpack.c.b16 %v1376, %v1375
  %v1591 = vpack.c.b16 %v1378, %v1377
  %v1592 = vpack.c.b16 %v1380, %v1379
  %v1593 = vpack.c.b16 %v1382, %v1381
  %v1594 = vpack.c.b16 %v1384, %v1383
  %v1595 = vpack.c.b16 %v1386, %v1385
  %v1596 = vpack.c.b16 %v1388, %v1387
  %v1597 = vpack.c.b16 %v1390, %v1389
  %v1598 = vpack.c.b16 %v1392, %v1391
  %v1599 = vpack.c.b16 %v1394, %v1393
  %v1600 = vpack.c.b16 %v1396, %v1395
  %v1601 = vpack.c.b16 %v1398, %v1397
  %v1602 = vpack.c.b16 %v1400, %v1399
  %v1603 = vpack.c.b16 %v1402, %v1401
  %v1604 = vpack.c.b16 %v1404, %v1403
  %v1605 = vpack.c.b16 %v1406, %v1405
  %v1606 = vpack.c.b16 %v1408, %v1407
  %v1607 = vpack.c.b16 %v1410, %v1409
  %v1608 = vpack.c.b16 %v1412, %v1411
  %v1609 = vpack.c.b16 %v1414, %v1413
  %v1610 = vpack.c.b16 %v1416, %v1415
  %v1611 = vpack.c.b16 %v1418, %v1417
  %v1612 = vpack.c.b16 %v1420, %v1419
  %v1613 = vpack.c.b16 %v1422, %v1421
  %v1614 = vpack.c.b16 %v1424, %v1423
  %v1615 = vpack.c.b16 %v1426, %v1425
  %v1616 = vpack.c.b16 %v1428, %v1427
  %v1617 = vpack.c.b16 %v1430, %v1429
  %v1618 = vpack.c.b16 %v1432, %v1431
  %v1619 = vpack.c.b16 %v1434, %v1433
  %v1620 = vpack.c.b16 %v1436, %v1435
  %v1621 = vpack.c.b16 %v1438, %v1437
  %v1622 = vpack.c.b16 %v1440, %v1439
  %v1623 = vpack.c.b16 %v1442, %v1441
  %v1624 = vpack.c.b16 %v1444, %v1443
  %v1625 = vpack.c.b16 %v1446, %v1445
  %v1626 = vpack.c.b16 %v1448, %v1447
  %v1627 = vpack.c.b16 %v1450, %v1449
  %v1628 = vpack.c.b16 %v1452, %v1451
  %v1629 = vpack.c.b16 %v1454, %v1453
  %v1630 = vpack.c.b16 %v1456, %v1455
  %v1631 = vpack.c.b16 %v1458, %v1457
  %v1632 = vpack.c.b16 %v1460, %v1459
  %v1633 = vpack.c.b16 %v1462, %v1461
  %v1634 = vpack.c.b16 %v1464, %v1463
  %v1635 = vpack.c.b16 %v1466, %v1465
  %v1636 = vpack.c.b16 %v1468, %v1467
  %v1637 = vpack.c.b16 %v1470, %v1469
  %v1638 = vpack.c.b16 %v1472, %v1471
  %v1639 = vpack.c.b16 %v1474, %v1473
  %v1640 = vpack.c.b16 %v1476, %v1475
  %v1641 = vpack.c.b16 %v1478, %v1477
  %v1642 = vpack.c.b16 %v1480, %v1479
  %v1643 = vpack.c.b16 %v1482, %v1481
  %v1644 = vpack.c.b16 %v1484, %v1483
  %v1645 = vpack.c.b16 %v1486, %v1485
  %v1646 = vpack.c.b16 %v1488, %v1487
  %v1647 = vpack.c.b16 %v1490, %v1489
  %v1648 = vpack.c.b16 %v1492, %v1491
  %v1649 = vpack.c.b16 %v1494, %v1493
  %v1650 = vpack.c.b16 %v1496, %v1495
  %v1651 = vpack.c.b16 %v1498, %v1497
  %v1652 = vpack.c.b16 %v1500, %v1499
  %v1653 = vpack.c.b16 %v1502, %v1501
  %v1654 = vpack.c.b16 %v1504, %v1503
  %v1655 = vpack.c.b16 %v1506, %v1505
  %v1656 = vpack.c.b16 %v1508, %v1507
  %v1657 = vpack.c.b16 %v1510, %v1509
  %v1658 = vpack.c.b16 %v1512, %v1511
  %v1659 = vpack.c.b16 %v1514, %v1513
  %v1660 = vpack.c.b16 %v1516, %v1515
  %v1661 = vpack.c.b16 %v1518, %v1517
  %v1662 = vpack.c.b16 %v1520, %v1519
  %v1663 = vpack.c.b16 %v1522, %v1521
  %v1664 = vpack.c.b16 %v1524, %v1523
  %v1665 = vpack.c.b16 %v1526, %v1525
  %v1666 = vpack.c.b16 %v1528, %v1527
  %v1667 = vpack.c.b16 %v1530, %v1529
  %v1668 = vpack.c.b16 %v1532, %v1531
  %v1669 = vpack.c.b16 %v1534, %v1533
  %v1670 = vpack.c.b16 %v1536, %v1535
  %v1671 = vpack.c.b16 %v1538, %v1537
  %v1672 = vpack.c.b16 %v1540, %v1539
  %v1673 = vpack.c.b16 %v1542, %v1541
  %v1674 = vpack.c.b16 %v1544, %v1543
  %v1675 = vpack.c.b16 %v1546, %v1545
  %v1676 = vpack.c.b16 %v1548, %v1547
  %1805 = vmatpush.bf16.msra.mxu0 %v1556
  %1806 = vmatpush.bf16.msra.mxu0 %v1555
  %1807 = vmatpush.bf16.msra.mxu0 %v1554
  %1808 = vmatpush.bf16.msra.mxu0 %v1553
  %1809 = vmatpush.bf16.msra.mxu0 %v1552
  %1810 = vmatpush.bf16.msra.mxu0 %v1551
  %1811 = vmatpush.bf16.msra.mxu0 %v1550
  %1812 = vmatpush.bf16.msra.mxu0 %v1549
  %1813 = vmatmul.bf16.gmra.mxu0 %v781
  %v1814 = vpop.f32.mrf.mxu0
  %v1815 = vadd.f32 0.0, %v1814
  %v1816 = vpop.f32.mrf.mxu0
  %v1817 = vadd.f32 0.0, %v1816
  %1818 = vmatmul.bf16.gmra.mxu0 %v797
  %v1819 = vpop.f32.mrf.mxu0
  %v1820 = vadd.f32 0.0, %v1819
  %v1821 = vpop.f32.mrf.mxu0
  %v1822 = vadd.f32 0.0, %v1821
  %1823 = vmatmul.bf16.gmra.mxu0 %v813
  %v1824 = vpop.f32.mrf.mxu0
  %v1825 = vadd.f32 0.0, %v1824
  %v1826 = vpop.f32.mrf.mxu0
  %v1827 = vadd.f32 0.0, %v1826
  %1828 = vmatmul.bf16.gmra.mxu0 %v829
  %v1829 = vpop.f32.mrf.mxu0
  %v1830 = vadd.f32 0.0, %v1829
  %v1831 = vpop.f32.mrf.mxu0
  %v1832 = vadd.f32 0.0, %v1831
  %1833 = vmatmul.bf16.gmra.mxu0 %v845
  %v1834 = vpop.f32.mrf.mxu0
  %v1835 = vadd.f32 0.0, %v1834
  %v1836 = vpop.f32.mrf.mxu0
  %v1837 = vadd.f32 0.0, %v1836
  %1838 = vmatmul.bf16.gmra.mxu0 %v861
  %v1839 = vpop.f32.mrf.mxu0
  %v1840 = vadd.f32 0.0, %v1839
  %v1841 = vpop.f32.mrf.mxu0
  %v1842 = vadd.f32 0.0, %v1841
  %1843 = vmatmul.bf16.gmra.mxu0 %v877
  %v1844 = vpop.f32.mrf.mxu0
  %v1845 = vadd.f32 0.0, %v1844
  %v1846 = vpop.f32.mrf.mxu0
  %v1847 = vadd.f32 0.0, %v1846
  %1848 = vmatmul.bf16.gmra.mxu0 %v893
  %v1849 = vpop.f32.mrf.mxu0
  %v1850 = vadd.f32 0.0, %v1849
  %v1851 = vpop.f32.mrf.mxu0
  %v1852 = vadd.f32 0.0, %v1851
  %1853 = vdwg.mxu0
  %1854 = vmatpush.bf16.msra.mxu0 %v1564
  %1855 = vmatpush.bf16.msra.mxu0 %v1563
  %1856 = vmatpush.bf16.msra.mxu0 %v1562
  %1857 = vmatpush.bf16.msra.mxu0 %v1561
  %1858 = vmatpush.bf16.msra.mxu0 %v1560
  %1859 = vmatpush.bf16.msra.mxu0 %v1559
  %1860 = vmatpush.bf16.msra.mxu0 %v1558
  %1861 = vmatpush.bf16.msra.mxu0 %v1557
  %1862 = vmatmul.bf16.gmra.mxu0 %v782
  %v1863 = vpop.f32.mrf.mxu0
  %v1864 = vadd.f32 %v1815, %v1863
  %v1865 = vpop.f32.mrf.mxu0
  %v1866 = vadd.f32 %v1817, %v1865
  %1867 = vmatmul.bf16.gmra.mxu0 %v798
  %v1868 = vpop.f32.mrf.mxu0
  %v1869 = vadd.f32 %v1820, %v1868
  %v1870 = vpop.f32.mrf.mxu0
  %v1871 = vadd.f32 %v1822, %v1870
  %1872 = vmatmul.bf16.gmra.mxu0 %v814
  %v1873 = vpop.f32.mrf.mxu0
  %v1874 = vadd.f32 %v1825, %v1873
  %v1875 = vpop.f32.mrf.mxu0
  %v1876 = vadd.f32 %v1827, %v1875
  %1877 = vmatmul.bf16.gmra.mxu0 %v830
  %v1878 = vpop.f32.mrf.mxu0
  %v1879 = vadd.f32 %v1830, %v1878
  %v1880 = vpop.f32.mrf.mxu0
  %v1881 = vadd.f32 %v1832, %v1880
  %1882 = vmatmul.bf16.gmra.mxu0 %v846
  %v1883 = vpop.f32.mrf.mxu0
  %v1884 = vadd.f32 %v1835, %v1883
  %v1885 = vpop.f32.mrf.mxu0
  %v1886 = vadd.f32 %v1837, %v1885
  %1887 = vmatmul.bf16.gmra.mxu0 %v862
  %v1888 = vpop.f32.mrf.mxu0
  %v1889 = vadd.f32 %v1840, %v1888
  %v1890 = vpop.f32.mrf.mxu0
  %v1891 = vadd.f32 %v1842, %v1890
  %1892 = vmatmul.bf16.gmra.mxu0 %v878
  %v1893 = vpop.f32.mrf.mxu0
  %v1894 = vadd.f32 %v1845, %v1893
  %v1895 = vpop.f32.mrf.mxu0
  %v1896 = vadd.f32 %v1847, %v1895
  %1897 = vmatmul.bf16.gmra.mxu0 %v894
  %v1898 = vpop.f32.mrf.mxu0
  %v1899 = vadd.f32 %v1850, %v1898
  %v1900 = vpop.f32.mrf.mxu0
  %v1901 = vadd.f32 %v1852, %v1900
  %1902 = vdwg.mxu0
  %1903 = vmatpush.bf16.msra.mxu0 %v1572
  %1904 = vmatpush.bf16.msra.mxu0 %v1571
  %1905 = vmatpush.bf16.msra.mxu0 %v1570
  %1906 = vmatpush.bf16.msra.mxu0 %v1569
  %1907 = vmatpush.bf16.msra.mxu0 %v1568
  %1908 = vmatpush.bf16.msra.mxu0 %v1567
  %1909 = vmatpush.bf16.msra.mxu0 %v1566
  %1910 = vmatpush.bf16.msra.mxu0 %v1565
  %1911 = vmatmul.bf16.gmra.mxu0 %v783
  %v1912 = vpop.f32.mrf.mxu0
  %v1913 = vadd.f32 %v1864, %v1912
  %v1914 = vpop.f32.mrf.mxu0
  %v1915 = vadd.f32 %v1866, %v1914
  %1916 = vmatmul.bf16.gmra.mxu0 %v799
  %v1917 = vpop.f32.mrf.mxu0
  %v1918 = vadd.f32 %v1869, %v1917
  %v1919 = vpop.f32.mrf.mxu0
  %v1920 = vadd.f32 %v1871, %v1919
  %1921 = vmatmul.bf16.gmra.mxu0 %v815
  %v1922 = vpop.f32.mrf.mxu0
  %v1923 = vadd.f32 %v1874, %v1922
  %v1924 = vpop.f32.mrf.mxu0
  %v1925 = vadd.f32 %v1876, %v1924
  %1926 = vmatmul.bf16.gmra.mxu0 %v831
  %v1927 = vpop.f32.mrf.mxu0
  %v1928 = vadd.f32 %v1879, %v1927
  %v1929 = vpop.f32.mrf.mxu0
  %v1930 = vadd.f32 %v1881, %v1929
  %1931 = vmatmul.bf16.gmra.mxu0 %v847
  %v1932 = vpop.f32.mrf.mxu0
  %v1933 = vadd.f32 %v1884, %v1932
  %v1934 = vpop.f32.mrf.mxu0
  %v1935 = vadd.f32 %v1886, %v1934
  %1936 = vmatmul.bf16.gmra.mxu0 %v863
  %v1937 = vpop.f32.mrf.mxu0
  %v1938 = vadd.f32 %v1889, %v1937
  %v1939 = vpop.f32.mrf.mxu0
  %v1940 = vadd.f32 %v1891, %v1939
  %1941 = vmatmul.bf16.gmra.mxu0 %v879
  %v1942 = vpop.f32.mrf.mxu0
  %v1943 = vadd.f32 %v1894, %v1942
  %v1944 = vpop.f32.mrf.mxu0
  %v1945 = vadd.f32 %v1896, %v1944
  %1946 = vmatmul.bf16.gmra.mxu0 %v895
  %v1947 = vpop.f32.mrf.mxu0
  %v1948 = vadd.f32 %v1899, %v1947
  %v1949 = vpop.f32.mrf.mxu0
  %v1950 = vadd.f32 %v1901, %v1949
  %1951 = vdwg.mxu0
  %1952 = vmatpush.bf16.msra.mxu0 %v1580
  %1953 = vmatpush.bf16.msra.mxu0 %v1579
  %1954 = vmatpush.bf16.msra.mxu0 %v1578
  %1955 = vmatpush.bf16.msra.mxu0 %v1577
  %1956 = vmatpush.bf16.msra.mxu0 %v1576
  %1957 = vmatpush.bf16.msra.mxu0 %v1575
  %1958 = vmatpush.bf16.msra.mxu0 %v1574
  %1959 = vmatpush.bf16.msra.mxu0 %v1573
  %1960 = vmatmul.bf16.gmra.mxu0 %v784
  %v1961 = vpop.f32.mrf.mxu0
  %v1962 = vadd.f32 %v1913, %v1961
  %v1963 = vpop.f32.mrf.mxu0
  %v1964 = vadd.f32 %v1915, %v1963
  %1965 = vmatmul.bf16.gmra.mxu0 %v800
  %v1966 = vpop.f32.mrf.mxu0
  %v1967 = vadd.f32 %v1918, %v1966
  %v1968 = vpop.f32.mrf.mxu0
  %v1969 = vadd.f32 %v1920, %v1968
  %1970 = vmatmul.bf16.gmra.mxu0 %v816
  %v1971 = vpop.f32.mrf.mxu0
  %v1972 = vadd.f32 %v1923, %v1971
  %v1973 = vpop.f32.mrf.mxu0
  %v1974 = vadd.f32 %v1925, %v1973
  %1975 = vmatmul.bf16.gmra.mxu0 %v832
  %v1976 = vpop.f32.mrf.mxu0
  %v1977 = vadd.f32 %v1928, %v1976
  %v1978 = vpop.f32.mrf.mxu0
  %v1979 = vadd.f32 %v1930, %v1978
  %1980 = vmatmul.bf16.gmra.mxu0 %v848
  %v1981 = vpop.f32.mrf.mxu0
  %v1982 = vadd.f32 %v1933, %v1981
  %v1983 = vpop.f32.mrf.mxu0
  %v1984 = vadd.f32 %v1935, %v1983
  %1985 = vmatmul.bf16.gmra.mxu0 %v864
  %v1986 = vpop.f32.mrf.mxu0
  %v1987 = vadd.f32 %v1938, %v1986
  %v1988 = vpop.f32.mrf.mxu0
  %v1989 = vadd.f32 %v1940, %v1988
  %1990 = vmatmul.bf16.gmra.mxu0 %v880
  %v1991 = vpop.f32.mrf.mxu0
  %v1992 = vadd.f32 %v1943, %v1991
  %v1993 = vpop.f32.mrf.mxu0
  %v1994 = vadd.f32 %v1945, %v1993
  %1995 = vmatmul.bf16.gmra.mxu0 %v896
  %v1996 = vpop.f32.mrf.mxu0
  %v1997 = vadd.f32 %v1948, %v1996
  %v1998 = vpop.f32.mrf.mxu0
  %v1999 = vadd.f32 %v1950, %v1998
  %2000 = vdwg.mxu0
  %2001 = vmatpush.bf16.msra.mxu0 %v1588
  %2002 = vmatpush.bf16.msra.mxu0 %v1587
  %2003 = vmatpush.bf16.msra.mxu0 %v1586
  %2004 = vmatpush.bf16.msra.mxu0 %v1585
  %2005 = vmatpush.bf16.msra.mxu0 %v1584
  %2006 = vmatpush.bf16.msra.mxu0 %v1583
  %2007 = vmatpush.bf16.msra.mxu0 %v1582
  %2008 = vmatpush.bf16.msra.mxu0 %v1581
  %2009 = vmatmul.bf16.gmra.mxu0 %v785
  %v2010 = vpop.f32.mrf.mxu0
  %v2011 = vadd.f32 %v1962, %v2010
  %v2012 = vpop.f32.mrf.mxu0
  %v2013 = vadd.f32 %v1964, %v2012
  %2014 = vmatmul.bf16.gmra.mxu0 %v801
  %v2015 = vpop.f32.mrf.mxu0
  %v2016 = vadd.f32 %v1967, %v2015
  %v2017 = vpop.f32.mrf.mxu0
  %v2018 = vadd.f32 %v1969, %v2017
  %2019 = vmatmul.bf16.gmra.mxu0 %v817
  %v2020 = vpop.f32.mrf.mxu0
  %v2021 = vadd.f32 %v1972, %v2020
  %v2022 = vpop.f32.mrf.mxu0
  %v2023 = vadd.f32 %v1974, %v2022
  %2024 = vmatmul.bf16.gmra.mxu0 %v833
  %v2025 = vpop.f32.mrf.mxu0
  %v2026 = vadd.f32 %v1977, %v2025
  %v2027 = vpop.f32.mrf.mxu0
  %v2028 = vadd.f32 %v1979, %v2027
  %2029 = vmatmul.bf16.gmra.mxu0 %v849
  %v2030 = vpop.f32.mrf.mxu0
  %v2031 = vadd.f32 %v1982, %v2030
  %v2032 = vpop.f32.mrf.mxu0
  %v2033 = vadd.f32 %v1984, %v2032
  %2034 = vmatmul.bf16.gmra.mxu0 %v865
  %v2035 = vpop.f32.mrf.mxu0
  %v2036 = vadd.f32 %v1987, %v2035
  %v2037 = vpop.f32.mrf.mxu0
  %v2038 = vadd.f32 %v1989, %v2037
  %2039 = vmatmul.bf16.gmra.mxu0 %v881
  %v2040 = vpop.f32.mrf.mxu0
  %v2041 = vadd.f32 %v1992, %v2040
  %v2042 = vpop.f32.mrf.mxu0
  %v2043 = vadd.f32 %v1994, %v2042
  %2044 = vmatmul.bf16.gmra.mxu0 %v897
  %v2045 = vpop.f32.mrf.mxu0
  %v2046 = vadd.f32 %v1997, %v2045
  %v2047 = vpop.f32.mrf.mxu0
  %v2048 = vadd.f32 %v1999, %v2047
  %2049 = vdwg.mxu0
  %2050 = vmatpush.bf16.msra.mxu0 %v1596
  %2051 = vmatpush.bf16.msra.mxu0 %v1595
  %2052 = vmatpush.bf16.msra.mxu0 %v1594
  %2053 = vmatpush.bf16.msra.mxu0 %v1593
  %2054 = vmatpush.bf16.msra.mxu0 %v1592
  %2055 = vmatpush.bf16.msra.mxu0 %v1591
  %2056 = vmatpush.bf16.msra.mxu0 %v1590
  %2057 = vmatpush.bf16.msra.mxu0 %v1589
  %2058 = vmatmul.bf16.gmra.mxu0 %v786
  %v2059 = vpop.f32.mrf.mxu0
  %v2060 = vadd.f32 %v2011, %v2059
  %v2061 = vpop.f32.mrf.mxu0
  %v2062 = vadd.f32 %v2013, %v2061
  %2063 = vmatmul.bf16.gmra.mxu0 %v802
  %v2064 = vpop.f32.mrf.mxu0
  %v2065 = vadd.f32 %v2016, %v2064
  %v2066 = vpop.f32.mrf.mxu0
  %v2067 = vadd.f32 %v2018, %v2066
  %2068 = vmatmul.bf16.gmra.mxu0 %v818
  %v2069 = vpop.f32.mrf.mxu0
  %v2070 = vadd.f32 %v2021, %v2069
  %v2071 = vpop.f32.mrf.mxu0
  %v2072 = vadd.f32 %v2023, %v2071
  %2073 = vmatmul.bf16.gmra.mxu0 %v834
  %v2074 = vpop.f32.mrf.mxu0
  %v2075 = vadd.f32 %v2026, %v2074
  %v2076 = vpop.f32.mrf.mxu0
  %v2077 = vadd.f32 %v2028, %v2076
  %2078 = vmatmul.bf16.gmra.mxu0 %v850
  %v2079 = vpop.f32.mrf.mxu0
  %v2080 = vadd.f32 %v2031, %v2079
  %v2081 = vpop.f32.mrf.mxu0
  %v2082 = vadd.f32 %v2033, %v2081
  %2083 = vmatmul.bf16.gmra.mxu0 %v866
  %v2084 = vpop.f32.mrf.mxu0
  %v2085 = vadd.f32 %v2036, %v2084
  %v2086 = vpop.f32.mrf.mxu0
  %v2087 = vadd.f32 %v2038, %v2086
  %2088 = vmatmul.bf16.gmra.mxu0 %v882
  %v2089 = vpop.f32.mrf.mxu0
  %v2090 = vadd.f32 %v2041, %v2089
  %v2091 = vpop.f32.mrf.mxu0
  %v2092 = vadd.f32 %v2043, %v2091
  %2093 = vmatmul.bf16.gmra.mxu0 %v898
  %v2094 = vpop.f32.mrf.mxu0
  %v2095 = vadd.f32 %v2046, %v2094
  %v2096 = vpop.f32.mrf.mxu0
  %v2097 = vadd.f32 %v2048, %v2096
  %2098 = vdwg.mxu0
  %2099 = vmatpush.bf16.msra.mxu0 %v1604
  %2100 = vmatpush.bf16.msra.mxu0 %v1603
  %2101 = vmatpush.bf16.msra.mxu0 %v1602
  %2102 = vmatpush.bf16.msra.mxu0 %v1601
  %2103 = vmatpush.bf16.msra.mxu0 %v1600
  %2104 = vmatpush.bf16.msra.mxu0 %v1599
  %2105 = vmatpush.bf16.msra.mxu0 %v1598
  %2106 = vmatpush.bf16.msra.mxu0 %v1597
  %2107 = vmatmul.bf16.gmra.mxu0 %v787
  %v2108 = vpop.f32.mrf.mxu0
  %v2109 = vadd.f32 %v2060, %v2108
  %v2110 = vpop.f32.mrf.mxu0
  %v2111 = vadd.f32 %v2062, %v2110
  %2112 = vmatmul.bf16.gmra.mxu0 %v803
  %v2113 = vpop.f32.mrf.mxu0
  %v2114 = vadd.f32 %v2065, %v2113
  %v2115 = vpop.f32.mrf.mxu0
  %v2116 = vadd.f32 %v2067, %v2115
  %2117 = vmatmul.bf16.gmra.mxu0 %v819
  %v2118 = vpop.f32.mrf.mxu0
  %v2119 = vadd.f32 %v2070, %v2118
  %v2120 = vpop.f32.mrf.mxu0
  %v2121 = vadd.f32 %v2072, %v2120
  %2122 = vmatmul.bf16.gmra.mxu0 %v835
  %v2123 = vpop.f32.mrf.mxu0
  %v2124 = vadd.f32 %v2075, %v2123
  %v2125 = vpop.f32.mrf.mxu0
  %v2126 = vadd.f32 %v2077, %v2125
  %2127 = vmatmul.bf16.gmra.mxu0 %v851
  %v2128 = vpop.f32.mrf.mxu0
  %v2129 = vadd.f32 %v2080, %v2128
  %v2130 = vpop.f32.mrf.mxu0
  %v2131 = vadd.f32 %v2082, %v2130
  %2132 = vmatmul.bf16.gmra.mxu0 %v867
  %v2133 = vpop.f32.mrf.mxu0
  %v2134 = vadd.f32 %v2085, %v2133
  %v2135 = vpop.f32.mrf.mxu0
  %v2136 = vadd.f32 %v2087, %v2135
  %2137 = vmatmul.bf16.gmra.mxu0 %v883
  %v2138 = vpop.f32.mrf.mxu0
  %v2139 = vadd.f32 %v2090, %v2138
  %v2140 = vpop.f32.mrf.mxu0
  %v2141 = vadd.f32 %v2092, %v2140
  %2142 = vmatmul.bf16.gmra.mxu0 %v899
  %v2143 = vpop.f32.mrf.mxu0
  %v2144 = vadd.f32 %v2095, %v2143
  %v2145 = vpop.f32.mrf.mxu0
  %v2146 = vadd.f32 %v2097, %v2145
  %2147 = vdwg.mxu0
  %2148 = vmatpush.bf16.msra.mxu0 %v1612
  %2149 = vmatpush.bf16.msra.mxu0 %v1611
  %2150 = vmatpush.bf16.msra.mxu0 %v1610
  %2151 = vmatpush.bf16.msra.mxu0 %v1609
  %2152 = vmatpush.bf16.msra.mxu0 %v1608
  %2153 = vmatpush.bf16.msra.mxu0 %v1607
  %2154 = vmatpush.bf16.msra.mxu0 %v1606
  %2155 = vmatpush.bf16.msra.mxu0 %v1605
  %2156 = vmatmul.bf16.gmra.mxu0 %v788
  %v2157 = vpop.f32.mrf.mxu0
  %v2158 = vadd.f32 %v2109, %v2157
  %v2159 = vpop.f32.mrf.mxu0
  %v2160 = vadd.f32 %v2111, %v2159
  %2161 = vmatmul.bf16.gmra.mxu0 %v804
  %v2162 = vpop.f32.mrf.mxu0
  %v2163 = vadd.f32 %v2114, %v2162
  %v2164 = vpop.f32.mrf.mxu0
  %v2165 = vadd.f32 %v2116, %v2164
  %2166 = vmatmul.bf16.gmra.mxu0 %v820
  %v2167 = vpop.f32.mrf.mxu0
  %v2168 = vadd.f32 %v2119, %v2167
  %v2169 = vpop.f32.mrf.mxu0
  %v2170 = vadd.f32 %v2121, %v2169
  %2171 = vmatmul.bf16.gmra.mxu0 %v836
  %v2172 = vpop.f32.mrf.mxu0
  %v2173 = vadd.f32 %v2124, %v2172
  %v2174 = vpop.f32.mrf.mxu0
  %v2175 = vadd.f32 %v2126, %v2174
  %2176 = vmatmul.bf16.gmra.mxu0 %v852
  %v2177 = vpop.f32.mrf.mxu0
  %v2178 = vadd.f32 %v2129, %v2177
  %v2179 = vpop.f32.mrf.mxu0
  %v2180 = vadd.f32 %v2131, %v2179
  %2181 = vmatmul.bf16.gmra.mxu0 %v868
  %v2182 = vpop.f32.mrf.mxu0
  %v2183 = vadd.f32 %v2134, %v2182
  %v2184 = vpop.f32.mrf.mxu0
  %v2185 = vadd.f32 %v2136, %v2184
  %2186 = vmatmul.bf16.gmra.mxu0 %v884
  %v2187 = vpop.f32.mrf.mxu0
  %v2188 = vadd.f32 %v2139, %v2187
  %v2189 = vpop.f32.mrf.mxu0
  %v2190 = vadd.f32 %v2141, %v2189
  %2191 = vmatmul.bf16.gmra.mxu0 %v900
  %v2192 = vpop.f32.mrf.mxu0
  %v2193 = vadd.f32 %v2144, %v2192
  %v2194 = vpop.f32.mrf.mxu0
  %v2195 = vadd.f32 %v2146, %v2194
  %2196 = vdwg.mxu0
  %2197 = vmatpush.bf16.msra.mxu0 %v1620
  %2198 = vmatpush.bf16.msra.mxu0 %v1619
  %2199 = vmatpush.bf16.msra.mxu0 %v1618
  %2200 = vmatpush.bf16.msra.mxu0 %v1617
  %2201 = vmatpush.bf16.msra.mxu0 %v1616
  %2202 = vmatpush.bf16.msra.mxu0 %v1615
  %2203 = vmatpush.bf16.msra.mxu0 %v1614
  %2204 = vmatpush.bf16.msra.mxu0 %v1613
  %2205 = vmatmul.bf16.gmra.mxu0 %v789
  %v2206 = vpop.f32.mrf.mxu0
  %v2207 = vadd.f32 %v2158, %v2206
  %v2208 = vpop.f32.mrf.mxu0
  %v2209 = vadd.f32 %v2160, %v2208
  %2210 = vmatmul.bf16.gmra.mxu0 %v805
  %v2211 = vpop.f32.mrf.mxu0
  %v2212 = vadd.f32 %v2163, %v2211
  %v2213 = vpop.f32.mrf.mxu0
  %v2214 = vadd.f32 %v2165, %v2213
  %2215 = vmatmul.bf16.gmra.mxu0 %v821
  %v2216 = vpop.f32.mrf.mxu0
  %v2217 = vadd.f32 %v2168, %v2216
  %v2218 = vpop.f32.mrf.mxu0
  %v2219 = vadd.f32 %v2170, %v2218
  %2220 = vmatmul.bf16.gmra.mxu0 %v837
  %v2221 = vpop.f32.mrf.mxu0
  %v2222 = vadd.f32 %v2173, %v2221
  %v2223 = vpop.f32.mrf.mxu0
  %v2224 = vadd.f32 %v2175, %v2223
  %2225 = vmatmul.bf16.gmra.mxu0 %v853
  %v2226 = vpop.f32.mrf.mxu0
  %v2227 = vadd.f32 %v2178, %v2226
  %v2228 = vpop.f32.mrf.mxu0
  %v2229 = vadd.f32 %v2180, %v2228
  %2230 = vmatmul.bf16.gmra.mxu0 %v869
  %v2231 = vpop.f32.mrf.mxu0
  %v2232 = vadd.f32 %v2183, %v2231
  %v2233 = vpop.f32.mrf.mxu0
  %v2234 = vadd.f32 %v2185, %v2233
  %2235 = vmatmul.bf16.gmra.mxu0 %v885
  %v2236 = vpop.f32.mrf.mxu0
  %v2237 = vadd.f32 %v2188, %v2236
  %v2238 = vpop.f32.mrf.mxu0
  %v2239 = vadd.f32 %v2190, %v2238
  %2240 = vmatmul.bf16.gmra.mxu0 %v901
  %v2241 = vpop.f32.mrf.mxu0
  %v2242 = vadd.f32 %v2193, %v2241
  %v2243 = vpop.f32.mrf.mxu0
  %v2244 = vadd.f32 %v2195, %v2243
  %2245 = vdwg.mxu0
  %2246 = vmatpush.bf16.msra.mxu0 %v1628
  %2247 = vmatpush.bf16.msra.mxu0 %v1627
  %2248 = vmatpush.bf16.msra.mxu0 %v1626
  %2249 = vmatpush.bf16.msra.mxu0 %v1625
  %2250 = vmatpush.bf16.msra.mxu0 %v1624
  %2251 = vmatpush.bf16.msra.mxu0 %v1623
  %2252 = vmatpush.bf16.msra.mxu0 %v1622
  %2253 = vmatpush.bf16.msra.mxu0 %v1621
  %2254 = vmatmul.bf16.gmra.mxu0 %v790
  %v2255 = vpop.f32.mrf.mxu0
  %v2256 = vadd.f32 %v2207, %v2255
  %v2257 = vpop.f32.mrf.mxu0
  %v2258 = vadd.f32 %v2209, %v2257
  %2259 = vmatmul.bf16.gmra.mxu0 %v806
  %v2260 = vpop.f32.mrf.mxu0
  %v2261 = vadd.f32 %v2212, %v2260
  %v2262 = vpop.f32.mrf.mxu0
  %v2263 = vadd.f32 %v2214, %v2262
  %2264 = vmatmul.bf16.gmra.mxu0 %v822
  %v2265 = vpop.f32.mrf.mxu0
  %v2266 = vadd.f32 %v2217, %v2265
  %v2267 = vpop.f32.mrf.mxu0
  %v2268 = vadd.f32 %v2219, %v2267
  %2269 = vmatmul.bf16.gmra.mxu0 %v838
  %v2270 = vpop.f32.mrf.mxu0
  %v2271 = vadd.f32 %v2222, %v2270
  %v2272 = vpop.f32.mrf.mxu0
  %v2273 = vadd.f32 %v2224, %v2272
  %2274 = vmatmul.bf16.gmra.mxu0 %v854
  %v2275 = vpop.f32.mrf.mxu0
  %v2276 = vadd.f32 %v2227, %v2275
  %v2277 = vpop.f32.mrf.mxu0
  %v2278 = vadd.f32 %v2229, %v2277
  %2279 = vmatmul.bf16.gmra.mxu0 %v870
  %v2280 = vpop.f32.mrf.mxu0
  %v2281 = vadd.f32 %v2232, %v2280
  %v2282 = vpop.f32.mrf.mxu0
  %v2283 = vadd.f32 %v2234, %v2282
  %2284 = vmatmul.bf16.gmra.mxu0 %v886
  %v2285 = vpop.f32.mrf.mxu0
  %v2286 = vadd.f32 %v2237, %v2285
  %v2287 = vpop.f32.mrf.mxu0
  %v2288 = vadd.f32 %v2239, %v2287
  %2289 = vmatmul.bf16.gmra.mxu0 %v902
  %v2290 = vpop.f32.mrf.mxu0
  %v2291 = vadd.f32 %v2242, %v2290
  %v2292 = vpop.f32.mrf.mxu0
  %v2293 = vadd.f32 %v2244, %v2292
  %2294 = vdwg.mxu0
  %2295 = vmatpush.bf16.msra.mxu0 %v1636
  %2296 = vmatpush.bf16.msra.mxu0 %v1635
  %2297 = vmatpush.bf16.msra.mxu0 %v1634
  %2298 = vmatpush.bf16.msra.mxu0 %v1633
  %2299 = vmatpush.bf16.msra.mxu0 %v1632
  %2300 = vmatpush.bf16.msra.mxu0 %v1631
  %2301 = vmatpush.bf16.msra.mxu0 %v1630
  %2302 = vmatpush.bf16.msra.mxu0 %v1629
  %2303 = vmatmul.bf16.gmra.mxu0 %v791
  %v2304 = vpop.f32.mrf.mxu0
  %v2305 = vadd.f32 %v2256, %v2304
  %v2306 = vpop.f32.mrf.mxu0
  %v2307 = vadd.f32 %v2258, %v2306
  %2308 = vmatmul.bf16.gmra.mxu0 %v807
  %v2309 = vpop.f32.mrf.mxu0
  %v2310 = vadd.f32 %v2261, %v2309
  %v2311 = vpop.f32.mrf.mxu0
  %v2312 = vadd.f32 %v2263, %v2311
  %2313 = vmatmul.bf16.gmra.mxu0 %v823
  %v2314 = vpop.f32.mrf.mxu0
  %v2315 = vadd.f32 %v2266, %v2314
  %v2316 = vpop.f32.mrf.mxu0
  %v2317 = vadd.f32 %v2268, %v2316
  %2318 = vmatmul.bf16.gmra.mxu0 %v839
  %v2319 = vpop.f32.mrf.mxu0
  %v2320 = vadd.f32 %v2271, %v2319
  %v2321 = vpop.f32.mrf.mxu0
  %v2322 = vadd.f32 %v2273, %v2321
  %2323 = vmatmul.bf16.gmra.mxu0 %v855
  %v2324 = vpop.f32.mrf.mxu0
  %v2325 = vadd.f32 %v2276, %v2324
  %v2326 = vpop.f32.mrf.mxu0
  %v2327 = vadd.f32 %v2278, %v2326
  %2328 = vmatmul.bf16.gmra.mxu0 %v871
  %v2329 = vpop.f32.mrf.mxu0
  %v2330 = vadd.f32 %v2281, %v2329
  %v2331 = vpop.f32.mrf.mxu0
  %v2332 = vadd.f32 %v2283, %v2331
  %2333 = vmatmul.bf16.gmra.mxu0 %v887
  %v2334 = vpop.f32.mrf.mxu0
  %v2335 = vadd.f32 %v2286, %v2334
  %v2336 = vpop.f32.mrf.mxu0
  %v2337 = vadd.f32 %v2288, %v2336
  %2338 = vmatmul.bf16.gmra.mxu0 %v903
  %v2339 = vpop.f32.mrf.mxu0
  %v2340 = vadd.f32 %v2291, %v2339
  %v2341 = vpop.f32.mrf.mxu0
  %v2342 = vadd.f32 %v2293, %v2341
  %2343 = vdwg.mxu0
  %2344 = vmatpush.bf16.msra.mxu0 %v1644
  %2345 = vmatpush.bf16.msra.mxu0 %v1643
  %2346 = vmatpush.bf16.msra.mxu0 %v1642
  %2347 = vmatpush.bf16.msra.mxu0 %v1641
  %2348 = vmatpush.bf16.msra.mxu0 %v1640
  %2349 = vmatpush.bf16.msra.mxu0 %v1639
  %2350 = vmatpush.bf16.msra.mxu0 %v1638
  %2351 = vmatpush.bf16.msra.mxu0 %v1637
  %2352 = vmatmul.bf16.gmra.mxu0 %v792
  %v2353 = vpop.f32.mrf.mxu0
  %v2354 = vadd.f32 %v2305, %v2353
  %v2355 = vpop.f32.mrf.mxu0
  %v2356 = vadd.f32 %v2307, %v2355
  %2357 = vmatmul.bf16.gmra.mxu0 %v808
  %v2358 = vpop.f32.mrf.mxu0
  %v2359 = vadd.f32 %v2310, %v2358
  %v2360 = vpop.f32.mrf.mxu0
  %v2361 = vadd.f32 %v2312, %v2360
  %2362 = vmatmul.bf16.gmra.mxu0 %v824
  %v2363 = vpop.f32.mrf.mxu0
  %v2364 = vadd.f32 %v2315, %v2363
  %v2365 = vpop.f32.mrf.mxu0
  %v2366 = vadd.f32 %v2317, %v2365
  %2367 = vmatmul.bf16.gmra.mxu0 %v840
  %v2368 = vpop.f32.mrf.mxu0
  %v2369 = vadd.f32 %v2320, %v2368
  %v2370 = vpop.f32.mrf.mxu0
  %v2371 = vadd.f32 %v2322, %v2370
  %2372 = vmatmul.bf16.gmra.mxu0 %v856
  %v2373 = vpop.f32.mrf.mxu0
  %v2374 = vadd.f32 %v2325, %v2373
  %v2375 = vpop.f32.mrf.mxu0
  %v2376 = vadd.f32 %v2327, %v2375
  %2377 = vmatmul.bf16.gmra.mxu0 %v872
  %v2378 = vpop.f32.mrf.mxu0
  %v2379 = vadd.f32 %v2330, %v2378
  %v2380 = vpop.f32.mrf.mxu0
  %v2381 = vadd.f32 %v2332, %v2380
  %2382 = vmatmul.bf16.gmra.mxu0 %v888
  %v2383 = vpop.f32.mrf.mxu0
  %v2384 = vadd.f32 %v2335, %v2383
  %v2385 = vpop.f32.mrf.mxu0
  %v2386 = vadd.f32 %v2337, %v2385
  %2387 = vmatmul.bf16.gmra.mxu0 %v904
  %v2388 = vpop.f32.mrf.mxu0
  %v2389 = vadd.f32 %v2340, %v2388
  %v2390 = vpop.f32.mrf.mxu0
  %v2391 = vadd.f32 %v2342, %v2390
  %2392 = vdwg.mxu0
  %2393 = vmatpush.bf16.msra.mxu0 %v1652
  %2394 = vmatpush.bf16.msra.mxu0 %v1651
  %2395 = vmatpush.bf16.msra.mxu0 %v1650
  %2396 = vmatpush.bf16.msra.mxu0 %v1649
  %2397 = vmatpush.bf16.msra.mxu0 %v1648
  %2398 = vmatpush.bf16.msra.mxu0 %v1647
  %2399 = vmatpush.bf16.msra.mxu0 %v1646
  %2400 = vmatpush.bf16.msra.mxu0 %v1645
  %2401 = vmatmul.bf16.gmra.mxu0 %v793
  %v2402 = vpop.f32.mrf.mxu0
  %v2403 = vadd.f32 %v2354, %v2402
  %v2404 = vpop.f32.mrf.mxu0
  %v2405 = vadd.f32 %v2356, %v2404
  %2406 = vmatmul.bf16.gmra.mxu0 %v809
  %v2407 = vpop.f32.mrf.mxu0
  %v2408 = vadd.f32 %v2359, %v2407
  %v2409 = vpop.f32.mrf.mxu0
  %v2410 = vadd.f32 %v2361, %v2409
  %2411 = vmatmul.bf16.gmra.mxu0 %v825
  %v2412 = vpop.f32.mrf.mxu0
  %v2413 = vadd.f32 %v2364, %v2412
  %v2414 = vpop.f32.mrf.mxu0
  %v2415 = vadd.f32 %v2366, %v2414
  %2416 = vmatmul.bf16.gmra.mxu0 %v841
  %v2417 = vpop.f32.mrf.mxu0
  %v2418 = vadd.f32 %v2369, %v2417
  %v2419 = vpop.f32.mrf.mxu0
  %v2420 = vadd.f32 %v2371, %v2419
  %2421 = vmatmul.bf16.gmra.mxu0 %v857
  %v2422 = vpop.f32.mrf.mxu0
  %v2423 = vadd.f32 %v2374, %v2422
  %v2424 = vpop.f32.mrf.mxu0
  %v2425 = vadd.f32 %v2376, %v2424
  %2426 = vmatmul.bf16.gmra.mxu0 %v873
  %v2427 = vpop.f32.mrf.mxu0
  %v2428 = vadd.f32 %v2379, %v2427
  %v2429 = vpop.f32.mrf.mxu0
  %v2430 = vadd.f32 %v2381, %v2429
  %2431 = vmatmul.bf16.gmra.mxu0 %v889
  %v2432 = vpop.f32.mrf.mxu0
  %v2433 = vadd.f32 %v2384, %v2432
  %v2434 = vpop.f32.mrf.mxu0
  %v2435 = vadd.f32 %v2386, %v2434
  %2436 = vmatmul.bf16.gmra.mxu0 %v905
  %v2437 = vpop.f32.mrf.mxu0
  %v2438 = vadd.f32 %v2389, %v2437
  %v2439 = vpop.f32.mrf.mxu0
  %v2440 = vadd.f32 %v2391, %v2439
  %2441 = vdwg.mxu0
  %2442 = vmatpush.bf16.msra.mxu0 %v1660
  %2443 = vmatpush.bf16.msra.mxu0 %v1659
  %2444 = vmatpush.bf16.msra.mxu0 %v1658
  %2445 = vmatpush.bf16.msra.mxu0 %v1657
  %2446 = vmatpush.bf16.msra.mxu0 %v1656
  %2447 = vmatpush.bf16.msra.mxu0 %v1655
  %2448 = vmatpush.bf16.msra.mxu0 %v1654
  %2449 = vmatpush.bf16.msra.mxu0 %v1653
  %2450 = vmatmul.bf16.gmra.mxu0 %v794
  %v2451 = vpop.f32.mrf.mxu0
  %v2452 = vadd.f32 %v2403, %v2451
  %v2453 = vpop.f32.mrf.mxu0
  %v2454 = vadd.f32 %v2405, %v2453
  %2455 = vmatmul.bf16.gmra.mxu0 %v810
  %v2456 = vpop.f32.mrf.mxu0
  %v2457 = vadd.f32 %v2408, %v2456
  %v2458 = vpop.f32.mrf.mxu0
  %v2459 = vadd.f32 %v2410, %v2458
  %2460 = vmatmul.bf16.gmra.mxu0 %v826
  %v2461 = vpop.f32.mrf.mxu0
  %v2462 = vadd.f32 %v2413, %v2461
  %v2463 = vpop.f32.mrf.mxu0
  %v2464 = vadd.f32 %v2415, %v2463
  %2465 = vmatmul.bf16.gmra.mxu0 %v842
  %v2466 = vpop.f32.mrf.mxu0
  %v2467 = vadd.f32 %v2418, %v2466
  %v2468 = vpop.f32.mrf.mxu0
  %v2469 = vadd.f32 %v2420, %v2468
  %2470 = vmatmul.bf16.gmra.mxu0 %v858
  %v2471 = vpop.f32.mrf.mxu0
  %v2472 = vadd.f32 %v2423, %v2471
  %v2473 = vpop.f32.mrf.mxu0
  %v2474 = vadd.f32 %v2425, %v2473
  %2475 = vmatmul.bf16.gmra.mxu0 %v874
  %v2476 = vpop.f32.mrf.mxu0
  %v2477 = vadd.f32 %v2428, %v2476
  %v2478 = vpop.f32.mrf.mxu0
  %v2479 = vadd.f32 %v2430, %v2478
  %2480 = vmatmul.bf16.gmra.mxu0 %v890
  %v2481 = vpop.f32.mrf.mxu0
  %v2482 = vadd.f32 %v2433, %v2481
  %v2483 = vpop.f32.mrf.mxu0
  %v2484 = vadd.f32 %v2435, %v2483
  %2485 = vmatmul.bf16.gmra.mxu0 %v906
  %v2486 = vpop.f32.mrf.mxu0
  %v2487 = vadd.f32 %v2438, %v2486
  %v2488 = vpop.f32.mrf.mxu0
  %v2489 = vadd.f32 %v2440, %v2488
  %2490 = vdwg.mxu0
  %2491 = vmatpush.bf16.msra.mxu0 %v1668
  %2492 = vmatpush.bf16.msra.mxu0 %v1667
  %2493 = vmatpush.bf16.msra.mxu0 %v1666
  %2494 = vmatpush.bf16.msra.mxu0 %v1665
  %2495 = vmatpush.bf16.msra.mxu0 %v1664
  %2496 = vmatpush.bf16.msra.mxu0 %v1663
  %2497 = vmatpush.bf16.msra.mxu0 %v1662
  %2498 = vmatpush.bf16.msra.mxu0 %v1661
  %2499 = vmatmul.bf16.gmra.mxu0 %v795
  %v2500 = vpop.f32.mrf.mxu0
  %v2501 = vadd.f32 %v2452, %v2500
  %v2502 = vpop.f32.mrf.mxu0
  %v2503 = vadd.f32 %v2454, %v2502
  %2504 = vmatmul.bf16.gmra.mxu0 %v811
  %v2505 = vpop.f32.mrf.mxu0
  %v2506 = vadd.f32 %v2457, %v2505
  %v2507 = vpop.f32.mrf.mxu0
  %v2508 = vadd.f32 %v2459, %v2507
  %2509 = vmatmul.bf16.gmra.mxu0 %v827
  %v2510 = vpop.f32.mrf.mxu0
  %v2511 = vadd.f32 %v2462, %v2510
  %v2512 = vpop.f32.mrf.mxu0
  %v2513 = vadd.f32 %v2464, %v2512
  %2514 = vmatmul.bf16.gmra.mxu0 %v843
  %v2515 = vpop.f32.mrf.mxu0
  %v2516 = vadd.f32 %v2467, %v2515
  %v2517 = vpop.f32.mrf.mxu0
  %v2518 = vadd.f32 %v2469, %v2517
  %2519 = vmatmul.bf16.gmra.mxu0 %v859
  %v2520 = vpop.f32.mrf.mxu0
  %v2521 = vadd.f32 %v2472, %v2520
  %v2522 = vpop.f32.mrf.mxu0
  %v2523 = vadd.f32 %v2474, %v2522
  %2524 = vmatmul.bf16.gmra.mxu0 %v875
  %v2525 = vpop.f32.mrf.mxu0
  %v2526 = vadd.f32 %v2477, %v2525
  %v2527 = vpop.f32.mrf.mxu0
  %v2528 = vadd.f32 %v2479, %v2527
  %2529 = vmatmul.bf16.gmra.mxu0 %v891
  %v2530 = vpop.f32.mrf.mxu0
  %v2531 = vadd.f32 %v2482, %v2530
  %v2532 = vpop.f32.mrf.mxu0
  %v2533 = vadd.f32 %v2484, %v2532
  %2534 = vmatmul.bf16.gmra.mxu0 %v907
  %v2535 = vpop.f32.mrf.mxu0
  %v2536 = vadd.f32 %v2487, %v2535
  %v2537 = vpop.f32.mrf.mxu0
  %v2538 = vadd.f32 %v2489, %v2537
  %2539 = vdwg.mxu0
  %2540 = vmatpush.bf16.msra.mxu0 %v1676
  %2541 = vmatpush.bf16.msra.mxu0 %v1675
  %2542 = vmatpush.bf16.msra.mxu0 %v1674
  %2543 = vmatpush.bf16.msra.mxu0 %v1673
  %2544 = vmatpush.bf16.msra.mxu0 %v1672
  %2545 = vmatpush.bf16.msra.mxu0 %v1671
  %2546 = vmatpush.bf16.msra.mxu0 %v1670
  %2547 = vmatpush.bf16.msra.mxu0 %v1669
  %2548 = vmatmul.bf16.gmra.mxu0 %v796
  %v2549 = vpop.f32.mrf.mxu0
  %v2550 = vadd.f32 %v2501, %v2549
  %v2551 = vpop.f32.mrf.mxu0
  %v2552 = vadd.f32 %v2503, %v2551
  %2553 = vmatmul.bf16.gmra.mxu0 %v812
  %v2554 = vpop.f32.mrf.mxu0
  %v2555 = vadd.f32 %v2506, %v2554
  %v2556 = vpop.f32.mrf.mxu0
  %v2557 = vadd.f32 %v2508, %v2556
  %2558 = vmatmul.bf16.gmra.mxu0 %v828
  %v2559 = vpop.f32.mrf.mxu0
  %v2560 = vadd.f32 %v2511, %v2559
  %v2561 = vpop.f32.mrf.mxu0
  %v2562 = vadd.f32 %v2513, %v2561
  %2563 = vmatmul.bf16.gmra.mxu0 %v844
  %v2564 = vpop.f32.mrf.mxu0
  %v2565 = vadd.f32 %v2516, %v2564
  %v2566 = vpop.f32.mrf.mxu0
  %v2567 = vadd.f32 %v2518, %v2566
  %2568 = vmatmul.bf16.gmra.mxu0 %v860
  %v2569 = vpop.f32.mrf.mxu0
  %v2570 = vadd.f32 %v2521, %v2569
  %v2571 = vpop.f32.mrf.mxu0
  %v2572 = vadd.f32 %v2523, %v2571
  %2573 = vmatmul.bf16.gmra.mxu0 %v876
  %v2574 = vpop.f32.mrf.mxu0
  %v2575 = vadd.f32 %v2526, %v2574
  %v2576 = vpop.f32.mrf.mxu0
  %v2577 = vadd.f32 %v2528, %v2576
  %2578 = vmatmul.bf16.gmra.mxu0 %v892
  %v2579 = vpop.f32.mrf.mxu0
  %v2580 = vadd.f32 %v2531, %v2579
  %v2581 = vpop.f32.mrf.mxu0
  %v2582 = vadd.f32 %v2533, %v2581
  %2583 = vmatmul.bf16.gmra.mxu0 %v908
  %v2584 = vpop.f32.mrf.mxu0
  %v2585 = vadd.f32 %v2536, %v2584
  %v2586 = vpop.f32.mrf.mxu0
  %v2587 = vadd.f32 %v2538, %v2586
  %2588 = vdwg.mxu0
  %v2589 = vpack.c.bf16 %v2550, %v2550
  %v2590 = vpack.c.bf16 %v2552, %v2552
  %v2591 = vpack.c.bf16 %v2555, %v2555
  %v2592 = vpack.c.bf16 %v2557, %v2557
  %v2593 = vpack.c.bf16 %v2560, %v2560
  %v2594 = vpack.c.bf16 %v2562, %v2562
  %v2595 = vpack.c.bf16 %v2565, %v2565
  %v2596 = vpack.c.bf16 %v2567, %v2567
  %v2597 = vpack.c.bf16 %v2570, %v2570
  %v2598 = vpack.c.bf16 %v2572, %v2572
  %v2599 = vpack.c.bf16 %v2575, %v2575
  %v2600 = vpack.c.bf16 %v2577, %v2577
  %v2601 = vpack.c.bf16 %v2580, %v2580
  %v2602 = vpack.c.bf16 %v2582, %v2582
  %v2603 = vpack.c.bf16 %v2585, %v2585
  %v2604 = vpack.c.bf16 %v2587, %v2587
  %2605 = vst [vmem:[%s2] sm:$0xf] %v2589
  %2606 = vst [vmem:[%s2 + $0x4] sm:$0xf] %v2590
  %2607 = vst [vmem:[%s2 + $0x8] sm:$0xf] %v2591
  %2608 = vst [vmem:[%s2 + $0xc] sm:$0xf] %v2592
  %2609 = vst [vmem:[%s2 + $0x10] sm:$0xf] %v2593
  %2610 = vst [vmem:[%s2 + $0x14] sm:$0xf] %v2594
  %2611 = vst [vmem:[%s2 + $0x18] sm:$0xf] %v2595
  %2612 = vst [vmem:[%s2 + $0x1c] sm:$0xf] %v2596
  %2613 = vst [vmem:[%s2 + $0x20] sm:$0xf] %v2597
  %2614 = vst [vmem:[%s2 + $0x24] sm:$0xf] %v2598
  %2615 = vst [vmem:[%s2 + $0x28] sm:$0xf] %v2599
  %2616 = vst [vmem:[%s2 + $0x2c] sm:$0xf] %v2600
  %2617 = vst [vmem:[%s2 + $0x30] sm:$0xf] %v2601
  %2618 = vst [vmem:[%s2 + $0x34] sm:$0xf] %v2602
  %2619 = vst [vmem:[%s2 + $0x38] sm:$0xf] %v2603
  %2620 = vst [vmem:[%s2 + $0x3c] sm:$0xf] %v2604
  %s2621 = smul.u32 0, 128
  %v2622 = vlaneseq
  %v2623 = vshrl.u32 %v2622, 7
  %v2624 = vadd.s32 %v2623, 8
  %v2625 = vadd.s32 %v2623, 16
  %v2626 = vadd.s32 %v2623, 24
  %v2627 = vadd.s32 %v2623, 32
  %v2628 = vadd.s32 %v2623, 40
  %v2629 = vadd.s32 %v2623, 48
  %v2630 = vadd.s32 %v2623, 56
  %v2631 = vadd.s32 %v2623, 64
  %v2632 = vadd.s32 %v2623, 72
  %v2633 = vadd.s32 %v2623, 80
  %v2634 = vadd.s32 %v2623, 88
  %v2635 = vadd.s32 %v2623, 96
  %v2636 = vadd.s32 %v2623, 104
  %v2637 = vadd.s32 %v2623, 112
  %v2638 = vadd.s32 %v2623, 120
  %v2639 = vstv %s2621
  %v2640 = vadd.s32 %v2639, %v2623
  %v2641 = vadd.s32 %v2639, %v2624
  %v2642 = vadd.s32 %v2639, %v2625
  %v2643 = vadd.s32 %v2639, %v2626
  %v2644 = vadd.s32 %v2639, %v2627
  %v2645 = vadd.s32 %v2639, %v2628
  %v2646 = vadd.s32 %v2639, %v2629
  %v2647 = vadd.s32 %v2639, %v2630
  %v2648 = vadd.s32 %v2639, %v2631
  %v2649 = vadd.s32 %v2639, %v2632
  %v2650 = vadd.s32 %v2639, %v2633
  %v2651 = vadd.s32 %v2639, %v2634
  %v2652 = vadd.s32 %v2639, %v2635
  %v2653 = vadd.s32 %v2639, %v2636
  %v2654 = vadd.s32 %v2639, %v2637
  %v2655 = vadd.s32 %v2639, %v2638
  %vm2656 = vcmp.lt.s32.totalorder %v2640, 128
  %vm2657 = vcmp.lt.s32.totalorder %v2641, 128
  %vm2658 = vcmp.lt.s32.totalorder %v2642, 128
  %vm2659 = vcmp.lt.s32.totalorder %v2643, 128
  %vm2660 = vcmp.lt.s32.totalorder %v2644, 128
  %vm2661 = vcmp.lt.s32.totalorder %v2645, 128
  %vm2662 = vcmp.lt.s32.totalorder %v2646, 128
  %vm2663 = vcmp.lt.s32.totalorder %v2647, 128
  %vm2664 = vcmp.lt.s32.totalorder %v2648, 128
  %vm2665 = vcmp.lt.s32.totalorder %v2649, 128
  %vm2666 = vcmp.lt.s32.totalorder %v2650, 128
  %vm2667 = vcmp.lt.s32.totalorder %v2651, 128
  %vm2668 = vcmp.lt.s32.totalorder %v2652, 128
  %vm2669 = vcmp.lt.s32.totalorder %v2653, 128
  %vm2670 = vcmp.lt.s32.totalorder %v2654, 128
  %vm2671 = vcmp.lt.s32.totalorder %v2655, 128
  %v2672 = vsel %vm2656, 1, 0
  %v2673 = vsel %vm2657, 1, 0
  %v2674 = vsel %vm2658, 1, 0
  %v2675 = vsel %vm2659, 1, 0
  %v2676 = vsel %vm2660, 1, 0
  %v2677 = vsel %vm2661, 1, 0
  %v2678 = vsel %vm2662, 1, 0
  %v2679 = vsel %vm2663, 1, 0
  %v2680 = vsel %vm2664, 1, 0
  %v2681 = vsel %vm2665, 1, 0
  %v2682 = vsel %vm2666, 1, 0
  %v2683 = vsel %vm2667, 1, 0
  %v2684 = vsel %vm2668, 1, 0
  %v2685 = vsel %vm2669, 1, 0
  %v2686 = vsel %vm2670, 1, 0
  %v2687 = vsel %vm2671, 1, 0
  %vm2688 = vcmp.eq.s32.totalorder %v2672, 1
  %vm2689 = vcmp.eq.s32.totalorder %v2673, 1
  %vm2690 = vcmp.eq.s32.totalorder %v2674, 1
  %vm2691 = vcmp.eq.s32.totalorder %v2675, 1
  %vm2692 = vcmp.eq.s32.totalorder %v2676, 1
  %vm2693 = vcmp.eq.s32.totalorder %v2677, 1
  %vm2694 = vcmp.eq.s32.totalorder %v2678, 1
  %vm2695 = vcmp.eq.s32.totalorder %v2679, 1
  %vm2696 = vcmp.eq.s32.totalorder %v2680, 1
  %vm2697 = vcmp.eq.s32.totalorder %v2681, 1
  %vm2698 = vcmp.eq.s32.totalorder %v2682, 1
  %vm2699 = vcmp.eq.s32.totalorder %v2683, 1
  %vm2700 = vcmp.eq.s32.totalorder %v2684, 1
  %vm2701 = vcmp.eq.s32.totalorder %v2685, 1
  %vm2702 = vcmp.eq.s32.totalorder %v2686, 1
  %vm2703 = vcmp.eq.s32.totalorder %v2687, 1
  %v2704 = vsel %vm2688, %v2550, 0.0
  %v2705 = vsel %vm2689, %v2552, 0.0
  %v2706 = vsel %vm2690, %v2555, 0.0
  %v2707 = vsel %vm2691, %v2557, 0.0
  %v2708 = vsel %vm2692, %v2560, 0.0
  %v2709 = vsel %vm2693, %v2562, 0.0
  %v2710 = vsel %vm2694, %v2565, 0.0
  %v2711 = vsel %vm2695, %v2567, 0.0
  %v2712 = vsel %vm2696, %v2570, 0.0
  %v2713 = vsel %vm2697, %v2572, 0.0
  %v2714 = vsel %vm2698, %v2575, 0.0
  %v2715 = vsel %vm2699, %v2577, 0.0
  %v2716 = vsel %vm2700, %v2580, 0.0
  %v2717 = vsel %vm2701, %v2582, 0.0
  %v2718 = vsel %vm2702, %v2585, 0.0
  %v2719 = vsel %vm2703, %v2587, 0.0
  %v2720 = vadd.f32 %v2704, %v2705
  %v2721 = vadd.f32 %v2720, %v2706
  %v2722 = vadd.f32 %v2721, %v2707
  %v2723 = vadd.f32 %v2722, %v2708
  %v2724 = vadd.f32 %v2723, %v2709
  %v2725 = vadd.f32 %v2724, %v2710
  %v2726 = vadd.f32 %v2725, %v2711
  %v2727 = vadd.f32 %v2726, %v2712
  %v2728 = vadd.f32 %v2727, %v2713
  %v2729 = vadd.f32 %v2728, %v2714
  %v2730 = vadd.f32 %v2729, %v2715
  %v2731 = vadd.f32 %v2730, %v2716
  %v2732 = vadd.f32 %v2731, %v2717
  %v2733 = vadd.f32 %v2732, %v2718
  %v2734 = vadd.f32 %v2733, %v2719
  %v2735 = vrot.slane %v2734, 4
  %v2736 = vadd.f32 %v2734, %v2735
  %v2737 = vrot.slane %v2736, 2
  %v2738 = vadd.f32 %v2736, %v2737
  %v2739 = vrot.slane %v2738, 1
  %v2740 = vadd.f32 %v2738, %v2739
  %v2741 = vmul.f32 %v2704, %v2704
  %v2742 = vmul.f32 %v2705, %v2705
  %v2743 = vmul.f32 %v2706, %v2706
  %v2744 = vmul.f32 %v2707, %v2707
  %v2745 = vmul.f32 %v2708, %v2708
  %v2746 = vmul.f32 %v2709, %v2709
  %v2747 = vmul.f32 %v2710, %v2710
  %v2748 = vmul.f32 %v2711, %v2711
  %v2749 = vmul.f32 %v2712, %v2712
  %v2750 = vmul.f32 %v2713, %v2713
  %v2751 = vmul.f32 %v2714, %v2714
  %v2752 = vmul.f32 %v2715, %v2715
  %v2753 = vmul.f32 %v2716, %v2716
  %v2754 = vmul.f32 %v2717, %v2717
  %v2755 = vmul.f32 %v2718, %v2718
  %v2756 = vmul.f32 %v2719, %v2719
  %v2757 = vadd.f32 %v2741, %v2742
  %v2758 = vadd.f32 %v2757, %v2743
  %v2759 = vadd.f32 %v2758, %v2744
  %v2760 = vadd.f32 %v2759, %v2745
  %v2761 = vadd.f32 %v2760, %v2746
  %v2762 = vadd.f32 %v2761, %v2747
  %v2763 = vadd.f32 %v2762, %v2748
  %v2764 = vadd.f32 %v2763, %v2749
  %v2765 = vadd.f32 %v2764, %v2750
  %v2766 = vadd.f32 %v2765, %v2751
  %v2767 = vadd.f32 %v2766, %v2752
  %v2768 = vadd.f32 %v2767, %v2753
  %v2769 = vadd.f32 %v2768, %v2754
  %v2770 = vadd.f32 %v2769, %v2755
  %v2771 = vadd.f32 %v2770, %v2756
  %v2772 = vrot.slane %v2771, 4
  %v2773 = vadd.f32 %v2771, %v2772
  %v2774 = vrot.slane %v2773, 2
  %v2775 = vadd.f32 %v2773, %v2774
  %v2776 = vrot.slane %v2775, 1
  %v2777 = vadd.f32 %v2775, %v2776
  %vm2778 = vcmask 1040384
  %v2779 = vsel %vm2778, %v2740, %v2777
  %2780 = vst [vmem:[%s3] sm:$0x3] %v2779
  // Predicated region
  $region10: #{_lambda_.9} parent=0 // pred_check
    _
  $region11: #{_lambda_.9} parent=0 // pred_check_branch
    %2782 = sbr.rel (0) target = $region13
  $region12: #{_lambda_.9} parent=0 // pred_region
    _
  $region13: #{_lambda_.9} parent=0 // pred_fallthru
    _
  // Predicated region
  $region14: #{_lambda_.9} parent=0 // pred_check
    _
  $region15: #{_lambda_.9} parent=0 // pred_check_branch
    %2784 = sbr.rel (0) target = $region17
  $region16: #{_lambda_.9} parent=0 // pred_region
    _
  $region17: #{_lambda_.9} parent=0 // pred_fallthru
    _
  // Predicated region
  $region18: #{_lambda_.9} parent=0 // pred_check
    _
  $region19: #{_lambda_.9} parent=0 // pred_check_branch
    %2786 = sbr.rel (0) target = $region21
  $region20: #{_lambda_.9} parent=0 // pred_region
    _
  $region21: #{_lambda_.9} parent=0 // pred_fallthru
    _
  // Predicated region
  $region22: #{_lambda_.9} parent=0 // pred_check
    _
  $region23: #{_lambda_.9} parent=0 // pred_check_branch
    %2788 = sbr.rel (0) target = $region25
  $region24: #{_lambda_.9} parent=0 // pred_region
    _
  $region25: #{_lambda_.9} parent=0 // pred_fallthru
    _

// kernel: _lambda_.12
$region0: #{_lambda_.12}
  #allocation0 [shape = 'u32[]', space=smem, size = 0x4, offset = 0x4, fixed_abs, tag = 'smem constant byte address 0x4 - core index']
  #allocation1 [shape = 'u32[72,128]{1,0:T(1,128)}', space=vmem, size = 0x9000, scoped, tag = 'internal scratch']
  %s0 = inlined_call_operand.vmem [shape: bf16[32,128], index: 0, kind: input, shape index: {}]
  %s1 = inlined_call_operand.vmem [shape: f32[1,128], index: 1, kind: input, shape index: {}]
  %s2 = inlined_call_operand.vmem [shape: f32[1,128], index: 2, kind: input, shape index: {}]
  %s3 = inlined_call_operand.vmem [shape: bf16[32,128], index: 3, kind: output, shape index: {}]
  %s4 = sld [smem:[#allocation0]]
  $region22: #{_lambda_.12} parent=0
    _
  %s6 = ssub.s32 1, %s4
  %s7 = scalar_select 0, %s6, %s4
  // Predicated region
  $region2: #{_lambda_.12} parent=0 // pred_check
    _
  $region3: #{_lambda_.12} parent=0 // pred_check_branch
    %9 = sbr.rel (0) target = $region5
  $region4: #{_lambda_.12} parent=0 // pred_region
    _
  $region5: #{_lambda_.12} parent=0 // pred_fallthru
    _
  // Predicated region
  $region6: #{_lambda_.12} parent=0 // pred_check
    _
  $region7: #{_lambda_.12} parent=0 // pred_check_branch
    %11 = sbr.rel (0) target = $region9
  $region8: #{_lambda_.12} parent=0 // pred_region
    _
  $region9: #{_lambda_.12} parent=0 // pred_fallthru
    _
  // Predicated region
  $region10: #{_lambda_.12} parent=0 // pred_check
    _
  $region11: #{_lambda_.12} parent=0 // pred_check_branch
    %13 = sbr.rel (0) target = $region13
  $region12: #{_lambda_.12} parent=0 // pred_region
    _
  $region13: #{_lambda_.12} parent=0 // pred_fallthru
    _
  %v14 = vld [vmem:[%s0] sm:$0xf]
  %v15 = vld [vmem:[%s0 + $0x4] sm:$0xf]
  %v16 = vld [vmem:[%s0 + $0x8] sm:$0xf]
  %v17 = vld [vmem:[%s0 + $0xc] sm:$0xf]
  %v18 = vunpack.c.l.bf16 %v14
  %v19 = vunpack.c.l.bf16 %v15
  %v20 = vunpack.c.l.bf16 %v16
  %v21 = vunpack.c.l.bf16 %v17
  %v22 = vld [vmem:[%s1] sm:$0x1]
  %v24 = vperm.slane %v22, 0
  %v26 = vmul.f32 %v18, %v24
  %v27 = vmul.f32 %v19, %v24
  %v28 = vmul.f32 %v20, %v24
  %v29 = vmul.f32 %v21, %v24
  %v30 = vld [vmem:[%s2] sm:$0x1]
  %v32 = vperm.slane %v30, 0
  %v34 = vadd.f32 %v26, %v32
  %v35 = vadd.f32 %v27, %v32
  %v36 = vadd.f32 %v28, %v32
  %v37 = vadd.f32 %v29, %v32
  %vm38 = vcmp.ge.f32.partialorder %v34, 0.0
  %vm39 = vcmp.ge.f32.partialorder %v35, 0.0
  %vm40 = vcmp.ge.f32.partialorder %v36, 0.0
  %vm41 = vcmp.ge.f32.partialorder %v37, 0.0
  %v42 = vmul.f32 %v34, 0.2
  %v43 = vmul.f32 %v35, 0.2
  %v44 = vmul.f32 %v36, 0.2
  %v45 = vmul.f32 %v37, 0.2
  %v46 = vsel %vm38, %v34, %v42
  %v47 = vsel %vm39, %v35, %v43
  %v48 = vsel %vm40, %v36, %v44
  %v49 = vsel %vm41, %v37, %v45
  %v50 = vpack.c.bf16 %v46, %v46
  %v51 = vpack.c.bf16 %v47, %v47
  %v52 = vpack.c.bf16 %v48, %v48
  %v53 = vpack.c.bf16 %v49, %v49
  %54 = vst [vmem:[%s3] sm:$0xf] %v50
  %55 = vst [vmem:[%s3 + $0x4] sm:$0xf] %v51
  %56 = vst [vmem:[%s3 + $0x8] sm:$0xf] %v52
  %57 = vst [vmem:[%s3 + $0xc] sm:$0xf] %v53
  // Predicated region
  $region14: #{_lambda_.12} parent=0 // pred_check
    _
  $region15: #{_lambda_.12} parent=0 // pred_check_branch
    %59 = sbr.rel (0) target = $region17
  $region16: #{_lambda_.12} parent=0 // pred_region
    _
  $region17: #{_lambda_.12} parent=0 // pred_fallthru
    _
  // Predicated region
  $region18: #{_lambda_.12} parent=0 // pred_check
    _
  $region19: #{_lambda_.12} parent=0 // pred_check_branch
    %61 = sbr.rel (0) target = $region21
  $region20: #{_lambda_.12} parent=0 // pred_region
    _
  $region21: #{_lambda_.12} parent=0 // pred_fallthru
    _

// kernel: _lambda_.11
$region0: #{_lambda_.11}
  #allocation0 [shape = 'u32[]', space=smem, size = 0x4, offset = 0x4, fixed_abs, tag = 'smem constant byte address 0x4 - core index']
  #allocation1 [shape = 'u32[72,128]{1,0:T(1,128)}', space=vmem, size = 0x9000, scoped, tag = 'internal scratch']
  %s0 = inlined_call_operand.vmem [shape: bf16[32,2048], index: 0, kind: input, shape index: {}]
  %s1 = inlined_call_operand.vmem [shape: bf16[2048,128], index: 1, kind: input, shape index: {}]
  %s2 = inlined_call_operand.vmem [shape: bf16[32,128], index: 2, kind: output, shape index: {0}]
  %s3 = inlined_call_operand.vmem [shape: f32[1,2,128], index: 3, kind: output, shape index: {1}]
  %4 = xla_tuple %s2, %s3
  %s5 = sld [smem:[#allocation0]]
  $region26: #{_lambda_.11} parent=0
    _
  %s7 = ssub.s32 1, %s5
  %s8 = scalar_select 0, %s7, %s5
  // Predicated region
  $region2: #{_lambda_.11} parent=0 // pred_check
    _
  $region3: #{_lambda_.11} parent=0 // pred_check_branch
    %10 = sbr.rel (0) target = $region5
  $region4: #{_lambda_.11} parent=0 // pred_region
    _
  $region5: #{_lambda_.11} parent=0 // pred_fallthru
    _
  // Predicated region
  $region6: #{_lambda_.11} parent=0 // pred_check
    _
  $region7: #{_lambda_.11} parent=0 // pred_check_branch
    %12 = sbr.rel (0) target = $region9
  $region8: #{_lambda_.11} parent=0 // pred_region
    _
  $region9: #{_lambda_.11} parent=0 // pred_fallthru
    _
  %v13 = vld [vmem:[%s0] sm:$0xff]
  %v14 = vld [vmem:[%s0 + $0x8] sm:$0xff]
  %v15 = vld [vmem:[%s0 + $0x10] sm:$0xff]
  %v16 = vld [vmem:[%s0 + $0x18] sm:$0xff]
  %v17 = vld [vmem:[%s0 + $0x20] sm:$0xff]
  %v18 = vld [vmem:[%s0 + $0x28] sm:$0xff]
  %v19 = vld [vmem:[%s0 + $0x30] sm:$0xff]
  %v20 = vld [vmem:[%s0 + $0x38] sm:$0xff]
  %v21 = vld [vmem:[%s0 + $0x40] sm:$0xff]
  %v22 = vld [vmem:[%s0 + $0x48] sm:$0xff]
  %v23 = vld [vmem:[%s0 + $0x50] sm:$0xff]
  %v24 = vld [vmem:[%s0 + $0x58] sm:$0xff]
  %v25 = vld [vmem:[%s0 + $0x60] sm:$0xff]
  %v26 = vld [vmem:[%s0 + $0x68] sm:$0xff]
  %v27 = vld [vmem:[%s0 + $0x70] sm:$0xff]
  %v28 = vld [vmem:[%s0 + $0x78] sm:$0xff]
  %v29 = vld [vmem:[%s0 + $0x80] sm:$0xff]
  %v30 = vld [vmem:[%s0 + $0x88] sm:$0xff]
  %v31 = vld [vmem:[%s0 + $0x90] sm:$0xff]
  %v32 = vld [vmem:[%s0 + $0x98] sm:$0xff]
  %v33 = vld [vmem:[%s0 + $0xa0] sm:$0xff]
  %v34 = vld [vmem:[%s0 + $0xa8] sm:$0xff]
  %v35 = vld [vmem:[%s0 + $0xb0] sm:$0xff]
  %v36 = vld [vmem:[%s0 + $0xb8] sm:$0xff]
  %v37 = vld [vmem:[%s0 + $0xc0] sm:$0xff]
  %v38 = vld [vmem:[%s0 + $0xc8] sm:$0xff]
  %v39 = vld [vmem:[%s0 + $0xd0] sm:$0xff]
  %v40 = vld [vmem:[%s0 + $0xd8] sm:$0xff]
  %v41 = vld [vmem:[%s0 + $0xe0] sm:$0xff]
  %v42 = vld [vmem:[%s0 + $0xe8] sm:$0xff]
  %v43 = vld [vmem:[%s0 + $0xf0] sm:$0xff]
  %v44 = vld [vmem:[%s0 + $0xf8] sm:$0xff]
  %v45 = vld [vmem:[%s1] sm:$0xf]
  %v46 = vld [vmem:[%s1 + $0x4] sm:$0xf]
  %v47 = vld [vmem:[%s1 + $0x8] sm:$0xf]
  %v48 = vld [vmem:[%s1 + $0xc] sm:$0xf]
  %v49 = vld [vmem:[%s1 + $0x10] sm:$0xf]
  %v50 = vld [vmem:[%s1 + $0x14] sm:$0xf]
  %v51 = vld [vmem:[%s1 + $0x18] sm:$0xf]
  %v52 = vld [vmem:[%s1 + $0x1c] sm:$0xf]
  %v53 = vld [vmem:[%s1 + $0x20] sm:$0xf]
  %v54 = vld [vmem:[%s1 + $0x24] sm:$0xf]
  %v55 = vld [vmem:[%s1 + $0x28] sm:$0xf]
  %v56 = vld [vmem:[%s1 + $0x2c] sm:$0xf]
  %v57 = vld [vmem:[%s1 + $0x30] sm:$0xf]
  %v58 = vld [vmem:[%s1 + $0x34] sm:$0xf]
  %v59 = vld [vmem:[%s1 + $0x38] sm:$0xf]
  %v60 = vld [vmem:[%s1 + $0x3c] sm:$0xf]
  %v61 = vld [vmem:[%s1 + $0x40] sm:$0xf]
  %v62 = vld [vmem:[%s1 + $0x44] sm:$0xf]
  %v63 = vld [vmem:[%s1 + $0x48] sm:$0xf]
  %v64 = vld [vmem:[%s1 + $0x4c] sm:$0xf]
  %v65 = vld [vmem:[%s1 + $0x50] sm:$0xf]
  %v66 = vld [vmem:[%s1 + $0x54] sm:$0xf]
  %v67 = vld [vmem:[%s1 + $0x58] sm:$0xf]
  %v68 = vld [vmem:[%s1 + $0x5c] sm:$0xf]
  %v69 = vld [vmem:[%s1 + $0x60] sm:$0xf]
  %v70 = vld [vmem:[%s1 + $0x64] sm:$0xf]
  %v71 = vld [vmem:[%s1 + $0x68] sm:$0xf]
  %v72 = vld [vmem:[%s1 + $0x6c] sm:$0xf]
  %v73 = vld [vmem:[%s1 + $0x70] sm:$0xf]
  %v74 = vld [vmem:[%s1 + $0x74] sm:$0xf]
  %v75 = vld [vmem:[%s1 + $0x78] sm:$0xf]
  %v76 = vld [vmem:[%s1 + $0x7c] sm:$0xf]
  %v77 = vld [vmem:[%s1 + $0x80] sm:$0xf]
  %v78 = vld [vmem:[%s1 + $0x84] sm:$0xf]
  %v79 = vld [vmem:[%s1 + $0x88] sm:$0xf]
  %v80 = vld [vmem:[%s1 + $0x8c] sm:$0xf]
  %v81 = vld [vmem:[%s1 + $0x90] sm:$0xf]
  %v82 = vld [vmem:[%s1 + $0x94] sm:$0xf]
  %v83 = vld [vmem:[%s1 + $0x98] sm:$0xf]
  %v84 = vld [vmem:[%s1 + $0x9c] sm:$0xf]
  %v85 = vld [vmem:[%s1 + $0xa0] sm:$0xf]
  %v86 = vld [vmem:[%s1 + $0xa4] sm:$0xf]
  %v87 = vld [vmem:[%s1 + $0xa8] sm:$0xf]
  %v88 = vld [vmem:[%s1 + $0xac] sm:$0xf]
  %v89 = vld [vmem:[%s1 + $0xb0] sm:$0xf]
  %v90 = vld [vmem:[%s1 + $0xb4] sm:$0xf]
  %v91 = vld [vmem:[%s1 + $0xb8] sm:$0xf]
  %v92 = vld [vmem:[%s1 + $0xbc] sm:$0xf]
  %v93 = vld [vmem:[%s1 + $0xc0] sm:$0xf]
  %v94 = vld [vmem:[%s1 + $0xc4] sm:$0xf]
  %v95 = vld [vmem:[%s1 + $0xc8] sm:$0xf]
  %v96 = vld [vmem:[%s1 + $0xcc] sm:$0xf]
  %v97 = vld [vmem:[%s1 + $0xd0] sm:$0xf]
  %v98 = vld [vmem:[%s1 + $0xd4] sm:$0xf]
  %v99 = vld [vmem:[%s1 + $0xd8] sm:$0xf]
  %v100 = vld [vmem:[%s1 + $0xdc] sm:$0xf]
  %v101 = vld [vmem:[%s1 + $0xe0] sm:$0xf]
  %v102 = vld [vmem:[%s1 + $0xe4] sm:$0xf]
  %v103 = vld [vmem:[%s1 + $0xe8] sm:$0xf]
  %v104 = vld [vmem:[%s1 + $0xec] sm:$0xf]
  %v105 = vld [vmem:[%s1 + $0xf0] sm:$0xf]
  %v106 = vld [vmem:[%s1 + $0xf4] sm:$0xf]
  %v107 = vld [vmem:[%s1 + $0xf8] sm:$0xf]
  %v108 = vld [vmem:[%s1 + $0xfc] sm:$0xf]
  %v109 = vld [vmem:[%s1 + $0x100] sm:$0xf]
  %v110 = vld [vmem:[%s1 + $0x104] sm:$0xf]
  %v111 = vld [vmem:[%s1 + $0x108] sm:$0xf]
  %v112 = vld [vmem:[%s1 + $0x10c] sm:$0xf]
  %v113 = vld [vmem:[%s1 + $0x110] sm:$0xf]
  %v114 = vld [vmem:[%s1 + $0x114] sm:$0xf]
  %v115 = vld [vmem:[%s1 + $0x118] sm:$0xf]
  %v116 = vld [vmem:[%s1 + $0x11c] sm:$0xf]
  %v117 = vld [vmem:[%s1 + $0x120] sm:$0xf]
  %v118 = vld [vmem:[%s1 + $0x124] sm:$0xf]
  %v119 = vld [vmem:[%s1 + $0x128] sm:$0xf]
  %v120 = vld [vmem:[%s1 + $0x12c] sm:$0xf]
  %v121 = vld [vmem:[%s1 + $0x130] sm:$0xf]
  %v122 = vld [vmem:[%s1 + $0x134] sm:$0xf]
  %v123 = vld [vmem:[%s1 + $0x138] sm:$0xf]
  %v124 = vld [vmem:[%s1 + $0x13c] sm:$0xf]
  %v125 = vld [vmem:[%s1 + $0x140] sm:$0xf]
  %v126 = vld [vmem:[%s1 + $0x144] sm:$0xf]
  %v127 = vld [vmem:[%s1 + $0x148] sm:$0xf]
  %v128 = vld [vmem:[%s1 + $0x14c] sm:$0xf]
  %v129 = vld [vmem:[%s1 + $0x150] sm:$0xf]
  %v130 = vld [vmem:[%s1 + $0x154] sm:$0xf]
  %v131 = vld [vmem:[%s1 + $0x158] sm:$0xf]
  %v132 = vld [vmem:[%s1 + $0x15c] sm:$0xf]
  %v133 = vld [vmem:[%s1 + $0x160] sm:$0xf]
  %v134 = vld [vmem:[%s1 + $0x164] sm:$0xf]
  %v135 = vld [vmem:[%s1 + $0x168] sm:$0xf]
  %v136 = vld [vmem:[%s1 + $0x16c] sm:$0xf]
  %v137 = vld [vmem:[%s1 + $0x170] sm:$0xf]
  %v138 = vld [vmem:[%s1 + $0x174] sm:$0xf]
  %v139 = vld [vmem:[%s1 + $0x178] sm:$0xf]
  %v140 = vld [vmem:[%s1 + $0x17c] sm:$0xf]
  %v141 = vld [vmem:[%s1 + $0x180] sm:$0xf]
  %v142 = vld [vmem:[%s1 + $0x184] sm:$0xf]
  %v143 = vld [vmem:[%s1 + $0x188] sm:$0xf]
  %v144 = vld [vmem:[%s1 + $0x18c] sm:$0xf]
  %v145 = vld [vmem:[%s1 + $0x190] sm:$0xf]
  %v146 = vld [vmem:[%s1 + $0x194] sm:$0xf]
  %v147 = vld [vmem:[%s1 + $0x198] sm:$0xf]
  %v148 = vld [vmem:[%s1 + $0x19c] sm:$0xf]
  %v149 = vld [vmem:[%s1 + $0x1a0] sm:$0xf]
  %v150 = vld [vmem:[%s1 + $0x1a4] sm:$0xf]
  %v151 = vld [vmem:[%s1 + $0x1a8] sm:$0xf]
  %v152 = vld [vmem:[%s1 + $0x1ac] sm:$0xf]
  %v153 = vld [vmem:[%s1 + $0x1b0] sm:$0xf]
  %v154 = vld [vmem:[%s1 + $0x1b4] sm:$0xf]
  %v155 = vld [vmem:[%s1 + $0x1b8] sm:$0xf]
  %v156 = vld [vmem:[%s1 + $0x1bc] sm:$0xf]
  %v157 = vld [vmem:[%s1 + $0x1c0] sm:$0xf]
  %v158 = vld [vmem:[%s1 + $0x1c4] sm:$0xf]
  %v159 = vld [vmem:[%s1 + $0x1c8] sm:$0xf]
  %v160 = vld [vmem:[%s1 + $0x1cc] sm:$0xf]
  %v161 = vld [vmem:[%s1 + $0x1d0] sm:$0xf]
  %v162 = vld [vmem:[%s1 + $0x1d4] sm:$0xf]
  %v163 = vld [vmem:[%s1 + $0x1d8] sm:$0xf]
  %v164 = vld [vmem:[%s1 + $0x1dc] sm:$0xf]
  %v165 = vld [vmem:[%s1 + $0x1e0] sm:$0xf]
  %v166 = vld [vmem:[%s1 + $0x1e4] sm:$0xf]
  %v167 = vld [vmem:[%s1 + $0x1e8] sm:$0xf]
  %v168 = vld [vmem:[%s1 + $0x1ec] sm:$0xf]
  %v169 = vld [vmem:[%s1 + $0x1f0] sm:$0xf]
  %v170 = vld [vmem:[%s1 + $0x1f4] sm:$0xf]
  %v171 = vld [vmem:[%s1 + $0x1f8] sm:$0xf]
  %v172 = vld [vmem:[%s1 + $0x1fc] sm:$0xf]
  %v173 = vld [vmem:[%s1 + $0x200] sm:$0xf]
  %v174 = vld [vmem:[%s1 + $0x204] sm:$0xf]
  %v175 = vld [vmem:[%s1 + $0x208] sm:$0xf]
  %v176 = vld [vmem:[%s1 + $0x20c] sm:$0xf]
  %v177 = vld [vmem:[%s1 + $0x210] sm:$0xf]
  %v178 = vld [vmem:[%s1 + $0x214] sm:$0xf]
  %v179 = vld [vmem:[%s1 + $0x218] sm:$0xf]
  %v180 = vld [vmem:[%s1 + $0x21c] sm:$0xf]
  %v181 = vld [vmem:[%s1 + $0x220] sm:$0xf]
  %v182 = vld [vmem:[%s1 + $0x224] sm:$0xf]
  %v183 = vld [vmem:[%s1 + $0x228] sm:$0xf]
  %v184 = vld [vmem:[%s1 + $0x22c] sm:$0xf]
  %v185 = vld [vmem:[%s1 + $0x230] sm:$0xf]
  %v186 = vld [vmem:[%s1 + $0x234] sm:$0xf]
  %v187 = vld [vmem:[%s1 + $0x238] sm:$0xf]
  %v188 = vld [vmem:[%s1 + $0x23c] sm:$0xf]
  %v189 = vld [vmem:[%s1 + $0x240] sm:$0xf]
  %v190 = vld [vmem:[%s1 + $0x244] sm:$0xf]
  %v191 = vld [vmem:[%s1 + $0x248] sm:$0xf]
  %v192 = vld [vmem:[%s1 + $0x24c] sm:$0xf]
  %v193 = vld [vmem:[%s1 + $0x250] sm:$0xf]
  %v194 = vld [vmem:[%s1 + $0x254] sm:$0xf]
  %v195 = vld [vmem:[%s1 + $0x258] sm:$0xf]
  %v196 = vld [vmem:[%s1 + $0x25c] sm:$0xf]
  %v197 = vld [vmem:[%s1 + $0x260] sm:$0xf]
  %v198 = vld [vmem:[%s1 + $0x264] sm:$0xf]
  %v199 = vld [vmem:[%s1 + $0x268] sm:$0xf]
  %v200 = vld [vmem:[%s1 + $0x26c] sm:$0xf]
  %v201 = vld [vmem:[%s1 + $0x270] sm:$0xf]
  %v202 = vld [vmem:[%s1 + $0x274] sm:$0xf]
  %v203 = vld [vmem:[%s1 + $0x278] sm:$0xf]
  %v204 = vld [vmem:[%s1 + $0x27c] sm:$0xf]
  %v205 = vld [vmem:[%s1 + $0x280] sm:$0xf]
  %v206 = vld [vmem:[%s1 + $0x284] sm:$0xf]
  %v207 = vld [vmem:[%s1 + $0x288] sm:$0xf]
  %v208 = vld [vmem:[%s1 + $0x28c] sm:$0xf]
  %v209 = vld [vmem:[%s1 + $0x290] sm:$0xf]
  %v210 = vld [vmem:[%s1 + $0x294] sm:$0xf]
  %v211 = vld [vmem:[%s1 + $0x298] sm:$0xf]
  %v212 = vld [vmem:[%s1 + $0x29c] sm:$0xf]
  %v213 = vld [vmem:[%s1 + $0x2a0] sm:$0xf]
  %v214 = vld [vmem:[%s1 + $0x2a4] sm:$0xf]
  %v215 = vld [vmem:[%s1 + $0x2a8] sm:$0xf]
  %v216 = vld [vmem:[%s1 + $0x2ac] sm:$0xf]
  %v217 = vld [vmem:[%s1 + $0x2b0] sm:$0xf]
  %v218 = vld [vmem:[%s1 + $0x2b4] sm:$0xf]
  %v219 = vld [vmem:[%s1 + $0x2b8] sm:$0xf]
  %v220 = vld [vmem:[%s1 + $0x2bc] sm:$0xf]
  %v221 = vld [vmem:[%s1 + $0x2c0] sm:$0xf]
  %v222 = vld [vmem:[%s1 + $0x2c4] sm:$0xf]
  %v223 = vld [vmem:[%s1 + $0x2c8] sm:$0xf]
  %v224 = vld [vmem:[%s1 + $0x2cc] sm:$0xf]
  %v225 = vld [vmem:[%s1 + $0x2d0] sm:$0xf]
  %v226 = vld [vmem:[%s1 + $0x2d4] sm:$0xf]
  %v227 = vld [vmem:[%s1 + $0x2d8] sm:$0xf]
  %v228 = vld [vmem:[%s1 + $0x2dc] sm:$0xf]
  %v229 = vld [vmem:[%s1 + $0x2e0] sm:$0xf]
  %v230 = vld [vmem:[%s1 + $0x2e4] sm:$0xf]
  %v231 = vld [vmem:[%s1 + $0x2e8] sm:$0xf]
  %v232 = vld [vmem:[%s1 + $0x2ec] sm:$0xf]
  %v233 = vld [vmem:[%s1 + $0x2f0] sm:$0xf]
  %v234 = vld [vmem:[%s1 + $0x2f4] sm:$0xf]
  %v235 = vld [vmem:[%s1 + $0x2f8] sm:$0xf]
  %v236 = vld [vmem:[%s1 + $0x2fc] sm:$0xf]
  %v237 = vld [vmem:[%s1 + $0x300] sm:$0xf]
  %v238 = vld [vmem:[%s1 + $0x304] sm:$0xf]
  %v239 = vld [vmem:[%s1 + $0x308] sm:$0xf]
  %v240 = vld [vmem:[%s1 + $0x30c] sm:$0xf]
  %v241 = vld [vmem:[%s1 + $0x310] sm:$0xf]
  %v242 = vld [vmem:[%s1 + $0x314] sm:$0xf]
  %v243 = vld [vmem:[%s1 + $0x318] sm:$0xf]
  %v244 = vld [vmem:[%s1 + $0x31c] sm:$0xf]
  %v245 = vld [vmem:[%s1 + $0x320] sm:$0xf]
  %v246 = vld [vmem:[%s1 + $0x324] sm:$0xf]
  %v247 = vld [vmem:[%s1 + $0x328] sm:$0xf]
  %v248 = vld [vmem:[%s1 + $0x32c] sm:$0xf]
  %v249 = vld [vmem:[%s1 + $0x330] sm:$0xf]
  %v250 = vld [vmem:[%s1 + $0x334] sm:$0xf]
  %v251 = vld [vmem:[%s1 + $0x338] sm:$0xf]
  %v252 = vld [vmem:[%s1 + $0x33c] sm:$0xf]
  %v253 = vld [vmem:[%s1 + $0x340] sm:$0xf]
  %v254 = vld [vmem:[%s1 + $0x344] sm:$0xf]
  %v255 = vld [vmem:[%s1 + $0x348] sm:$0xf]
  %v256 = vld [vmem:[%s1 + $0x34c] sm:$0xf]
  %v257 = vld [vmem:[%s1 + $0x350] sm:$0xf]
  %v258 = vld [vmem:[%s1 + $0x354] sm:$0xf]
  %v259 = vld [vmem:[%s1 + $0x358] sm:$0xf]
  %v260 = vld [vmem:[%s1 + $0x35c] sm:$0xf]
  %v261 = vld [vmem:[%s1 + $0x360] sm:$0xf]
  %v262 = vld [vmem:[%s1 + $0x364] sm:$0xf]
  %v263 = vld [vmem:[%s1 + $0x368] sm:$0xf]
  %v264 = vld [vmem:[%s1 + $0x36c] sm:$0xf]
  %v265 = vld [vmem:[%s1 + $0x370] sm:$0xf]
  %v266 = vld [vmem:[%s1 + $0x374] sm:$0xf]
  %v267 = vld [vmem:[%s1 + $0x378] sm:$0xf]
  %v268 = vld [vmem:[%s1 + $0x37c] sm:$0xf]
  %v269 = vld [vmem:[%s1 + $0x380] sm:$0xf]
  %v270 = vld [vmem:[%s1 + $0x384] sm:$0xf]
  %v271 = vld [vmem:[%s1 + $0x388] sm:$0xf]
  %v272 = vld [vmem:[%s1 + $0x38c] sm:$0xf]
  %v273 = vld [vmem:[%s1 + $0x390] sm:$0xf]
  %v274 = vld [vmem:[%s1 + $0x394] sm:$0xf]
  %v275 = vld [vmem:[%s1 + $0x398] sm:$0xf]
  %v276 = vld [vmem:[%s1 + $0x39c] sm:$0xf]
  %v277 = vld [vmem:[%s1 + $0x3a0] sm:$0xf]
  %v278 = vld [vmem:[%s1 + $0x3a4] sm:$0xf]
  %v279 = vld [vmem:[%s1 + $0x3a8] sm:$0xf]
  %v280 = vld [vmem:[%s1 + $0x3ac] sm:$0xf]
  %v281 = vld [vmem:[%s1 + $0x3b0] sm:$0xf]
  %v282 = vld [vmem:[%s1 + $0x3b4] sm:$0xf]
  %v283 = vld [vmem:[%s1 + $0x3b8] sm:$0xf]
  %v284 = vld [vmem:[%s1 + $0x3bc] sm:$0xf]
  %v285 = vld [vmem:[%s1 + $0x3c0] sm:$0xf]
  %v286 = vld [vmem:[%s1 + $0x3c4] sm:$0xf]
  %v287 = vld [vmem:[%s1 + $0x3c8] sm:$0xf]
  %v288 = vld [vmem:[%s1 + $0x3cc] sm:$0xf]
  %v289 = vld [vmem:[%s1 + $0x3d0] sm:$0xf]
  %v290 = vld [vmem:[%s1 + $0x3d4] sm:$0xf]
  %v291 = vld [vmem:[%s1 + $0x3d8] sm:$0xf]
  %v292 = vld [vmem:[%s1 + $0x3dc] sm:$0xf]
  %v293 = vld [vmem:[%s1 + $0x3e0] sm:$0xf]
  %v294 = vld [vmem:[%s1 + $0x3e4] sm:$0xf]
  %v295 = vld [vmem:[%s1 + $0x3e8] sm:$0xf]
  %v296 = vld [vmem:[%s1 + $0x3ec] sm:$0xf]
  %v297 = vld [vmem:[%s1 + $0x3f0] sm:$0xf]
  %v298 = vld [vmem:[%s1 + $0x3f4] sm:$0xf]
  %v299 = vld [vmem:[%s1 + $0x3f8] sm:$0xf]
  %v300 = vld [vmem:[%s1 + $0x3fc] sm:$0xf]
  %v333 = vunpack.c.l.b16 %v13
  %v334 = vunpack.c.h.b16 %v13
  %v335 = vunpack.c.l.b16 %v14
  %v336 = vunpack.c.h.b16 %v14
  %v337 = vunpack.c.l.b16 %v15
  %v338 = vunpack.c.h.b16 %v15
  %v339 = vunpack.c.l.b16 %v16
  %v340 = vunpack.c.h.b16 %v16
  %v341 = vunpack.c.l.b16 %v17
  %v342 = vunpack.c.h.b16 %v17
  %v343 = vunpack.c.l.b16 %v18
  %v344 = vunpack.c.h.b16 %v18
  %v345 = vunpack.c.l.b16 %v19
  %v346 = vunpack.c.h.b16 %v19
  %v347 = vunpack.c.l.b16 %v20
  %v348 = vunpack.c.h.b16 %v20
  %v349 = vunpack.c.l.b16 %v21
  %v350 = vunpack.c.h.b16 %v21
  %v351 = vunpack.c.l.b16 %v22
  %v352 = vunpack.c.h.b16 %v22
  %v353 = vunpack.c.l.b16 %v23
  %v354 = vunpack.c.h.b16 %v23
  %v355 = vunpack.c.l.b16 %v24
  %v356 = vunpack.c.h.b16 %v24
  %v357 = vunpack.c.l.b16 %v25
  %v358 = vunpack.c.h.b16 %v25
  %v359 = vunpack.c.l.b16 %v26
  %v360 = vunpack.c.h.b16 %v26
  %v361 = vunpack.c.l.b16 %v27
  %v362 = vunpack.c.h.b16 %v27
  %v363 = vunpack.c.l.b16 %v28
  %v364 = vunpack.c.h.b16 %v28
  %v365 = vunpack.c.l.b16 %v29
  %v366 = vunpack.c.h.b16 %v29
  %v367 = vunpack.c.l.b16 %v30
  %v368 = vunpack.c.h.b16 %v30
  %v369 = vunpack.c.l.b16 %v31
  %v370 = vunpack.c.h.b16 %v31
  %v371 = vunpack.c.l.b16 %v32
  %v372 = vunpack.c.h.b16 %v32
  %v373 = vunpack.c.l.b16 %v33
  %v374 = vunpack.c.h.b16 %v33
  %v375 = vunpack.c.l.b16 %v34
  %v376 = vunpack.c.h.b16 %v34
  %v377 = vunpack.c.l.b16 %v35
  %v378 = vunpack.c.h.b16 %v35
  %v379 = vunpack.c.l.b16 %v36
  %v380 = vunpack.c.h.b16 %v36
  %v381 = vunpack.c.l.b16 %v37
  %v382 = vunpack.c.h.b16 %v37
  %v383 = vunpack.c.l.b16 %v38
  %v384 = vunpack.c.h.b16 %v38
  %v385 = vunpack.c.l.b16 %v39
  %v386 = vunpack.c.h.b16 %v39
  %v387 = vunpack.c.l.b16 %v40
  %v388 = vunpack.c.h.b16 %v40
  %v389 = vunpack.c.l.b16 %v41
  %v390 = vunpack.c.h.b16 %v41
  %v391 = vunpack.c.l.b16 %v42
  %v392 = vunpack.c.h.b16 %v42
  %v393 = vunpack.c.l.b16 %v43
  %v394 = vunpack.c.h.b16 %v43
  %v395 = vunpack.c.l.b16 %v44
  %v396 = vunpack.c.h.b16 %v44
  %v397 = vpack.c.b16 %v349, %v333
  %v398 = vpack.c.b16 %v350, %v334
  %v399 = vpack.c.b16 %v351, %v335
  %v400 = vpack.c.b16 %v352, %v336
  %v401 = vpack.c.b16 %v353, %v337
  %v402 = vpack.c.b16 %v354, %v338
  %v403 = vpack.c.b16 %v355, %v339
  %v404 = vpack.c.b16 %v356, %v340
  %v405 = vpack.c.b16 %v357, %v341
  %v406 = vpack.c.b16 %v358, %v342
  %v407 = vpack.c.b16 %v359, %v343
  %v408 = vpack.c.b16 %v360, %v344
  %v409 = vpack.c.b16 %v361, %v345
  %v410 = vpack.c.b16 %v362, %v346
  %v411 = vpack.c.b16 %v363, %v347
  %v412 = vpack.c.b16 %v364, %v348
  %v413 = vpack.c.b16 %v381, %v365
  %v414 = vpack.c.b16 %v382, %v366
  %v415 = vpack.c.b16 %v383, %v367
  %v416 = vpack.c.b16 %v384, %v368
  %v417 = vpack.c.b16 %v385, %v369
  %v418 = vpack.c.b16 %v386, %v370
  %v419 = vpack.c.b16 %v387, %v371
  %v420 = vpack.c.b16 %v388, %v372
  %v421 = vpack.c.b16 %v389, %v373
  %v422 = vpack.c.b16 %v390, %v374
  %v423 = vpack.c.b16 %v391, %v375
  %v424 = vpack.c.b16 %v392, %v376
  %v425 = vpack.c.b16 %v393, %v377
  %v426 = vpack.c.b16 %v394, %v378
  %v427 = vpack.c.b16 %v395, %v379
  %v428 = vpack.c.b16 %v396, %v380
  %v717 = vunpack.c.l.b16 %v45
  %v718 = vunpack.c.l.b16 %v46
  %v719 = vunpack.c.l.b16 %v47
  %v720 = vunpack.c.l.b16 %v48
  %v721 = vunpack.c.l.b16 %v49
  %v722 = vunpack.c.l.b16 %v50
  %v723 = vunpack.c.l.b16 %v51
  %v724 = vunpack.c.l.b16 %v52
  %v725 = vunpack.c.l.b16 %v53
  %v726 = vunpack.c.l.b16 %v54
  %v727 = vunpack.c.l.b16 %v55
  %v728 = vunpack.c.l.b16 %v56
  %v729 = vunpack.c.l.b16 %v57
  %v730 = vunpack.c.l.b16 %v58
  %v731 = vunpack.c.l.b16 %v59
  %v732 = vunpack.c.l.b16 %v60
  %v733 = vunpack.c.l.b16 %v61
  %v734 = vunpack.c.l.b16 %v62
  %v735 = vunpack.c.l.b16 %v63
  %v736 = vunpack.c.l.b16 %v64
  %v737 = vunpack.c.l.b16 %v65
  %v738 = vunpack.c.l.b16 %v66
  %v739 = vunpack.c.l.b16 %v67
  %v740 = vunpack.c.l.b16 %v68
  %v741 = vunpack.c.l.b16 %v69
  %v742 = vunpack.c.l.b16 %v70
  %v743 = vunpack.c.l.b16 %v71
  %v744 = vunpack.c.l.b16 %v72
  %v745 = vunpack.c.l.b16 %v73
  %v746 = vunpack.c.l.b16 %v74
  %v747 = vunpack.c.l.b16 %v75
  %v748 = vunpack.c.l.b16 %v76
  %v749 = vunpack.c.l.b16 %v77
  %v750 = vunpack.c.l.b16 %v78
  %v751 = vunpack.c.l.b16 %v79
  %v752 = vunpack.c.l.b16 %v80
  %v753 = vunpack.c.l.b16 %v81
  %v754 = vunpack.c.l.b16 %v82
  %v755 = vunpack.c.l.b16 %v83
  %v756 = vunpack.c.l.b16 %v84
  %v757 = vunpack.c.l.b16 %v85
  %v758 = vunpack.c.l.b16 %v86
  %v759 = vunpack.c.l.b16 %v87
  %v760 = vunpack.c.l.b16 %v88
  %v761 = vunpack.c.l.b16 %v89
  %v762 = vunpack.c.l.b16 %v90
  %v763 = vunpack.c.l.b16 %v91
  %v764 = vunpack.c.l.b16 %v92
  %v765 = vunpack.c.l.b16 %v93
  %v766 = vunpack.c.l.b16 %v94
  %v767 = vunpack.c.l.b16 %v95
  %v768 = vunpack.c.l.b16 %v96
  %v769 = vunpack.c.l.b16 %v97
  %v770 = vunpack.c.l.b16 %v98
  %v771 = vunpack.c.l.b16 %v99
  %v772 = vunpack.c.l.b16 %v100
  %v773 = vunpack.c.l.b16 %v101
  %v774 = vunpack.c.l.b16 %v102
  %v775 = vunpack.c.l.b16 %v103
  %v776 = vunpack.c.l.b16 %v104
  %v777 = vunpack.c.l.b16 %v105
  %v778 = vunpack.c.l.b16 %v106
  %v779 = vunpack.c.l.b16 %v107
  %v780 = vunpack.c.l.b16 %v108
  %v781 = vunpack.c.l.b16 %v109
  %v782 = vunpack.c.l.b16 %v110
  %v783 = vunpack.c.l.b16 %v111
  %v784 = vunpack.c.l.b16 %v112
  %v785 = vunpack.c.l.b16 %v113
  %v786 = vunpack.c.l.b16 %v114
  %v787 = vunpack.c.l.b16 %v115
  %v788 = vunpack.c.l.b16 %v116
  %v789 = vunpack.c.l.b16 %v117
  %v790 = vunpack.c.l.b16 %v118
  %v791 = vunpack.c.l.b16 %v119
  %v792 = vunpack.c.l.b16 %v120
  %v793 = vunpack.c.l.b16 %v121
  %v794 = vunpack.c.l.b16 %v122
  %v795 = vunpack.c.l.b16 %v123
  %v796 = vunpack.c.l.b16 %v124
  %v797 = vunpack.c.l.b16 %v125
  %v798 = vunpack.c.l.b16 %v126
  %v799 = vunpack.c.l.b16 %v127
  %v800 = vunpack.c.l.b16 %v128
  %v801 = vunpack.c.l.b16 %v129
  %v802 = vunpack.c.l.b16 %v130
  %v803 = vunpack.c.l.b16 %v131
  %v804 = vunpack.c.l.b16 %v132
  %v805 = vunpack.c.l.b16 %v133
  %v806 = vunpack.c.l.b16 %v134
  %v807 = vunpack.c.l.b16 %v135
  %v808 = vunpack.c.l.b16 %v136
  %v809 = vunpack.c.l.b16 %v137
  %v810 = vunpack.c.l.b16 %v138
  %v811 = vunpack.c.l.b16 %v139
  %v812 = vunpack.c.l.b16 %v140
  %v813 = vunpack.c.l.b16 %v141
  %v814 = vunpack.c.l.b16 %v142
  %v815 = vunpack.c.l.b16 %v143
  %v816 = vunpack.c.l.b16 %v144
  %v817 = vunpack.c.l.b16 %v145
  %v818 = vunpack.c.l.b16 %v146
  %v819 = vunpack.c.l.b16 %v147
  %v820 = vunpack.c.l.b16 %v148
  %v821 = vunpack.c.l.b16 %v149
  %v822 = vunpack.c.l.b16 %v150
  %v823 = vunpack.c.l.b16 %v151
  %v824 = vunpack.c.l.b16 %v152
  %v825 = vunpack.c.l.b16 %v153
  %v826 = vunpack.c.l.b16 %v154
  %v827 = vunpack.c.l.b16 %v155
  %v828 = vunpack.c.l.b16 %v156
  %v829 = vunpack.c.l.b16 %v157
  %v830 = vunpack.c.l.b16 %v158
  %v831 = vunpack.c.l.b16 %v159
  %v832 = vunpack.c.l.b16 %v160
  %v833 = vunpack.c.l.b16 %v161
  %v834 = vunpack.c.l.b16 %v162
  %v835 = vunpack.c.l.b16 %v163
  %v836 = vunpack.c.l.b16 %v164
  %v837 = vunpack.c.l.b16 %v165
  %v838 = vunpack.c.l.b16 %v166
  %v839 = vunpack.c.l.b16 %v167
  %v840 = vunpack.c.l.b16 %v168
  %v841 = vunpack.c.l.b16 %v169
  %v842 = vunpack.c.l.b16 %v170
  %v843 = vunpack.c.l.b16 %v171
  %v844 = vunpack.c.l.b16 %v172
  %v845 = vunpack.c.l.b16 %v173
  %v846 = vunpack.c.l.b16 %v174
  %v847 = vunpack.c.l.b16 %v175
  %v848 = vunpack.c.l.b16 %v176
  %v849 = vunpack.c.l.b16 %v177
  %v850 = vunpack.c.l.b16 %v178
  %v851 = vunpack.c.l.b16 %v179
  %v852 = vunpack.c.l.b16 %v180
  %v853 = vunpack.c.l.b16 %v181
  %v854 = vunpack.c.l.b16 %v182
  %v855 = vunpack.c.l.b16 %v183
  %v856 = vunpack.c.l.b16 %v184
  %v857 = vunpack.c.l.b16 %v185
  %v858 = vunpack.c.l.b16 %v186
  %v859 = vunpack.c.l.b16 %v187
  %v860 = vunpack.c.l.b16 %v188
  %v861 = vunpack.c.l.b16 %v189
  %v862 = vunpack.c.l.b16 %v190
  %v863 = vunpack.c.l.b16 %v191
  %v864 = vunpack.c.l.b16 %v192
  %v865 = vunpack.c.l.b16 %v193
  %v866 = vunpack.c.l.b16 %v194
  %v867 = vunpack.c.l.b16 %v195
  %v868 = vunpack.c.l.b16 %v196
  %v869 = vunpack.c.l.b16 %v197
  %v870 = vunpack.c.l.b16 %v198
  %v871 = vunpack.c.l.b16 %v199
  %v872 = vunpack.c.l.b16 %v200
  %v873 = vunpack.c.l.b16 %v201
  %v874 = vunpack.c.l.b16 %v202
  %v875 = vunpack.c.l.b16 %v203
  %v876 = vunpack.c.l.b16 %v204
  %v877 = vunpack.c.l.b16 %v205
  %v878 = vunpack.c.l.b16 %v206
  %v879 = vunpack.c.l.b16 %v207
  %v880 = vunpack.c.l.b16 %v208
  %v881 = vunpack.c.l.b16 %v209
  %v882 = vunpack.c.l.b16 %v210
  %v883 = vunpack.c.l.b16 %v211
  %v884 = vunpack.c.l.b16 %v212
  %v885 = vunpack.c.l.b16 %v213
  %v886 = vunpack.c.l.b16 %v214
  %v887 = vunpack.c.l.b16 %v215
  %v888 = vunpack.c.l.b16 %v216
  %v889 = vunpack.c.l.b16 %v217
  %v890 = vunpack.c.l.b16 %v218
  %v891 = vunpack.c.l.b16 %v219
  %v892 = vunpack.c.l.b16 %v220
  %v893 = vunpack.c.l.b16 %v221
  %v894 = vunpack.c.l.b16 %v222
  %v895 = vunpack.c.l.b16 %v223
  %v896 = vunpack.c.l.b16 %v224
  %v897 = vunpack.c.l.b16 %v225
  %v898 = vunpack.c.l.b16 %v226
  %v899 = vunpack.c.l.b16 %v227
  %v900 = vunpack.c.l.b16 %v228
  %v901 = vunpack.c.l.b16 %v229
  %v902 = vunpack.c.l.b16 %v230
  %v903 = vunpack.c.l.b16 %v231
  %v904 = vunpack.c.l.b16 %v232
  %v905 = vunpack.c.l.b16 %v233
  %v906 = vunpack.c.l.b16 %v234
  %v907 = vunpack.c.l.b16 %v235
  %v908 = vunpack.c.l.b16 %v236
  %v909 = vunpack.c.l.b16 %v237
  %v910 = vunpack.c.l.b16 %v238
  %v911 = vunpack.c.l.b16 %v239
  %v912 = vunpack.c.l.b16 %v240
  %v913 = vunpack.c.l.b16 %v241
  %v914 = vunpack.c.l.b16 %v242
  %v915 = vunpack.c.l.b16 %v243
  %v916 = vunpack.c.l.b16 %v244
  %v917 = vunpack.c.l.b16 %v245
  %v918 = vunpack.c.l.b16 %v246
  %v919 = vunpack.c.l.b16 %v247
  %v920 = vunpack.c.l.b16 %v248
  %v921 = vunpack.c.l.b16 %v249
  %v922 = vunpack.c.l.b16 %v250
  %v923 = vunpack.c.l.b16 %v251
  %v924 = vunpack.c.l.b16 %v252
  %v925 = vunpack.c.l.b16 %v253
  %v926 = vunpack.c.l.b16 %v254
  %v927 = vunpack.c.l.b16 %v255
  %v928 = vunpack.c.l.b16 %v256
  %v929 = vunpack.c.l.b16 %v257
  %v930 = vunpack.c.l.b16 %v258
  %v931 = vunpack.c.l.b16 %v259
  %v932 = vunpack.c.l.b16 %v260
  %v933 = vunpack.c.l.b16 %v261
  %v934 = vunpack.c.l.b16 %v262
  %v935 = vunpack.c.l.b16 %v263
  %v936 = vunpack.c.l.b16 %v264
  %v937 = vunpack.c.l.b16 %v265
  %v938 = vunpack.c.l.b16 %v266
  %v939 = vunpack.c.l.b16 %v267
  %v940 = vunpack.c.l.b16 %v268
  %v941 = vunpack.c.l.b16 %v269
  %v942 = vunpack.c.l.b16 %v270
  %v943 = vunpack.c.l.b16 %v271
  %v944 = vunpack.c.l.b16 %v272
  %v945 = vunpack.c.l.b16 %v273
  %v946 = vunpack.c.l.b16 %v274
  %v947 = vunpack.c.l.b16 %v275
  %v948 = vunpack.c.l.b16 %v276
  %v949 = vunpack.c.l.b16 %v277
  %v950 = vunpack.c.l.b16 %v278
  %v951 = vunpack.c.l.b16 %v279
  %v952 = vunpack.c.l.b16 %v280
  %v953 = vunpack.c.l.b16 %v281
  %v954 = vunpack.c.l.b16 %v282
  %v955 = vunpack.c.l.b16 %v283
  %v956 = vunpack.c.l.b16 %v284
  %v957 = vunpack.c.l.b16 %v285
  %v958 = vunpack.c.l.b16 %v286
  %v959 = vunpack.c.l.b16 %v287
  %v960 = vunpack.c.l.b16 %v288
  %v961 = vunpack.c.l.b16 %v289
  %v962 = vunpack.c.l.b16 %v290
  %v963 = vunpack.c.l.b16 %v291
  %v964 = vunpack.c.l.b16 %v292
  %v965 = vunpack.c.l.b16 %v293
  %v966 = vunpack.c.l.b16 %v294
  %v967 = vunpack.c.l.b16 %v295
  %v968 = vunpack.c.l.b16 %v296
  %v969 = vunpack.c.l.b16 %v297
  %v970 = vunpack.c.l.b16 %v298
  %v971 = vunpack.c.l.b16 %v299
  %v972 = vunpack.c.l.b16 %v300
  %v973 = vpack.c.b16 %v718, %v717
  %v974 = vpack.c.b16 %v720, %v719
  %v975 = vpack.c.b16 %v722, %v721
  %v976 = vpack.c.b16 %v724, %v723
  %v977 = vpack.c.b16 %v726, %v725
  %v978 = vpack.c.b16 %v728, %v727
  %v979 = vpack.c.b16 %v730, %v729
  %v980 = vpack.c.b16 %v732, %v731
  %v981 = vpack.c.b16 %v734, %v733
  %v982 = vpack.c.b16 %v736, %v735
  %v983 = vpack.c.b16 %v738, %v737
  %v984 = vpack.c.b16 %v740, %v739
  %v985 = vpack.c.b16 %v742, %v741
  %v986 = vpack.c.b16 %v744, %v743
  %v987 = vpack.c.b16 %v746, %v745
  %v988 = vpack.c.b16 %v748, %v747
  %v989 = vpack.c.b16 %v750, %v749
  %v990 = vpack.c.b16 %v752, %v751
  %v991 = vpack.c.b16 %v754, %v753
  %v992 = vpack.c.b16 %v756, %v755
  %v993 = vpack.c.b16 %v758, %v757
  %v994 = vpack.c.b16 %v760, %v759
  %v995 = vpack.c.b16 %v762, %v761
  %v996 = vpack.c.b16 %v764, %v763
  %v997 = vpack.c.b16 %v766, %v765
  %v998 = vpack.c.b16 %v768, %v767
  %v999 = vpack.c.b16 %v770, %v769
  %v1000 = vpack.c.b16 %v772, %v771
  %v1001 = vpack.c.b16 %v774, %v773
  %v1002 = vpack.c.b16 %v776, %v775
  %v1003 = vpack.c.b16 %v778, %v777
  %v1004 = vpack.c.b16 %v780, %v779
  %v1005 = vpack.c.b16 %v782, %v781
  %v1006 = vpack.c.b16 %v784, %v783
  %v1007 = vpack.c.b16 %v786, %v785
  %v1008 = vpack.c.b16 %v788, %v787
  %v1009 = vpack.c.b16 %v790, %v789
  %v1010 = vpack.c.b16 %v792, %v791
  %v1011 = vpack.c.b16 %v794, %v793
  %v1012 = vpack.c.b16 %v796, %v795
  %v1013 = vpack.c.b16 %v798, %v797
  %v1014 = vpack.c.b16 %v800, %v799
  %v1015 = vpack.c.b16 %v802, %v801
  %v1016 = vpack.c.b16 %v804, %v803
  %v1017 = vpack.c.b16 %v806, %v805
  %v1018 = vpack.c.b16 %v808, %v807
  %v1019 = vpack.c.b16 %v810, %v809
  %v1020 = vpack.c.b16 %v812, %v811
  %v1021 = vpack.c.b16 %v814, %v813
  %v1022 = vpack.c.b16 %v816, %v815
  %v1023 = vpack.c.b16 %v818, %v817
  %v1024 = vpack.c.b16 %v820, %v819
  %v1025 = vpack.c.b16 %v822, %v821
  %v1026 = vpack.c.b16 %v824, %v823
  %v1027 = vpack.c.b16 %v826, %v825
  %v1028 = vpack.c.b16 %v828, %v827
  %v1029 = vpack.c.b16 %v830, %v829
  %v1030 = vpack.c.b16 %v832, %v831
  %v1031 = vpack.c.b16 %v834, %v833
  %v1032 = vpack.c.b16 %v836, %v835
  %v1033 = vpack.c.b16 %v838, %v837
  %v1034 = vpack.c.b16 %v840, %v839
  %v1035 = vpack.c.b16 %v842, %v841
  %v1036 = vpack.c.b16 %v844, %v843
  %v1037 = vpack.c.b16 %v846, %v845
  %v1038 = vpack.c.b16 %v848, %v847
  %v1039 = vpack.c.b16 %v850, %v849
  %v1040 = vpack.c.b16 %v852, %v851
  %v1041 = vpack.c.b16 %v854, %v853
  %v1042 = vpack.c.b16 %v856, %v855
  %v1043 = vpack.c.b16 %v858, %v857
  %v1044 = vpack.c.b16 %v860, %v859
  %v1045 = vpack.c.b16 %v862, %v861
  %v1046 = vpack.c.b16 %v864, %v863
  %v1047 = vpack.c.b16 %v866, %v865
  %v1048 = vpack.c.b16 %v868, %v867
  %v1049 = vpack.c.b16 %v870, %v869
  %v1050 = vpack.c.b16 %v872, %v871
  %v1051 = vpack.c.b16 %v874, %v873
  %v1052 = vpack.c.b16 %v876, %v875
  %v1053 = vpack.c.b16 %v878, %v877
  %v1054 = vpack.c.b16 %v880, %v879
  %v1055 = vpack.c.b16 %v882, %v881
  %v1056 = vpack.c.b16 %v884, %v883
  %v1057 = vpack.c.b16 %v886, %v885
  %v1058 = vpack.c.b16 %v888, %v887
  %v1059 = vpack.c.b16 %v890, %v889
  %v1060 = vpack.c.b16 %v892, %v891
  %v1061 = vpack.c.b16 %v894, %v893
  %v1062 = vpack.c.b16 %v896, %v895
  %v1063 = vpack.c.b16 %v898, %v897
  %v1064 = vpack.c.b16 %v900, %v899
  %v1065 = vpack.c.b16 %v902, %v901
  %v1066 = vpack.c.b16 %v904, %v903
  %v1067 = vpack.c.b16 %v906, %v905
  %v1068 = vpack.c.b16 %v908, %v907
  %v1069 = vpack.c.b16 %v910, %v909
  %v1070 = vpack.c.b16 %v912, %v911
  %v1071 = vpack.c.b16 %v914, %v913
  %v1072 = vpack.c.b16 %v916, %v915
  %v1073 = vpack.c.b16 %v918, %v917
  %v1074 = vpack.c.b16 %v920, %v919
  %v1075 = vpack.c.b16 %v922, %v921
  %v1076 = vpack.c.b16 %v924, %v923
  %v1077 = vpack.c.b16 %v926, %v925
  %v1078 = vpack.c.b16 %v928, %v927
  %v1079 = vpack.c.b16 %v930, %v929
  %v1080 = vpack.c.b16 %v932, %v931
  %v1081 = vpack.c.b16 %v934, %v933
  %v1082 = vpack.c.b16 %v936, %v935
  %v1083 = vpack.c.b16 %v938, %v937
  %v1084 = vpack.c.b16 %v940, %v939
  %v1085 = vpack.c.b16 %v942, %v941
  %v1086 = vpack.c.b16 %v944, %v943
  %v1087 = vpack.c.b16 %v946, %v945
  %v1088 = vpack.c.b16 %v948, %v947
  %v1089 = vpack.c.b16 %v950, %v949
  %v1090 = vpack.c.b16 %v952, %v951
  %v1091 = vpack.c.b16 %v954, %v953
  %v1092 = vpack.c.b16 %v956, %v955
  %v1093 = vpack.c.b16 %v958, %v957
  %v1094 = vpack.c.b16 %v960, %v959
  %v1095 = vpack.c.b16 %v962, %v961
  %v1096 = vpack.c.b16 %v964, %v963
  %v1097 = vpack.c.b16 %v966, %v965
  %v1098 = vpack.c.b16 %v968, %v967
  %v1099 = vpack.c.b16 %v970, %v969
  %v1100 = vpack.c.b16 %v972, %v971
  %1229 = vmatpush.bf16.msra.mxu0 %v980
  %1230 = vmatpush.bf16.msra.mxu0 %v979
  %1231 = vmatpush.bf16.msra.mxu0 %v978
  %1232 = vmatpush.bf16.msra.mxu0 %v977
  %1233 = vmatpush.bf16.msra.mxu0 %v976
  %1234 = vmatpush.bf16.msra.mxu0 %v975
  %1235 = vmatpush.bf16.msra.mxu0 %v974
  %1236 = vmatpush.bf16.msra.mxu0 %v973
  %1237 = vmatmul.bf16.gmra.mxu0 %v397
  %v1238 = vpop.f32.mrf.mxu0
  %v1239 = vadd.f32 0.0, %v1238
  %v1240 = vpop.f32.mrf.mxu0
  %v1241 = vadd.f32 0.0, %v1240
  %1242 = vmatmul.bf16.gmra.mxu0 %v413
  %v1243 = vpop.f32.mrf.mxu0
  %v1244 = vadd.f32 0.0, %v1243
  %v1245 = vpop.f32.mrf.mxu0
  %v1246 = vadd.f32 0.0, %v1245
  %1247 = vdwg.mxu0
  %1248 = vmatpush.bf16.msra.mxu0 %v988
  %1249 = vmatpush.bf16.msra.mxu0 %v987
  %1250 = vmatpush.bf16.msra.mxu0 %v986
  %1251 = vmatpush.bf16.msra.mxu0 %v985
  %1252 = vmatpush.bf16.msra.mxu0 %v984
  %1253 = vmatpush.bf16.msra.mxu0 %v983
  %1254 = vmatpush.bf16.msra.mxu0 %v982
  %1255 = vmatpush.bf16.msra.mxu0 %v981
  %1256 = vmatmul.bf16.gmra.mxu0 %v398
  %v1257 = vpop.f32.mrf.mxu0
  %v1258 = vadd.f32 %v1239, %v1257
  %v1259 = vpop.f32.mrf.mxu0
  %v1260 = vadd.f32 %v1241, %v1259
  %1261 = vmatmul.bf16.gmra.mxu0 %v414
  %v1262 = vpop.f32.mrf.mxu0
  %v1263 = vadd.f32 %v1244, %v1262
  %v1264 = vpop.f32.mrf.mxu0
  %v1265 = vadd.f32 %v1246, %v1264
  %1266 = vdwg.mxu0
  %1267 = vmatpush.bf16.msra.mxu0 %v996
  %1268 = vmatpush.bf16.msra.mxu0 %v995
  %1269 = vmatpush.bf16.msra.mxu0 %v994
  %1270 = vmatpush.bf16.msra.mxu0 %v993
  %1271 = vmatpush.bf16.msra.mxu0 %v992
  %1272 = vmatpush.bf16.msra.mxu0 %v991
  %1273 = vmatpush.bf16.msra.mxu0 %v990
  %1274 = vmatpush.bf16.msra.mxu0 %v989
  %1275 = vmatmul.bf16.gmra.mxu0 %v399
  %v1276 = vpop.f32.mrf.mxu0
  %v1277 = vadd.f32 %v1258, %v1276
  %v1278 = vpop.f32.mrf.mxu0
  %v1279 = vadd.f32 %v1260, %v1278
  %1280 = vmatmul.bf16.gmra.mxu0 %v415
  %v1281 = vpop.f32.mrf.mxu0
  %v1282 = vadd.f32 %v1263, %v1281
  %v1283 = vpop.f32.mrf.mxu0
  %v1284 = vadd.f32 %v1265, %v1283
  %1285 = vdwg.mxu0
  %1286 = vmatpush.bf16.msra.mxu0 %v1004
  %1287 = vmatpush.bf16.msra.mxu0 %v1003
  %1288 = vmatpush.bf16.msra.mxu0 %v1002
  %1289 = vmatpush.bf16.msra.mxu0 %v1001
  %1290 = vmatpush.bf16.msra.mxu0 %v1000
  %1291 = vmatpush.bf16.msra.mxu0 %v999
  %1292 = vmatpush.bf16.msra.mxu0 %v998
  %1293 = vmatpush.bf16.msra.mxu0 %v997
  %1294 = vmatmul.bf16.gmra.mxu0 %v400
  %v1295 = vpop.f32.mrf.mxu0
  %v1296 = vadd.f32 %v1277, %v1295
  %v1297 = vpop.f32.mrf.mxu0
  %v1298 = vadd.f32 %v1279, %v1297
  %1299 = vmatmul.bf16.gmra.mxu0 %v416
  %v1300 = vpop.f32.mrf.mxu0
  %v1301 = vadd.f32 %v1282, %v1300
  %v1302 = vpop.f32.mrf.mxu0
  %v1303 = vadd.f32 %v1284, %v1302
  %1304 = vdwg.mxu0
  %1305 = vmatpush.bf16.msra.mxu0 %v1012
  %1306 = vmatpush.bf16.msra.mxu0 %v1011
  %1307 = vmatpush.bf16.msra.mxu0 %v1010
  %1308 = vmatpush.bf16.msra.mxu0 %v1009
  %1309 = vmatpush.bf16.msra.mxu0 %v1008
  %1310 = vmatpush.bf16.msra.mxu0 %v1007
  %1311 = vmatpush.bf16.msra.mxu0 %v1006
  %1312 = vmatpush.bf16.msra.mxu0 %v1005
  %1313 = vmatmul.bf16.gmra.mxu0 %v401
  %v1314 = vpop.f32.mrf.mxu0
  %v1315 = vadd.f32 %v1296, %v1314
  %v1316 = vpop.f32.mrf.mxu0
  %v1317 = vadd.f32 %v1298, %v1316
  %1318 = vmatmul.bf16.gmra.mxu0 %v417
  %v1319 = vpop.f32.mrf.mxu0
  %v1320 = vadd.f32 %v1301, %v1319
  %v1321 = vpop.f32.mrf.mxu0
  %v1322 = vadd.f32 %v1303, %v1321
  %1323 = vdwg.mxu0
  %1324 = vmatpush.bf16.msra.mxu0 %v1020
  %1325 = vmatpush.bf16.msra.mxu0 %v1019
  %1326 = vmatpush.bf16.msra.mxu0 %v1018
  %1327 = vmatpush.bf16.msra.mxu0 %v1017
  %1328 = vmatpush.bf16.msra.mxu0 %v1016
  %1329 = vmatpush.bf16.msra.mxu0 %v1015
  %1330 = vmatpush.bf16.msra.mxu0 %v1014
  %1331 = vmatpush.bf16.msra.mxu0 %v1013
  %1332 = vmatmul.bf16.gmra.mxu0 %v402
  %v1333 = vpop.f32.mrf.mxu0
  %v1334 = vadd.f32 %v1315, %v1333
  %v1335 = vpop.f32.mrf.mxu0
  %v1336 = vadd.f32 %v1317, %v1335
  %1337 = vmatmul.bf16.gmra.mxu0 %v418
  %v1338 = vpop.f32.mrf.mxu0
  %v1339 = vadd.f32 %v1320, %v1338
  %v1340 = vpop.f32.mrf.mxu0
  %v1341 = vadd.f32 %v1322, %v1340
  %1342 = vdwg.mxu0
  %1343 = vmatpush.bf16.msra.mxu0 %v1028
  %1344 = vmatpush.bf16.msra.mxu0 %v1027
  %1345 = vmatpush.bf16.msra.mxu0 %v1026
  %1346 = vmatpush.bf16.msra.mxu0 %v1025
  %1347 = vmatpush.bf16.msra.mxu0 %v1024
  %1348 = vmatpush.bf16.msra.mxu0 %v1023
  %1349 = vmatpush.bf16.msra.mxu0 %v1022
  %1350 = vmatpush.bf16.msra.mxu0 %v1021
  %1351 = vmatmul.bf16.gmra.mxu0 %v403
  %v1352 = vpop.f32.mrf.mxu0
  %v1353 = vadd.f32 %v1334, %v1352
  %v1354 = vpop.f32.mrf.mxu0
  %v1355 = vadd.f32 %v1336, %v1354
  %1356 = vmatmul.bf16.gmra.mxu0 %v419
  %v1357 = vpop.f32.mrf.mxu0
  %v1358 = vadd.f32 %v1339, %v1357
  %v1359 = vpop.f32.mrf.mxu0
  %v1360 = vadd.f32 %v1341, %v1359
  %1361 = vdwg.mxu0
  %1362 = vmatpush.bf16.msra.mxu0 %v1036
  %1363 = vmatpush.bf16.msra.mxu0 %v1035
  %1364 = vmatpush.bf16.msra.mxu0 %v1034
  %1365 = vmatpush.bf16.msra.mxu0 %v1033
  %1366 = vmatpush.bf16.msra.mxu0 %v1032
  %1367 = vmatpush.bf16.msra.mxu0 %v1031
  %1368 = vmatpush.bf16.msra.mxu0 %v1030
  %1369 = vmatpush.bf16.msra.mxu0 %v1029
  %1370 = vmatmul.bf16.gmra.mxu0 %v404
  %v1371 = vpop.f32.mrf.mxu0
  %v1372 = vadd.f32 %v1353, %v1371
  %v1373 = vpop.f32.mrf.mxu0
  %v1374 = vadd.f32 %v1355, %v1373
  %1375 = vmatmul.bf16.gmra.mxu0 %v420
  %v1376 = vpop.f32.mrf.mxu0
  %v1377 = vadd.f32 %v1358, %v1376
  %v1378 = vpop.f32.mrf.mxu0
  %v1379 = vadd.f32 %v1360, %v1378
  %1380 = vdwg.mxu0
  %1381 = vmatpush.bf16.msra.mxu0 %v1044
  %1382 = vmatpush.bf16.msra.mxu0 %v1043
  %1383 = vmatpush.bf16.msra.mxu0 %v1042
  %1384 = vmatpush.bf16.msra.mxu0 %v1041
  %1385 = vmatpush.bf16.msra.mxu0 %v1040
  %1386 = vmatpush.bf16.msra.mxu0 %v1039
  %1387 = vmatpush.bf16.msra.mxu0 %v1038
  %1388 = vmatpush.bf16.msra.mxu0 %v1037
  %1389 = vmatmul.bf16.gmra.mxu0 %v405
  %v1390 = vpop.f32.mrf.mxu0
  %v1391 = vadd.f32 %v1372, %v1390
  %v1392 = vpop.f32.mrf.mxu0
  %v1393 = vadd.f32 %v1374, %v1392
  %1394 = vmatmul.bf16.gmra.mxu0 %v421
  %v1395 = vpop.f32.mrf.mxu0
  %v1396 = vadd.f32 %v1377, %v1395
  %v1397 = vpop.f32.mrf.mxu0
  %v1398 = vadd.f32 %v1379, %v1397
  %1399 = vdwg.mxu0
  %1400 = vmatpush.bf16.msra.mxu0 %v1052
  %1401 = vmatpush.bf16.msra.mxu0 %v1051
  %1402 = vmatpush.bf16.msra.mxu0 %v1050
  %1403 = vmatpush.bf16.msra.mxu0 %v1049
  %1404 = vmatpush.bf16.msra.mxu0 %v1048
  %1405 = vmatpush.bf16.msra.mxu0 %v1047
  %1406 = vmatpush.bf16.msra.mxu0 %v1046
  %1407 = vmatpush.bf16.msra.mxu0 %v1045
  %1408 = vmatmul.bf16.gmra.mxu0 %v406
  %v1409 = vpop.f32.mrf.mxu0
  %v1410 = vadd.f32 %v1391, %v1409
  %v1411 = vpop.f32.mrf.mxu0
  %v1412 = vadd.f32 %v1393, %v1411
  %1413 = vmatmul.bf16.gmra.mxu0 %v422
  %v1414 = vpop.f32.mrf.mxu0
  %v1415 = vadd.f32 %v1396, %v1414
  %v1416 = vpop.f32.mrf.mxu0
  %v1417 = vadd.f32 %v1398, %v1416
  %1418 = vdwg.mxu0
  %1419 = vmatpush.bf16.msra.mxu0 %v1060
  %1420 = vmatpush.bf16.msra.mxu0 %v1059
  %1421 = vmatpush.bf16.msra.mxu0 %v1058
  %1422 = vmatpush.bf16.msra.mxu0 %v1057
  %1423 = vmatpush.bf16.msra.mxu0 %v1056
  %1424 = vmatpush.bf16.msra.mxu0 %v1055
  %1425 = vmatpush.bf16.msra.mxu0 %v1054
  %1426 = vmatpush.bf16.msra.mxu0 %v1053
  %1427 = vmatmul.bf16.gmra.mxu0 %v407
  %v1428 = vpop.f32.mrf.mxu0
  %v1429 = vadd.f32 %v1410, %v1428
  %v1430 = vpop.f32.mrf.mxu0
  %v1431 = vadd.f32 %v1412, %v1430
  %1432 = vmatmul.bf16.gmra.mxu0 %v423
  %v1433 = vpop.f32.mrf.mxu0
  %v1434 = vadd.f32 %v1415, %v1433
  %v1435 = vpop.f32.mrf.mxu0
  %v1436 = vadd.f32 %v1417, %v1435
  %1437 = vdwg.mxu0
  %1438 = vmatpush.bf16.msra.mxu0 %v1068
  %1439 = vmatpush.bf16.msra.mxu0 %v1067
  %1440 = vmatpush.bf16.msra.mxu0 %v1066
  %1441 = vmatpush.bf16.msra.mxu0 %v1065
  %1442 = vmatpush.bf16.msra.mxu0 %v1064
  %1443 = vmatpush.bf16.msra.mxu0 %v1063
  %1444 = vmatpush.bf16.msra.mxu0 %v1062
  %1445 = vmatpush.bf16.msra.mxu0 %v1061
  %1446 = vmatmul.bf16.gmra.mxu0 %v408
  %v1447 = vpop.f32.mrf.mxu0
  %v1448 = vadd.f32 %v1429, %v1447
  %v1449 = vpop.f32.mrf.mxu0
  %v1450 = vadd.f32 %v1431, %v1449
  %1451 = vmatmul.bf16.gmra.mxu0 %v424
  %v1452 = vpop.f32.mrf.mxu0
  %v1453 = vadd.f32 %v1434, %v1452
  %v1454 = vpop.f32.mrf.mxu0
  %v1455 = vadd.f32 %v1436, %v1454
  %1456 = vdwg.mxu0
  %1457 = vmatpush.bf16.msra.mxu0 %v1076
  %1458 = vmatpush.bf16.msra.mxu0 %v1075
  %1459 = vmatpush.bf16.msra.mxu0 %v1074
  %1460 = vmatpush.bf16.msra.mxu0 %v1073
  %1461 = vmatpush.bf16.msra.mxu0 %v1072
  %1462 = vmatpush.bf16.msra.mxu0 %v1071
  %1463 = vmatpush.bf16.msra.mxu0 %v1070
  %1464 = vmatpush.bf16.msra.mxu0 %v1069
  %1465 = vmatmul.bf16.gmra.mxu0 %v409
  %v1466 = vpop.f32.mrf.mxu0
  %v1467 = vadd.f32 %v1448, %v1466
  %v1468 = vpop.f32.mrf.mxu0
  %v1469 = vadd.f32 %v1450, %v1468
  %1470 = vmatmul.bf16.gmra.mxu0 %v425
  %v1471 = vpop.f32.mrf.mxu0
  %v1472 = vadd.f32 %v1453, %v1471
  %v1473 = vpop.f32.mrf.mxu0
  %v1474 = vadd.f32 %v1455, %v1473
  %1475 = vdwg.mxu0
  %1476 = vmatpush.bf16.msra.mxu0 %v1084
  %1477 = vmatpush.bf16.msra.mxu0 %v1083
  %1478 = vmatpush.bf16.msra.mxu0 %v1082
  %1479 = vmatpush.bf16.msra.mxu0 %v1081
  %1480 = vmatpush.bf16.msra.mxu0 %v1080
  %1481 = vmatpush.bf16.msra.mxu0 %v1079
  %1482 = vmatpush.bf16.msra.mxu0 %v1078
  %1483 = vmatpush.bf16.msra.mxu0 %v1077
  %1484 = vmatmul.bf16.gmra.mxu0 %v410
  %v1485 = vpop.f32.mrf.mxu0
  %v1486 = vadd.f32 %v1467, %v1485
  %v1487 = vpop.f32.mrf.mxu0
  %v1488 = vadd.f32 %v1469, %v1487
  %1489 = vmatmul.bf16.gmra.mxu0 %v426
  %v1490 = vpop.f32.mrf.mxu0
  %v1491 = vadd.f32 %v1472, %v1490
  %v1492 = vpop.f32.mrf.mxu0
  %v1493 = vadd.f32 %v1474, %v1492
  %1494 = vdwg.mxu0
  %1495 = vmatpush.bf16.msra.mxu0 %v1092
  %1496 = vmatpush.bf16.msra.mxu0 %v1091
  %1497 = vmatpush.bf16.msra.mxu0 %v1090
  %1498 = vmatpush.bf16.msra.mxu0 %v1089
  %1499 = vmatpush.bf16.msra.mxu0 %v1088
  %1500 = vmatpush.bf16.msra.mxu0 %v1087
  %1501 = vmatpush.bf16.msra.mxu0 %v1086
  %1502 = vmatpush.bf16.msra.mxu0 %v1085
  %1503 = vmatmul.bf16.gmra.mxu0 %v411
  %v1504 = vpop.f32.mrf.mxu0
  %v1505 = vadd.f32 %v1486, %v1504
  %v1506 = vpop.f32.mrf.mxu0
  %v1507 = vadd.f32 %v1488, %v1506
  %1508 = vmatmul.bf16.gmra.mxu0 %v427
  %v1509 = vpop.f32.mrf.mxu0
  %v1510 = vadd.f32 %v1491, %v1509
  %v1511 = vpop.f32.mrf.mxu0
  %v1512 = vadd.f32 %v1493, %v1511
  %1513 = vdwg.mxu0
  %1514 = vmatpush.bf16.msra.mxu0 %v1100
  %1515 = vmatpush.bf16.msra.mxu0 %v1099
  %1516 = vmatpush.bf16.msra.mxu0 %v1098
  %1517 = vmatpush.bf16.msra.mxu0 %v1097
  %1518 = vmatpush.bf16.msra.mxu0 %v1096
  %1519 = vmatpush.bf16.msra.mxu0 %v1095
  %1520 = vmatpush.bf16.msra.mxu0 %v1094
  %1521 = vmatpush.bf16.msra.mxu0 %v1093
  %1522 = vmatmul.bf16.gmra.mxu0 %v412
  %v1523 = vpop.f32.mrf.mxu0
  %v1524 = vadd.f32 %v1505, %v1523
  %v1525 = vpop.f32.mrf.mxu0
  %v1526 = vadd.f32 %v1507, %v1525
  %1527 = vmatmul.bf16.gmra.mxu0 %v428
  %v1528 = vpop.f32.mrf.mxu0
  %v1529 = vadd.f32 %v1510, %v1528
  %v1530 = vpop.f32.mrf.mxu0
  %v1531 = vadd.f32 %v1512, %v1530
  %1532 = vdwg.mxu0
  %v1533 = vpack.c.bf16 %v1524, %v1524
  %v1534 = vpack.c.bf16 %v1526, %v1526
  %v1535 = vpack.c.bf16 %v1529, %v1529
  %v1536 = vpack.c.bf16 %v1531, %v1531
  %1537 = vst [vmem:[%s2] sm:$0xf] %v1533
  %1538 = vst [vmem:[%s2 + $0x4] sm:$0xf] %v1534
  %1539 = vst [vmem:[%s2 + $0x8] sm:$0xf] %v1535
  %1540 = vst [vmem:[%s2 + $0xc] sm:$0xf] %v1536
  %s1541 = smul.u32 0, 32
  %v1542 = vlaneseq
  %v1543 = vshrl.u32 %v1542, 7
  %v1544 = vadd.s32 %v1543, 8
  %v1545 = vadd.s32 %v1543, 16
  %v1546 = vadd.s32 %v1543, 24
  %v1547 = vstv %s1541
  %v1548 = vadd.s32 %v1547, %v1543
  %v1549 = vadd.s32 %v1547, %v1544
  %v1550 = vadd.s32 %v1547, %v1545
  %v1551 = vadd.s32 %v1547, %v1546
  %vm1552 = vcmp.lt.s32.totalorder %v1548, 32
  %vm1553 = vcmp.lt.s32.totalorder %v1549, 32
  %vm1554 = vcmp.lt.s32.totalorder %v1550, 32
  %vm1555 = vcmp.lt.s32.totalorder %v1551, 32
  %v1556 = vsel %vm1552, 1, 0
  %v1557 = vsel %vm1553, 1, 0
  %v1558 = vsel %vm1554, 1, 0
  %v1559 = vsel %vm1555, 1, 0
  %vm1560 = vcmp.eq.s32.totalorder %v1556, 1
  %vm1561 = vcmp.eq.s32.totalorder %v1557, 1
  %vm1562 = vcmp.eq.s32.totalorder %v1558, 1
  %vm1563 = vcmp.eq.s32.totalorder %v1559, 1
  %v1564 = vsel %vm1560, %v1524, 0.0
  %v1565 = vsel %vm1561, %v1526, 0.0
  %v1566 = vsel %vm1562, %v1529, 0.0
  %v1567 = vsel %vm1563, %v1531, 0.0
  %v1568 = vadd.f32 %v1564, %v1565
  %v1569 = vadd.f32 %v1568, %v1566
  %v1570 = vadd.f32 %v1569, %v1567
  %v1571 = vrot.slane %v1570, 4
  %v1572 = vadd.f32 %v1570, %v1571
  %v1573 = vrot.slane %v1572, 2
  %v1574 = vadd.f32 %v1572, %v1573
  %v1575 = vrot.slane %v1574, 1
  %v1576 = vadd.f32 %v1574, %v1575
  %v1577 = vmul.f32 %v1564, %v1564
  %v1578 = vmul.f32 %v1565, %v1565
  %v1579 = vmul.f32 %v1566, %v1566
  %v1580 = vmul.f32 %v1567, %v1567
  %v1581 = vadd.f32 %v1577, %v1578
  %v1582 = vadd.f32 %v1581, %v1579
  %v1583 = vadd.f32 %v1582, %v1580
  %v1584 = vrot.slane %v1583, 4
  %v1585 = vadd.f32 %v1583, %v1584
  %v1586 = vrot.slane %v1585, 2
  %v1587 = vadd.f32 %v1585, %v1586
  %v1588 = vrot.slane %v1587, 1
  %v1589 = vadd.f32 %v1587, %v1588
  %vm1590 = vcmask 1040384
  %v1591 = vsel %vm1590, %v1576, %v1589
  %1592 = vst [vmem:[%s3] sm:$0x3] %v1591
  // Predicated region
  $region10: #{_lambda_.11} parent=0 // pred_check
    _
  $region11: #{_lambda_.11} parent=0 // pred_check_branch
    %1594 = sbr.rel (0) target = $region13
  $region12: #{_lambda_.11} parent=0 // pred_region
    _
  $region13: #{_lambda_.11} parent=0 // pred_fallthru
    _
  // Predicated region
  $region14: #{_lambda_.11} parent=0 // pred_check
    _
  $region15: #{_lambda_.11} parent=0 // pred_check_branch
    %1596 = sbr.rel (0) target = $region17
  $region16: #{_lambda_.11} parent=0 // pred_region
    _
  $region17: #{_lambda_.11} parent=0 // pred_fallthru
    _
  // Predicated region
  $region18: #{_lambda_.11} parent=0 // pred_check
    _
  $region19: #{_lambda_.11} parent=0 // pred_check_branch
    %1598 = sbr.rel (0) target = $region21
  $region20: #{_lambda_.11} parent=0 // pred_region
    _
  $region21: #{_lambda_.11} parent=0 // pred_fallthru
    _
  // Predicated region
  $region22: #{_lambda_.11} parent=0 // pred_check
    _
  $region23: #{_lambda_.11} parent=0 // pred_check_branch
    %1600 = sbr.rel (0) target = $region25
  $region24: #{_lambda_.11} parent=0 // pred_region
    _
  $region25: #{_lambda_.11} parent=0 // pred_fallthru
    _

// kernel: _lambda_.14
$region0: #{_lambda_.14}
  #allocation0 [shape = 'u32[]', space=smem, size = 0x4, offset = 0x4, fixed_abs, tag = 'smem constant byte address 0x4 - core index']
  #allocation1 [shape = 'u32[72,128]{1,0:T(1,128)}', space=vmem, size = 0x9000, scoped, tag = 'internal scratch']
  %s0 = inlined_call_operand.vmem [shape: bf16[18,128], index: 0, kind: input, shape index: {}]
  %s1 = inlined_call_operand.vmem [shape: f32[1,128], index: 1, kind: input, shape index: {}]
  %s2 = inlined_call_operand.vmem [shape: f32[1,128], index: 2, kind: input, shape index: {}]
  %s3 = inlined_call_operand.vmem [shape: bf16[18,128], index: 3, kind: output, shape index: {}]
  %s4 = sld [smem:[#allocation0]]
  $region22: #{_lambda_.14} parent=0
    _
  %s6 = ssub.s32 1, %s4
  %s7 = scalar_select 0, %s6, %s4
  // Predicated region
  $region2: #{_lambda_.14} parent=0 // pred_check
    _
  $region3: #{_lambda_.14} parent=0 // pred_check_branch
    %9 = sbr.rel (0) target = $region5
  $region4: #{_lambda_.14} parent=0 // pred_region
    _
  $region5: #{_lambda_.14} parent=0 // pred_fallthru
    _
  // Predicated region
  $region6: #{_lambda_.14} parent=0 // pred_check
    _
  $region7: #{_lambda_.14} parent=0 // pred_check_branch
    %11 = sbr.rel (0) target = $region9
  $region8: #{_lambda_.14} parent=0 // pred_region
    _
  $region9: #{_lambda_.14} parent=0 // pred_fallthru
    _
  // Predicated region
  $region10: #{_lambda_.14} parent=0 // pred_check
    _
  $region11: #{_lambda_.14} parent=0 // pred_check_branch
    %13 = sbr.rel (0) target = $region13
  $region12: #{_lambda_.14} parent=0 // pred_region
    _
  $region13: #{_lambda_.14} parent=0 // pred_fallthru
    _
  %v14 = vld [vmem:[%s0] sm:$0xf]
  %v15 = vld [vmem:[%s0 + $0x4] sm:$0xf]
  %v16 = vld [vmem:[%s0 + $0x8] sm:$0x1]
  %v17 = vunpack.c.l.bf16 %v14
  %v18 = vunpack.c.l.bf16 %v15
  %v19 = vunpack.c.l.bf16 %v16
  %v20 = vld [vmem:[%s1] sm:$0x1]
  %v22 = vperm.slane %v20, 0
  %v24 = vmul.f32 %v17, %v22
  %v25 = vmul.f32 %v18, %v22
  %v26 = vmul.f32 %v19, %v22
  %v27 = vld [vmem:[%s2] sm:$0x1]
  %v29 = vperm.slane %v27, 0
  %v31 = vadd.f32 %v24, %v29
  %v32 = vadd.f32 %v25, %v29
  %v33 = vadd.f32 %v26, %v29
  %vm34 = vcmp.ge.f32.partialorder %v31, 0.0
  %vm35 = vcmp.ge.f32.partialorder %v32, 0.0
  %vm36 = vcmp.ge.f32.partialorder %v33, 0.0
  %v37 = vmul.f32 %v31, 0.2
  %v38 = vmul.f32 %v32, 0.2
  %v39 = vmul.f32 %v33, 0.2
  %v40 = vsel %vm34, %v31, %v37
  %v41 = vsel %vm35, %v32, %v38
  %v42 = vsel %vm36, %v33, %v39
  %v43 = vpack.c.bf16 %v40, %v40
  %v44 = vpack.c.bf16 %v41, %v41
  %v45 = vpack.c.bf16 %v42, %v42
  %46 = vst [vmem:[%s3] sm:$0xf] %v43
  %47 = vst [vmem:[%s3 + $0x4] sm:$0xf] %v44
  %48 = vst [vmem:[%s3 + $0x8] sm:$0x1] %v45
  // Predicated region
  $region14: #{_lambda_.14} parent=0 // pred_check
    _
  $region15: #{_lambda_.14} parent=0 // pred_check_branch
    %50 = sbr.rel (0) target = $region17
  $region16: #{_lambda_.14} parent=0 // pred_region
    _
  $region17: #{_lambda_.14} parent=0 // pred_fallthru
    _
  // Predicated region
  $region18: #{_lambda_.14} parent=0 // pred_check
    _
  $region19: #{_lambda_.14} parent=0 // pred_check_branch
    %52 = sbr.rel (0) target = $region21
  $region20: #{_lambda_.14} parent=0 // pred_region
    _
  $region21: #{_lambda_.14} parent=0 // pred_fallthru
    _

// kernel: _lambda_.13
$region0: #{_lambda_.13}
  #allocation0 [shape = 'u32[]', space=smem, size = 0x4, offset = 0x4, fixed_abs, tag = 'smem constant byte address 0x4 - core index']
  #allocation1 [shape = 'u32[72,128]{1,0:T(1,128)}', space=vmem, size = 0x9000, scoped, tag = 'internal scratch']
  %s0 = inlined_call_operand.vmem [shape: bf16[18,2048], index: 0, kind: input, shape index: {}]
  %s1 = inlined_call_operand.vmem [shape: bf16[2048,128], index: 1, kind: input, shape index: {}]
  %s2 = inlined_call_operand.vmem [shape: bf16[18,128], index: 2, kind: output, shape index: {0}]
  %s3 = inlined_call_operand.vmem [shape: f32[1,2,128], index: 3, kind: output, shape index: {1}]
  %4 = xla_tuple %s2, %s3
  %s5 = sld [smem:[#allocation0]]
  $region26: #{_lambda_.13} parent=0
    _
  %s7 = ssub.s32 1, %s5
  %s8 = scalar_select 0, %s7, %s5
  // Predicated region
  $region2: #{_lambda_.13} parent=0 // pred_check
    _
  $region3: #{_lambda_.13} parent=0 // pred_check_branch
    %10 = sbr.rel (0) target = $region5
  $region4: #{_lambda_.13} parent=0 // pred_region
    _
  $region5: #{_lambda_.13} parent=0 // pred_fallthru
    _
  // Predicated region
  $region6: #{_lambda_.13} parent=0 // pred_check
    _
  $region7: #{_lambda_.13} parent=0 // pred_check_branch
    %12 = sbr.rel (0) target = $region9
  $region8: #{_lambda_.13} parent=0 // pred_region
    _
  $region9: #{_lambda_.13} parent=0 // pred_fallthru
    _
  %v13 = vld [vmem:[%s0] sm:$0xff]
  %v14 = vld [vmem:[%s0 + $0x8] sm:$0xff]
  %v15 = vld [vmem:[%s0 + $0x10] sm:$0xff]
  %v16 = vld [vmem:[%s0 + $0x18] sm:$0xff]
  %v17 = vld [vmem:[%s0 + $0x20] sm:$0xff]
  %v18 = vld [vmem:[%s0 + $0x28] sm:$0xff]
  %v19 = vld [vmem:[%s0 + $0x30] sm:$0xff]
  %v20 = vld [vmem:[%s0 + $0x38] sm:$0xff]
  %v21 = vld [vmem:[%s0 + $0x40] sm:$0xff]
  %v22 = vld [vmem:[%s0 + $0x48] sm:$0xff]
  %v23 = vld [vmem:[%s0 + $0x50] sm:$0xff]
  %v24 = vld [vmem:[%s0 + $0x58] sm:$0xff]
  %v25 = vld [vmem:[%s0 + $0x60] sm:$0xff]
  %v26 = vld [vmem:[%s0 + $0x68] sm:$0xff]
  %v27 = vld [vmem:[%s0 + $0x70] sm:$0xff]
  %v28 = vld [vmem:[%s0 + $0x78] sm:$0xff]
  %v29 = vld [vmem:[%s0 + $0x80] sm:$0x11]
  %v30 = vld [vmem:[%s0 + $0x88] sm:$0x11]
  %v31 = vld [vmem:[%s0 + $0x90] sm:$0x11]
  %v32 = vld [vmem:[%s0 + $0x98] sm:$0x11]
  %v33 = vld [vmem:[%s0 + $0xa0] sm:$0x11]
  %v34 = vld [vmem:[%s0 + $0xa8] sm:$0x11]
  %v35 = vld [vmem:[%s0 + $0xb0] sm:$0x11]
  %v36 = vld [vmem:[%s0 + $0xb8] sm:$0x11]
  %v37 = vld [vmem:[%s1] sm:$0xf]
  %v38 = vld [vmem:[%s1 + $0x4] sm:$0xf]
  %v39 = vld [vmem:[%s1 + $0x8] sm:$0xf]
  %v40 = vld [vmem:[%s1 + $0xc] sm:$0xf]
  %v41 = vld [vmem:[%s1 + $0x10] sm:$0xf]
  %v42 = vld [vmem:[%s1 + $0x14] sm:$0xf]
  %v43 = vld [vmem:[%s1 + $0x18] sm:$0xf]
  %v44 = vld [vmem:[%s1 + $0x1c] sm:$0xf]
  %v45 = vld [vmem:[%s1 + $0x20] sm:$0xf]
  %v46 = vld [vmem:[%s1 + $0x24] sm:$0xf]
  %v47 = vld [vmem:[%s1 + $0x28] sm:$0xf]
  %v48 = vld [vmem:[%s1 + $0x2c] sm:$0xf]
  %v49 = vld [vmem:[%s1 + $0x30] sm:$0xf]
  %v50 = vld [vmem:[%s1 + $0x34] sm:$0xf]
  %v51 = vld [vmem:[%s1 + $0x38] sm:$0xf]
  %v52 = vld [vmem:[%s1 + $0x3c] sm:$0xf]
  %v53 = vld [vmem:[%s1 + $0x40] sm:$0xf]
  %v54 = vld [vmem:[%s1 + $0x44] sm:$0xf]
  %v55 = vld [vmem:[%s1 + $0x48] sm:$0xf]
  %v56 = vld [vmem:[%s1 + $0x4c] sm:$0xf]
  %v57 = vld [vmem:[%s1 + $0x50] sm:$0xf]
  %v58 = vld [vmem:[%s1 + $0x54] sm:$0xf]
  %v59 = vld [vmem:[%s1 + $0x58] sm:$0xf]
  %v60 = vld [vmem:[%s1 + $0x5c] sm:$0xf]
  %v61 = vld [vmem:[%s1 + $0x60] sm:$0xf]
  %v62 = vld [vmem:[%s1 + $0x64] sm:$0xf]
  %v63 = vld [vmem:[%s1 + $0x68] sm:$0xf]
  %v64 = vld [vmem:[%s1 + $0x6c] sm:$0xf]
  %v65 = vld [vmem:[%s1 + $0x70] sm:$0xf]
  %v66 = vld [vmem:[%s1 + $0x74] sm:$0xf]
  %v67 = vld [vmem:[%s1 + $0x78] sm:$0xf]
  %v68 = vld [vmem:[%s1 + $0x7c] sm:$0xf]
  %v69 = vld [vmem:[%s1 + $0x80] sm:$0xf]
  %v70 = vld [vmem:[%s1 + $0x84] sm:$0xf]
  %v71 = vld [vmem:[%s1 + $0x88] sm:$0xf]
  %v72 = vld [vmem:[%s1 + $0x8c] sm:$0xf]
  %v73 = vld [vmem:[%s1 + $0x90] sm:$0xf]
  %v74 = vld [vmem:[%s1 + $0x94] sm:$0xf]
  %v75 = vld [vmem:[%s1 + $0x98] sm:$0xf]
  %v76 = vld [vmem:[%s1 + $0x9c] sm:$0xf]
  %v77 = vld [vmem:[%s1 + $0xa0] sm:$0xf]
  %v78 = vld [vmem:[%s1 + $0xa4] sm:$0xf]
  %v79 = vld [vmem:[%s1 + $0xa8] sm:$0xf]
  %v80 = vld [vmem:[%s1 + $0xac] sm:$0xf]
  %v81 = vld [vmem:[%s1 + $0xb0] sm:$0xf]
  %v82 = vld [vmem:[%s1 + $0xb4] sm:$0xf]
  %v83 = vld [vmem:[%s1 + $0xb8] sm:$0xf]
  %v84 = vld [vmem:[%s1 + $0xbc] sm:$0xf]
  %v85 = vld [vmem:[%s1 + $0xc0] sm:$0xf]
  %v86 = vld [vmem:[%s1 + $0xc4] sm:$0xf]
  %v87 = vld [vmem:[%s1 + $0xc8] sm:$0xf]
  %v88 = vld [vmem:[%s1 + $0xcc] sm:$0xf]
  %v89 = vld [vmem:[%s1 + $0xd0] sm:$0xf]
  %v90 = vld [vmem:[%s1 + $0xd4] sm:$0xf]
  %v91 = vld [vmem:[%s1 + $0xd8] sm:$0xf]
  %v92 = vld [vmem:[%s1 + $0xdc] sm:$0xf]
  %v93 = vld [vmem:[%s1 + $0xe0] sm:$0xf]
  %v94 = vld [vmem:[%s1 + $0xe4] sm:$0xf]
  %v95 = vld [vmem:[%s1 + $0xe8] sm:$0xf]
  %v96 = vld [vmem:[%s1 + $0xec] sm:$0xf]
  %v97 = vld [vmem:[%s1 + $0xf0] sm:$0xf]
  %v98 = vld [vmem:[%s1 + $0xf4] sm:$0xf]
  %v99 = vld [vmem:[%s1 + $0xf8] sm:$0xf]
  %v100 = vld [vmem:[%s1 + $0xfc] sm:$0xf]
  %v101 = vld [vmem:[%s1 + $0x100] sm:$0xf]
  %v102 = vld [vmem:[%s1 + $0x104] sm:$0xf]
  %v103 = vld [vmem:[%s1 + $0x108] sm:$0xf]
  %v104 = vld [vmem:[%s1 + $0x10c] sm:$0xf]
  %v105 = vld [vmem:[%s1 + $0x110] sm:$0xf]
  %v106 = vld [vmem:[%s1 + $0x114] sm:$0xf]
  %v107 = vld [vmem:[%s1 + $0x118] sm:$0xf]
  %v108 = vld [vmem:[%s1 + $0x11c] sm:$0xf]
  %v109 = vld [vmem:[%s1 + $0x120] sm:$0xf]
  %v110 = vld [vmem:[%s1 + $0x124] sm:$0xf]
  %v111 = vld [vmem:[%s1 + $0x128] sm:$0xf]
  %v112 = vld [vmem:[%s1 + $0x12c] sm:$0xf]
  %v113 = vld [vmem:[%s1 + $0x130] sm:$0xf]
  %v114 = vld [vmem:[%s1 + $0x134] sm:$0xf]
  %v115 = vld [vmem:[%s1 + $0x138] sm:$0xf]
  %v116 = vld [vmem:[%s1 + $0x13c] sm:$0xf]
  %v117 = vld [vmem:[%s1 + $0x140] sm:$0xf]
  %v118 = vld [vmem:[%s1 + $0x144] sm:$0xf]
  %v119 = vld [vmem:[%s1 + $0x148] sm:$0xf]
  %v120 = vld [vmem:[%s1 + $0x14c] sm:$0xf]
  %v121 = vld [vmem:[%s1 + $0x150] sm:$0xf]
  %v122 = vld [vmem:[%s1 + $0x154] sm:$0xf]
  %v123 = vld [vmem:[%s1 + $0x158] sm:$0xf]
  %v124 = vld [vmem:[%s1 + $0x15c] sm:$0xf]
  %v125 = vld [vmem:[%s1 + $0x160] sm:$0xf]
  %v126 = vld [vmem:[%s1 + $0x164] sm:$0xf]
  %v127 = vld [vmem:[%s1 + $0x168] sm:$0xf]
  %v128 = vld [vmem:[%s1 + $0x16c] sm:$0xf]
  %v129 = vld [vmem:[%s1 + $0x170] sm:$0xf]
  %v130 = vld [vmem:[%s1 + $0x174] sm:$0xf]
  %v131 = vld [vmem:[%s1 + $0x178] sm:$0xf]
  %v132 = vld [vmem:[%s1 + $0x17c] sm:$0xf]
  %v133 = vld [vmem:[%s1 + $0x180] sm:$0xf]
  %v134 = vld [vmem:[%s1 + $0x184] sm:$0xf]
  %v135 = vld [vmem:[%s1 + $0x188] sm:$0xf]
  %v136 = vld [vmem:[%s1 + $0x18c] sm:$0xf]
  %v137 = vld [vmem:[%s1 + $0x190] sm:$0xf]
  %v138 = vld [vmem:[%s1 + $0x194] sm:$0xf]
  %v139 = vld [vmem:[%s1 + $0x198] sm:$0xf]
  %v140 = vld [vmem:[%s1 + $0x19c] sm:$0xf]
  %v141 = vld [vmem:[%s1 + $0x1a0] sm:$0xf]
  %v142 = vld [vmem:[%s1 + $0x1a4] sm:$0xf]
  %v143 = vld [vmem:[%s1 + $0x1a8] sm:$0xf]
  %v144 = vld [vmem:[%s1 + $0x1ac] sm:$0xf]
  %v145 = vld [vmem:[%s1 + $0x1b0] sm:$0xf]
  %v146 = vld [vmem:[%s1 + $0x1b4] sm:$0xf]
  %v147 = vld [vmem:[%s1 + $0x1b8] sm:$0xf]
  %v148 = vld [vmem:[%s1 + $0x1bc] sm:$0xf]
  %v149 = vld [vmem:[%s1 + $0x1c0] sm:$0xf]
  %v150 = vld [vmem:[%s1 + $0x1c4] sm:$0xf]
  %v151 = vld [vmem:[%s1 + $0x1c8] sm:$0xf]
  %v152 = vld [vmem:[%s1 + $0x1cc] sm:$0xf]
  %v153 = vld [vmem:[%s1 + $0x1d0] sm:$0xf]
  %v154 = vld [vmem:[%s1 + $0x1d4] sm:$0xf]
  %v155 = vld [vmem:[%s1 + $0x1d8] sm:$0xf]
  %v156 = vld [vmem:[%s1 + $0x1dc] sm:$0xf]
  %v157 = vld [vmem:[%s1 + $0x1e0] sm:$0xf]
  %v158 = vld [vmem:[%s1 + $0x1e4] sm:$0xf]
  %v159 = vld [vmem:[%s1 + $0x1e8] sm:$0xf]
  %v160 = vld [vmem:[%s1 + $0x1ec] sm:$0xf]
  %v161 = vld [vmem:[%s1 + $0x1f0] sm:$0xf]
  %v162 = vld [vmem:[%s1 + $0x1f4] sm:$0xf]
  %v163 = vld [vmem:[%s1 + $0x1f8] sm:$0xf]
  %v164 = vld [vmem:[%s1 + $0x1fc] sm:$0xf]
  %v165 = vld [vmem:[%s1 + $0x200] sm:$0xf]
  %v166 = vld [vmem:[%s1 + $0x204] sm:$0xf]
  %v167 = vld [vmem:[%s1 + $0x208] sm:$0xf]
  %v168 = vld [vmem:[%s1 + $0x20c] sm:$0xf]
  %v169 = vld [vmem:[%s1 + $0x210] sm:$0xf]
  %v170 = vld [vmem:[%s1 + $0x214] sm:$0xf]
  %v171 = vld [vmem:[%s1 + $0x218] sm:$0xf]
  %v172 = vld [vmem:[%s1 + $0x21c] sm:$0xf]
  %v173 = vld [vmem:[%s1 + $0x220] sm:$0xf]
  %v174 = vld [vmem:[%s1 + $0x224] sm:$0xf]
  %v175 = vld [vmem:[%s1 + $0x228] sm:$0xf]
  %v176 = vld [vmem:[%s1 + $0x22c] sm:$0xf]
  %v177 = vld [vmem:[%s1 + $0x230] sm:$0xf]
  %v178 = vld [vmem:[%s1 + $0x234] sm:$0xf]
  %v179 = vld [vmem:[%s1 + $0x238] sm:$0xf]
  %v180 = vld [vmem:[%s1 + $0x23c] sm:$0xf]
  %v181 = vld [vmem:[%s1 + $0x240] sm:$0xf]
  %v182 = vld [vmem:[%s1 + $0x244] sm:$0xf]
  %v183 = vld [vmem:[%s1 + $0x248] sm:$0xf]
  %v184 = vld [vmem:[%s1 + $0x24c] sm:$0xf]
  %v185 = vld [vmem:[%s1 + $0x250] sm:$0xf]
  %v186 = vld [vmem:[%s1 + $0x254] sm:$0xf]
  %v187 = vld [vmem:[%s1 + $0x258] sm:$0xf]
  %v188 = vld [vmem:[%s1 + $0x25c] sm:$0xf]
  %v189 = vld [vmem:[%s1 + $0x260] sm:$0xf]
  %v190 = vld [vmem:[%s1 + $0x264] sm:$0xf]
  %v191 = vld [vmem:[%s1 + $0x268] sm:$0xf]
  %v192 = vld [vmem:[%s1 + $0x26c] sm:$0xf]
  %v193 = vld [vmem:[%s1 + $0x270] sm:$0xf]
  %v194 = vld [vmem:[%s1 + $0x274] sm:$0xf]
  %v195 = vld [vmem:[%s1 + $0x278] sm:$0xf]
  %v196 = vld [vmem:[%s1 + $0x27c] sm:$0xf]
  %v197 = vld [vmem:[%s1 + $0x280] sm:$0xf]
  %v198 = vld [vmem:[%s1 + $0x284] sm:$0xf]
  %v199 = vld [vmem:[%s1 + $0x288] sm:$0xf]
  %v200 = vld [vmem:[%s1 + $0x28c] sm:$0xf]
  %v201 = vld [vmem:[%s1 + $0x290] sm:$0xf]
  %v202 = vld [vmem:[%s1 + $0x294] sm:$0xf]
  %v203 = vld [vmem:[%s1 + $0x298] sm:$0xf]
  %v204 = vld [vmem:[%s1 + $0x29c] sm:$0xf]
  %v205 = vld [vmem:[%s1 + $0x2a0] sm:$0xf]
  %v206 = vld [vmem:[%s1 + $0x2a4] sm:$0xf]
  %v207 = vld [vmem:[%s1 + $0x2a8] sm:$0xf]
  %v208 = vld [vmem:[%s1 + $0x2ac] sm:$0xf]
  %v209 = vld [vmem:[%s1 + $0x2b0] sm:$0xf]
  %v210 = vld [vmem:[%s1 + $0x2b4] sm:$0xf]
  %v211 = vld [vmem:[%s1 + $0x2b8] sm:$0xf]
  %v212 = vld [vmem:[%s1 + $0x2bc] sm:$0xf]
  %v213 = vld [vmem:[%s1 + $0x2c0] sm:$0xf]
  %v214 = vld [vmem:[%s1 + $0x2c4] sm:$0xf]
  %v215 = vld [vmem:[%s1 + $0x2c8] sm:$0xf]
  %v216 = vld [vmem:[%s1 + $0x2cc] sm:$0xf]
  %v217 = vld [vmem:[%s1 + $0x2d0] sm:$0xf]
  %v218 = vld [vmem:[%s1 + $0x2d4] sm:$0xf]
  %v219 = vld [vmem:[%s1 + $0x2d8] sm:$0xf]
  %v220 = vld [vmem:[%s1 + $0x2dc] sm:$0xf]
  %v221 = vld [vmem:[%s1 + $0x2e0] sm:$0xf]
  %v222 = vld [vmem:[%s1 + $0x2e4] sm:$0xf]
  %v223 = vld [vmem:[%s1 + $0x2e8] sm:$0xf]
  %v224 = vld [vmem:[%s1 + $0x2ec] sm:$0xf]
  %v225 = vld [vmem:[%s1 + $0x2f0] sm:$0xf]
  %v226 = vld [vmem:[%s1 + $0x2f4] sm:$0xf]
  %v227 = vld [vmem:[%s1 + $0x2f8] sm:$0xf]
  %v228 = vld [vmem:[%s1 + $0x2fc] sm:$0xf]
  %v229 = vld [vmem:[%s1 + $0x300] sm:$0xf]
  %v230 = vld [vmem:[%s1 + $0x304] sm:$0xf]
  %v231 = vld [vmem:[%s1 + $0x308] sm:$0xf]
  %v232 = vld [vmem:[%s1 + $0x30c] sm:$0xf]
  %v233 = vld [vmem:[%s1 + $0x310] sm:$0xf]
  %v234 = vld [vmem:[%s1 + $0x314] sm:$0xf]
  %v235 = vld [vmem:[%s1 + $0x318] sm:$0xf]
  %v236 = vld [vmem:[%s1 + $0x31c] sm:$0xf]
  %v237 = vld [vmem:[%s1 + $0x320] sm:$0xf]
  %v238 = vld [vmem:[%s1 + $0x324] sm:$0xf]
  %v239 = vld [vmem:[%s1 + $0x328] sm:$0xf]
  %v240 = vld [vmem:[%s1 + $0x32c] sm:$0xf]
  %v241 = vld [vmem:[%s1 + $0x330] sm:$0xf]
  %v242 = vld [vmem:[%s1 + $0x334] sm:$0xf]
  %v243 = vld [vmem:[%s1 + $0x338] sm:$0xf]
  %v244 = vld [vmem:[%s1 + $0x33c] sm:$0xf]
  %v245 = vld [vmem:[%s1 + $0x340] sm:$0xf]
  %v246 = vld [vmem:[%s1 + $0x344] sm:$0xf]
  %v247 = vld [vmem:[%s1 + $0x348] sm:$0xf]
  %v248 = vld [vmem:[%s1 + $0x34c] sm:$0xf]
  %v249 = vld [vmem:[%s1 + $0x350] sm:$0xf]
  %v250 = vld [vmem:[%s1 + $0x354] sm:$0xf]
  %v251 = vld [vmem:[%s1 + $0x358] sm:$0xf]
  %v252 = vld [vmem:[%s1 + $0x35c] sm:$0xf]
  %v253 = vld [vmem:[%s1 + $0x360] sm:$0xf]
  %v254 = vld [vmem:[%s1 + $0x364] sm:$0xf]
  %v255 = vld [vmem:[%s1 + $0x368] sm:$0xf]
  %v256 = vld [vmem:[%s1 + $0x36c] sm:$0xf]
  %v257 = vld [vmem:[%s1 + $0x370] sm:$0xf]
  %v258 = vld [vmem:[%s1 + $0x374] sm:$0xf]
  %v259 = vld [vmem:[%s1 + $0x378] sm:$0xf]
  %v260 = vld [vmem:[%s1 + $0x37c] sm:$0xf]
  %v261 = vld [vmem:[%s1 + $0x380] sm:$0xf]
  %v262 = vld [vmem:[%s1 + $0x384] sm:$0xf]
  %v263 = vld [vmem:[%s1 + $0x388] sm:$0xf]
  %v264 = vld [vmem:[%s1 + $0x38c] sm:$0xf]
  %v265 = vld [vmem:[%s1 + $0x390] sm:$0xf]
  %v266 = vld [vmem:[%s1 + $0x394] sm:$0xf]
  %v267 = vld [vmem:[%s1 + $0x398] sm:$0xf]
  %v268 = vld [vmem:[%s1 + $0x39c] sm:$0xf]
  %v269 = vld [vmem:[%s1 + $0x3a0] sm:$0xf]
  %v270 = vld [vmem:[%s1 + $0x3a4] sm:$0xf]
  %v271 = vld [vmem:[%s1 + $0x3a8] sm:$0xf]
  %v272 = vld [vmem:[%s1 + $0x3ac] sm:$0xf]
  %v273 = vld [vmem:[%s1 + $0x3b0] sm:$0xf]
  %v274 = vld [vmem:[%s1 + $0x3b4] sm:$0xf]
  %v275 = vld [vmem:[%s1 + $0x3b8] sm:$0xf]
  %v276 = vld [vmem:[%s1 + $0x3bc] sm:$0xf]
  %v277 = vld [vmem:[%s1 + $0x3c0] sm:$0xf]
  %v278 = vld [vmem:[%s1 + $0x3c4] sm:$0xf]
  %v279 = vld [vmem:[%s1 + $0x3c8] sm:$0xf]
  %v280 = vld [vmem:[%s1 + $0x3cc] sm:$0xf]
  %v281 = vld [vmem:[%s1 + $0x3d0] sm:$0xf]
  %v282 = vld [vmem:[%s1 + $0x3d4] sm:$0xf]
  %v283 = vld [vmem:[%s1 + $0x3d8] sm:$0xf]
  %v284 = vld [vmem:[%s1 + $0x3dc] sm:$0xf]
  %v285 = vld [vmem:[%s1 + $0x3e0] sm:$0xf]
  %v286 = vld [vmem:[%s1 + $0x3e4] sm:$0xf]
  %v287 = vld [vmem:[%s1 + $0x3e8] sm:$0xf]
  %v288 = vld [vmem:[%s1 + $0x3ec] sm:$0xf]
  %v289 = vld [vmem:[%s1 + $0x3f0] sm:$0xf]
  %v290 = vld [vmem:[%s1 + $0x3f4] sm:$0xf]
  %v291 = vld [vmem:[%s1 + $0x3f8] sm:$0xf]
  %v292 = vld [vmem:[%s1 + $0x3fc] sm:$0xf]
  %v317 = vunpack.c.l.b16 %v13
  %v318 = vunpack.c.h.b16 %v13
  %v319 = vunpack.c.l.b16 %v14
  %v320 = vunpack.c.h.b16 %v14
  %v321 = vunpack.c.l.b16 %v15
  %v322 = vunpack.c.h.b16 %v15
  %v323 = vunpack.c.l.b16 %v16
  %v324 = vunpack.c.h.b16 %v16
  %v325 = vunpack.c.l.b16 %v17
  %v326 = vunpack.c.h.b16 %v17
  %v327 = vunpack.c.l.b16 %v18
  %v328 = vunpack.c.h.b16 %v18
  %v329 = vunpack.c.l.b16 %v19
  %v330 = vunpack.c.h.b16 %v19
  %v331 = vunpack.c.l.b16 %v20
  %v332 = vunpack.c.h.b16 %v20
  %v333 = vunpack.c.l.b16 %v21
  %v334 = vunpack.c.h.b16 %v21
  %v335 = vunpack.c.l.b16 %v22
  %v336 = vunpack.c.h.b16 %v22
  %v337 = vunpack.c.l.b16 %v23
  %v338 = vunpack.c.h.b16 %v23
  %v339 = vunpack.c.l.b16 %v24
  %v340 = vunpack.c.h.b16 %v24
  %v341 = vunpack.c.l.b16 %v25
  %v342 = vunpack.c.h.b16 %v25
  %v343 = vunpack.c.l.b16 %v26
  %v344 = vunpack.c.h.b16 %v26
  %v345 = vunpack.c.l.b16 %v27
  %v346 = vunpack.c.h.b16 %v27
  %v347 = vunpack.c.l.b16 %v28
  %v348 = vunpack.c.h.b16 %v28
  %v349 = vunpack.c.l.b16 %v29
  %v350 = vunpack.c.h.b16 %v29
  %v351 = vunpack.c.l.b16 %v30
  %v352 = vunpack.c.h.b16 %v30
  %v353 = vunpack.c.l.b16 %v31
  %v354 = vunpack.c.h.b16 %v31
  %v355 = vunpack.c.l.b16 %v32
  %v356 = vunpack.c.h.b16 %v32
  %v357 = vunpack.c.l.b16 %v33
  %v358 = vunpack.c.h.b16 %v33
  %v359 = vunpack.c.l.b16 %v34
  %v360 = vunpack.c.h.b16 %v34
  %v361 = vunpack.c.l.b16 %v35
  %v362 = vunpack.c.h.b16 %v35
  %v363 = vunpack.c.l.b16 %v36
  %v364 = vunpack.c.h.b16 %v36
  %v365 = vpack.c.b16 %v333, %v317
  %v366 = vpack.c.b16 %v334, %v318
  %v367 = vpack.c.b16 %v335, %v319
  %v368 = vpack.c.b16 %v336, %v320
  %v369 = vpack.c.b16 %v337, %v321
  %v370 = vpack.c.b16 %v338, %v322
  %v371 = vpack.c.b16 %v339, %v323
  %v372 = vpack.c.b16 %v340, %v324
  %v373 = vpack.c.b16 %v341, %v325
  %v374 = vpack.c.b16 %v342, %v326
  %v375 = vpack.c.b16 %v343, %v327
  %v376 = vpack.c.b16 %v344, %v328
  %v377 = vpack.c.b16 %v345, %v329
  %v378 = vpack.c.b16 %v346, %v330
  %v379 = vpack.c.b16 %v347, %v331
  %v380 = vpack.c.b16 %v348, %v332
  %v381 = vpack.c.b16 %v349, %v349
  %v382 = vpack.c.b16 %v350, %v350
  %v383 = vpack.c.b16 %v351, %v351
  %v384 = vpack.c.b16 %v352, %v352
  %v385 = vpack.c.b16 %v353, %v353
  %v386 = vpack.c.b16 %v354, %v354
  %v387 = vpack.c.b16 %v355, %v355
  %v388 = vpack.c.b16 %v356, %v356
  %v389 = vpack.c.b16 %v357, %v357
  %v390 = vpack.c.b16 %v358, %v358
  %v391 = vpack.c.b16 %v359, %v359
  %v392 = vpack.c.b16 %v360, %v360
  %v393 = vpack.c.b16 %v361, %v361
  %v394 = vpack.c.b16 %v362, %v362
  %v395 = vpack.c.b16 %v363, %v363
  %v396 = vpack.c.b16 %v364, %v364
  %v685 = vunpack.c.l.b16 %v37
  %v686 = vunpack.c.l.b16 %v38
  %v687 = vunpack.c.l.b16 %v39
  %v688 = vunpack.c.l.b16 %v40
  %v689 = vunpack.c.l.b16 %v41
  %v690 = vunpack.c.l.b16 %v42
  %v691 = vunpack.c.l.b16 %v43
  %v692 = vunpack.c.l.b16 %v44
  %v693 = vunpack.c.l.b16 %v45
  %v694 = vunpack.c.l.b16 %v46
  %v695 = vunpack.c.l.b16 %v47
  %v696 = vunpack.c.l.b16 %v48
  %v697 = vunpack.c.l.b16 %v49
  %v698 = vunpack.c.l.b16 %v50
  %v699 = vunpack.c.l.b16 %v51
  %v700 = vunpack.c.l.b16 %v52
  %v701 = vunpack.c.l.b16 %v53
  %v702 = vunpack.c.l.b16 %v54
  %v703 = vunpack.c.l.b16 %v55
  %v704 = vunpack.c.l.b16 %v56
  %v705 = vunpack.c.l.b16 %v57
  %v706 = vunpack.c.l.b16 %v58
  %v707 = vunpack.c.l.b16 %v59
  %v708 = vunpack.c.l.b16 %v60
  %v709 = vunpack.c.l.b16 %v61
  %v710 = vunpack.c.l.b16 %v62
  %v711 = vunpack.c.l.b16 %v63
  %v712 = vunpack.c.l.b16 %v64
  %v713 = vunpack.c.l.b16 %v65
  %v714 = vunpack.c.l.b16 %v66
  %v715 = vunpack.c.l.b16 %v67
  %v716 = vunpack.c.l.b16 %v68
  %v717 = vunpack.c.l.b16 %v69
  %v718 = vunpack.c.l.b16 %v70
  %v719 = vunpack.c.l.b16 %v71
  %v720 = vunpack.c.l.b16 %v72
  %v721 = vunpack.c.l.b16 %v73
  %v722 = vunpack.c.l.b16 %v74
  %v723 = vunpack.c.l.b16 %v75
  %v724 = vunpack.c.l.b16 %v76
  %v725 = vunpack.c.l.b16 %v77
  %v726 = vunpack.c.l.b16 %v78
  %v727 = vunpack.c.l.b16 %v79
  %v728 = vunpack.c.l.b16 %v80
  %v729 = vunpack.c.l.b16 %v81
  %v730 = vunpack.c.l.b16 %v82
  %v731 = vunpack.c.l.b16 %v83
  %v732 = vunpack.c.l.b16 %v84
  %v733 = vunpack.c.l.b16 %v85
  %v734 = vunpack.c.l.b16 %v86
  %v735 = vunpack.c.l.b16 %v87
  %v736 = vunpack.c.l.b16 %v88
  %v737 = vunpack.c.l.b16 %v89
  %v738 = vunpack.c.l.b16 %v90
  %v739 = vunpack.c.l.b16 %v91
  %v740 = vunpack.c.l.b16 %v92
  %v741 = vunpack.c.l.b16 %v93
  %v742 = vunpack.c.l.b16 %v94
  %v743 = vunpack.c.l.b16 %v95
  %v744 = vunpack.c.l.b16 %v96
  %v745 = vunpack.c.l.b16 %v97
  %v746 = vunpack.c.l.b16 %v98
  %v747 = vunpack.c.l.b16 %v99
  %v748 = vunpack.c.l.b16 %v100
  %v749 = vunpack.c.l.b16 %v101
  %v750 = vunpack.c.l.b16 %v102
  %v751 = vunpack.c.l.b16 %v103
  %v752 = vunpack.c.l.b16 %v104
  %v753 = vunpack.c.l.b16 %v105
  %v754 = vunpack.c.l.b16 %v106
  %v755 = vunpack.c.l.b16 %v107
  %v756 = vunpack.c.l.b16 %v108
  %v757 = vunpack.c.l.b16 %v109
  %v758 = vunpack.c.l.b16 %v110
  %v759 = vunpack.c.l.b16 %v111
  %v760 = vunpack.c.l.b16 %v112
  %v761 = vunpack.c.l.b16 %v113
  %v762 = vunpack.c.l.b16 %v114
  %v763 = vunpack.c.l.b16 %v115
  %v764 = vunpack.c.l.b16 %v116
  %v765 = vunpack.c.l.b16 %v117
  %v766 = vunpack.c.l.b16 %v118
  %v767 = vunpack.c.l.b16 %v119
  %v768 = vunpack.c.l.b16 %v120
  %v769 = vunpack.c.l.b16 %v121
  %v770 = vunpack.c.l.b16 %v122
  %v771 = vunpack.c.l.b16 %v123
  %v772 = vunpack.c.l.b16 %v124
  %v773 = vunpack.c.l.b16 %v125
  %v774 = vunpack.c.l.b16 %v126
  %v775 = vunpack.c.l.b16 %v127
  %v776 = vunpack.c.l.b16 %v128
  %v777 = vunpack.c.l.b16 %v129
  %v778 = vunpack.c.l.b16 %v130
  %v779 = vunpack.c.l.b16 %v131
  %v780 = vunpack.c.l.b16 %v132
  %v781 = vunpack.c.l.b16 %v133
  %v782 = vunpack.c.l.b16 %v134
  %v783 = vunpack.c.l.b16 %v135
  %v784 = vunpack.c.l.b16 %v136
  %v785 = vunpack.c.l.b16 %v137
  %v786 = vunpack.c.l.b16 %v138
  %v787 = vunpack.c.l.b16 %v139
  %v788 = vunpack.c.l.b16 %v140
  %v789 = vunpack.c.l.b16 %v141
  %v790 = vunpack.c.l.b16 %v142
  %v791 = vunpack.c.l.b16 %v143
  %v792 = vunpack.c.l.b16 %v144
  %v793 = vunpack.c.l.b16 %v145
  %v794 = vunpack.c.l.b16 %v146
  %v795 = vunpack.c.l.b16 %v147
  %v796 = vunpack.c.l.b16 %v148
  %v797 = vunpack.c.l.b16 %v149
  %v798 = vunpack.c.l.b16 %v150
  %v799 = vunpack.c.l.b16 %v151
  %v800 = vunpack.c.l.b16 %v152
  %v801 = vunpack.c.l.b16 %v153
  %v802 = vunpack.c.l.b16 %v154
  %v803 = vunpack.c.l.b16 %v155
  %v804 = vunpack.c.l.b16 %v156
  %v805 = vunpack.c.l.b16 %v157
  %v806 = vunpack.c.l.b16 %v158
  %v807 = vunpack.c.l.b16 %v159
  %v808 = vunpack.c.l.b16 %v160
  %v809 = vunpack.c.l.b16 %v161
  %v810 = vunpack.c.l.b16 %v162
  %v811 = vunpack.c.l.b16 %v163
  %v812 = vunpack.c.l.b16 %v164
  %v813 = vunpack.c.l.b16 %v165
  %v814 = vunpack.c.l.b16 %v166
  %v815 = vunpack.c.l.b16 %v167
  %v816 = vunpack.c.l.b16 %v168
  %v817 = vunpack.c.l.b16 %v169
  %v818 = vunpack.c.l.b16 %v170
  %v819 = vunpack.c.l.b16 %v171
  %v820 = vunpack.c.l.b16 %v172
  %v821 = vunpack.c.l.b16 %v173
  %v822 = vunpack.c.l.b16 %v174
  %v823 = vunpack.c.l.b16 %v175
  %v824 = vunpack.c.l.b16 %v176
  %v825 = vunpack.c.l.b16 %v177
  %v826 = vunpack.c.l.b16 %v178
  %v827 = vunpack.c.l.b16 %v179
  %v828 = vunpack.c.l.b16 %v180
  %v829 = vunpack.c.l.b16 %v181
  %v830 = vunpack.c.l.b16 %v182
  %v831 = vunpack.c.l.b16 %v183
  %v832 = vunpack.c.l.b16 %v184
  %v833 = vunpack.c.l.b16 %v185
  %v834 = vunpack.c.l.b16 %v186
  %v835 = vunpack.c.l.b16 %v187
  %v836 = vunpack.c.l.b16 %v188
  %v837 = vunpack.c.l.b16 %v189
  %v838 = vunpack.c.l.b16 %v190
  %v839 = vunpack.c.l.b16 %v191
  %v840 = vunpack.c.l.b16 %v192
  %v841 = vunpack.c.l.b16 %v193
  %v842 = vunpack.c.l.b16 %v194
  %v843 = vunpack.c.l.b16 %v195
  %v844 = vunpack.c.l.b16 %v196
  %v845 = vunpack.c.l.b16 %v197
  %v846 = vunpack.c.l.b16 %v198
  %v847 = vunpack.c.l.b16 %v199
  %v848 = vunpack.c.l.b16 %v200
  %v849 = vunpack.c.l.b16 %v201
  %v850 = vunpack.c.l.b16 %v202
  %v851 = vunpack.c.l.b16 %v203
  %v852 = vunpack.c.l.b16 %v204
  %v853 = vunpack.c.l.b16 %v205
  %v854 = vunpack.c.l.b16 %v206
  %v855 = vunpack.c.l.b16 %v207
  %v856 = vunpack.c.l.b16 %v208
  %v857 = vunpack.c.l.b16 %v209
  %v858 = vunpack.c.l.b16 %v210
  %v859 = vunpack.c.l.b16 %v211
  %v860 = vunpack.c.l.b16 %v212
  %v861 = vunpack.c.l.b16 %v213
  %v862 = vunpack.c.l.b16 %v214
  %v863 = vunpack.c.l.b16 %v215
  %v864 = vunpack.c.l.b16 %v216
  %v865 = vunpack.c.l.b16 %v217
  %v866 = vunpack.c.l.b16 %v218
  %v867 = vunpack.c.l.b16 %v219
  %v868 = vunpack.c.l.b16 %v220
  %v869 = vunpack.c.l.b16 %v221
  %v870 = vunpack.c.l.b16 %v222
  %v871 = vunpack.c.l.b16 %v223
  %v872 = vunpack.c.l.b16 %v224
  %v873 = vunpack.c.l.b16 %v225
  %v874 = vunpack.c.l.b16 %v226
  %v875 = vunpack.c.l.b16 %v227
  %v876 = vunpack.c.l.b16 %v228
  %v877 = vunpack.c.l.b16 %v229
  %v878 = vunpack.c.l.b16 %v230
  %v879 = vunpack.c.l.b16 %v231
  %v880 = vunpack.c.l.b16 %v232
  %v881 = vunpack.c.l.b16 %v233
  %v882 = vunpack.c.l.b16 %v234
  %v883 = vunpack.c.l.b16 %v235
  %v884 = vunpack.c.l.b16 %v236
  %v885 = vunpack.c.l.b16 %v237
  %v886 = vunpack.c.l.b16 %v238
  %v887 = vunpack.c.l.b16 %v239
  %v888 = vunpack.c.l.b16 %v240
  %v889 = vunpack.c.l.b16 %v241
  %v890 = vunpack.c.l.b16 %v242
  %v891 = vunpack.c.l.b16 %v243
  %v892 = vunpack.c.l.b16 %v244
  %v893 = vunpack.c.l.b16 %v245
  %v894 = vunpack.c.l.b16 %v246
  %v895 = vunpack.c.l.b16 %v247
  %v896 = vunpack.c.l.b16 %v248
  %v897 = vunpack.c.l.b16 %v249
  %v898 = vunpack.c.l.b16 %v250
  %v899 = vunpack.c.l.b16 %v251
  %v900 = vunpack.c.l.b16 %v252
  %v901 = vunpack.c.l.b16 %v253
  %v902 = vunpack.c.l.b16 %v254
  %v903 = vunpack.c.l.b16 %v255
  %v904 = vunpack.c.l.b16 %v256
  %v905 = vunpack.c.l.b16 %v257
  %v906 = vunpack.c.l.b16 %v258
  %v907 = vunpack.c.l.b16 %v259
  %v908 = vunpack.c.l.b16 %v260
  %v909 = vunpack.c.l.b16 %v261
  %v910 = vunpack.c.l.b16 %v262
  %v911 = vunpack.c.l.b16 %v263
  %v912 = vunpack.c.l.b16 %v264
  %v913 = vunpack.c.l.b16 %v265
  %v914 = vunpack.c.l.b16 %v266
  %v915 = vunpack.c.l.b16 %v267
  %v916 = vunpack.c.l.b16 %v268
  %v917 = vunpack.c.l.b16 %v269
  %v918 = vunpack.c.l.b16 %v270
  %v919 = vunpack.c.l.b16 %v271
  %v920 = vunpack.c.l.b16 %v272
  %v921 = vunpack.c.l.b16 %v273
  %v922 = vunpack.c.l.b16 %v274
  %v923 = vunpack.c.l.b16 %v275
  %v924 = vunpack.c.l.b16 %v276
  %v925 = vunpack.c.l.b16 %v277
  %v926 = vunpack.c.l.b16 %v278
  %v927 = vunpack.c.l.b16 %v279
  %v928 = vunpack.c.l.b16 %v280
  %v929 = vunpack.c.l.b16 %v281
  %v930 = vunpack.c.l.b16 %v282
  %v931 = vunpack.c.l.b16 %v283
  %v932 = vunpack.c.l.b16 %v284
  %v933 = vunpack.c.l.b16 %v285
  %v934 = vunpack.c.l.b16 %v286
  %v935 = vunpack.c.l.b16 %v287
  %v936 = vunpack.c.l.b16 %v288
  %v937 = vunpack.c.l.b16 %v289
  %v938 = vunpack.c.l.b16 %v290
  %v939 = vunpack.c.l.b16 %v291
  %v940 = vunpack.c.l.b16 %v292
  %v941 = vpack.c.b16 %v686, %v685
  %v942 = vpack.c.b16 %v688, %v687
  %v943 = vpack.c.b16 %v690, %v689
  %v944 = vpack.c.b16 %v692, %v691
  %v945 = vpack.c.b16 %v694, %v693
  %v946 = vpack.c.b16 %v696, %v695
  %v947 = vpack.c.b16 %v698, %v697
  %v948 = vpack.c.b16 %v700, %v699
  %v949 = vpack.c.b16 %v702, %v701
  %v950 = vpack.c.b16 %v704, %v703
  %v951 = vpack.c.b16 %v706, %v705
  %v952 = vpack.c.b16 %v708, %v707
  %v953 = vpack.c.b16 %v710, %v709
  %v954 = vpack.c.b16 %v712, %v711
  %v955 = vpack.c.b16 %v714, %v713
  %v956 = vpack.c.b16 %v716, %v715
  %v957 = vpack.c.b16 %v718, %v717
  %v958 = vpack.c.b16 %v720, %v719
  %v959 = vpack.c.b16 %v722, %v721
  %v960 = vpack.c.b16 %v724, %v723
  %v961 = vpack.c.b16 %v726, %v725
  %v962 = vpack.c.b16 %v728, %v727
  %v963 = vpack.c.b16 %v730, %v729
  %v964 = vpack.c.b16 %v732, %v731
  %v965 = vpack.c.b16 %v734, %v733
  %v966 = vpack.c.b16 %v736, %v735
  %v967 = vpack.c.b16 %v738, %v737
  %v968 = vpack.c.b16 %v740, %v739
  %v969 = vpack.c.b16 %v742, %v741
  %v970 = vpack.c.b16 %v744, %v743
  %v971 = vpack.c.b16 %v746, %v745
  %v972 = vpack.c.b16 %v748, %v747
  %v973 = vpack.c.b16 %v750, %v749
  %v974 = vpack.c.b16 %v752, %v751
  %v975 = vpack.c.b16 %v754, %v753
  %v976 = vpack.c.b16 %v756, %v755
  %v977 = vpack.c.b16 %v758, %v757
  %v978 = vpack.c.b16 %v760, %v759
  %v979 = vpack.c.b16 %v762, %v761
  %v980 = vpack.c.b16 %v764, %v763
  %v981 = vpack.c.b16 %v766, %v765
  %v982 = vpack.c.b16 %v768, %v767
  %v983 = vpack.c.b16 %v770, %v769
  %v984 = vpack.c.b16 %v772, %v771
  %v985 = vpack.c.b16 %v774, %v773
  %v986 = vpack.c.b16 %v776, %v775
  %v987 = vpack.c.b16 %v778, %v777
  %v988 = vpack.c.b16 %v780, %v779
  %v989 = vpack.c.b16 %v782, %v781
  %v990 = vpack.c.b16 %v784, %v783
  %v991 = vpack.c.b16 %v786, %v785
  %v992 = vpack.c.b16 %v788, %v787
  %v993 = vpack.c.b16 %v790, %v789
  %v994 = vpack.c.b16 %v792, %v791
  %v995 = vpack.c.b16 %v794, %v793
  %v996 = vpack.c.b16 %v796, %v795
  %v997 = vpack.c.b16 %v798, %v797
  %v998 = vpack.c.b16 %v800, %v799
  %v999 = vpack.c.b16 %v802, %v801
  %v1000 = vpack.c.b16 %v804, %v803
  %v1001 = vpack.c.b16 %v806, %v805
  %v1002 = vpack.c.b16 %v808, %v807
  %v1003 = vpack.c.b16 %v810, %v809
  %v1004 = vpack.c.b16 %v812, %v811
  %v1005 = vpack.c.b16 %v814, %v813
  %v1006 = vpack.c.b16 %v816, %v815
  %v1007 = vpack.c.b16 %v818, %v817
  %v1008 = vpack.c.b16 %v820, %v819
  %v1009 = vpack.c.b16 %v822, %v821
  %v1010 = vpack.c.b16 %v824, %v823
  %v1011 = vpack.c.b16 %v826, %v825
  %v1012 = vpack.c.b16 %v828, %v827
  %v1013 = vpack.c.b16 %v830, %v829
  %v1014 = vpack.c.b16 %v832, %v831
  %v1015 = vpack.c.b16 %v834, %v833
  %v1016 = vpack.c.b16 %v836, %v835
  %v1017 = vpack.c.b16 %v838, %v837
  %v1018 = vpack.c.b16 %v840, %v839
  %v1019 = vpack.c.b16 %v842, %v841
  %v1020 = vpack.c.b16 %v844, %v843
  %v1021 = vpack.c.b16 %v846, %v845
  %v1022 = vpack.c.b16 %v848, %v847
  %v1023 = vpack.c.b16 %v850, %v849
  %v1024 = vpack.c.b16 %v852, %v851
  %v1025 = vpack.c.b16 %v854, %v853
  %v1026 = vpack.c.b16 %v856, %v855
  %v1027 = vpack.c.b16 %v858, %v857
  %v1028 = vpack.c.b16 %v860, %v859
  %v1029 = vpack.c.b16 %v862, %v861
  %v1030 = vpack.c.b16 %v864, %v863
  %v1031 = vpack.c.b16 %v866, %v865
  %v1032 = vpack.c.b16 %v868, %v867
  %v1033 = vpack.c.b16 %v870, %v869
  %v1034 = vpack.c.b16 %v872, %v871
  %v1035 = vpack.c.b16 %v874, %v873
  %v1036 = vpack.c.b16 %v876, %v875
  %v1037 = vpack.c.b16 %v878, %v877
  %v1038 = vpack.c.b16 %v880, %v879
  %v1039 = vpack.c.b16 %v882, %v881
  %v1040 = vpack.c.b16 %v884, %v883
  %v1041 = vpack.c.b16 %v886, %v885
  %v1042 = vpack.c.b16 %v888, %v887
  %v1043 = vpack.c.b16 %v890, %v889
  %v1044 = vpack.c.b16 %v892, %v891
  %v1045 = vpack.c.b16 %v894, %v893
  %v1046 = vpack.c.b16 %v896, %v895
  %v1047 = vpack.c.b16 %v898, %v897
  %v1048 = vpack.c.b16 %v900, %v899
  %v1049 = vpack.c.b16 %v902, %v901
  %v1050 = vpack.c.b16 %v904, %v903
  %v1051 = vpack.c.b16 %v906, %v905
  %v1052 = vpack.c.b16 %v908, %v907
  %v1053 = vpack.c.b16 %v910, %v909
  %v1054 = vpack.c.b16 %v912, %v911
  %v1055 = vpack.c.b16 %v914, %v913
  %v1056 = vpack.c.b16 %v916, %v915
  %v1057 = vpack.c.b16 %v918, %v917
  %v1058 = vpack.c.b16 %v920, %v919
  %v1059 = vpack.c.b16 %v922, %v921
  %v1060 = vpack.c.b16 %v924, %v923
  %v1061 = vpack.c.b16 %v926, %v925
  %v1062 = vpack.c.b16 %v928, %v927
  %v1063 = vpack.c.b16 %v930, %v929
  %v1064 = vpack.c.b16 %v932, %v931
  %v1065 = vpack.c.b16 %v934, %v933
  %v1066 = vpack.c.b16 %v936, %v935
  %v1067 = vpack.c.b16 %v938, %v937
  %v1068 = vpack.c.b16 %v940, %v939
  %1197 = vmatpush.bf16.msra.mxu0 %v948
  %1198 = vmatpush.bf16.msra.mxu0 %v947
  %1199 = vmatpush.bf16.msra.mxu0 %v946
  %1200 = vmatpush.bf16.msra.mxu0 %v945
  %1201 = vmatpush.bf16.msra.mxu0 %v944
  %1202 = vmatpush.bf16.msra.mxu0 %v943
  %1203 = vmatpush.bf16.msra.mxu0 %v942
  %1204 = vmatpush.bf16.msra.mxu0 %v941
  %1205 = vmatmul.bf16.gmra.mxu0 %v365
  %v1206 = vpop.f32.mrf.mxu0
  %v1207 = vadd.f32 0.0, %v1206
  %v1208 = vpop.f32.mrf.mxu0
  %v1209 = vadd.f32 0.0, %v1208
  %1210 = vmatmul.bf16.gmra.mxu0 %v381
  %v1211 = vpop.f32.mrf.mxu0
  %v1212 = vadd.f32 0.0, %v1211
  %v1213 = vpop.f32.mrf.mxu0
  %1214 = vdwg.mxu0
  %1215 = vmatpush.bf16.msra.mxu0 %v956
  %1216 = vmatpush.bf16.msra.mxu0 %v955
  %1217 = vmatpush.bf16.msra.mxu0 %v954
  %1218 = vmatpush.bf16.msra.mxu0 %v953
  %1219 = vmatpush.bf16.msra.mxu0 %v952
  %1220 = vmatpush.bf16.msra.mxu0 %v951
  %1221 = vmatpush.bf16.msra.mxu0 %v950
  %1222 = vmatpush.bf16.msra.mxu0 %v949
  %1223 = vmatmul.bf16.gmra.mxu0 %v366
  %v1224 = vpop.f32.mrf.mxu0
  %v1225 = vadd.f32 %v1207, %v1224
  %v1226 = vpop.f32.mrf.mxu0
  %v1227 = vadd.f32 %v1209, %v1226
  %1228 = vmatmul.bf16.gmra.mxu0 %v382
  %v1229 = vpop.f32.mrf.mxu0
  %v1230 = vadd.f32 %v1212, %v1229
  %v1231 = vpop.f32.mrf.mxu0
  %1232 = vdwg.mxu0
  %1233 = vmatpush.bf16.msra.mxu0 %v964
  %1234 = vmatpush.bf16.msra.mxu0 %v963
  %1235 = vmatpush.bf16.msra.mxu0 %v962
  %1236 = vmatpush.bf16.msra.mxu0 %v961
  %1237 = vmatpush.bf16.msra.mxu0 %v960
  %1238 = vmatpush.bf16.msra.mxu0 %v959
  %1239 = vmatpush.bf16.msra.mxu0 %v958
  %1240 = vmatpush.bf16.msra.mxu0 %v957
  %1241 = vmatmul.bf16.gmra.mxu0 %v367
  %v1242 = vpop.f32.mrf.mxu0
  %v1243 = vadd.f32 %v1225, %v1242
  %v1244 = vpop.f32.mrf.mxu0
  %v1245 = vadd.f32 %v1227, %v1244
  %1246 = vmatmul.bf16.gmra.mxu0 %v383
  %v1247 = vpop.f32.mrf.mxu0
  %v1248 = vadd.f32 %v1230, %v1247
  %v1249 = vpop.f32.mrf.mxu0
  %1250 = vdwg.mxu0
  %1251 = vmatpush.bf16.msra.mxu0 %v972
  %1252 = vmatpush.bf16.msra.mxu0 %v971
  %1253 = vmatpush.bf16.msra.mxu0 %v970
  %1254 = vmatpush.bf16.msra.mxu0 %v969
  %1255 = vmatpush.bf16.msra.mxu0 %v968
  %1256 = vmatpush.bf16.msra.mxu0 %v967
  %1257 = vmatpush.bf16.msra.mxu0 %v966
  %1258 = vmatpush.bf16.msra.mxu0 %v965
  %1259 = vmatmul.bf16.gmra.mxu0 %v368
  %v1260 = vpop.f32.mrf.mxu0
  %v1261 = vadd.f32 %v1243, %v1260
  %v1262 = vpop.f32.mrf.mxu0
  %v1263 = vadd.f32 %v1245, %v1262
  %1264 = vmatmul.bf16.gmra.mxu0 %v384
  %v1265 = vpop.f32.mrf.mxu0
  %v1266 = vadd.f32 %v1248, %v1265
  %v1267 = vpop.f32.mrf.mxu0
  %1268 = vdwg.mxu0
  %1269 = vmatpush.bf16.msra.mxu0 %v980
  %1270 = vmatpush.bf16.msra.mxu0 %v979
  %1271 = vmatpush.bf16.msra.mxu0 %v978
  %1272 = vmatpush.bf16.msra.mxu0 %v977
  %1273 = vmatpush.bf16.msra.mxu0 %v976
  %1274 = vmatpush.bf16.msra.mxu0 %v975
  %1275 = vmatpush.bf16.msra.mxu0 %v974
  %1276 = vmatpush.bf16.msra.mxu0 %v973
  %1277 = vmatmul.bf16.gmra.mxu0 %v369
  %v1278 = vpop.f32.mrf.mxu0
  %v1279 = vadd.f32 %v1261, %v1278
  %v1280 = vpop.f32.mrf.mxu0
  %v1281 = vadd.f32 %v1263, %v1280
  %1282 = vmatmul.bf16.gmra.mxu0 %v385
  %v1283 = vpop.f32.mrf.mxu0
  %v1284 = vadd.f32 %v1266, %v1283
  %v1285 = vpop.f32.mrf.mxu0
  %1286 = vdwg.mxu0
  %1287 = vmatpush.bf16.msra.mxu0 %v988
  %1288 = vmatpush.bf16.msra.mxu0 %v987
  %1289 = vmatpush.bf16.msra.mxu0 %v986
  %1290 = vmatpush.bf16.msra.mxu0 %v985
  %1291 = vmatpush.bf16.msra.mxu0 %v984
  %1292 = vmatpush.bf16.msra.mxu0 %v983
  %1293 = vmatpush.bf16.msra.mxu0 %v982
  %1294 = vmatpush.bf16.msra.mxu0 %v981
  %1295 = vmatmul.bf16.gmra.mxu0 %v370
  %v1296 = vpop.f32.mrf.mxu0
  %v1297 = vadd.f32 %v1279, %v1296
  %v1298 = vpop.f32.mrf.mxu0
  %v1299 = vadd.f32 %v1281, %v1298
  %1300 = vmatmul.bf16.gmra.mxu0 %v386
  %v1301 = vpop.f32.mrf.mxu0
  %v1302 = vadd.f32 %v1284, %v1301
  %v1303 = vpop.f32.mrf.mxu0
  %1304 = vdwg.mxu0
  %1305 = vmatpush.bf16.msra.mxu0 %v996
  %1306 = vmatpush.bf16.msra.mxu0 %v995
  %1307 = vmatpush.bf16.msra.mxu0 %v994
  %1308 = vmatpush.bf16.msra.mxu0 %v993
  %1309 = vmatpush.bf16.msra.mxu0 %v992
  %1310 = vmatpush.bf16.msra.mxu0 %v991
  %1311 = vmatpush.bf16.msra.mxu0 %v990
  %1312 = vmatpush.bf16.msra.mxu0 %v989
  %1313 = vmatmul.bf16.gmra.mxu0 %v371
  %v1314 = vpop.f32.mrf.mxu0
  %v1315 = vadd.f32 %v1297, %v1314
  %v1316 = vpop.f32.mrf.mxu0
  %v1317 = vadd.f32 %v1299, %v1316
  %1318 = vmatmul.bf16.gmra.mxu0 %v387
  %v1319 = vpop.f32.mrf.mxu0
  %v1320 = vadd.f32 %v1302, %v1319
  %v1321 = vpop.f32.mrf.mxu0
  %1322 = vdwg.mxu0
  %1323 = vmatpush.bf16.msra.mxu0 %v1004
  %1324 = vmatpush.bf16.msra.mxu0 %v1003
  %1325 = vmatpush.bf16.msra.mxu0 %v1002
  %1326 = vmatpush.bf16.msra.mxu0 %v1001
  %1327 = vmatpush.bf16.msra.mxu0 %v1000
  %1328 = vmatpush.bf16.msra.mxu0 %v999
  %1329 = vmatpush.bf16.msra.mxu0 %v998
  %1330 = vmatpush.bf16.msra.mxu0 %v997
  %1331 = vmatmul.bf16.gmra.mxu0 %v372
  %v1332 = vpop.f32.mrf.mxu0
  %v1333 = vadd.f32 %v1315, %v1332
  %v1334 = vpop.f32.mrf.mxu0
  %v1335 = vadd.f32 %v1317, %v1334
  %1336 = vmatmul.bf16.gmra.mxu0 %v388
  %v1337 = vpop.f32.mrf.mxu0
  %v1338 = vadd.f32 %v1320, %v1337
  %v1339 = vpop.f32.mrf.mxu0
  %1340 = vdwg.mxu0
  %1341 = vmatpush.bf16.msra.mxu0 %v1012
  %1342 = vmatpush.bf16.msra.mxu0 %v1011
  %1343 = vmatpush.bf16.msra.mxu0 %v1010
  %1344 = vmatpush.bf16.msra.mxu0 %v1009
  %1345 = vmatpush.bf16.msra.mxu0 %v1008
  %1346 = vmatpush.bf16.msra.mxu0 %v1007
  %1347 = vmatpush.bf16.msra.mxu0 %v1006
  %1348 = vmatpush.bf16.msra.mxu0 %v1005
  %1349 = vmatmul.bf16.gmra.mxu0 %v373
  %v1350 = vpop.f32.mrf.mxu0
  %v1351 = vadd.f32 %v1333, %v1350
  %v1352 = vpop.f32.mrf.mxu0
  %v1353 = vadd.f32 %v1335, %v1352
  %1354 = vmatmul.bf16.gmra.mxu0 %v389
  %v1355 = vpop.f32.mrf.mxu0
  %v1356 = vadd.f32 %v1338, %v1355
  %v1357 = vpop.f32.mrf.mxu0
  %1358 = vdwg.mxu0
  %1359 = vmatpush.bf16.msra.mxu0 %v1020
  %1360 = vmatpush.bf16.msra.mxu0 %v1019
  %1361 = vmatpush.bf16.msra.mxu0 %v1018
  %1362 = vmatpush.bf16.msra.mxu0 %v1017
  %1363 = vmatpush.bf16.msra.mxu0 %v1016
  %1364 = vmatpush.bf16.msra.mxu0 %v1015
  %1365 = vmatpush.bf16.msra.mxu0 %v1014
  %1366 = vmatpush.bf16.msra.mxu0 %v1013
  %1367 = vmatmul.bf16.gmra.mxu0 %v374
  %v1368 = vpop.f32.mrf.mxu0
  %v1369 = vadd.f32 %v1351, %v1368
  %v1370 = vpop.f32.mrf.mxu0
  %v1371 = vadd.f32 %v1353, %v1370
  %1372 = vmatmul.bf16.gmra.mxu0 %v390
  %v1373 = vpop.f32.mrf.mxu0
  %v1374 = vadd.f32 %v1356, %v1373
  %v1375 = vpop.f32.mrf.mxu0
  %1376 = vdwg.mxu0
  %1377 = vmatpush.bf16.msra.mxu0 %v1028
  %1378 = vmatpush.bf16.msra.mxu0 %v1027
  %1379 = vmatpush.bf16.msra.mxu0 %v1026
  %1380 = vmatpush.bf16.msra.mxu0 %v1025
  %1381 = vmatpush.bf16.msra.mxu0 %v1024
  %1382 = vmatpush.bf16.msra.mxu0 %v1023
  %1383 = vmatpush.bf16.msra.mxu0 %v1022
  %1384 = vmatpush.bf16.msra.mxu0 %v1021
  %1385 = vmatmul.bf16.gmra.mxu0 %v375
  %v1386 = vpop.f32.mrf.mxu0
  %v1387 = vadd.f32 %v1369, %v1386
  %v1388 = vpop.f32.mrf.mxu0
  %v1389 = vadd.f32 %v1371, %v1388
  %1390 = vmatmul.bf16.gmra.mxu0 %v391
  %v1391 = vpop.f32.mrf.mxu0
  %v1392 = vadd.f32 %v1374, %v1391
  %v1393 = vpop.f32.mrf.mxu0
  %1394 = vdwg.mxu0
  %1395 = vmatpush.bf16.msra.mxu0 %v1036
  %1396 = vmatpush.bf16.msra.mxu0 %v1035
  %1397 = vmatpush.bf16.msra.mxu0 %v1034
  %1398 = vmatpush.bf16.msra.mxu0 %v1033
  %1399 = vmatpush.bf16.msra.mxu0 %v1032
  %1400 = vmatpush.bf16.msra.mxu0 %v1031
  %1401 = vmatpush.bf16.msra.mxu0 %v1030
  %1402 = vmatpush.bf16.msra.mxu0 %v1029
  %1403 = vmatmul.bf16.gmra.mxu0 %v376
  %v1404 = vpop.f32.mrf.mxu0
  %v1405 = vadd.f32 %v1387, %v1404
  %v1406 = vpop.f32.mrf.mxu0
  %v1407 = vadd.f32 %v1389, %v1406
  %1408 = vmatmul.bf16.gmra.mxu0 %v392
  %v1409 = vpop.f32.mrf.mxu0
  %v1410 = vadd.f32 %v1392, %v1409
  %v1411 = vpop.f32.mrf.mxu0
  %1412 = vdwg.mxu0
  %1413 = vmatpush.bf16.msra.mxu0 %v1044
  %1414 = vmatpush.bf16.msra.mxu0 %v1043
  %1415 = vmatpush.bf16.msra.mxu0 %v1042
  %1416 = vmatpush.bf16.msra.mxu0 %v1041
  %1417 = vmatpush.bf16.msra.mxu0 %v1040
  %1418 = vmatpush.bf16.msra.mxu0 %v1039
  %1419 = vmatpush.bf16.msra.mxu0 %v1038
  %1420 = vmatpush.bf16.msra.mxu0 %v1037
  %1421 = vmatmul.bf16.gmra.mxu0 %v377
  %v1422 = vpop.f32.mrf.mxu0
  %v1423 = vadd.f32 %v1405, %v1422
  %v1424 = vpop.f32.mrf.mxu0
  %v1425 = vadd.f32 %v1407, %v1424
  %1426 = vmatmul.bf16.gmra.mxu0 %v393
  %v1427 = vpop.f32.mrf.mxu0
  %v1428 = vadd.f32 %v1410, %v1427
  %v1429 = vpop.f32.mrf.mxu0
  %1430 = vdwg.mxu0
  %1431 = vmatpush.bf16.msra.mxu0 %v1052
  %1432 = vmatpush.bf16.msra.mxu0 %v1051
  %1433 = vmatpush.bf16.msra.mxu0 %v1050
  %1434 = vmatpush.bf16.msra.mxu0 %v1049
  %1435 = vmatpush.bf16.msra.mxu0 %v1048
  %1436 = vmatpush.bf16.msra.mxu0 %v1047
  %1437 = vmatpush.bf16.msra.mxu0 %v1046
  %1438 = vmatpush.bf16.msra.mxu0 %v1045
  %1439 = vmatmul.bf16.gmra.mxu0 %v378
  %v1440 = vpop.f32.mrf.mxu0
  %v1441 = vadd.f32 %v1423, %v1440
  %v1442 = vpop.f32.mrf.mxu0
  %v1443 = vadd.f32 %v1425, %v1442
  %1444 = vmatmul.bf16.gmra.mxu0 %v394
  %v1445 = vpop.f32.mrf.mxu0
  %v1446 = vadd.f32 %v1428, %v1445
  %v1447 = vpop.f32.mrf.mxu0
  %1448 = vdwg.mxu0
  %1449 = vmatpush.bf16.msra.mxu0 %v1060
  %1450 = vmatpush.bf16.msra.mxu0 %v1059
  %1451 = vmatpush.bf16.msra.mxu0 %v1058
  %1452 = vmatpush.bf16.msra.mxu0 %v1057
  %1453 = vmatpush.bf16.msra.mxu0 %v1056
  %1454 = vmatpush.bf16.msra.mxu0 %v1055
  %1455 = vmatpush.bf16.msra.mxu0 %v1054
  %1456 = vmatpush.bf16.msra.mxu0 %v1053
  %1457 = vmatmul.bf16.gmra.mxu0 %v379
  %v1458 = vpop.f32.mrf.mxu0
  %v1459 = vadd.f32 %v1441, %v1458
  %v1460 = vpop.f32.mrf.mxu0
  %v1461 = vadd.f32 %v1443, %v1460
  %1462 = vmatmul.bf16.gmra.mxu0 %v395
  %v1463 = vpop.f32.mrf.mxu0
  %v1464 = vadd.f32 %v1446, %v1463
  %v1465 = vpop.f32.mrf.mxu0
  %1466 = vdwg.mxu0
  %1467 = vmatpush.bf16.msra.mxu0 %v1068
  %1468 = vmatpush.bf16.msra.mxu0 %v1067
  %1469 = vmatpush.bf16.msra.mxu0 %v1066
  %1470 = vmatpush.bf16.msra.mxu0 %v1065
  %1471 = vmatpush.bf16.msra.mxu0 %v1064
  %1472 = vmatpush.bf16.msra.mxu0 %v1063
  %1473 = vmatpush.bf16.msra.mxu0 %v1062
  %1474 = vmatpush.bf16.msra.mxu0 %v1061
  %1475 = vmatmul.bf16.gmra.mxu0 %v380
  %v1476 = vpop.f32.mrf.mxu0
  %v1477 = vadd.f32 %v1459, %v1476
  %v1478 = vpop.f32.mrf.mxu0
  %v1479 = vadd.f32 %v1461, %v1478
  %1480 = vmatmul.bf16.gmra.mxu0 %v396
  %v1481 = vpop.f32.mrf.mxu0
  %v1482 = vadd.f32 %v1464, %v1481
  %v1483 = vpop.f32.mrf.mxu0
  %1484 = vdwg.mxu0
  %v1485 = vpack.c.bf16 %v1477, %v1477
  %v1486 = vpack.c.bf16 %v1479, %v1479
  %v1487 = vpack.c.bf16 %v1482, %v1482
  %1488 = vst [vmem:[%s2] sm:$0xf] %v1485
  %1489 = vst [vmem:[%s2 + $0x4] sm:$0xf] %v1486
  %1490 = vst [vmem:[%s2 + $0x8] sm:$0x1] %v1487
  %s1491 = smul.u32 0, 18
  %v1492 = vlaneseq
  %v1493 = vshrl.u32 %v1492, 7
  %v1494 = vadd.s32 %v1493, 8
  %v1495 = vadd.s32 %v1493, 16
  %v1496 = vstv %s1491
  %v1497 = vadd.s32 %v1496, %v1493
  %v1498 = vadd.s32 %v1496, %v1494
  %v1499 = vadd.s32 %v1496, %v1495
  %vm1500 = vcmp.lt.s32.totalorder %v1497, 18
  %vm1501 = vcmp.lt.s32.totalorder %v1498, 18
  %vm1502 = vcmp.lt.s32.totalorder %v1499, 18
  %v1503 = vsel %vm1500, 1, 0
  %v1504 = vsel %vm1501, 1, 0
  %v1505 = vsel %vm1502, 1, 0
  %vm1506 = vcmp.eq.s32.totalorder %v1503, 1
  %vm1507 = vcmp.eq.s32.totalorder %v1504, 1
  %vm1508 = vcmp.eq.s32.totalorder %v1505, 1
  %v1509 = vsel %vm1506, %v1477, 0.0
  %v1510 = vsel %vm1507, %v1479, 0.0
  %v1511 = vsel %vm1508, %v1482, 0.0
  %v1512 = vadd.f32 %v1509, %v1510
  %vm1513 = vcmask 1041408
  %v1514 = vsel %vm1513, %v1511, 0.0
  %v1515 = vadd.f32 %v1512, %v1514
  %v1516 = vrot.slane %v1515, 4
  %v1517 = vadd.f32 %v1515, %v1516
  %v1518 = vrot.slane %v1517, 2
  %v1519 = vadd.f32 %v1517, %v1518
  %v1520 = vrot.slane %v1519, 1
  %v1521 = vadd.f32 %v1519, %v1520
  %v1522 = vmul.f32 %v1509, %v1509
  %v1523 = vmul.f32 %v1510, %v1510
  %v1524 = vmul.f32 %v1511, %v1511
  %v1525 = vadd.f32 %v1522, %v1523
  %v1526 = vsel %vm1513, %v1524, 0.0
  %v1527 = vadd.f32 %v1525, %v1526
  %v1528 = vrot.slane %v1527, 4
  %v1529 = vadd.f32 %v1527, %v1528
  %v1530 = vrot.slane %v1529, 2
  %v1531 = vadd.f32 %v1529, %v1530
  %v1532 = vrot.slane %v1531, 1
  %v1533 = vadd.f32 %v1531, %v1532
  %vm1534 = vcmask 1040384
  %v1535 = vsel %vm1534, %v1521, %v1533
  %1536 = vst [vmem:[%s3] sm:$0x3] %v1535
  // Predicated region
  $region10: #{_lambda_.13} parent=0 // pred_check
    _
  $region11: #{_lambda_.13} parent=0 // pred_check_branch
    %1538 = sbr.rel (0) target = $region13
  $region12: #{_lambda_.13} parent=0 // pred_region
    _
  $region13: #{_lambda_.13} parent=0 // pred_fallthru
    _
  // Predicated region
  $region14: #{_lambda_.13} parent=0 // pred_check
    _
  $region15: #{_lambda_.13} parent=0 // pred_check_branch
    %1540 = sbr.rel (0) target = $region17
  $region16: #{_lambda_.13} parent=0 // pred_region
    _
  $region17: #{_lambda_.13} parent=0 // pred_fallthru
    _
  // Predicated region
  $region18: #{_lambda_.13} parent=0 // pred_check
    _
  $region19: #{_lambda_.13} parent=0 // pred_check_branch
    %1542 = sbr.rel (0) target = $region21
  $region20: #{_lambda_.13} parent=0 // pred_region
    _
  $region21: #{_lambda_.13} parent=0 // pred_fallthru
    _
  // Predicated region
  $region22: #{_lambda_.13} parent=0 // pred_check
    _
  $region23: #{_lambda_.13} parent=0 // pred_check_branch
    %1544 = sbr.rel (0) target = $region25
  $region24: #{_lambda_.13} parent=0 // pred_region
    _
  $region25: #{_lambda_.13} parent=0 // pred_fallthru
    _

// kernel: _lambda_.15
$region0: #{_lambda_.15}
  #allocation0 [shape = 'u32[]', space=smem, size = 0x4, offset = 0x4, fixed_abs, tag = 'smem constant byte address 0x4 - core index']
  #allocation1 [shape = 'u32[72,128]{1,0:T(1,128)}', space=vmem, size = 0x9000, scoped, tag = 'internal scratch']
  %s0 = inlined_call_operand.vmem [shape: bf16[8,2048], index: 0, kind: input, shape index: {}]
  %s1 = inlined_call_operand.vmem [shape: bf16[2048,128], index: 1, kind: input, shape index: {}]
  %s2 = inlined_call_operand.vmem [shape: f32[1,128], index: 2, kind: input, shape index: {}]
  %s3 = inlined_call_operand.vmem [shape: f32[8,128], index: 3, kind: output, shape index: {}]
  %s4 = sld [smem:[#allocation0]]
  $region22: #{_lambda_.15} parent=0
    _
  %s6 = ssub.s32 1, %s4
  %s7 = scalar_select 0, %s6, %s4
  // Predicated region
  $region2: #{_lambda_.15} parent=0 // pred_check
    _
  $region3: #{_lambda_.15} parent=0 // pred_check_branch
    %9 = sbr.rel (0) target = $region5
  $region4: #{_lambda_.15} parent=0 // pred_region
    _
  $region5: #{_lambda_.15} parent=0 // pred_fallthru
    _
  // Predicated region
  $region6: #{_lambda_.15} parent=0 // pred_check
    _
  $region7: #{_lambda_.15} parent=0 // pred_check_branch
    %11 = sbr.rel (0) target = $region9
  $region8: #{_lambda_.15} parent=0 // pred_region
    _
  $region9: #{_lambda_.15} parent=0 // pred_fallthru
    _
  // Predicated region
  $region10: #{_lambda_.15} parent=0 // pred_check
    _
  $region11: #{_lambda_.15} parent=0 // pred_check_branch
    %13 = sbr.rel (0) target = $region13
  $region12: #{_lambda_.15} parent=0 // pred_region
    _
  $region13: #{_lambda_.15} parent=0 // pred_fallthru
    _
  %v14 = vld [vmem:[%s0] sm:$0xff]
  %v15 = vld [vmem:[%s0 + $0x8] sm:$0xff]
  %v16 = vld [vmem:[%s0 + $0x10] sm:$0xff]
  %v17 = vld [vmem:[%s0 + $0x18] sm:$0xff]
  %v18 = vld [vmem:[%s0 + $0x20] sm:$0xff]
  %v19 = vld [vmem:[%s0 + $0x28] sm:$0xff]
  %v20 = vld [vmem:[%s0 + $0x30] sm:$0xff]
  %v21 = vld [vmem:[%s0 + $0x38] sm:$0xff]
  %v22 = vld [vmem:[%s1] sm:$0xf]
  %v23 = vld [vmem:[%s1 + $0x4] sm:$0xf]
  %v24 = vld [vmem:[%s1 + $0x8] sm:$0xf]
  %v25 = vld [vmem:[%s1 + $0xc] sm:$0xf]
  %v26 = vld [vmem:[%s1 + $0x10] sm:$0xf]
  %v27 = vld [vmem:[%s1 + $0x14] sm:$0xf]
  %v28 = vld [vmem:[%s1 + $0x18] sm:$0xf]
  %v29 = vld [vmem:[%s1 + $0x1c] sm:$0xf]
  %v30 = vld [vmem:[%s1 + $0x20] sm:$0xf]
  %v31 = vld [vmem:[%s1 + $0x24] sm:$0xf]
  %v32 = vld [vmem:[%s1 + $0x28] sm:$0xf]
  %v33 = vld [vmem:[%s1 + $0x2c] sm:$0xf]
  %v34 = vld [vmem:[%s1 + $0x30] sm:$0xf]
  %v35 = vld [vmem:[%s1 + $0x34] sm:$0xf]
  %v36 = vld [vmem:[%s1 + $0x38] sm:$0xf]
  %v37 = vld [vmem:[%s1 + $0x3c] sm:$0xf]
  %v38 = vld [vmem:[%s1 + $0x40] sm:$0xf]
  %v39 = vld [vmem:[%s1 + $0x44] sm:$0xf]
  %v40 = vld [vmem:[%s1 + $0x48] sm:$0xf]
  %v41 = vld [vmem:[%s1 + $0x4c] sm:$0xf]
  %v42 = vld [vmem:[%s1 + $0x50] sm:$0xf]
  %v43 = vld [vmem:[%s1 + $0x54] sm:$0xf]
  %v44 = vld [vmem:[%s1 + $0x58] sm:$0xf]
  %v45 = vld [vmem:[%s1 + $0x5c] sm:$0xf]
  %v46 = vld [vmem:[%s1 + $0x60] sm:$0xf]
  %v47 = vld [vmem:[%s1 + $0x64] sm:$0xf]
  %v48 = vld [vmem:[%s1 + $0x68] sm:$0xf]
  %v49 = vld [vmem:[%s1 + $0x6c] sm:$0xf]
  %v50 = vld [vmem:[%s1 + $0x70] sm:$0xf]
  %v51 = vld [vmem:[%s1 + $0x74] sm:$0xf]
  %v52 = vld [vmem:[%s1 + $0x78] sm:$0xf]
  %v53 = vld [vmem:[%s1 + $0x7c] sm:$0xf]
  %v54 = vld [vmem:[%s1 + $0x80] sm:$0xf]
  %v55 = vld [vmem:[%s1 + $0x84] sm:$0xf]
  %v56 = vld [vmem:[%s1 + $0x88] sm:$0xf]
  %v57 = vld [vmem:[%s1 + $0x8c] sm:$0xf]
  %v58 = vld [vmem:[%s1 + $0x90] sm:$0xf]
  %v59 = vld [vmem:[%s1 + $0x94] sm:$0xf]
  %v60 = vld [vmem:[%s1 + $0x98] sm:$0xf]
  %v61 = vld [vmem:[%s1 + $0x9c] sm:$0xf]
  %v62 = vld [vmem:[%s1 + $0xa0] sm:$0xf]
  %v63 = vld [vmem:[%s1 + $0xa4] sm:$0xf]
  %v64 = vld [vmem:[%s1 + $0xa8] sm:$0xf]
  %v65 = vld [vmem:[%s1 + $0xac] sm:$0xf]
  %v66 = vld [vmem:[%s1 + $0xb0] sm:$0xf]
  %v67 = vld [vmem:[%s1 + $0xb4] sm:$0xf]
  %v68 = vld [vmem:[%s1 + $0xb8] sm:$0xf]
  %v69 = vld [vmem:[%s1 + $0xbc] sm:$0xf]
  %v70 = vld [vmem:[%s1 + $0xc0] sm:$0xf]
  %v71 = vld [vmem:[%s1 + $0xc4] sm:$0xf]
  %v72 = vld [vmem:[%s1 + $0xc8] sm:$0xf]
  %v73 = vld [vmem:[%s1 + $0xcc] sm:$0xf]
  %v74 = vld [vmem:[%s1 + $0xd0] sm:$0xf]
  %v75 = vld [vmem:[%s1 + $0xd4] sm:$0xf]
  %v76 = vld [vmem:[%s1 + $0xd8] sm:$0xf]
  %v77 = vld [vmem:[%s1 + $0xdc] sm:$0xf]
  %v78 = vld [vmem:[%s1 + $0xe0] sm:$0xf]
  %v79 = vld [vmem:[%s1 + $0xe4] sm:$0xf]
  %v80 = vld [vmem:[%s1 + $0xe8] sm:$0xf]
  %v81 = vld [vmem:[%s1 + $0xec] sm:$0xf]
  %v82 = vld [vmem:[%s1 + $0xf0] sm:$0xf]
  %v83 = vld [vmem:[%s1 + $0xf4] sm:$0xf]
  %v84 = vld [vmem:[%s1 + $0xf8] sm:$0xf]
  %v85 = vld [vmem:[%s1 + $0xfc] sm:$0xf]
  %v86 = vld [vmem:[%s1 + $0x100] sm:$0xf]
  %v87 = vld [vmem:[%s1 + $0x104] sm:$0xf]
  %v88 = vld [vmem:[%s1 + $0x108] sm:$0xf]
  %v89 = vld [vmem:[%s1 + $0x10c] sm:$0xf]
  %v90 = vld [vmem:[%s1 + $0x110] sm:$0xf]
  %v91 = vld [vmem:[%s1 + $0x114] sm:$0xf]
  %v92 = vld [vmem:[%s1 + $0x118] sm:$0xf]
  %v93 = vld [vmem:[%s1 + $0x11c] sm:$0xf]
  %v94 = vld [vmem:[%s1 + $0x120] sm:$0xf]
  %v95 = vld [vmem:[%s1 + $0x124] sm:$0xf]
  %v96 = vld [vmem:[%s1 + $0x128] sm:$0xf]
  %v97 = vld [vmem:[%s1 + $0x12c] sm:$0xf]
  %v98 = vld [vmem:[%s1 + $0x130] sm:$0xf]
  %v99 = vld [vmem:[%s1 + $0x134] sm:$0xf]
  %v100 = vld [vmem:[%s1 + $0x138] sm:$0xf]
  %v101 = vld [vmem:[%s1 + $0x13c] sm:$0xf]
  %v102 = vld [vmem:[%s1 + $0x140] sm:$0xf]
  %v103 = vld [vmem:[%s1 + $0x144] sm:$0xf]
  %v104 = vld [vmem:[%s1 + $0x148] sm:$0xf]
  %v105 = vld [vmem:[%s1 + $0x14c] sm:$0xf]
  %v106 = vld [vmem:[%s1 + $0x150] sm:$0xf]
  %v107 = vld [vmem:[%s1 + $0x154] sm:$0xf]
  %v108 = vld [vmem:[%s1 + $0x158] sm:$0xf]
  %v109 = vld [vmem:[%s1 + $0x15c] sm:$0xf]
  %v110 = vld [vmem:[%s1 + $0x160] sm:$0xf]
  %v111 = vld [vmem:[%s1 + $0x164] sm:$0xf]
  %v112 = vld [vmem:[%s1 + $0x168] sm:$0xf]
  %v113 = vld [vmem:[%s1 + $0x16c] sm:$0xf]
  %v114 = vld [vmem:[%s1 + $0x170] sm:$0xf]
  %v115 = vld [vmem:[%s1 + $0x174] sm:$0xf]
  %v116 = vld [vmem:[%s1 + $0x178] sm:$0xf]
  %v117 = vld [vmem:[%s1 + $0x17c] sm:$0xf]
  %v118 = vld [vmem:[%s1 + $0x180] sm:$0xf]
  %v119 = vld [vmem:[%s1 + $0x184] sm:$0xf]
  %v120 = vld [vmem:[%s1 + $0x188] sm:$0xf]
  %v121 = vld [vmem:[%s1 + $0x18c] sm:$0xf]
  %v122 = vld [vmem:[%s1 + $0x190] sm:$0xf]
  %v123 = vld [vmem:[%s1 + $0x194] sm:$0xf]
  %v124 = vld [vmem:[%s1 + $0x198] sm:$0xf]
  %v125 = vld [vmem:[%s1 + $0x19c] sm:$0xf]
  %v126 = vld [vmem:[%s1 + $0x1a0] sm:$0xf]
  %v127 = vld [vmem:[%s1 + $0x1a4] sm:$0xf]
  %v128 = vld [vmem:[%s1 + $0x1a8] sm:$0xf]
  %v129 = vld [vmem:[%s1 + $0x1ac] sm:$0xf]
  %v130 = vld [vmem:[%s1 + $0x1b0] sm:$0xf]
  %v131 = vld [vmem:[%s1 + $0x1b4] sm:$0xf]
  %v132 = vld [vmem:[%s1 + $0x1b8] sm:$0xf]
  %v133 = vld [vmem:[%s1 + $0x1bc] sm:$0xf]
  %v134 = vld [vmem:[%s1 + $0x1c0] sm:$0xf]
  %v135 = vld [vmem:[%s1 + $0x1c4] sm:$0xf]
  %v136 = vld [vmem:[%s1 + $0x1c8] sm:$0xf]
  %v137 = vld [vmem:[%s1 + $0x1cc] sm:$0xf]
  %v138 = vld [vmem:[%s1 + $0x1d0] sm:$0xf]
  %v139 = vld [vmem:[%s1 + $0x1d4] sm:$0xf]
  %v140 = vld [vmem:[%s1 + $0x1d8] sm:$0xf]
  %v141 = vld [vmem:[%s1 + $0x1dc] sm:$0xf]
  %v142 = vld [vmem:[%s1 + $0x1e0] sm:$0xf]
  %v143 = vld [vmem:[%s1 + $0x1e4] sm:$0xf]
  %v144 = vld [vmem:[%s1 + $0x1e8] sm:$0xf]
  %v145 = vld [vmem:[%s1 + $0x1ec] sm:$0xf]
  %v146 = vld [vmem:[%s1 + $0x1f0] sm:$0xf]
  %v147 = vld [vmem:[%s1 + $0x1f4] sm:$0xf]
  %v148 = vld [vmem:[%s1 + $0x1f8] sm:$0xf]
  %v149 = vld [vmem:[%s1 + $0x1fc] sm:$0xf]
  %v150 = vld [vmem:[%s1 + $0x200] sm:$0xf]
  %v151 = vld [vmem:[%s1 + $0x204] sm:$0xf]
  %v152 = vld [vmem:[%s1 + $0x208] sm:$0xf]
  %v153 = vld [vmem:[%s1 + $0x20c] sm:$0xf]
  %v154 = vld [vmem:[%s1 + $0x210] sm:$0xf]
  %v155 = vld [vmem:[%s1 + $0x214] sm:$0xf]
  %v156 = vld [vmem:[%s1 + $0x218] sm:$0xf]
  %v157 = vld [vmem:[%s1 + $0x21c] sm:$0xf]
  %v158 = vld [vmem:[%s1 + $0x220] sm:$0xf]
  %v159 = vld [vmem:[%s1 + $0x224] sm:$0xf]
  %v160 = vld [vmem:[%s1 + $0x228] sm:$0xf]
  %v161 = vld [vmem:[%s1 + $0x22c] sm:$0xf]
  %v162 = vld [vmem:[%s1 + $0x230] sm:$0xf]
  %v163 = vld [vmem:[%s1 + $0x234] sm:$0xf]
  %v164 = vld [vmem:[%s1 + $0x238] sm:$0xf]
  %v165 = vld [vmem:[%s1 + $0x23c] sm:$0xf]
  %v166 = vld [vmem:[%s1 + $0x240] sm:$0xf]
  %v167 = vld [vmem:[%s1 + $0x244] sm:$0xf]
  %v168 = vld [vmem:[%s1 + $0x248] sm:$0xf]
  %v169 = vld [vmem:[%s1 + $0x24c] sm:$0xf]
  %v170 = vld [vmem:[%s1 + $0x250] sm:$0xf]
  %v171 = vld [vmem:[%s1 + $0x254] sm:$0xf]
  %v172 = vld [vmem:[%s1 + $0x258] sm:$0xf]
  %v173 = vld [vmem:[%s1 + $0x25c] sm:$0xf]
  %v174 = vld [vmem:[%s1 + $0x260] sm:$0xf]
  %v175 = vld [vmem:[%s1 + $0x264] sm:$0xf]
  %v176 = vld [vmem:[%s1 + $0x268] sm:$0xf]
  %v177 = vld [vmem:[%s1 + $0x26c] sm:$0xf]
  %v178 = vld [vmem:[%s1 + $0x270] sm:$0xf]
  %v179 = vld [vmem:[%s1 + $0x274] sm:$0xf]
  %v180 = vld [vmem:[%s1 + $0x278] sm:$0xf]
  %v181 = vld [vmem:[%s1 + $0x27c] sm:$0xf]
  %v182 = vld [vmem:[%s1 + $0x280] sm:$0xf]
  %v183 = vld [vmem:[%s1 + $0x284] sm:$0xf]
  %v184 = vld [vmem:[%s1 + $0x288] sm:$0xf]
  %v185 = vld [vmem:[%s1 + $0x28c] sm:$0xf]
  %v186 = vld [vmem:[%s1 + $0x290] sm:$0xf]
  %v187 = vld [vmem:[%s1 + $0x294] sm:$0xf]
  %v188 = vld [vmem:[%s1 + $0x298] sm:$0xf]
  %v189 = vld [vmem:[%s1 + $0x29c] sm:$0xf]
  %v190 = vld [vmem:[%s1 + $0x2a0] sm:$0xf]
  %v191 = vld [vmem:[%s1 + $0x2a4] sm:$0xf]
  %v192 = vld [vmem:[%s1 + $0x2a8] sm:$0xf]
  %v193 = vld [vmem:[%s1 + $0x2ac] sm:$0xf]
  %v194 = vld [vmem:[%s1 + $0x2b0] sm:$0xf]
  %v195 = vld [vmem:[%s1 + $0x2b4] sm:$0xf]
  %v196 = vld [vmem:[%s1 + $0x2b8] sm:$0xf]
  %v197 = vld [vmem:[%s1 + $0x2bc] sm:$0xf]
  %v198 = vld [vmem:[%s1 + $0x2c0] sm:$0xf]
  %v199 = vld [vmem:[%s1 + $0x2c4] sm:$0xf]
  %v200 = vld [vmem:[%s1 + $0x2c8] sm:$0xf]
  %v201 = vld [vmem:[%s1 + $0x2cc] sm:$0xf]
  %v202 = vld [vmem:[%s1 + $0x2d0] sm:$0xf]
  %v203 = vld [vmem:[%s1 + $0x2d4] sm:$0xf]
  %v204 = vld [vmem:[%s1 + $0x2d8] sm:$0xf]
  %v205 = vld [vmem:[%s1 + $0x2dc] sm:$0xf]
  %v206 = vld [vmem:[%s1 + $0x2e0] sm:$0xf]
  %v207 = vld [vmem:[%s1 + $0x2e4] sm:$0xf]
  %v208 = vld [vmem:[%s1 + $0x2e8] sm:$0xf]
  %v209 = vld [vmem:[%s1 + $0x2ec] sm:$0xf]
  %v210 = vld [vmem:[%s1 + $0x2f0] sm:$0xf]
  %v211 = vld [vmem:[%s1 + $0x2f4] sm:$0xf]
  %v212 = vld [vmem:[%s1 + $0x2f8] sm:$0xf]
  %v213 = vld [vmem:[%s1 + $0x2fc] sm:$0xf]
  %v214 = vld [vmem:[%s1 + $0x300] sm:$0xf]
  %v215 = vld [vmem:[%s1 + $0x304] sm:$0xf]
  %v216 = vld [vmem:[%s1 + $0x308] sm:$0xf]
  %v217 = vld [vmem:[%s1 + $0x30c] sm:$0xf]
  %v218 = vld [vmem:[%s1 + $0x310] sm:$0xf]
  %v219 = vld [vmem:[%s1 + $0x314] sm:$0xf]
  %v220 = vld [vmem:[%s1 + $0x318] sm:$0xf]
  %v221 = vld [vmem:[%s1 + $0x31c] sm:$0xf]
  %v222 = vld [vmem:[%s1 + $0x320] sm:$0xf]
  %v223 = vld [vmem:[%s1 + $0x324] sm:$0xf]
  %v224 = vld [vmem:[%s1 + $0x328] sm:$0xf]
  %v225 = vld [vmem:[%s1 + $0x32c] sm:$0xf]
  %v226 = vld [vmem:[%s1 + $0x330] sm:$0xf]
  %v227 = vld [vmem:[%s1 + $0x334] sm:$0xf]
  %v228 = vld [vmem:[%s1 + $0x338] sm:$0xf]
  %v229 = vld [vmem:[%s1 + $0x33c] sm:$0xf]
  %v230 = vld [vmem:[%s1 + $0x340] sm:$0xf]
  %v231 = vld [vmem:[%s1 + $0x344] sm:$0xf]
  %v232 = vld [vmem:[%s1 + $0x348] sm:$0xf]
  %v233 = vld [vmem:[%s1 + $0x34c] sm:$0xf]
  %v234 = vld [vmem:[%s1 + $0x350] sm:$0xf]
  %v235 = vld [vmem:[%s1 + $0x354] sm:$0xf]
  %v236 = vld [vmem:[%s1 + $0x358] sm:$0xf]
  %v237 = vld [vmem:[%s1 + $0x35c] sm:$0xf]
  %v238 = vld [vmem:[%s1 + $0x360] sm:$0xf]
  %v239 = vld [vmem:[%s1 + $0x364] sm:$0xf]
  %v240 = vld [vmem:[%s1 + $0x368] sm:$0xf]
  %v241 = vld [vmem:[%s1 + $0x36c] sm:$0xf]
  %v242 = vld [vmem:[%s1 + $0x370] sm:$0xf]
  %v243 = vld [vmem:[%s1 + $0x374] sm:$0xf]
  %v244 = vld [vmem:[%s1 + $0x378] sm:$0xf]
  %v245 = vld [vmem:[%s1 + $0x37c] sm:$0xf]
  %v246 = vld [vmem:[%s1 + $0x380] sm:$0xf]
  %v247 = vld [vmem:[%s1 + $0x384] sm:$0xf]
  %v248 = vld [vmem:[%s1 + $0x388] sm:$0xf]
  %v249 = vld [vmem:[%s1 + $0x38c] sm:$0xf]
  %v250 = vld [vmem:[%s1 + $0x390] sm:$0xf]
  %v251 = vld [vmem:[%s1 + $0x394] sm:$0xf]
  %v252 = vld [vmem:[%s1 + $0x398] sm:$0xf]
  %v253 = vld [vmem:[%s1 + $0x39c] sm:$0xf]
  %v254 = vld [vmem:[%s1 + $0x3a0] sm:$0xf]
  %v255 = vld [vmem:[%s1 + $0x3a4] sm:$0xf]
  %v256 = vld [vmem:[%s1 + $0x3a8] sm:$0xf]
  %v257 = vld [vmem:[%s1 + $0x3ac] sm:$0xf]
  %v258 = vld [vmem:[%s1 + $0x3b0] sm:$0xf]
  %v259 = vld [vmem:[%s1 + $0x3b4] sm:$0xf]
  %v260 = vld [vmem:[%s1 + $0x3b8] sm:$0xf]
  %v261 = vld [vmem:[%s1 + $0x3bc] sm:$0xf]
  %v262 = vld [vmem:[%s1 + $0x3c0] sm:$0xf]
  %v263 = vld [vmem:[%s1 + $0x3c4] sm:$0xf]
  %v264 = vld [vmem:[%s1 + $0x3c8] sm:$0xf]
  %v265 = vld [vmem:[%s1 + $0x3cc] sm:$0xf]
  %v266 = vld [vmem:[%s1 + $0x3d0] sm:$0xf]
  %v267 = vld [vmem:[%s1 + $0x3d4] sm:$0xf]
  %v268 = vld [vmem:[%s1 + $0x3d8] sm:$0xf]
  %v269 = vld [vmem:[%s1 + $0x3dc] sm:$0xf]
  %v270 = vld [vmem:[%s1 + $0x3e0] sm:$0xf]
  %v271 = vld [vmem:[%s1 + $0x3e4] sm:$0xf]
  %v272 = vld [vmem:[%s1 + $0x3e8] sm:$0xf]
  %v273 = vld [vmem:[%s1 + $0x3ec] sm:$0xf]
  %v274 = vld [vmem:[%s1 + $0x3f0] sm:$0xf]
  %v275 = vld [vmem:[%s1 + $0x3f4] sm:$0xf]
  %v276 = vld [vmem:[%s1 + $0x3f8] sm:$0xf]
  %v277 = vld [vmem:[%s1 + $0x3fc] sm:$0xf]
  %v278 = vld [vmem:[%s2] sm:$0x1]
  %v280 = vperm.slane %v278, 0
  %v290 = vunpack.c.l.b16 %v14
  %v291 = vunpack.c.h.b16 %v14
  %v292 = vunpack.c.l.b16 %v15
  %v293 = vunpack.c.h.b16 %v15
  %v294 = vunpack.c.l.b16 %v16
  %v295 = vunpack.c.h.b16 %v16
  %v296 = vunpack.c.l.b16 %v17
  %v297 = vunpack.c.h.b16 %v17
  %v298 = vunpack.c.l.b16 %v18
  %v299 = vunpack.c.h.b16 %v18
  %v300 = vunpack.c.l.b16 %v19
  %v301 = vunpack.c.h.b16 %v19
  %v302 = vunpack.c.l.b16 %v20
  %v303 = vunpack.c.h.b16 %v20
  %v304 = vunpack.c.l.b16 %v21
  %v305 = vunpack.c.h.b16 %v21
  %v306 = vpack.c.b16 %v290, %v290
  %v307 = vpack.c.b16 %v291, %v291
  %v308 = vpack.c.b16 %v292, %v292
  %v309 = vpack.c.b16 %v293, %v293
  %v310 = vpack.c.b16 %v294, %v294
  %v311 = vpack.c.b16 %v295, %v295
  %v312 = vpack.c.b16 %v296, %v296
  %v313 = vpack.c.b16 %v297, %v297
  %v314 = vpack.c.b16 %v298, %v298
  %v315 = vpack.c.b16 %v299, %v299
  %v316 = vpack.c.b16 %v300, %v300
  %v317 = vpack.c.b16 %v301, %v301
  %v318 = vpack.c.b16 %v302, %v302
  %v319 = vpack.c.b16 %v303, %v303
  %v320 = vpack.c.b16 %v304, %v304
  %v321 = vpack.c.b16 %v305, %v305
  %v594 = vunpack.c.l.b16 %v22
  %v595 = vunpack.c.l.b16 %v23
  %v596 = vunpack.c.l.b16 %v24
  %v597 = vunpack.c.l.b16 %v25
  %v598 = vunpack.c.l.b16 %v26
  %v599 = vunpack.c.l.b16 %v27
  %v600 = vunpack.c.l.b16 %v28
  %v601 = vunpack.c.l.b16 %v29
  %v602 = vunpack.c.l.b16 %v30
  %v603 = vunpack.c.l.b16 %v31
  %v604 = vunpack.c.l.b16 %v32
  %v605 = vunpack.c.l.b16 %v33
  %v606 = vunpack.c.l.b16 %v34
  %v607 = vunpack.c.l.b16 %v35
  %v608 = vunpack.c.l.b16 %v36
  %v609 = vunpack.c.l.b16 %v37
  %v610 = vunpack.c.l.b16 %v38
  %v611 = vunpack.c.l.b16 %v39
  %v612 = vunpack.c.l.b16 %v40
  %v613 = vunpack.c.l.b16 %v41
  %v614 = vunpack.c.l.b16 %v42
  %v615 = vunpack.c.l.b16 %v43
  %v616 = vunpack.c.l.b16 %v44
  %v617 = vunpack.c.l.b16 %v45
  %v618 = vunpack.c.l.b16 %v46
  %v619 = vunpack.c.l.b16 %v47
  %v620 = vunpack.c.l.b16 %v48
  %v621 = vunpack.c.l.b16 %v49
  %v622 = vunpack.c.l.b16 %v50
  %v623 = vunpack.c.l.b16 %v51
  %v624 = vunpack.c.l.b16 %v52
  %v625 = vunpack.c.l.b16 %v53
  %v626 = vunpack.c.l.b16 %v54
  %v627 = vunpack.c.l.b16 %v55
  %v628 = vunpack.c.l.b16 %v56
  %v629 = vunpack.c.l.b16 %v57
  %v630 = vunpack.c.l.b16 %v58
  %v631 = vunpack.c.l.b16 %v59
  %v632 = vunpack.c.l.b16 %v60
  %v633 = vunpack.c.l.b16 %v61
  %v634 = vunpack.c.l.b16 %v62
  %v635 = vunpack.c.l.b16 %v63
  %v636 = vunpack.c.l.b16 %v64
  %v637 = vunpack.c.l.b16 %v65
  %v638 = vunpack.c.l.b16 %v66
  %v639 = vunpack.c.l.b16 %v67
  %v640 = vunpack.c.l.b16 %v68
  %v641 = vunpack.c.l.b16 %v69
  %v642 = vunpack.c.l.b16 %v70
  %v643 = vunpack.c.l.b16 %v71
  %v644 = vunpack.c.l.b16 %v72
  %v645 = vunpack.c.l.b16 %v73
  %v646 = vunpack.c.l.b16 %v74
  %v647 = vunpack.c.l.b16 %v75
  %v648 = vunpack.c.l.b16 %v76
  %v649 = vunpack.c.l.b16 %v77
  %v650 = vunpack.c.l.b16 %v78
  %v651 = vunpack.c.l.b16 %v79
  %v652 = vunpack.c.l.b16 %v80
  %v653 = vunpack.c.l.b16 %v81
  %v654 = vunpack.c.l.b16 %v82
  %v655 = vunpack.c.l.b16 %v83
  %v656 = vunpack.c.l.b16 %v84
  %v657 = vunpack.c.l.b16 %v85
  %v658 = vunpack.c.l.b16 %v86
  %v659 = vunpack.c.l.b16 %v87
  %v660 = vunpack.c.l.b16 %v88
  %v661 = vunpack.c.l.b16 %v89
  %v662 = vunpack.c.l.b16 %v90
  %v663 = vunpack.c.l.b16 %v91
  %v664 = vunpack.c.l.b16 %v92
  %v665 = vunpack.c.l.b16 %v93
  %v666 = vunpack.c.l.b16 %v94
  %v667 = vunpack.c.l.b16 %v95
  %v668 = vunpack.c.l.b16 %v96
  %v669 = vunpack.c.l.b16 %v97
  %v670 = vunpack.c.l.b16 %v98
  %v671 = vunpack.c.l.b16 %v99
  %v672 = vunpack.c.l.b16 %v100
  %v673 = vunpack.c.l.b16 %v101
  %v674 = vunpack.c.l.b16 %v102
  %v675 = vunpack.c.l.b16 %v103
  %v676 = vunpack.c.l.b16 %v104
  %v677 = vunpack.c.l.b16 %v105
  %v678 = vunpack.c.l.b16 %v106
  %v679 = vunpack.c.l.b16 %v107
  %v680 = vunpack.c.l.b16 %v108
  %v681 = vunpack.c.l.b16 %v109
  %v682 = vunpack.c.l.b16 %v110
  %v683 = vunpack.c.l.b16 %v111
  %v684 = vunpack.c.l.b16 %v112
  %v685 = vunpack.c.l.b16 %v113
  %v686 = vunpack.c.l.b16 %v114
  %v687 = vunpack.c.l.b16 %v115
  %v688 = vunpack.c.l.b16 %v116
  %v689 = vunpack.c.l.b16 %v117
  %v690 = vunpack.c.l.b16 %v118
  %v691 = vunpack.c.l.b16 %v119
  %v692 = vunpack.c.l.b16 %v120
  %v693 = vunpack.c.l.b16 %v121
  %v694 = vunpack.c.l.b16 %v122
  %v695 = vunpack.c.l.b16 %v123
  %v696 = vunpack.c.l.b16 %v124
  %v697 = vunpack.c.l.b16 %v125
  %v698 = vunpack.c.l.b16 %v126
  %v699 = vunpack.c.l.b16 %v127
  %v700 = vunpack.c.l.b16 %v128
  %v701 = vunpack.c.l.b16 %v129
  %v702 = vunpack.c.l.b16 %v130
  %v703 = vunpack.c.l.b16 %v131
  %v704 = vunpack.c.l.b16 %v132
  %v705 = vunpack.c.l.b16 %v133
  %v706 = vunpack.c.l.b16 %v134
  %v707 = vunpack.c.l.b16 %v135
  %v708 = vunpack.c.l.b16 %v136
  %v709 = vunpack.c.l.b16 %v137
  %v710 = vunpack.c.l.b16 %v138
  %v711 = vunpack.c.l.b16 %v139
  %v712 = vunpack.c.l.b16 %v140
  %v713 = vunpack.c.l.b16 %v141
  %v714 = vunpack.c.l.b16 %v142
  %v715 = vunpack.c.l.b16 %v143
  %v716 = vunpack.c.l.b16 %v144
  %v717 = vunpack.c.l.b16 %v145
  %v718 = vunpack.c.l.b16 %v146
  %v719 = vunpack.c.l.b16 %v147
  %v720 = vunpack.c.l.b16 %v148
  %v721 = vunpack.c.l.b16 %v149
  %v722 = vunpack.c.l.b16 %v150
  %v723 = vunpack.c.l.b16 %v151
  %v724 = vunpack.c.l.b16 %v152
  %v725 = vunpack.c.l.b16 %v153
  %v726 = vunpack.c.l.b16 %v154
  %v727 = vunpack.c.l.b16 %v155
  %v728 = vunpack.c.l.b16 %v156
  %v729 = vunpack.c.l.b16 %v157
  %v730 = vunpack.c.l.b16 %v158
  %v731 = vunpack.c.l.b16 %v159
  %v732 = vunpack.c.l.b16 %v160
  %v733 = vunpack.c.l.b16 %v161
  %v734 = vunpack.c.l.b16 %v162
  %v735 = vunpack.c.l.b16 %v163
  %v736 = vunpack.c.l.b16 %v164
  %v737 = vunpack.c.l.b16 %v165
  %v738 = vunpack.c.l.b16 %v166
  %v739 = vunpack.c.l.b16 %v167
  %v740 = vunpack.c.l.b16 %v168
  %v741 = vunpack.c.l.b16 %v169
  %v742 = vunpack.c.l.b16 %v170
  %v743 = vunpack.c.l.b16 %v171
  %v744 = vunpack.c.l.b16 %v172
  %v745 = vunpack.c.l.b16 %v173
  %v746 = vunpack.c.l.b16 %v174
  %v747 = vunpack.c.l.b16 %v175
  %v748 = vunpack.c.l.b16 %v176
  %v749 = vunpack.c.l.b16 %v177
  %v750 = vunpack.c.l.b16 %v178
  %v751 = vunpack.c.l.b16 %v179
  %v752 = vunpack.c.l.b16 %v180
  %v753 = vunpack.c.l.b16 %v181
  %v754 = vunpack.c.l.b16 %v182
  %v755 = vunpack.c.l.b16 %v183
  %v756 = vunpack.c.l.b16 %v184
  %v757 = vunpack.c.l.b16 %v185
  %v758 = vunpack.c.l.b16 %v186
  %v759 = vunpack.c.l.b16 %v187
  %v760 = vunpack.c.l.b16 %v188
  %v761 = vunpack.c.l.b16 %v189
  %v762 = vunpack.c.l.b16 %v190
  %v763 = vunpack.c.l.b16 %v191
  %v764 = vunpack.c.l.b16 %v192
  %v765 = vunpack.c.l.b16 %v193
  %v766 = vunpack.c.l.b16 %v194
  %v767 = vunpack.c.l.b16 %v195
  %v768 = vunpack.c.l.b16 %v196
  %v769 = vunpack.c.l.b16 %v197
  %v770 = vunpack.c.l.b16 %v198
  %v771 = vunpack.c.l.b16 %v199
  %v772 = vunpack.c.l.b16 %v200
  %v773 = vunpack.c.l.b16 %v201
  %v774 = vunpack.c.l.b16 %v202
  %v775 = vunpack.c.l.b16 %v203
  %v776 = vunpack.c.l.b16 %v204
  %v777 = vunpack.c.l.b16 %v205
  %v778 = vunpack.c.l.b16 %v206
  %v779 = vunpack.c.l.b16 %v207
  %v780 = vunpack.c.l.b16 %v208
  %v781 = vunpack.c.l.b16 %v209
  %v782 = vunpack.c.l.b16 %v210
  %v783 = vunpack.c.l.b16 %v211
  %v784 = vunpack.c.l.b16 %v212
  %v785 = vunpack.c.l.b16 %v213
  %v786 = vunpack.c.l.b16 %v214
  %v787 = vunpack.c.l.b16 %v215
  %v788 = vunpack.c.l.b16 %v216
  %v789 = vunpack.c.l.b16 %v217
  %v790 = vunpack.c.l.b16 %v218
  %v791 = vunpack.c.l.b16 %v219
  %v792 = vunpack.c.l.b16 %v220
  %v793 = vunpack.c.l.b16 %v221
  %v794 = vunpack.c.l.b16 %v222
  %v795 = vunpack.c.l.b16 %v223
  %v796 = vunpack.c.l.b16 %v224
  %v797 = vunpack.c.l.b16 %v225
  %v798 = vunpack.c.l.b16 %v226
  %v799 = vunpack.c.l.b16 %v227
  %v800 = vunpack.c.l.b16 %v228
  %v801 = vunpack.c.l.b16 %v229
  %v802 = vunpack.c.l.b16 %v230
  %v803 = vunpack.c.l.b16 %v231
  %v804 = vunpack.c.l.b16 %v232
  %v805 = vunpack.c.l.b16 %v233
  %v806 = vunpack.c.l.b16 %v234
  %v807 = vunpack.c.l.b16 %v235
  %v808 = vunpack.c.l.b16 %v236
  %v809 = vunpack.c.l.b16 %v237
  %v810 = vunpack.c.l.b16 %v238
  %v811 = vunpack.c.l.b16 %v239
  %v812 = vunpack.c.l.b16 %v240
  %v813 = vunpack.c.l.b16 %v241
  %v814 = vunpack.c.l.b16 %v242
  %v815 = vunpack.c.l.b16 %v243
  %v816 = vunpack.c.l.b16 %v244
  %v817 = vunpack.c.l.b16 %v245
  %v818 = vunpack.c.l.b16 %v246
  %v819 = vunpack.c.l.b16 %v247
  %v820 = vunpack.c.l.b16 %v248
  %v821 = vunpack.c.l.b16 %v249
  %v822 = vunpack.c.l.b16 %v250
  %v823 = vunpack.c.l.b16 %v251
  %v824 = vunpack.c.l.b16 %v252
  %v825 = vunpack.c.l.b16 %v253
  %v826 = vunpack.c.l.b16 %v254
  %v827 = vunpack.c.l.b16 %v255
  %v828 = vunpack.c.l.b16 %v256
  %v829 = vunpack.c.l.b16 %v257
  %v830 = vunpack.c.l.b16 %v258
  %v831 = vunpack.c.l.b16 %v259
  %v832 = vunpack.c.l.b16 %v260
  %v833 = vunpack.c.l.b16 %v261
  %v834 = vunpack.c.l.b16 %v262
  %v835 = vunpack.c.l.b16 %v263
  %v836 = vunpack.c.l.b16 %v264
  %v837 = vunpack.c.l.b16 %v265
  %v838 = vunpack.c.l.b16 %v266
  %v839 = vunpack.c.l.b16 %v267
  %v840 = vunpack.c.l.b16 %v268
  %v841 = vunpack.c.l.b16 %v269
  %v842 = vunpack.c.l.b16 %v270
  %v843 = vunpack.c.l.b16 %v271
  %v844 = vunpack.c.l.b16 %v272
  %v845 = vunpack.c.l.b16 %v273
  %v846 = vunpack.c.l.b16 %v274
  %v847 = vunpack.c.l.b16 %v275
  %v848 = vunpack.c.l.b16 %v276
  %v849 = vunpack.c.l.b16 %v277
  %v850 = vpack.c.b16 %v595, %v594
  %v851 = vpack.c.b16 %v597, %v596
  %v852 = vpack.c.b16 %v599, %v598
  %v853 = vpack.c.b16 %v601, %v600
  %v854 = vpack.c.b16 %v603, %v602
  %v855 = vpack.c.b16 %v605, %v604
  %v856 = vpack.c.b16 %v607, %v606
  %v857 = vpack.c.b16 %v609, %v608
  %v858 = vpack.c.b16 %v611, %v610
  %v859 = vpack.c.b16 %v613, %v612
  %v860 = vpack.c.b16 %v615, %v614
  %v861 = vpack.c.b16 %v617, %v616
  %v862 = vpack.c.b16 %v619, %v618
  %v863 = vpack.c.b16 %v621, %v620
  %v864 = vpack.c.b16 %v623, %v622
  %v865 = vpack.c.b16 %v625, %v624
  %v866 = vpack.c.b16 %v627, %v626
  %v867 = vpack.c.b16 %v629, %v628
  %v868 = vpack.c.b16 %v631, %v630
  %v869 = vpack.c.b16 %v633, %v632
  %v870 = vpack.c.b16 %v635, %v634
  %v871 = vpack.c.b16 %v637, %v636
  %v872 = vpack.c.b16 %v639, %v638
  %v873 = vpack.c.b16 %v641, %v640
  %v874 = vpack.c.b16 %v643, %v642
  %v875 = vpack.c.b16 %v645, %v644
  %v876 = vpack.c.b16 %v647, %v646
  %v877 = vpack.c.b16 %v649, %v648
  %v878 = vpack.c.b16 %v651, %v650
  %v879 = vpack.c.b16 %v653, %v652
  %v880 = vpack.c.b16 %v655, %v654
  %v881 = vpack.c.b16 %v657, %v656
  %v882 = vpack.c.b16 %v659, %v658
  %v883 = vpack.c.b16 %v661, %v660
  %v884 = vpack.c.b16 %v663, %v662
  %v885 = vpack.c.b16 %v665, %v664
  %v886 = vpack.c.b16 %v667, %v666
  %v887 = vpack.c.b16 %v669, %v668
  %v888 = vpack.c.b16 %v671, %v670
  %v889 = vpack.c.b16 %v673, %v672
  %v890 = vpack.c.b16 %v675, %v674
  %v891 = vpack.c.b16 %v677, %v676
  %v892 = vpack.c.b16 %v679, %v678
  %v893 = vpack.c.b16 %v681, %v680
  %v894 = vpack.c.b16 %v683, %v682
  %v895 = vpack.c.b16 %v685, %v684
  %v896 = vpack.c.b16 %v687, %v686
  %v897 = vpack.c.b16 %v689, %v688
  %v898 = vpack.c.b16 %v691, %v690
  %v899 = vpack.c.b16 %v693, %v692
  %v900 = vpack.c.b16 %v695, %v694
  %v901 = vpack.c.b16 %v697, %v696
  %v902 = vpack.c.b16 %v699, %v698
  %v903 = vpack.c.b16 %v701, %v700
  %v904 = vpack.c.b16 %v703, %v702
  %v905 = vpack.c.b16 %v705, %v704
  %v906 = vpack.c.b16 %v707, %v706
  %v907 = vpack.c.b16 %v709, %v708
  %v908 = vpack.c.b16 %v711, %v710
  %v909 = vpack.c.b16 %v713, %v712
  %v910 = vpack.c.b16 %v715, %v714
  %v911 = vpack.c.b16 %v717, %v716
  %v912 = vpack.c.b16 %v719, %v718
  %v913 = vpack.c.b16 %v721, %v720
  %v914 = vpack.c.b16 %v723, %v722
  %v915 = vpack.c.b16 %v725, %v724
  %v916 = vpack.c.b16 %v727, %v726
  %v917 = vpack.c.b16 %v729, %v728
  %v918 = vpack.c.b16 %v731, %v730
  %v919 = vpack.c.b16 %v733, %v732
  %v920 = vpack.c.b16 %v735, %v734
  %v921 = vpack.c.b16 %v737, %v736
  %v922 = vpack.c.b16 %v739, %v738
  %v923 = vpack.c.b16 %v741, %v740
  %v924 = vpack.c.b16 %v743, %v742
  %v925 = vpack.c.b16 %v745, %v744
  %v926 = vpack.c.b16 %v747, %v746
  %v927 = vpack.c.b16 %v749, %v748
  %v928 = vpack.c.b16 %v751, %v750
  %v929 = vpack.c.b16 %v753, %v752
  %v930 = vpack.c.b16 %v755, %v754
  %v931 = vpack.c.b16 %v757, %v756
  %v932 = vpack.c.b16 %v759, %v758
  %v933 = vpack.c.b16 %v761, %v760
  %v934 = vpack.c.b16 %v763, %v762
  %v935 = vpack.c.b16 %v765, %v764
  %v936 = vpack.c.b16 %v767, %v766
  %v937 = vpack.c.b16 %v769, %v768
  %v938 = vpack.c.b16 %v771, %v770
  %v939 = vpack.c.b16 %v773, %v772
  %v940 = vpack.c.b16 %v775, %v774
  %v941 = vpack.c.b16 %v777, %v776
  %v942 = vpack.c.b16 %v779, %v778
  %v943 = vpack.c.b16 %v781, %v780
  %v944 = vpack.c.b16 %v783, %v782
  %v945 = vpack.c.b16 %v785, %v784
  %v946 = vpack.c.b16 %v787, %v786
  %v947 = vpack.c.b16 %v789, %v788
  %v948 = vpack.c.b16 %v791, %v790
  %v949 = vpack.c.b16 %v793, %v792
  %v950 = vpack.c.b16 %v795, %v794
  %v951 = vpack.c.b16 %v797, %v796
  %v952 = vpack.c.b16 %v799, %v798
  %v953 = vpack.c.b16 %v801, %v800
  %v954 = vpack.c.b16 %v803, %v802
  %v955 = vpack.c.b16 %v805, %v804
  %v956 = vpack.c.b16 %v807, %v806
  %v957 = vpack.c.b16 %v809, %v808
  %v958 = vpack.c.b16 %v811, %v810
  %v959 = vpack.c.b16 %v813, %v812
  %v960 = vpack.c.b16 %v815, %v814
  %v961 = vpack.c.b16 %v817, %v816
  %v962 = vpack.c.b16 %v819, %v818
  %v963 = vpack.c.b16 %v821, %v820
  %v964 = vpack.c.b16 %v823, %v822
  %v965 = vpack.c.b16 %v825, %v824
  %v966 = vpack.c.b16 %v827, %v826
  %v967 = vpack.c.b16 %v829, %v828
  %v968 = vpack.c.b16 %v831, %v830
  %v969 = vpack.c.b16 %v833, %v832
  %v970 = vpack.c.b16 %v835, %v834
  %v971 = vpack.c.b16 %v837, %v836
  %v972 = vpack.c.b16 %v839, %v838
  %v973 = vpack.c.b16 %v841, %v840
  %v974 = vpack.c.b16 %v843, %v842
  %v975 = vpack.c.b16 %v845, %v844
  %v976 = vpack.c.b16 %v847, %v846
  %v977 = vpack.c.b16 %v849, %v848
  %1106 = vmatpush.bf16.msra.mxu0 %v857
  %1107 = vmatpush.bf16.msra.mxu0 %v856
  %1108 = vmatpush.bf16.msra.mxu0 %v855
  %1109 = vmatpush.bf16.msra.mxu0 %v854
  %1110 = vmatpush.bf16.msra.mxu0 %v853
  %1111 = vmatpush.bf16.msra.mxu0 %v852
  %1112 = vmatpush.bf16.msra.mxu0 %v851
  %1113 = vmatpush.bf16.msra.mxu0 %v850
  %1114 = vmatmul.bf16.gmra.mxu0 %v306
  %v1115 = vpop.f32.mrf.mxu0
  %v1116 = vadd.f32 %v280, %v1115
  %v1117 = vpop.f32.mrf.mxu0
  %1118 = vdwg.mxu0
  %1119 = vmatpush.bf16.msra.mxu0 %v865
  %1120 = vmatpush.bf16.msra.mxu0 %v864
  %1121 = vmatpush.bf16.msra.mxu0 %v863
  %1122 = vmatpush.bf16.msra.mxu0 %v862
  %1123 = vmatpush.bf16.msra.mxu0 %v861
  %1124 = vmatpush.bf16.msra.mxu0 %v860
  %1125 = vmatpush.bf16.msra.mxu0 %v859
  %1126 = vmatpush.bf16.msra.mxu0 %v858
  %1127 = vmatmul.bf16.gmra.mxu0 %v307
  %v1128 = vpop.f32.mrf.mxu0
  %v1129 = vadd.f32 %v1116, %v1128
  %v1130 = vpop.f32.mrf.mxu0
  %1131 = vdwg.mxu0
  %1132 = vmatpush.bf16.msra.mxu0 %v873
  %1133 = vmatpush.bf16.msra.mxu0 %v872
  %1134 = vmatpush.bf16.msra.mxu0 %v871
  %1135 = vmatpush.bf16.msra.mxu0 %v870
  %1136 = vmatpush.bf16.msra.mxu0 %v869
  %1137 = vmatpush.bf16.msra.mxu0 %v868
  %1138 = vmatpush.bf16.msra.mxu0 %v867
  %1139 = vmatpush.bf16.msra.mxu0 %v866
  %1140 = vmatmul.bf16.gmra.mxu0 %v308
  %v1141 = vpop.f32.mrf.mxu0
  %v1142 = vadd.f32 %v1129, %v1141
  %v1143 = vpop.f32.mrf.mxu0
  %1144 = vdwg.mxu0
  %1145 = vmatpush.bf16.msra.mxu0 %v881
  %1146 = vmatpush.bf16.msra.mxu0 %v880
  %1147 = vmatpush.bf16.msra.mxu0 %v879
  %1148 = vmatpush.bf16.msra.mxu0 %v878
  %1149 = vmatpush.bf16.msra.mxu0 %v877
  %1150 = vmatpush.bf16.msra.mxu0 %v876
  %1151 = vmatpush.bf16.msra.mxu0 %v875
  %1152 = vmatpush.bf16.msra.mxu0 %v874
  %1153 = vmatmul.bf16.gmra.mxu0 %v309
  %v1154 = vpop.f32.mrf.mxu0
  %v1155 = vadd.f32 %v1142, %v1154
  %v1156 = vpop.f32.mrf.mxu0
  %1157 = vdwg.mxu0
  %1158 = vmatpush.bf16.msra.mxu0 %v889
  %1159 = vmatpush.bf16.msra.mxu0 %v888
  %1160 = vmatpush.bf16.msra.mxu0 %v887
  %1161 = vmatpush.bf16.msra.mxu0 %v886
  %1162 = vmatpush.bf16.msra.mxu0 %v885
  %1163 = vmatpush.bf16.msra.mxu0 %v884
  %1164 = vmatpush.bf16.msra.mxu0 %v883
  %1165 = vmatpush.bf16.msra.mxu0 %v882
  %1166 = vmatmul.bf16.gmra.mxu0 %v310
  %v1167 = vpop.f32.mrf.mxu0
  %v1168 = vadd.f32 %v1155, %v1167
  %v1169 = vpop.f32.mrf.mxu0
  %1170 = vdwg.mxu0
  %1171 = vmatpush.bf16.msra.mxu0 %v897
  %1172 = vmatpush.bf16.msra.mxu0 %v896
  %1173 = vmatpush.bf16.msra.mxu0 %v895
  %1174 = vmatpush.bf16.msra.mxu0 %v894
  %1175 = vmatpush.bf16.msra.mxu0 %v893
  %1176 = vmatpush.bf16.msra.mxu0 %v892
  %1177 = vmatpush.bf16.msra.mxu0 %v891
  %1178 = vmatpush.bf16.msra.mxu0 %v890
  %1179 = vmatmul.bf16.gmra.mxu0 %v311
  %v1180 = vpop.f32.mrf.mxu0
  %v1181 = vadd.f32 %v1168, %v1180
  %v1182 = vpop.f32.mrf.mxu0
  %1183 = vdwg.mxu0
  %1184 = vmatpush.bf16.msra.mxu0 %v905
  %1185 = vmatpush.bf16.msra.mxu0 %v904
  %1186 = vmatpush.bf16.msra.mxu0 %v903
  %1187 = vmatpush.bf16.msra.mxu0 %v902
  %1188 = vmatpush.bf16.msra.mxu0 %v901
  %1189 = vmatpush.bf16.msra.mxu0 %v900
  %1190 = vmatpush.bf16.msra.mxu0 %v899
  %1191 = vmatpush.bf16.msra.mxu0 %v898
  %1192 = vmatmul.bf16.gmra.mxu0 %v312
  %v1193 = vpop.f32.mrf.mxu0
  %v1194 = vadd.f32 %v1181, %v1193
  %v1195 = vpop.f32.mrf.mxu0
  %1196 = vdwg.mxu0
  %1197 = vmatpush.bf16.msra.mxu0 %v913
  %1198 = vmatpush.bf16.msra.mxu0 %v912
  %1199 = vmatpush.bf16.msra.mxu0 %v911
  %1200 = vmatpush.bf16.msra.mxu0 %v910
  %1201 = vmatpush.bf16.msra.mxu0 %v909
  %1202 = vmatpush.bf16.msra.mxu0 %v908
  %1203 = vmatpush.bf16.msra.mxu0 %v907
  %1204 = vmatpush.bf16.msra.mxu0 %v906
  %1205 = vmatmul.bf16.gmra.mxu0 %v313
  %v1206 = vpop.f32.mrf.mxu0
  %v1207 = vadd.f32 %v1194, %v1206
  %v1208 = vpop.f32.mrf.mxu0
  %1209 = vdwg.mxu0
  %1210 = vmatpush.bf16.msra.mxu0 %v921
  %1211 = vmatpush.bf16.msra.mxu0 %v920
  %1212 = vmatpush.bf16.msra.mxu0 %v919
  %1213 = vmatpush.bf16.msra.mxu0 %v918
  %1214 = vmatpush.bf16.msra.mxu0 %v917
  %1215 = vmatpush.bf16.msra.mxu0 %v916
  %1216 = vmatpush.bf16.msra.mxu0 %v915
  %1217 = vmatpush.bf16.msra.mxu0 %v914
  %1218 = vmatmul.bf16.gmra.mxu0 %v314
  %v1219 = vpop.f32.mrf.mxu0
  %v1220 = vadd.f32 %v1207, %v1219
  %v1221 = vpop.f32.mrf.mxu0
  %1222 = vdwg.mxu0
  %1223 = vmatpush.bf16.msra.mxu0 %v929
  %1224 = vmatpush.bf16.msra.mxu0 %v928
  %1225 = vmatpush.bf16.msra.mxu0 %v927
  %1226 = vmatpush.bf16.msra.mxu0 %v926
  %1227 = vmatpush.bf16.msra.mxu0 %v925
  %1228 = vmatpush.bf16.msra.mxu0 %v924
  %1229 = vmatpush.bf16.msra.mxu0 %v923
  %1230 = vmatpush.bf16.msra.mxu0 %v922
  %1231 = vmatmul.bf16.gmra.mxu0 %v315
  %v1232 = vpop.f32.mrf.mxu0
  %v1233 = vadd.f32 %v1220, %v1232
  %v1234 = vpop.f32.mrf.mxu0
  %1235 = vdwg.mxu0
  %1236 = vmatpush.bf16.msra.mxu0 %v937
  %1237 = vmatpush.bf16.msra.mxu0 %v936
  %1238 = vmatpush.bf16.msra.mxu0 %v935
  %1239 = vmatpush.bf16.msra.mxu0 %v934
  %1240 = vmatpush.bf16.msra.mxu0 %v933
  %1241 = vmatpush.bf16.msra.mxu0 %v932
  %1242 = vmatpush.bf16.msra.mxu0 %v931
  %1243 = vmatpush.bf16.msra.mxu0 %v930
  %1244 = vmatmul.bf16.gmra.mxu0 %v316
  %v1245 = vpop.f32.mrf.mxu0
  %v1246 = vadd.f32 %v1233, %v1245
  %v1247 = vpop.f32.mrf.mxu0
  %1248 = vdwg.mxu0
  %1249 = vmatpush.bf16.msra.mxu0 %v945
  %1250 = vmatpush.bf16.msra.mxu0 %v944
  %1251 = vmatpush.bf16.msra.mxu0 %v943
  %1252 = vmatpush.bf16.msra.mxu0 %v942
  %1253 = vmatpush.bf16.msra.mxu0 %v941
  %1254 = vmatpush.bf16.msra.mxu0 %v940
  %1255 = vmatpush.bf16.msra.mxu0 %v939
  %1256 = vmatpush.bf16.msra.mxu0 %v938
  %1257 = vmatmul.bf16.gmra.mxu0 %v317
  %v1258 = vpop.f32.mrf.mxu0
  %v1259 = vadd.f32 %v1246, %v1258
  %v1260 = vpop.f32.mrf.mxu0
  %1261 = vdwg.mxu0
  %1262 = vmatpush.bf16.msra.mxu0 %v953
  %1263 = vmatpush.bf16.msra.mxu0 %v952
  %1264 = vmatpush.bf16.msra.mxu0 %v951
  %1265 = vmatpush.bf16.msra.mxu0 %v950
  %1266 = vmatpush.bf16.msra.mxu0 %v949
  %1267 = vmatpush.bf16.msra.mxu0 %v948
  %1268 = vmatpush.bf16.msra.mxu0 %v947
  %1269 = vmatpush.bf16.msra.mxu0 %v946
  %1270 = vmatmul.bf16.gmra.mxu0 %v318
  %v1271 = vpop.f32.mrf.mxu0
  %v1272 = vadd.f32 %v1259, %v1271
  %v1273 = vpop.f32.mrf.mxu0
  %1274 = vdwg.mxu0
  %1275 = vmatpush.bf16.msra.mxu0 %v961
  %1276 = vmatpush.bf16.msra.mxu0 %v960
  %1277 = vmatpush.bf16.msra.mxu0 %v959
  %1278 = vmatpush.bf16.msra.mxu0 %v958
  %1279 = vmatpush.bf16.msra.mxu0 %v957
  %1280 = vmatpush.bf16.msra.mxu0 %v956
  %1281 = vmatpush.bf16.msra.mxu0 %v955
  %1282 = vmatpush.bf16.msra.mxu0 %v954
  %1283 = vmatmul.bf16.gmra.mxu0 %v319
  %v1284 = vpop.f32.mrf.mxu0
  %v1285 = vadd.f32 %v1272, %v1284
  %v1286 = vpop.f32.mrf.mxu0
  %1287 = vdwg.mxu0
  %1288 = vmatpush.bf16.msra.mxu0 %v969
  %1289 = vmatpush.bf16.msra.mxu0 %v968
  %1290 = vmatpush.bf16.msra.mxu0 %v967
  %1291 = vmatpush.bf16.msra.mxu0 %v966
  %1292 = vmatpush.bf16.msra.mxu0 %v965
  %1293 = vmatpush.bf16.msra.mxu0 %v964
  %1294 = vmatpush.bf16.msra.mxu0 %v963
  %1295 = vmatpush.bf16.msra.mxu0 %v962
  %1296 = vmatmul.bf16.gmra.mxu0 %v320
  %v1297 = vpop.f32.mrf.mxu0
  %v1298 = vadd.f32 %v1285, %v1297
  %v1299 = vpop.f32.mrf.mxu0
  %1300 = vdwg.mxu0
  %1301 = vmatpush.bf16.msra.mxu0 %v977
  %1302 = vmatpush.bf16.msra.mxu0 %v976
  %1303 = vmatpush.bf16.msra.mxu0 %v975
  %1304 = vmatpush.bf16.msra.mxu0 %v974
  %1305 = vmatpush.bf16.msra.mxu0 %v973
  %1306 = vmatpush.bf16.msra.mxu0 %v972
  %1307 = vmatpush.bf16.msra.mxu0 %v971
  %1308 = vmatpush.bf16.msra.mxu0 %v970
  %1309 = vmatmul.bf16.gmra.mxu0 %v321
  %v1310 = vpop.f32.mrf.mxu0
  %v1311 = vadd.f32 %v1298, %v1310
  %v1312 = vpop.f32.mrf.mxu0
  %1313 = vdwg.mxu0
  %1314 = vst [vmem:[%s3] sm:$0xff] %v1311
  // Predicated region
  $region14: #{_lambda_.15} parent=0 // pred_check
    _
  $region15: #{_lambda_.15} parent=0 // pred_check_branch
    %1316 = sbr.rel (0) target = $region17
  $region16: #{_lambda_.15} parent=0 // pred_region
    _
  $region17: #{_lambda_.15} parent=0 // pred_fallthru
    _
  // Predicated region
  $region18: #{_lambda_.15} parent=0 // pred_check
    _
  $region19: #{_lambda_.15} parent=0 // pred_check_branch
    %1318 = sbr.rel (0) target = $region21
  $region20: #{_lambda_.15} parent=0 // pred_region
    _
  $region21: #{_lambda_.15} parent=0 // pred_fallthru
    _

</llo_original>
